<compile_context>
chip_gen: v7x
topology: tpu7x:2x2x1
jax: 0.10.0
libtpu: 0.0.40
codegen_flags: <defaults>
</compile_context>

<pallas_src>
import jax
import jax.numpy as jnp
from jax import lax
from jax.experimental import pallas as pl
from jax.experimental.pallas import tpu as pltpu

EPS = 1e-5  # nn.BatchNorm2d default eps


# ---------------- Pallas kernels ----------------

def conv1x1_stats_kernel(x_ref, w_ref, y_ref, ssum_ref, ssq_ref):
    # conv1: y = x @ w1 (bf16 MXU, f32 acc) + per-tile channel sum / sumsq.
    y = jnp.dot(x_ref[...].astype(jnp.bfloat16), w_ref[...],
                preferred_element_type=jnp.float32)
    y_ref[...] = y.astype(y_ref.dtype)
    c = y.shape[-1]
    ssum_ref[...] = jnp.sum(y, axis=0).reshape(1, 1, c)
    ssq_ref[...] = jnp.sum(y * y, axis=0).reshape(1, 1, c)


def bn_relu_conv1x1_stats_kernel(y_in_ref, sc_ref, sh_ref, w_ref,
                                 y_out_ref, ssum_ref, ssq_ref):
    # bn2 (folded scale/shift) + relu + conv3 (1x1) + per-tile channel stats.
    h = jnp.maximum(
        y_in_ref[...].astype(jnp.float32) * sc_ref[...] + sh_ref[...], 0.0)
    y = jnp.dot(h.astype(jnp.bfloat16), w_ref[...],
                preferred_element_type=jnp.float32)
    y_out_ref[...] = y.astype(y_out_ref.dtype)
    c = y.shape[-1]
    ssum_ref[...] = jnp.sum(y, axis=0).reshape(1, 1, c)
    ssq_ref[...] = jnp.sum(y * y, axis=0).reshape(1, 1, c)


def make_conv3x3_fused_kernel(H, W, C, TB):
    # bn1 (scale/shift) + relu + zero-pad + 3x3 conv (row-band tiled,
    # 9 accumulated K=C dots) + per-image channel stats.
    nb = H // TB

    def kernel(y1_ref, sc_ref, sh_ref, w_ref, y2_ref, ssum_ref, ssq_ref,
               xp_ref):
        # bn1 epilogue as one FMA per element, then ReLU; conv input in bf16.
        h = jnp.maximum(
            y1_ref[0].astype(jnp.float32) * sc_ref[...] + sh_ref[...], 0.0)

        # Zero only the thin pad border every step (cheap; safe under a
        # "parallel" grid where a program_id==0 one-off init would not run on
        # every TensorCore), then write the interior symmetrically padded.
        zrow = jnp.zeros((1, W + 2, C), xp_ref.dtype)
        zcol = jnp.zeros((H + 2, 1, C), xp_ref.dtype)
        xp_ref[0:1] = zrow
        xp_ref[H + 1:H + 2] = zrow
        xp_ref[:, 0:1, :] = zcol
        xp_ref[:, W + 1:W + 2, :] = zcol
        xp_ref[1:H + 1, 1:W + 1, :] = h.astype(xp_ref.dtype)

        def band(b, carry):
            ssum, ssq = carry
            r0 = pl.multiple_of(b * TB, TB)
            acc = jnp.zeros((TB * W, C), jnp.float32)
            for ky in range(3):
                for kx in range(3):
                    tap = xp_ref[pl.ds(r0 + ky, TB), pl.ds(kx, W), :]
                    acc = acc + jnp.dot(tap.reshape(TB * W, C), w_ref[ky, kx],
                                        preferred_element_type=jnp.float32)
            y2_ref[0:1, pl.ds(r0, TB), :, :] = (
                acc.reshape(1, TB, W, C).astype(y2_ref.dtype))
            ssum = ssum + jnp.sum(acc, axis=0, keepdims=True)
            ssq = ssq + jnp.sum(acc * acc, axis=0, keepdims=True)
            return ssum, ssq

        ssum, ssq = lax.fori_loop(
            0, nb, band,
            (jnp.zeros((1, C), jnp.float32), jnp.zeros((1, C), jnp.float32)))
        ssum_ref[...] = ssum.reshape(1, 1, C)
        ssq_ref[...] = ssq.reshape(1, 1, C)

    return kernel


def bn_add_relu_kernel(y_ref, sc_ref, sh_ref, res_ref, o_ref):
    # bn3 (scale/shift) + residual add + relu.
    o_ref[...] = jnp.maximum(
        y_ref[...].astype(jnp.float32) * sc_ref[...] + sh_ref[...]
        + res_ref[...], 0.0)


# ---------------- wrapper helpers ----------------

def _vmem_capacity_bytes():
    # Generation-aware VMEM capacity; conservative (v7x-sized) fallback.
    try:
        info = pltpu.get_tpu_info()
        cap = int(getattr(info, "vmem_capacity_bytes", 0) or 0)
        if cap > 0:
            return cap
    except Exception:
        pass
    return 64 << 20


def _pick_tm(m, row_bytes, per_buffer_budget):
    # Largest row-tile that divides M and whose biggest double-buffered
    # operand stays within the per-generation per-buffer budget.
    for tm in (4096, 2048, 1024, 512, 256, 128, 64, 32, 16, 8):
        if m % tm == 0 and 2 * tm * row_bytes <= per_buffer_budget:
            return tm
    return m  # TODO(synk): M with no small divisor -> whole-array block


def _pick_tb(H, W, C):
    # Row-band height for the 3x3 conv: keep the per-band f32 accumulator and
    # tap temporaries small so the LLO scheduler can overlap MXU and loads.
    for tb in (16, 8, 4, 2, 1):
        if H % tb == 0 and tb * W * C * 4 * 4 <= (2 << 20):
            return tb
    return 1


def _cparams(semantics, working_bytes, vmem_cap):
    # Never set the limit to the full physical VMEM (headroom for compiler
    # scratch / double buffers), but allow >64 MiB on 128 MiB parts.
    cap = max(vmem_cap - (16 << 20), 32 << 20)
    limit = int(min(max(3 * working_bytes + (8 << 20), 32 << 20), cap))
    return pltpu.CompilerParams(dimension_semantics=semantics,
                                vmem_limit_bytes=limit)


def _bn_scale_shift(ssum_g, ssq_g, n_per, gamma, beta):
    # Chan-style merge of per-tile partial (sum, sumsq) into (scale, shift).
    # Each of the G tiles covers exactly n_per rows.
    g = ssum_g.shape[0]
    total = g * n_per
    mean_t = ssum_g / n_per                                   # (G, C)
    m2_t = jnp.maximum(ssq_g - ssum_g * mean_t, 0.0)          # per-tile M2
    mean = jnp.mean(mean_t, axis=0, keepdims=True)            # (1, C)
    m2 = (jnp.sum(m2_t, axis=0, keepdims=True)
          + n_per * jnp.sum(jnp.square(mean_t - mean), axis=0, keepdims=True))
    var = m2 / total
    scale = gamma.reshape(1, -1) * lax.rsqrt(var + EPS)
    shift = beta.reshape(1, -1) - mean * scale
    return scale, shift


# ---------------- public wrapper ----------------

@jax.jit
def bottleneck_pallas(x_nchw, params):
    # TODO(synk): stride>1 and a non-None `downsample` branch are not
    # implemented (this instantiation uses stride=1, downsample=None).
    N, Cin, H, W = x_nchw.shape
    planes = params["w1"].shape[1]
    assert Cin == planes * 4
    f32, bf16 = jnp.float32, jnp.bfloat16

    x_nhwc = jnp.transpose(x_nchw, (0, 2, 3, 1)).astype(f32)
    M = N * H * W
    x2d = x_nhwc.reshape(M, Cin)

    w1 = params["w1"].astype(bf16)            # (Cin, planes)
    w2 = params["w2"].astype(bf16)            # (3, 3, planes, planes)  HWIO
    w3 = params["w3"].astype(bf16)            # (planes, Cin)

    vmem_cap = _vmem_capacity_bytes()
    buf_budget = int(min(max(vmem_cap // 8, 4 << 20), 16 << 20))
    TM = _pick_tm(M, 4 * Cin, buf_budget)     # largest f32 (TM, Cin) buffer
    G = M // TM

    # ---- conv1 (1x1) + per-tile batch stats (parallel grid) ----
    y1, s1, q1 = pl.pallas_call(
        conv1x1_stats_kernel,
        grid=(G,),
        in_specs=[pl.BlockSpec((TM, Cin), lambda i: (i, 0)),
                  pl.BlockSpec((Cin, planes), lambda i: (0, 0))],
        out_specs=(pl.BlockSpec((TM, planes), lambda i: (i, 0)),
                   pl.BlockSpec((1, 1, planes), lambda i: (i, 0, 0)),
                   pl.BlockSpec((1, 1, planes), lambda i: (i, 0, 0))),
        out_shape=(jax.ShapeDtypeStruct((M, planes), bf16),
                   jax.ShapeDtypeStruct((G, 1, planes), f32),
                   jax.ShapeDtypeStruct((G, 1, planes), f32)),
        compiler_params=_cparams(("parallel",),
                                 TM * (4 * Cin + 2 * planes), vmem_cap),
        cost_estimate=pl.CostEstimate(
            flops=2 * M * Cin * planes, transcendentals=0,
            bytes_accessed=M * Cin * 4 + M * planes * 2 + Cin * planes * 2),
    )(x2d, w1)
    sc1, sh1 = _bn_scale_shift(s1.reshape(G, planes), q1.reshape(G, planes),
                               TM, params["g1"], params["b1"])

    # ---- bn1 + relu + conv2 (3x3, pad=1) + stats (fused, per image) ----
    TB = _pick_tb(H, W, planes)
    y1_4d = y1.reshape(N, H, W, planes)
    conv3x3_kernel = make_conv3x3_fused_kernel(H, W, planes, TB)
    y2_4d, s2, q2 = pl.pallas_call(
        conv3x3_kernel,
        grid=(N,),
        in_specs=[pl.BlockSpec((1, H, W, planes), lambda n: (n, 0, 0, 0)),
                  pl.BlockSpec((1, planes), lambda n: (0, 0)),
                  pl.BlockSpec((1, planes), lambda n: (0, 0)),
                  pl.BlockSpec((3, 3, planes, planes),
                               lambda n: (0, 0, 0, 0))],
        out_specs=(pl.BlockSpec((1, H, W, planes), lambda n: (n, 0, 0, 0)),
                   pl.BlockSpec((1, 1, planes), lambda n: (n, 0, 0)),
                   pl.BlockSpec((1, 1, planes), lambda n: (n, 0, 0))),
        out_shape=(jax.ShapeDtypeStruct((N, H, W, planes), bf16),
                   jax.ShapeDtypeStruct((N, 1, planes), f32),
                   jax.ShapeDtypeStruct((N, 1, planes), f32)),
        scratch_shapes=[pltpu.VMEM((H + 2, W + 2, planes), bf16)],
        compiler_params=_cparams(
            ("parallel",),
            (H + 2) * (W + 2) * planes * 2 + 4 * H * W * planes * 2
            + 4 * TB * W * planes * 4,
            vmem_cap),
        cost_estimate=pl.CostEstimate(
            flops=2 * M * 9 * planes * planes + 6 * M * planes,
            transcendentals=0,
            bytes_accessed=2 * M * planes * 2 + 9 * planes * planes * 2),
    )(y1_4d, sc1, sh1, w2)
    sc2, sh2 = _bn_scale_shift(s2.reshape(N, planes), q2.reshape(N, planes),
                               H * W, params["g2"], params["b2"])

    # ---- bn2 + relu + conv3 (1x1) + stats (fused, parallel grid) ----
    y2 = y2_4d.reshape(M, planes)
    y3, s3, q3 = pl.pallas_call(
        bn_relu_conv1x1_stats_kernel,
        grid=(G,),
        in_specs=[pl.BlockSpec((TM, planes), lambda i: (i, 0)),
                  pl.BlockSpec((1, planes), lambda i: (0, 0)),
                  pl.BlockSpec((1, planes), lambda i: (0, 0)),
                  pl.BlockSpec((planes, Cin), lambda i: (0, 0))],
        out_specs=(pl.BlockSpec((TM, Cin), lambda i: (i, 0)),
                   pl.BlockSpec((1, 1, Cin), lambda i: (i, 0, 0)),
                   pl.BlockSpec((1, 1, Cin), lambda i: (i, 0, 0))),
        out_shape=(jax.ShapeDtypeStruct((M, Cin), bf16),
                   jax.ShapeDtypeStruct((G, 1, Cin), f32),
                   jax.ShapeDtypeStruct((G, 1, Cin), f32)),
        compiler_params=_cparams(("parallel",),
                                 TM * (2 * planes + 2 * Cin), vmem_cap),
        cost_estimate=pl.CostEstimate(
            flops=2 * M * planes * Cin + 4 * M * planes, transcendentals=0,
            bytes_accessed=M * planes * 2 + M * Cin * 2 + planes * Cin * 2),
    )(y2, sc2, sh2, w3)
    sc3, sh3 = _bn_scale_shift(s3.reshape(G, Cin), q3.reshape(G, Cin),
                               TM, params["g3"], params["b3"])

    # ---- bn3 + residual add + relu ----
    out2d = pl.pallas_call(
        bn_add_relu_kernel,
        grid=(G,),
        in_specs=[pl.BlockSpec((TM, Cin), lambda i: (i, 0)),
                  pl.BlockSpec((1, Cin), lambda i: (0, 0)),
                  pl.BlockSpec((1, Cin), lambda i: (0, 0)),
                  pl.BlockSpec((TM, Cin), lambda i: (i, 0))],
        out_specs=pl.BlockSpec((TM, Cin), lambda i: (i, 0)),
        out_shape=jax.ShapeDtypeStruct((M, Cin), f32),
        compiler_params=_cparams(("parallel",), TM * 10 * Cin, vmem_cap),
        cost_estimate=pl.CostEstimate(
            flops=4 * M * Cin, transcendentals=0,
            bytes_accessed=M * Cin * (2 + 4 + 4)),
    )(y3, sc3, sh3, x2d)

    return jnp.transpose(out2d.reshape(N, H, W, Cin), (0, 3, 1, 2))


# ---------------- Pure-JAX reference (for verification) ----------------

def bottleneck_ref(x_nchw, p):
    x = jnp.transpose(x_nchw, (0, 2, 3, 1)).astype(jnp.float32)

    def bn(y, g, b):
        mean = jnp.mean(y, axis=(0, 1, 2), keepdims=True)
        var = jnp.mean(jnp.square(y - mean), axis=(0, 1, 2), keepdims=True)
        return (y - mean) * lax.rsqrt(var + EPS) * g + b

    dn = ("NHWC", "HWIO", "NHWC")
    h = jnp.einsum("nhwc,cd->nhwd", x, p["w1"], precision=lax.Precision.HIGHEST)
    h = jnp.maximum(bn(h, p["g1"], p["b1"]), 0.0)
    h = lax.conv_general_dilated(h, p["w2"], (1, 1), "SAME",
                                 dimension_numbers=dn,
                                 precision=lax.Precision.HIGHEST)
    h = jnp.maximum(bn(h, p["g2"], p["b2"]), 0.0)
    h = jnp.einsum("nhwc,cd->nhwd", h, p["w3"], precision=lax.Precision.HIGHEST)
    h = bn(h, p["g3"], p["b3"])
    h = jnp.maximum(h + x, 0.0)
    return jnp.transpose(h, (0, 3, 1, 2))


def init_params(key, inplanes, planes):
    ks = jax.random.split(key, 9)
    f32 = jnp.float32
    return dict(
        w1=jax.random.normal(ks[0], (inplanes, planes), f32) * (inplanes ** -0.5),
        w2=jax.random.normal(ks[1], (3, 3, planes, planes), f32) * ((9 * planes) ** -0.5),
        w3=jax.random.normal(ks[2], (planes, planes * 4), f32) * (planes ** -0.5),
        g1=1.0 + 0.1 * jax.random.normal(ks[3], (planes,), f32),
        b1=0.1 * jax.random.normal(ks[4], (planes,), f32),
        g2=1.0 + 0.1 * jax.random.normal(ks[5], (planes,), f32),
        b2=0.1 * jax.random.normal(ks[6], (planes,), f32),
        g3=1.0 + 0.1 * jax.random.normal(ks[7], (planes * 4,), f32),
        b3=0.1 * jax.random.normal(ks[8], (planes * 4,), f32),
    )


if __name__ == "__main__":
    key = jax.random.PRNGKey(0)
    k_x, k_p = jax.random.split(key)

    batch, planes, spatial = 2, 8, 16
    inplanes = planes * 4  # downsample=None => residual channel match
    x = jax.random.normal(k_x, (batch, inplanes, spatial, spatial), jnp.float32)
    params = init_params(k_p, inplanes, planes)

    out = jax.block_until_ready(bottleneck_pallas(x, params))
    ref = bottleneck_ref(x, params)

    assert out.shape == ref.shape == (batch, inplanes, spatial, spatial)
    max_err = float(jnp.max(jnp.abs(out - ref)))
    mean_err = float(jnp.mean(jnp.abs(out - ref)))
    # Tolerance loosened vs the f32 HIGHEST-precision reference: the kernels
    # use bf16 MXU operands and bf16 HBM intermediates (f32 accumulation).
    assert max_err < 2e-1 and mean_err < 2e-2, \
        f"mismatch vs reference: max={max_err}, mean={mean_err}"

    print("KERNEL_OK")
</pallas_src>

<mosaic_0001>
module attributes {stable_mosaic.version = 11 : i64} {
  func.func @conv1x1_stats_kernel(%arg0: i32, %arg1: memref<512x32xf32, #tpu.memory_space<vmem>>, %arg2: memref<32x8xbf16, #tpu.memory_space<vmem>>, %arg3: memref<512x8xbf16, #tpu.memory_space<vmem>>, %arg4: memref<1x1x8xf32, #tpu.memory_space<vmem>>, %arg5: memref<1x1x8xf32, #tpu.memory_space<vmem>>) attributes {dimension_semantics = [#tpu.dimension_semantics<parallel>], iteration_bounds = array<i64: 1>, scalar_prefetch = 0 : i64, scratch_operands = 0 : i64, tpu.core_type = #tpu.core_type<tc>, window_params = [{transform_indices = @transform_0, window_bounds = array<i64: 512, 32>}, {pipeline_mode = #tpu.pipeline_mode<synchronous>, transform_indices = @transform_1, window_bounds = array<i64: 32, 8>}, {transform_indices = @transform_2, window_bounds = array<i64: 512, 8>}, {transform_indices = @transform_3, window_bounds = array<i64: 1, 1, 8>}, {transform_indices = @transform_4, window_bounds = array<i64: 1, 1, 8>}]} {
    %c0 = arith.constant 0 : index
    %c0_0 = arith.constant 0 : index
    %0 = vector.load %arg1[%c0, %c0_0] : memref<512x32xf32, #tpu.memory_space<vmem>>, vector<512x32xf32>
    %1 = arith.truncf %0 : vector<512x32xf32> to vector<512x32xbf16>
    %c0_1 = arith.constant 0 : index
    %c0_2 = arith.constant 0 : index
    %2 = vector.load %arg2[%c0_1, %c0_2] : memref<32x8xbf16, #tpu.memory_space<vmem>>, vector<32x8xbf16>
    %cst = arith.constant dense<0.000000e+00> : vector<512x8xf32>
    %3 = tpu.matmul %1, %2, %cst {dimension_numbers = #tpu.dot_dimension_numbers<[1], [0], [0], [1], [0, 0, 1, 1], [], []>} : vector<512x32xbf16>, vector<32x8xbf16>, vector<512x8xf32> -> vector<512x8xf32>
    %4 = arith.truncf %3 : vector<512x8xf32> to vector<512x8xbf16>
    %c0_3 = arith.constant 0 : index
    %c0_4 = arith.constant 0 : index
    %5 = vector.load %arg3[%c0_3, %c0_4] : memref<512x8xbf16, #tpu.memory_space<vmem>>, vector<512x8xbf16>
    tpu.vector_store %arg3[%c0_3, %c0_4], %4 {strides = array<i32>} : memref<512x8xbf16, #tpu.memory_space<vmem>>, vector<512x8xbf16>,
    %cst_5 = arith.constant dense<0.000000e+00> : vector<8xf32>
    %6 = vector.multi_reduction <add>, %3, %cst_5 [0] : vector<512x8xf32> to vector<8xf32>
    %7 = vector.shape_cast %6 : vector<8xf32> to vector<1x1x8xf32>
    %c0_6 = arith.constant 0 : index
    %c0_7 = arith.constant 0 : index
    %c0_8 = arith.constant 0 : index
    %8 = vector.load %arg4[%c0_6, %c0_7, %c0_8] : memref<1x1x8xf32, #tpu.memory_space<vmem>>, vector<1x1x8xf32>
    tpu.vector_store %arg4[%c0_6, %c0_7, %c0_8], %7 {strides = array<i32>} : memref<1x1x8xf32, #tpu.memory_space<vmem>>, vector<1x1x8xf32>,
    %9 = arith.mulf %3, %3 : vector<512x8xf32>
    %cst_9 = arith.constant dense<0.000000e+00> : vector<8xf32>
    %10 = vector.multi_reduction <add>, %9, %cst_9 [0] : vector<512x8xf32> to vector<8xf32>
    %11 = vector.shape_cast %10 : vector<8xf32> to vector<1x1x8xf32>
    %c0_10 = arith.constant 0 : index
    %c0_11 = arith.constant 0 : index
    %c0_12 = arith.constant 0 : index
    %12 = vector.load %arg5[%c0_10, %c0_11, %c0_12] : memref<1x1x8xf32, #tpu.memory_space<vmem>>, vector<1x1x8xf32>
    tpu.vector_store %arg5[%c0_10, %c0_11, %c0_12], %11 {strides = array<i32>} : memref<1x1x8xf32, #tpu.memory_space<vmem>>, vector<1x1x8xf32>,
    return
  }
  func.func @transform_0(%arg0: i32) -> (i32, i32) {
    %c0_i32 = arith.constant 0 : i32
    %c0_i32_0 = arith.constant 0 : i32
    return %arg0, %c0_i32 : i32, i32
  }
  func.func @transform_1(%arg0: i32) -> (i32, i32) {
    %c0_i32 = arith.constant 0 : i32
    %c0_i32_0 = arith.constant 0 : i32
    %c0_i32_1 = arith.constant 0 : i32
    return %c0_i32, %c0_i32_0 : i32, i32
  }
  func.func @transform_2(%arg0: i32) -> (i32, i32) {
    %c0_i32 = arith.constant 0 : i32
    %c0_i32_0 = arith.constant 0 : i32
    return %arg0, %c0_i32 : i32, i32
  }
  func.func @transform_3(%arg0: i32) -> (i32, i32, i32) {
    %c0_i32 = arith.constant 0 : i32
    %c0_i32_0 = arith.constant 0 : i32
    %c0_i32_1 = arith.constant 0 : i32
    return %arg0, %c0_i32, %c0_i32_0 : i32, i32, i32
  }
  func.func @transform_4(%arg0: i32) -> (i32, i32, i32) {
    %c0_i32 = arith.constant 0 : i32
    %c0_i32_0 = arith.constant 0 : i32
    %c0_i32_1 = arith.constant 0 : i32
    return %arg0, %c0_i32, %c0_i32_0 : i32, i32, i32
  }
}

module attributes {stable_mosaic.version = 11 : i64} {
  func.func @kernel(%arg0: i32, %arg1: memref<1x16x16x8xbf16, #tpu.memory_space<vmem>>, %arg2: memref<1x8xf32, #tpu.memory_space<vmem>>, %arg3: memref<1x8xf32, #tpu.memory_space<vmem>>, %arg4: memref<3x3x8x8xbf16, #tpu.memory_space<vmem>>, %arg5: memref<1x16x16x8xbf16, #tpu.memory_space<vmem>>, %arg6: memref<1x1x8xf32, #tpu.memory_space<vmem>>, %arg7: memref<1x1x8xf32, #tpu.memory_space<vmem>>, %arg8: memref<18x18x8xbf16, #tpu.memory_space<vmem>>) attributes {dimension_semantics = [#tpu.dimension_semantics<parallel>], iteration_bounds = array<i64: 2>, scalar_prefetch = 0 : i64, scratch_operands = 1 : i64, tpu.core_type = #tpu.core_type<tc>, window_params = [{transform_indices = @transform_0, window_bounds = array<i64: 1, 16, 16, 8>}, {pipeline_mode = #tpu.pipeline_mode<synchronous>, transform_indices = @transform_1, window_bounds = array<i64: 1, 8>}, {pipeline_mode = #tpu.pipeline_mode<synchronous>, transform_indices = @transform_2, window_bounds = array<i64: 1, 8>}, {pipeline_mode = #tpu.pipeline_mode<synchronous>, transform_indices = @transform_3, window_bounds = array<i64: 3, 3, 8, 8>}, {transform_indices = @transform_4, window_bounds = array<i64: 1, 16, 16, 8>}, {transform_indices = @transform_5, window_bounds = array<i64: 1, 1, 8>}, {transform_indices = @transform_6, window_bounds = array<i64: 1, 1, 8>}]} {
    %c0 = arith.constant 0 : index
    %c0_0 = arith.constant 0 : index
    %c0_1 = arith.constant 0 : index
    %c0_2 = arith.constant 0 : index
    %0 = vector.load %arg1[%c0, %c0_0, %c0_1, %c0_2] : memref<1x16x16x8xbf16, #tpu.memory_space<vmem>>, vector<1x16x16x8xbf16>
    %1 = vector.shape_cast %0 : vector<1x16x16x8xbf16> to vector<16x16x8xbf16>
    %2 = arith.extf %1 : vector<16x16x8xbf16> to vector<16x16x8xf32>
    %c0_3 = arith.constant 0 : index
    %c0_4 = arith.constant 0 : index
    %3 = vector.load %arg2[%c0_3, %c0_4] : memref<1x8xf32, #tpu.memory_space<vmem>>, vector<1x8xf32>
    %4 = vector.shape_cast %3 : vector<1x8xf32> to vector<1x1x8xf32>
    %5 = vector.broadcast %4 : vector<1x1x8xf32> to vector<16x16x8xf32>
    %6 = arith.mulf %2, %5 : vector<16x16x8xf32>
    %c0_5 = arith.constant 0 : index
    %c0_6 = arith.constant 0 : index
    %7 = vector.load %arg3[%c0_5, %c0_6] : memref<1x8xf32, #tpu.memory_space<vmem>>, vector<1x8xf32>
    %8 = vector.shape_cast %7 : vector<1x8xf32> to vector<1x1x8xf32>
    %9 = vector.broadcast %8 : vector<1x1x8xf32> to vector<16x16x8xf32>
    %10 = arith.addf %6, %9 : vector<16x16x8xf32>
    %cst = arith.constant 0.000000e+00 : f32
    %11 = vector.broadcast %cst : f32 to vector<16x16x8xf32>
    %12 = arith.maximumf %10, %11 : vector<16x16x8xf32>
    %cst_7 = arith.constant 0.000000e+00 : bf16
    %13 = vector.broadcast %cst_7 : bf16 to vector<1x18x8xbf16>
    %cst_8 = arith.constant 0.000000e+00 : bf16
    %14 = vector.broadcast %cst_8 : bf16 to vector<18x1x8xbf16>
    %c0_9 = arith.constant 0 : index
    %c0_10 = arith.constant 0 : index
    %c0_11 = arith.constant 0 : index
    %15 = vector.load %arg8[%c0_9, %c0_10, %c0_11] : memref<18x18x8xbf16, #tpu.memory_space<vmem>>, vector<1x18x8xbf16>
    tpu.vector_store %arg8[%c0_9, %c0_10, %c0_11], %13 {strides = array<i32>} : memref<18x18x8xbf16, #tpu.memory_space<vmem>>, vector<1x18x8xbf16>,
    %c17 = arith.constant 17 : index
    %c0_12 = arith.constant 0 : index
    %c0_13 = arith.constant 0 : index
    %16 = vector.load %arg8[%c17, %c0_12, %c0_13] : memref<18x18x8xbf16, #tpu.memory_space<vmem>>, vector<1x18x8xbf16>
    tpu.vector_store %arg8[%c17, %c0_12, %c0_13], %13 {strides = array<i32>} : memref<18x18x8xbf16, #tpu.memory_space<vmem>>, vector<1x18x8xbf16>,
    %c0_14 = arith.constant 0 : index
    %c0_15 = arith.constant 0 : index
    %c0_16 = arith.constant 0 : index
    %17 = vector.load %arg8[%c0_14, %c0_15, %c0_16] : memref<18x18x8xbf16, #tpu.memory_space<vmem>>, vector<18x1x8xbf16>
    tpu.vector_store %arg8[%c0_14, %c0_15, %c0_16], %14 {strides = array<i32>} : memref<18x18x8xbf16, #tpu.memory_space<vmem>>, vector<18x1x8xbf16>,
    %c0_17 = arith.constant 0 : index
    %c17_18 = arith.constant 17 : index
    %c0_19 = arith.constant 0 : index
    %18 = vector.load %arg8[%c0_17, %c17_18, %c0_19] : memref<18x18x8xbf16, #tpu.memory_space<vmem>>, vector<18x1x8xbf16>
    tpu.vector_store %arg8[%c0_17, %c17_18, %c0_19], %14 {strides = array<i32>} : memref<18x18x8xbf16, #tpu.memory_space<vmem>>, vector<18x1x8xbf16>,
    %19 = arith.truncf %12 : vector<16x16x8xf32> to vector<16x16x8xbf16>
    %c1 = arith.constant 1 : index
    %c1_20 = arith.constant 1 : index
    %c0_21 = arith.constant 0 : index
    %20 = vector.load %arg8[%c1, %c1_20, %c0_21] : memref<18x18x8xbf16, #tpu.memory_space<vmem>>, vector<16x16x8xbf16>
    tpu.vector_store %arg8[%c1, %c1_20, %c0_21], %19 {strides = array<i32>} : memref<18x18x8xbf16, #tpu.memory_space<vmem>>, vector<16x16x8xbf16>,
    %cst_22 = arith.constant 0.000000e+00 : f32
    %21 = vector.broadcast %cst_22 : f32 to vector<1x8xf32>
    %cst_23 = arith.constant 0.000000e+00 : f32
    %22 = vector.broadcast %cst_23 : f32 to vector<1x8xf32>
    %c0_i32 = arith.constant 0 : i32
    %c16_i32 = arith.constant 16 : i32
    %23 = arith.muli %c0_i32, %c16_i32 : i32
    %24 = tpu.assume_multiple %23, 16 : i32
    %cst_24 = arith.constant 0.000000e+00 : f32
    %25 = vector.broadcast %cst_24 : f32 to vector<256x8xf32>
    %c0_i32_25 = arith.constant 0 : i32
    %26 = arith.addi %24, %c0_i32_25 : i32
    %27 = arith.index_cast %26 : i32 to index
    %c0_26 = arith.constant 0 : index
    %c0_27 = arith.constant 0 : index
    %28 = vector.load %arg8[%27, %c0_26, %c0_27] : memref<18x18x8xbf16, #tpu.memory_space<vmem>>, vector<16x16x8xbf16>
    %29 = vector.shape_cast %28 : vector<16x16x8xbf16> to vector<256x8xbf16>
    %c0_28 = arith.constant 0 : index
    %c0_29 = arith.constant 0 : index
    %c0_30 = arith.constant 0 : index
    %c0_31 = arith.constant 0 : index
    %30 = vector.load %arg4[%c0_28, %c0_29, %c0_30, %c0_31] : memref<3x3x8x8xbf16, #tpu.memory_space<vmem>>, vector<1x1x8x8xbf16>
    %31 = vector.shape_cast %30 : vector<1x1x8x8xbf16> to vector<8x8xbf16>
    %cst_32 = arith.constant dense<0.000000e+00> : vector<256x8xf32>
    %32 = tpu.matmul %29, %31, %cst_32 {dimension_numbers = #tpu.dot_dimension_numbers<[1], [0], [0], [1], [0, 0, 1, 1], [], []>} : vector<256x8xbf16>, vector<8x8xbf16>, vector<256x8xf32> -> vector<256x8xf32>
    %33 = arith.addf %25, %32 : vector<256x8xf32>
    %c0_i32_33 = arith.constant 0 : i32
    %34 = arith.addi %24, %c0_i32_33 : i32
    %35 = arith.index_cast %34 : i32 to index
    %c1_34 = arith.constant 1 : index
    %c0_35 = arith.constant 0 : index
    %36 = vector.load %arg8[%35, %c1_34, %c0_35] : memref<18x18x8xbf16, #tpu.memory_space<vmem>>, vector<16x16x8xbf16>
    %37 = vector.shape_cast %36 : vector<16x16x8xbf16> to vector<256x8xbf16>
    %c0_36 = arith.constant 0 : index
    %c1_37 = arith.constant 1 : index
    %c0_38 = arith.constant 0 : index
    %c0_39 = arith.constant 0 : index
    %38 = vector.load %arg4[%c0_36, %c1_37, %c0_38, %c0_39] : memref<3x3x8x8xbf16, #tpu.memory_space<vmem>>, vector<1x1x8x8xbf16>
    %39 = vector.shape_cast %38 : vector<1x1x8x8xbf16> to vector<8x8xbf16>
    %cst_40 = arith.constant dense<0.000000e+00> : vector<256x8xf32>
    %40 = tpu.matmul %37, %39, %cst_40 {dimension_numbers = #tpu.dot_dimension_numbers<[1], [0], [0], [1], [0, 0, 1, 1], [], []>} : vector<256x8xbf16>, vector<8x8xbf16>, vector<256x8xf32> -> vector<256x8xf32>
    %41 = arith.addf %33, %40 : vector<256x8xf32>
    %c0_i32_41 = arith.constant 0 : i32
    %42 = arith.addi %24, %c0_i32_41 : i32
    %43 = arith.index_cast %42 : i32 to index
    %c2 = arith.constant 2 : index
    %c0_42 = arith.constant 0 : index
    %44 = vector.load %arg8[%43, %c2, %c0_42] : memref<18x18x8xbf16, #tpu.memory_space<vmem>>, vector<16x16x8xbf16>
    %45 = vector.shape_cast %44 : vector<16x16x8xbf16> to vector<256x8xbf16>
    %c0_43 = arith.constant 0 : index
    %c2_44 = arith.constant 2 : index
    %c0_45 = arith.constant 0 : index
    %c0_46 = arith.constant 0 : index
    %46 = vector.load %arg4[%c0_43, %c2_44, %c0_45, %c0_46] : memref<3x3x8x8xbf16, #tpu.memory_space<vmem>>, vector<1x1x8x8xbf16>
    %47 = vector.shape_cast %46 : vector<1x1x8x8xbf16> to vector<8x8xbf16>
    %cst_47 = arith.constant dense<0.000000e+00> : vector<256x8xf32>
    %48 = tpu.matmul %45, %47, %cst_47 {dimension_numbers = #tpu.dot_dimension_numbers<[1], [0], [0], [1], [0, 0, 1, 1], [], []>} : vector<256x8xbf16>, vector<8x8xbf16>, vector<256x8xf32> -> vector<256x8xf32>
    %49 = arith.addf %41, %48 : vector<256x8xf32>
    %c1_i32 = arith.constant 1 : i32
    %50 = arith.addi %24, %c1_i32 : i32
    %51 = arith.index_cast %50 : i32 to index
    %c0_48 = arith.constant 0 : index
    %c0_49 = arith.constant 0 : index
    %52 = vector.load %arg8[%51, %c0_48, %c0_49] : memref<18x18x8xbf16, #tpu.memory_space<vmem>>, vector<16x16x8xbf16>
    %53 = vector.shape_cast %52 : vector<16x16x8xbf16> to vector<256x8xbf16>
    %c1_50 = arith.constant 1 : index
    %c0_51 = arith.constant 0 : index
    %c0_52 = arith.constant 0 : index
    %c0_53 = arith.constant 0 : index
    %54 = vector.load %arg4[%c1_50, %c0_51, %c0_52, %c0_53] : memref<3x3x8x8xbf16, #tpu.memory_space<vmem>>, vector<1x1x8x8xbf16>
    %55 = vector.shape_cast %54 : vector<1x1x8x8xbf16> to vector<8x8xbf16>
    %cst_54 = arith.constant dense<0.000000e+00> : vector<256x8xf32>
    %56 = tpu.matmul %53, %55, %cst_54 {dimension_numbers = #tpu.dot_dimension_numbers<[1], [0], [0], [1], [0, 0, 1, 1], [], []>} : vector<256x8xbf16>, vector<8x8xbf16>, vector<256x8xf32> -> vector<256x8xf32>
    %57 = arith.addf %49, %56 : vector<256x8xf32>
    %c1_i32_55 = arith.constant 1 : i32
    %58 = arith.addi %24, %c1_i32_55 : i32
    %59 = arith.index_cast %58 : i32 to index
    %c1_56 = arith.constant 1 : index
    %c0_57 = arith.constant 0 : index
    %60 = vector.load %arg8[%59, %c1_56, %c0_57] : memref<18x18x8xbf16, #tpu.memory_space<vmem>>, vector<16x16x8xbf16>
    %61 = vector.shape_cast %60 : vector<16x16x8xbf16> to vector<256x8xbf16>
    %c1_58 = arith.constant 1 : index
    %c1_59 = arith.constant 1 : index
    %c0_60 = arith.constant 0 : index
    %c0_61 = arith.constant 0 : index
    %62 = vector.load %arg4[%c1_58, %c1_59, %c0_60, %c0_61] : memref<3x3x8x8xbf16, #tpu.memory_space<vmem>>, vector<1x1x8x8xbf16>
    %63 = vector.shape_cast %62 : vector<1x1x8x8xbf16> to vector<8x8xbf16>
    %cst_62 = arith.constant dense<0.000000e+00> : vector<256x8xf32>
    %64 = tpu.matmul %61, %63, %cst_62 {dimension_numbers = #tpu.dot_dimension_numbers<[1], [0], [0], [1], [0, 0, 1, 1], [], []>} : vector<256x8xbf16>, vector<8x8xbf16>, vector<256x8xf32> -> vector<256x8xf32>
    %65 = arith.addf %57, %64 : vector<256x8xf32>
    %c1_i32_63 = arith.constant 1 : i32
    %66 = arith.addi %24, %c1_i32_63 : i32
    %67 = arith.index_cast %66 : i32 to index
    %c2_64 = arith.constant 2 : index
    %c0_65 = arith.constant 0 : index
    %68 = vector.load %arg8[%67, %c2_64, %c0_65] : memref<18x18x8xbf16, #tpu.memory_space<vmem>>, vector<16x16x8xbf16>
    %69 = vector.shape_cast %68 : vector<16x16x8xbf16> to vector<256x8xbf16>
    %c1_66 = arith.constant 1 : index
    %c2_67 = arith.constant 2 : index
    %c0_68 = arith.constant 0 : index
    %c0_69 = arith.constant 0 : index
    %70 = vector.load %arg4[%c1_66, %c2_67, %c0_68, %c0_69] : memref<3x3x8x8xbf16, #tpu.memory_space<vmem>>, vector<1x1x8x8xbf16>
    %71 = vector.shape_cast %70 : vector<1x1x8x8xbf16> to vector<8x8xbf16>
    %cst_70 = arith.constant dense<0.000000e+00> : vector<256x8xf32>
    %72 = tpu.matmul %69, %71, %cst_70 {dimension_numbers = #tpu.dot_dimension_numbers<[1], [0], [0], [1], [0, 0, 1, 1], [], []>} : vector<256x8xbf16>, vector<8x8xbf16>, vector<256x8xf32> -> vector<256x8xf32>
    %73 = arith.addf %65, %72 : vector<256x8xf32>
    %c2_i32 = arith.constant 2 : i32
    %74 = arith.addi %24, %c2_i32 : i32
    %75 = arith.index_cast %74 : i32 to index
    %c0_71 = arith.constant 0 : index
    %c0_72 = arith.constant 0 : index
    %76 = vector.load %arg8[%75, %c0_71, %c0_72] : memref<18x18x8xbf16, #tpu.memory_space<vmem>>, vector<16x16x8xbf16>
    %77 = vector.shape_cast %76 : vector<16x16x8xbf16> to vector<256x8xbf16>
    %c2_73 = arith.constant 2 : index
    %c0_74 = arith.constant 0 : index
    %c0_75 = arith.constant 0 : index
    %c0_76 = arith.constant 0 : index
    %78 = vector.load %arg4[%c2_73, %c0_74, %c0_75, %c0_76] : memref<3x3x8x8xbf16, #tpu.memory_space<vmem>>, vector<1x1x8x8xbf16>
    %79 = vector.shape_cast %78 : vector<1x1x8x8xbf16> to vector<8x8xbf16>
    %cst_77 = arith.constant dense<0.000000e+00> : vector<256x8xf32>
    %80 = tpu.matmul %77, %79, %cst_77 {dimension_numbers = #tpu.dot_dimension_numbers<[1], [0], [0], [1], [0, 0, 1, 1], [], []>} : vector<256x8xbf16>, vector<8x8xbf16>, vector<256x8xf32> -> vector<256x8xf32>
    %81 = arith.addf %73, %80 : vector<256x8xf32>
    %c2_i32_78 = arith.constant 2 : i32
    %82 = arith.addi %24, %c2_i32_78 : i32
    %83 = arith.index_cast %82 : i32 to index
    %c1_79 = arith.constant 1 : index
    %c0_80 = arith.constant 0 : index
    %84 = vector.load %arg8[%83, %c1_79, %c0_80] : memref<18x18x8xbf16, #tpu.memory_space<vmem>>, vector<16x16x8xbf16>
    %85 = vector.shape_cast %84 : vector<16x16x8xbf16> to vector<256x8xbf16>
    %c2_81 = arith.constant 2 : index
    %c1_82 = arith.constant 1 : index
    %c0_83 = arith.constant 0 : index
    %c0_84 = arith.constant 0 : index
    %86 = vector.load %arg4[%c2_81, %c1_82, %c0_83, %c0_84] : memref<3x3x8x8xbf16, #tpu.memory_space<vmem>>, vector<1x1x8x8xbf16>
    %87 = vector.shape_cast %86 : vector<1x1x8x8xbf16> to vector<8x8xbf16>
    %cst_85 = arith.constant dense<0.000000e+00> : vector<256x8xf32>
    %88 = tpu.matmul %85, %87, %cst_85 {dimension_numbers = #tpu.dot_dimension_numbers<[1], [0], [0], [1], [0, 0, 1, 1], [], []>} : vector<256x8xbf16>, vector<8x8xbf16>, vector<256x8xf32> -> vector<256x8xf32>
    %89 = arith.addf %81, %88 : vector<256x8xf32>
    %c2_i32_86 = arith.constant 2 : i32
    %90 = arith.addi %24, %c2_i32_86 : i32
    %91 = arith.index_cast %90 : i32 to index
    %c2_87 = arith.constant 2 : index
    %c0_88 = arith.constant 0 : index
    %92 = vector.load %arg8[%91, %c2_87, %c0_88] : memref<18x18x8xbf16, #tpu.memory_space<vmem>>, vector<16x16x8xbf16>
    %93 = vector.shape_cast %92 : vector<16x16x8xbf16> to vector<256x8xbf16>
    %c2_89 = arith.constant 2 : index
    %c2_90 = arith.constant 2 : index
    %c0_91 = arith.constant 0 : index
    %c0_92 = arith.constant 0 : index
    %94 = vector.load %arg4[%c2_89, %c2_90, %c0_91, %c0_92] : memref<3x3x8x8xbf16, #tpu.memory_space<vmem>>, vector<1x1x8x8xbf16>
    %95 = vector.shape_cast %94 : vector<1x1x8x8xbf16> to vector<8x8xbf16>
    %cst_93 = arith.constant dense<0.000000e+00> : vector<256x8xf32>
    %96 = tpu.matmul %93, %95, %cst_93 {dimension_numbers = #tpu.dot_dimension_numbers<[1], [0], [0], [1], [0, 0, 1, 1], [], []>} : vector<256x8xbf16>, vector<8x8xbf16>, vector<256x8xf32> -> vector<256x8xf32>
    %97 = arith.addf %89, %96 : vector<256x8xf32>
    %98 = vector.shape_cast %97 : vector<256x8xf32> to vector<1x16x16x8xf32>
    %99 = arith.truncf %98 : vector<1x16x16x8xf32> to vector<1x16x16x8xbf16>
    %c0_94 = arith.constant 0 : index
    %100 = arith.index_cast %24 : i32 to index
    %c0_95 = arith.constant 0 : index
    %c0_96 = arith.constant 0 : index
    %101 = vector.load %arg5[%c0_94, %100, %c0_95, %c0_96] : memref<1x16x16x8xbf16, #tpu.memory_space<vmem>>, vector<1x16x16x8xbf16>
    tpu.vector_store %arg5[%c0_94, %100, %c0_95, %c0_96], %99 {strides = array<i32>} : memref<1x16x16x8xbf16, #tpu.memory_space<vmem>>, vector<1x16x16x8xbf16>,
    %cst_97 = arith.constant dense<0.000000e+00> : vector<8xf32>
    %102 = vector.multi_reduction <add>, %97, %cst_97 [0] : vector<256x8xf32> to vector<8xf32>
    %103 = vector.shape_cast %102 : vector<8xf32> to vector<1x8xf32>
    %104 = arith.addf %21, %103 : vector<1x8xf32>
    %105 = arith.mulf %97, %97 : vector<256x8xf32>
    %cst_98 = arith.constant dense<0.000000e+00> : vector<8xf32>
    %106 = vector.multi_reduction <add>, %105, %cst_98 [0] : vector<256x8xf32> to vector<8xf32>
    %107 = vector.shape_cast %106 : vector<8xf32> to vector<1x8xf32>
    %108 = arith.addf %22, %107 : vector<1x8xf32>
    %c1_i32_99 = arith.constant 1 : i32
    %109 = vector.shape_cast %104 : vector<1x8xf32> to vector<1x1x8xf32>
    %c0_100 = arith.constant 0 : index
    %c0_101 = arith.constant 0 : index
    %c0_102 = arith.constant 0 : index
    %110 = vector.load %arg6[%c0_100, %c0_101, %c0_102] : memref<1x1x8xf32, #tpu.memory_space<vmem>>, vector<1x1x8xf32>
    tpu.vector_store %arg6[%c0_100, %c0_101, %c0_102], %109 {strides = array<i32>} : memref<1x1x8xf32, #tpu.memory_space<vmem>>, vector<1x1x8xf32>,
    %111 = vector.shape_cast %108 : vector<1x8xf32> to vector<1x1x8xf32>
    %c0_103 = arith.constant 0 : index
    %c0_104 = arith.constant 0 : index
    %c0_105 = arith.constant 0 : index
    %112 = vector.load %arg7[%c0_103, %c0_104, %c0_105] : memref<1x1x8xf32, #tpu.memory_space<vmem>>, vector<1x1x8xf32>
    tpu.vector_store %arg7[%c0_103, %c0_104, %c0_105], %111 {strides = array<i32>} : memref<1x1x8xf32, #tpu.memory_space<vmem>>, vector<1x1x8xf32>,
    return
  }
  func.func @transform_0(%arg0: i32) -> (i32, i32, i32, i32) {
    %c0_i32 = arith.constant 0 : i32
    %c0_i32_0 = arith.constant 0 : i32
    %c0_i32_1 = arith.constant 0 : i32
    %c0_i32_2 = arith.constant 0 : i32
    return %arg0, %c0_i32, %c0_i32_0, %c0_i32_1 : i32, i32, i32, i32
  }
  func.func @transform_1(%arg0: i32) -> (i32, i32) {
    %c0_i32 = arith.constant 0 : i32
    %c0_i32_0 = arith.constant 0 : i32
    %c0_i32_1 = arith.constant 0 : i32
    return %c0_i32, %c0_i32_0 : i32, i32
  }
  func.func @transform_2(%arg0: i32) -> (i32, i32) {
    %c0_i32 = arith.constant 0 : i32
    %c0_i32_0 = arith.constant 0 : i32
    %c0_i32_1 = arith.constant 0 : i32
    return %c0_i32, %c0_i32_0 : i32, i32
  }
  func.func @transform_3(%arg0: i32) -> (i32, i32, i32, i32) {
    %c0_i32 = arith.constant 0 : i32
    %c0_i32_0 = arith.constant 0 : i32
    %c0_i32_1 = arith.constant 0 : i32
    %c0_i32_2 = arith.constant 0 : i32
    %c0_i32_3 = arith.constant 0 : i32
    return %c0_i32, %c0_i32_0, %c0_i32_1, %c0_i32_2 : i32, i32, i32, i32
  }
  func.func @transform_4(%arg0: i32) -> (i32, i32, i32, i32) {
    %c0_i32 = arith.constant 0 : i32
    %c0_i32_0 = arith.constant 0 : i32
    %c0_i32_1 = arith.constant 0 : i32
    %c0_i32_2 = arith.constant 0 : i32
    return %arg0, %c0_i32, %c0_i32_0, %c0_i32_1 : i32, i32, i32, i32
  }
  func.func @transform_5(%arg0: i32) -> (i32, i32, i32) {
    %c0_i32 = arith.constant 0 : i32
    %c0_i32_0 = arith.constant 0 : i32
    %c0_i32_1 = arith.constant 0 : i32
    return %arg0, %c0_i32, %c0_i32_0 : i32, i32, i32
  }
  func.func @transform_6(%arg0: i32) -> (i32, i32, i32) {
    %c0_i32 = arith.constant 0 : i32
    %c0_i32_0 = arith.constant 0 : i32
    %c0_i32_1 = arith.constant 0 : i32
    return %arg0, %c0_i32, %c0_i32_0 : i32, i32, i32
  }
}

module attributes {stable_mosaic.version = 11 : i64} {
  func.func @bn_relu_conv1x1_stats_kernel(%arg0: i32, %arg1: memref<512x8xbf16, #tpu.memory_space<vmem>>, %arg2: memref<1x8xf32, #tpu.memory_space<vmem>>, %arg3: memref<1x8xf32, #tpu.memory_space<vmem>>, %arg4: memref<8x32xbf16, #tpu.memory_space<vmem>>, %arg5: memref<512x32xbf16, #tpu.memory_space<vmem>>, %arg6: memref<1x1x32xf32, #tpu.memory_space<vmem>>, %arg7: memref<1x1x32xf32, #tpu.memory_space<vmem>>) attributes {dimension_semantics = [#tpu.dimension_semantics<parallel>], iteration_bounds = array<i64: 1>, scalar_prefetch = 0 : i64, scratch_operands = 0 : i64, tpu.core_type = #tpu.core_type<tc>, window_params = [{transform_indices = @transform_0, window_bounds = array<i64: 512, 8>}, {pipeline_mode = #tpu.pipeline_mode<synchronous>, transform_indices = @transform_1, window_bounds = array<i64: 1, 8>}, {pipeline_mode = #tpu.pipeline_mode<synchronous>, transform_indices = @transform_2, window_bounds = array<i64: 1, 8>}, {pipeline_mode = #tpu.pipeline_mode<synchronous>, transform_indices = @transform_3, window_bounds = array<i64: 8, 32>}, {transform_indices = @transform_4, window_bounds = array<i64: 512, 32>}, {transform_indices = @transform_5, window_bounds = array<i64: 1, 1, 32>}, {transform_indices = @transform_6, window_bounds = array<i64: 1, 1, 32>}]} {
    %c0 = arith.constant 0 : index
    %c0_0 = arith.constant 0 : index
    %0 = vector.load %arg1[%c0, %c0_0] : memref<512x8xbf16, #tpu.memory_space<vmem>>, vector<512x8xbf16>
    %1 = arith.extf %0 : vector<512x8xbf16> to vector<512x8xf32>
    %c0_1 = arith.constant 0 : index
    %c0_2 = arith.constant 0 : index
    %2 = vector.load %arg2[%c0_1, %c0_2] : memref<1x8xf32, #tpu.memory_space<vmem>>, vector<1x8xf32>
    %3 = vector.broadcast %2 : vector<1x8xf32> to vector<512x8xf32>
    %4 = arith.mulf %1, %3 : vector<512x8xf32>
    %c0_3 = arith.constant 0 : index
    %c0_4 = arith.constant 0 : index
    %5 = vector.load %arg3[%c0_3, %c0_4] : memref<1x8xf32, #tpu.memory_space<vmem>>, vector<1x8xf32>
    %6 = vector.broadcast %5 : vector<1x8xf32> to vector<512x8xf32>
    %7 = arith.addf %4, %6 : vector<512x8xf32>
    %cst = arith.constant 0.000000e+00 : f32
    %8 = vector.broadcast %cst : f32 to vector<512x8xf32>
    %9 = arith.maximumf %7, %8 : vector<512x8xf32>
    %10 = arith.truncf %9 : vector<512x8xf32> to vector<512x8xbf16>
    %c0_5 = arith.constant 0 : index
    %c0_6 = arith.constant 0 : index
    %11 = vector.load %arg4[%c0_5, %c0_6] : memref<8x32xbf16, #tpu.memory_space<vmem>>, vector<8x32xbf16>
    %cst_7 = arith.constant dense<0.000000e+00> : vector<512x32xf32>
    %12 = tpu.matmul %10, %11, %cst_7 {dimension_numbers = #tpu.dot_dimension_numbers<[1], [0], [0], [1], [0, 0, 1, 1], [], []>} : vector<512x8xbf16>, vector<8x32xbf16>, vector<512x32xf32> -> vector<512x32xf32>
    %13 = arith.truncf %12 : vector<512x32xf32> to vector<512x32xbf16>
    %c0_8 = arith.constant 0 : index
    %c0_9 = arith.constant 0 : index
    %14 = vector.load %arg5[%c0_8, %c0_9] : memref<512x32xbf16, #tpu.memory_space<vmem>>, vector<512x32xbf16>
    tpu.vector_store %arg5[%c0_8, %c0_9], %13 {strides = array<i32>} : memref<512x32xbf16, #tpu.memory_space<vmem>>, vector<512x32xbf16>,
    %cst_10 = arith.constant dense<0.000000e+00> : vector<32xf32>
    %15 = vector.multi_reduction <add>, %12, %cst_10 [0] : vector<512x32xf32> to vector<32xf32>
    %16 = vector.shape_cast %15 : vector<32xf32> to vector<1x1x32xf32>
    %c0_11 = arith.constant 0 : index
    %c0_12 = arith.constant 0 : index
    %c0_13 = arith.constant 0 : index
    %17 = vector.load %arg6[%c0_11, %c0_12, %c0_13] : memref<1x1x32xf32, #tpu.memory_space<vmem>>, vector<1x1x32xf32>
    tpu.vector_store %arg6[%c0_11, %c0_12, %c0_13], %16 {strides = array<i32>} : memref<1x1x32xf32, #tpu.memory_space<vmem>>, vector<1x1x32xf32>,
    %18 = arith.mulf %12, %12 : vector<512x32xf32>
    %cst_14 = arith.constant dense<0.000000e+00> : vector<32xf32>
    %19 = vector.multi_reduction <add>, %18, %cst_14 [0] : vector<512x32xf32> to vector<32xf32>
    %20 = vector.shape_cast %19 : vector<32xf32> to vector<1x1x32xf32>
    %c0_15 = arith.constant 0 : index
    %c0_16 = arith.constant 0 : index
    %c0_17 = arith.constant 0 : index
    %21 = vector.load %arg7[%c0_15, %c0_16, %c0_17] : memref<1x1x32xf32, #tpu.memory_space<vmem>>, vector<1x1x32xf32>
    tpu.vector_store %arg7[%c0_15, %c0_16, %c0_17], %20 {strides = array<i32>} : memref<1x1x32xf32, #tpu.memory_space<vmem>>, vector<1x1x32xf32>,
    return
  }
  func.func @transform_0(%arg0: i32) -> (i32, i32) {
    %c0_i32 = arith.constant 0 : i32
    %c0_i32_0 = arith.constant 0 : i32
    return %arg0, %c0_i32 : i32, i32
  }
  func.func @transform_1(%arg0: i32) -> (i32, i32) {
    %c0_i32 = arith.constant 0 : i32
    %c0_i32_0 = arith.constant 0 : i32
    %c0_i32_1 = arith.constant 0 : i32
    return %c0_i32, %c0_i32_0 : i32, i32
  }
  func.func @transform_2(%arg0: i32) -> (i32, i32) {
    %c0_i32 = arith.constant 0 : i32
    %c0_i32_0 = arith.constant 0 : i32
    %c0_i32_1 = arith.constant 0 : i32
    return %c0_i32, %c0_i32_0 : i32, i32
  }
  func.func @transform_3(%arg0: i32) -> (i32, i32) {
    %c0_i32 = arith.constant 0 : i32
    %c0_i32_0 = arith.constant 0 : i32
    %c0_i32_1 = arith.constant 0 : i32
    return %c0_i32, %c0_i32_0 : i32, i32
  }
  func.func @transform_4(%arg0: i32) -> (i32, i32) {
    %c0_i32 = arith.constant 0 : i32
    %c0_i32_0 = arith.constant 0 : i32
    return %arg0, %c0_i32 : i32, i32
  }
  func.func @transform_5(%arg0: i32) -> (i32, i32, i32) {
    %c0_i32 = arith.constant 0 : i32
    %c0_i32_0 = arith.constant 0 : i32
    %c0_i32_1 = arith.constant 0 : i32
    return %arg0, %c0_i32, %c0_i32_0 : i32, i32, i32
  }
  func.func @transform_6(%arg0: i32) -> (i32, i32, i32) {
    %c0_i32 = arith.constant 0 : i32
    %c0_i32_0 = arith.constant 0 : i32
    %c0_i32_1 = arith.constant 0 : i32
    return %arg0, %c0_i32, %c0_i32_0 : i32, i32, i32
  }
}

module attributes {stable_mosaic.version = 11 : i64} {
  func.func @bn_add_relu_kernel(%arg0: i32, %arg1: memref<512x32xbf16, #tpu.memory_space<vmem>>, %arg2: memref<1x32xf32, #tpu.memory_space<vmem>>, %arg3: memref<1x32xf32, #tpu.memory_space<vmem>>, %arg4: memref<512x32xf32, #tpu.memory_space<vmem>>, %arg5: memref<512x32xf32, #tpu.memory_space<vmem>>) attributes {dimension_semantics = [#tpu.dimension_semantics<parallel>], iteration_bounds = array<i64: 1>, scalar_prefetch = 0 : i64, scratch_operands = 0 : i64, tpu.core_type = #tpu.core_type<tc>, window_params = [{transform_indices = @transform_0, window_bounds = array<i64: 512, 32>}, {pipeline_mode = #tpu.pipeline_mode<synchronous>, transform_indices = @transform_1, window_bounds = array<i64: 1, 32>}, {pipeline_mode = #tpu.pipeline_mode<synchronous>, transform_indices = @transform_2, window_bounds = array<i64: 1, 32>}, {transform_indices = @transform_3, window_bounds = array<i64: 512, 32>}, {transform_indices = @transform_4, window_bounds = array<i64: 512, 32>}]} {
    %c0 = arith.constant 0 : index
    %c0_0 = arith.constant 0 : index
    %0 = vector.load %arg1[%c0, %c0_0] : memref<512x32xbf16, #tpu.memory_space<vmem>>, vector<512x32xbf16>
    %1 = arith.extf %0 : vector<512x32xbf16> to vector<512x32xf32>
    %c0_1 = arith.constant 0 : index
    %c0_2 = arith.constant 0 : index
    %2 = vector.load %arg2[%c0_1, %c0_2] : memref<1x32xf32, #tpu.memory_space<vmem>>, vector<1x32xf32>
    %3 = vector.broadcast %2 : vector<1x32xf32> to vector<512x32xf32>
    %4 = arith.mulf %1, %3 : vector<512x32xf32>
    %c0_3 = arith.constant 0 : index
    %c0_4 = arith.constant 0 : index
    %5 = vector.load %arg3[%c0_3, %c0_4] : memref<1x32xf32, #tpu.memory_space<vmem>>, vector<1x32xf32>
    %6 = vector.broadcast %5 : vector<1x32xf32> to vector<512x32xf32>
    %7 = arith.addf %4, %6 : vector<512x32xf32>
    %c0_5 = arith.constant 0 : index
    %c0_6 = arith.constant 0 : index
    %8 = vector.load %arg4[%c0_5, %c0_6] : memref<512x32xf32, #tpu.memory_space<vmem>>, vector<512x32xf32>
    %9 = arith.addf %7, %8 : vector<512x32xf32>
    %cst = arith.constant 0.000000e+00 : f32
    %10 = vector.broadcast %cst : f32 to vector<512x32xf32>
    %11 = arith.maximumf %9, %10 : vector<512x32xf32>
    %c0_7 = arith.constant 0 : index
    %c0_8 = arith.constant 0 : index
    %12 = vector.load %arg5[%c0_7, %c0_8] : memref<512x32xf32, #tpu.memory_space<vmem>>, vector<512x32xf32>
    tpu.vector_store %arg5[%c0_7, %c0_8], %11 {strides = array<i32>} : memref<512x32xf32, #tpu.memory_space<vmem>>, vector<512x32xf32>,
    return
  }
  func.func @transform_0(%arg0: i32) -> (i32, i32) {
    %c0_i32 = arith.constant 0 : i32
    %c0_i32_0 = arith.constant 0 : i32
    return %arg0, %c0_i32 : i32, i32
  }
  func.func @transform_1(%arg0: i32) -> (i32, i32) {
    %c0_i32 = arith.constant 0 : i32
    %c0_i32_0 = arith.constant 0 : i32
    %c0_i32_1 = arith.constant 0 : i32
    return %c0_i32, %c0_i32_0 : i32, i32
  }
  func.func @transform_2(%arg0: i32) -> (i32, i32) {
    %c0_i32 = arith.constant 0 : i32
    %c0_i32_0 = arith.constant 0 : i32
    %c0_i32_1 = arith.constant 0 : i32
    return %c0_i32, %c0_i32_0 : i32, i32
  }
  func.func @transform_3(%arg0: i32) -> (i32, i32) {
    %c0_i32 = arith.constant 0 : i32
    %c0_i32_0 = arith.constant 0 : i32
    return %arg0, %c0_i32 : i32, i32
  }
  func.func @transform_4(%arg0: i32) -> (i32, i32) {
    %c0_i32 = arith.constant 0 : i32
    %c0_i32_0 = arith.constant 0 : i32
    return %arg0, %c0_i32 : i32, i32
  }
}

</mosaic_0001>

<llo_original>
// kernel: bottleneck_pallas.7
$region0: #{bottleneck_pallas.7}
  #allocation0 [shape = 'u32[]', space=smem, size = 0x4, offset = 0x4, fixed_abs, tag = 'smem constant byte address 0x4 - core index']
  #allocation1 [shape = 'u32[144,128]{1,0:T(1,128)}', space=vmem, size = 0x12000, scoped, tag = 'internal scratch']
  %s0 = inlined_call_operand.vmem [shape: bf16[512,32], index: 0, kind: input, shape index: {}]
  %s1 = inlined_call_operand.vmem [shape: f32[1,32], index: 1, kind: input, shape index: {}]
  %s2 = inlined_call_operand.vmem [shape: f32[1,32], index: 2, kind: input, shape index: {}]
  %s3 = inlined_call_operand.vmem [shape: f32[512,32], index: 3, kind: input, shape index: {}]
  %s4 = inlined_call_operand.hbm [shape: f32[512,32], index: 4, kind: output, shape index: {}]
  %s5 = sld [smem:[#allocation0]]
  $region26: #{bottleneck_pallas.7} parent=0
    _
  %s7 = ssub.s32 1, %s5
  %s8 = scalar_select 0, %s7, %s5
  $region1: #{bottleneck_pallas.7} parent=0
    #allocation2 [shape = 'u8[262144]{0}', space=vmem, size = 0x40000, scoped, tag = 'output window, operand 0, single buffered']
    #allocation3 [shape = 's32[1]{0}', space=sflag, size = 0x4, scoped, tag = 'scoped memory for bottleneck_pallas.7']
    %9 = vsyncpa [#allocation3], 0
    // Predicated region
    $region2: #{bottleneck_pallas.7} parent=1 // pred_check
      _
    $region3: #{bottleneck_pallas.7} parent=1 // pred_check_branch
      %11 = sbr.rel (0) target = $region5
    $region4: #{bottleneck_pallas.7} parent=1 // pred_region
      _
    $region5: #{bottleneck_pallas.7} parent=1 // pred_fallthru
      _
    // Predicated region
    $region6: #{bottleneck_pallas.7} parent=1 // pred_check
      _
    $region7: #{bottleneck_pallas.7} parent=1 // pred_check_branch
      %13 = sbr.rel (0) target = $region9
    $region8: #{bottleneck_pallas.7} parent=1 // pred_region
      _
    $region9: #{bottleneck_pallas.7} parent=1 // pred_fallthru
      _
    // Predicated region
    $region10: #{bottleneck_pallas.7} parent=1 // pred_check
      _
    $region11: #{bottleneck_pallas.7} parent=1 // pred_check_branch
      %15 = sbr.rel (0) target = $region13
    $region12: #{bottleneck_pallas.7} parent=1 // pred_region
      _
    $region13: #{bottleneck_pallas.7} parent=1 // pred_fallthru
      _
    // Predicated region
    $region14: #{bottleneck_pallas.7} parent=1 // pred_check
      _
    $region15: #{bottleneck_pallas.7} parent=1 // pred_check_branch
      %17 = sbr.rel (0) target = $region17
    $region16: #{bottleneck_pallas.7} parent=1 // pred_region
      _
    $region17: #{bottleneck_pallas.7} parent=1 // pred_fallthru
      _
    %v18 = vld [vmem:[%s0] sm:$0xf]
    %v19 = vld [vmem:[%s0 + $0x4] sm:$0xf]
    %v20 = vld [vmem:[%s0 + $0x8] sm:$0xf]
    %v21 = vld [vmem:[%s0 + $0xc] sm:$0xf]
    %v22 = vld [vmem:[%s0 + $0x10] sm:$0xf]
    %v23 = vld [vmem:[%s0 + $0x14] sm:$0xf]
    %v24 = vld [vmem:[%s0 + $0x18] sm:$0xf]
    %v25 = vld [vmem:[%s0 + $0x1c] sm:$0xf]
    %v26 = vld [vmem:[%s0 + $0x20] sm:$0xf]
    %v27 = vld [vmem:[%s0 + $0x24] sm:$0xf]
    %v28 = vld [vmem:[%s0 + $0x28] sm:$0xf]
    %v29 = vld [vmem:[%s0 + $0x2c] sm:$0xf]
    %v30 = vld [vmem:[%s0 + $0x30] sm:$0xf]
    %v31 = vld [vmem:[%s0 + $0x34] sm:$0xf]
    %v32 = vld [vmem:[%s0 + $0x38] sm:$0xf]
    %v33 = vld [vmem:[%s0 + $0x3c] sm:$0xf]
    %v34 = vld [vmem:[%s0 + $0x40] sm:$0xf]
    %v35 = vld [vmem:[%s0 + $0x44] sm:$0xf]
    %v36 = vld [vmem:[%s0 + $0x48] sm:$0xf]
    %v37 = vld [vmem:[%s0 + $0x4c] sm:$0xf]
    %v38 = vld [vmem:[%s0 + $0x50] sm:$0xf]
    %v39 = vld [vmem:[%s0 + $0x54] sm:$0xf]
    %v40 = vld [vmem:[%s0 + $0x58] sm:$0xf]
    %v41 = vld [vmem:[%s0 + $0x5c] sm:$0xf]
    %v42 = vld [vmem:[%s0 + $0x60] sm:$0xf]
    %v43 = vld [vmem:[%s0 + $0x64] sm:$0xf]
    %v44 = vld [vmem:[%s0 + $0x68] sm:$0xf]
    %v45 = vld [vmem:[%s0 + $0x6c] sm:$0xf]
    %v46 = vld [vmem:[%s0 + $0x70] sm:$0xf]
    %v47 = vld [vmem:[%s0 + $0x74] sm:$0xf]
    %v48 = vld [vmem:[%s0 + $0x78] sm:$0xf]
    %v49 = vld [vmem:[%s0 + $0x7c] sm:$0xf]
    %v50 = vld [vmem:[%s0 + $0x80] sm:$0xf]
    %v51 = vld [vmem:[%s0 + $0x84] sm:$0xf]
    %v52 = vld [vmem:[%s0 + $0x88] sm:$0xf]
    %v53 = vld [vmem:[%s0 + $0x8c] sm:$0xf]
    %v54 = vld [vmem:[%s0 + $0x90] sm:$0xf]
    %v55 = vld [vmem:[%s0 + $0x94] sm:$0xf]
    %v56 = vld [vmem:[%s0 + $0x98] sm:$0xf]
    %v57 = vld [vmem:[%s0 + $0x9c] sm:$0xf]
    %v58 = vld [vmem:[%s0 + $0xa0] sm:$0xf]
    %v59 = vld [vmem:[%s0 + $0xa4] sm:$0xf]
    %v60 = vld [vmem:[%s0 + $0xa8] sm:$0xf]
    %v61 = vld [vmem:[%s0 + $0xac] sm:$0xf]
    %v62 = vld [vmem:[%s0 + $0xb0] sm:$0xf]
    %v63 = vld [vmem:[%s0 + $0xb4] sm:$0xf]
    %v64 = vld [vmem:[%s0 + $0xb8] sm:$0xf]
    %v65 = vld [vmem:[%s0 + $0xbc] sm:$0xf]
    %v66 = vld [vmem:[%s0 + $0xc0] sm:$0xf]
    %v67 = vld [vmem:[%s0 + $0xc4] sm:$0xf]
    %v68 = vld [vmem:[%s0 + $0xc8] sm:$0xf]
    %v69 = vld [vmem:[%s0 + $0xcc] sm:$0xf]
    %v70 = vld [vmem:[%s0 + $0xd0] sm:$0xf]
    %v71 = vld [vmem:[%s0 + $0xd4] sm:$0xf]
    %v72 = vld [vmem:[%s0 + $0xd8] sm:$0xf]
    %v73 = vld [vmem:[%s0 + $0xdc] sm:$0xf]
    %v74 = vld [vmem:[%s0 + $0xe0] sm:$0xf]
    %v75 = vld [vmem:[%s0 + $0xe4] sm:$0xf]
    %v76 = vld [vmem:[%s0 + $0xe8] sm:$0xf]
    %v77 = vld [vmem:[%s0 + $0xec] sm:$0xf]
    %v78 = vld [vmem:[%s0 + $0xf0] sm:$0xf]
    %v79 = vld [vmem:[%s0 + $0xf4] sm:$0xf]
    %v80 = vld [vmem:[%s0 + $0xf8] sm:$0xf]
    %v81 = vld [vmem:[%s0 + $0xfc] sm:$0xf]
    %v82 = vunpack.c.l.bf16 %v18
    %v83 = vunpack.c.l.bf16 %v19
    %v84 = vunpack.c.l.bf16 %v20
    %v85 = vunpack.c.l.bf16 %v21
    %v86 = vunpack.c.l.bf16 %v22
    %v87 = vunpack.c.l.bf16 %v23
    %v88 = vunpack.c.l.bf16 %v24
    %v89 = vunpack.c.l.bf16 %v25
    %v90 = vunpack.c.l.bf16 %v26
    %v91 = vunpack.c.l.bf16 %v27
    %v92 = vunpack.c.l.bf16 %v28
    %v93 = vunpack.c.l.bf16 %v29
    %v94 = vunpack.c.l.bf16 %v30
    %v95 = vunpack.c.l.bf16 %v31
    %v96 = vunpack.c.l.bf16 %v32
    %v97 = vunpack.c.l.bf16 %v33
    %v98 = vunpack.c.l.bf16 %v34
    %v99 = vunpack.c.l.bf16 %v35
    %v100 = vunpack.c.l.bf16 %v36
    %v101 = vunpack.c.l.bf16 %v37
    %v102 = vunpack.c.l.bf16 %v38
    %v103 = vunpack.c.l.bf16 %v39
    %v104 = vunpack.c.l.bf16 %v40
    %v105 = vunpack.c.l.bf16 %v41
    %v106 = vunpack.c.l.bf16 %v42
    %v107 = vunpack.c.l.bf16 %v43
    %v108 = vunpack.c.l.bf16 %v44
    %v109 = vunpack.c.l.bf16 %v45
    %v110 = vunpack.c.l.bf16 %v46
    %v111 = vunpack.c.l.bf16 %v47
    %v112 = vunpack.c.l.bf16 %v48
    %v113 = vunpack.c.l.bf16 %v49
    %v114 = vunpack.c.l.bf16 %v50
    %v115 = vunpack.c.l.bf16 %v51
    %v116 = vunpack.c.l.bf16 %v52
    %v117 = vunpack.c.l.bf16 %v53
    %v118 = vunpack.c.l.bf16 %v54
    %v119 = vunpack.c.l.bf16 %v55
    %v120 = vunpack.c.l.bf16 %v56
    %v121 = vunpack.c.l.bf16 %v57
    %v122 = vunpack.c.l.bf16 %v58
    %v123 = vunpack.c.l.bf16 %v59
    %v124 = vunpack.c.l.bf16 %v60
    %v125 = vunpack.c.l.bf16 %v61
    %v126 = vunpack.c.l.bf16 %v62
    %v127 = vunpack.c.l.bf16 %v63
    %v128 = vunpack.c.l.bf16 %v64
    %v129 = vunpack.c.l.bf16 %v65
    %v130 = vunpack.c.l.bf16 %v66
    %v131 = vunpack.c.l.bf16 %v67
    %v132 = vunpack.c.l.bf16 %v68
    %v133 = vunpack.c.l.bf16 %v69
    %v134 = vunpack.c.l.bf16 %v70
    %v135 = vunpack.c.l.bf16 %v71
    %v136 = vunpack.c.l.bf16 %v72
    %v137 = vunpack.c.l.bf16 %v73
    %v138 = vunpack.c.l.bf16 %v74
    %v139 = vunpack.c.l.bf16 %v75
    %v140 = vunpack.c.l.bf16 %v76
    %v141 = vunpack.c.l.bf16 %v77
    %v142 = vunpack.c.l.bf16 %v78
    %v143 = vunpack.c.l.bf16 %v79
    %v144 = vunpack.c.l.bf16 %v80
    %v145 = vunpack.c.l.bf16 %v81
    %v146 = vld [vmem:[%s1] sm:$0x1]
    %v148 = vlaneseq
    %v149 = vshrl.u32 %v148, 7
    %v150 = vsub.s32 0, %v149
    %v151 = vrot.slane %v146, %v150
    %v153 = vmul.f32 %v82, %v151
    %v154 = vmul.f32 %v83, %v151
    %v155 = vmul.f32 %v84, %v151
    %v156 = vmul.f32 %v85, %v151
    %v157 = vmul.f32 %v86, %v151
    %v158 = vmul.f32 %v87, %v151
    %v159 = vmul.f32 %v88, %v151
    %v160 = vmul.f32 %v89, %v151
    %v161 = vmul.f32 %v90, %v151
    %v162 = vmul.f32 %v91, %v151
    %v163 = vmul.f32 %v92, %v151
    %v164 = vmul.f32 %v93, %v151
    %v165 = vmul.f32 %v94, %v151
    %v166 = vmul.f32 %v95, %v151
    %v167 = vmul.f32 %v96, %v151
    %v168 = vmul.f32 %v97, %v151
    %v169 = vmul.f32 %v98, %v151
    %v170 = vmul.f32 %v99, %v151
    %v171 = vmul.f32 %v100, %v151
    %v172 = vmul.f32 %v101, %v151
    %v173 = vmul.f32 %v102, %v151
    %v174 = vmul.f32 %v103, %v151
    %v175 = vmul.f32 %v104, %v151
    %v176 = vmul.f32 %v105, %v151
    %v177 = vmul.f32 %v106, %v151
    %v178 = vmul.f32 %v107, %v151
    %v179 = vmul.f32 %v108, %v151
    %v180 = vmul.f32 %v109, %v151
    %v181 = vmul.f32 %v110, %v151
    %v182 = vmul.f32 %v111, %v151
    %v183 = vmul.f32 %v112, %v151
    %v184 = vmul.f32 %v113, %v151
    %v185 = vmul.f32 %v114, %v151
    %v186 = vmul.f32 %v115, %v151
    %v187 = vmul.f32 %v116, %v151
    %v188 = vmul.f32 %v117, %v151
    %v189 = vmul.f32 %v118, %v151
    %v190 = vmul.f32 %v119, %v151
    %v191 = vmul.f32 %v120, %v151
    %v192 = vmul.f32 %v121, %v151
    %v193 = vmul.f32 %v122, %v151
    %v194 = vmul.f32 %v123, %v151
    %v195 = vmul.f32 %v124, %v151
    %v196 = vmul.f32 %v125, %v151
    %v197 = vmul.f32 %v126, %v151
    %v198 = vmul.f32 %v127, %v151
    %v199 = vmul.f32 %v128, %v151
    %v200 = vmul.f32 %v129, %v151
    %v201 = vmul.f32 %v130, %v151
    %v202 = vmul.f32 %v131, %v151
    %v203 = vmul.f32 %v132, %v151
    %v204 = vmul.f32 %v133, %v151
    %v205 = vmul.f32 %v134, %v151
    %v206 = vmul.f32 %v135, %v151
    %v207 = vmul.f32 %v136, %v151
    %v208 = vmul.f32 %v137, %v151
    %v209 = vmul.f32 %v138, %v151
    %v210 = vmul.f32 %v139, %v151
    %v211 = vmul.f32 %v140, %v151
    %v212 = vmul.f32 %v141, %v151
    %v213 = vmul.f32 %v142, %v151
    %v214 = vmul.f32 %v143, %v151
    %v215 = vmul.f32 %v144, %v151
    %v216 = vmul.f32 %v145, %v151
    %v217 = vld [vmem:[%s2] sm:$0x1]
    %v219 = vlaneseq
    %v220 = vshrl.u32 %v219, 7
    %v221 = vsub.s32 0, %v220
    %v222 = vrot.slane %v217, %v221
    %v224 = vadd.f32 %v153, %v222
    %v225 = vadd.f32 %v154, %v222
    %v226 = vadd.f32 %v155, %v222
    %v227 = vadd.f32 %v156, %v222
    %v228 = vadd.f32 %v157, %v222
    %v229 = vadd.f32 %v158, %v222
    %v230 = vadd.f32 %v159, %v222
    %v231 = vadd.f32 %v160, %v222
    %v232 = vadd.f32 %v161, %v222
    %v233 = vadd.f32 %v162, %v222
    %v234 = vadd.f32 %v163, %v222
    %v235 = vadd.f32 %v164, %v222
    %v236 = vadd.f32 %v165, %v222
    %v237 = vadd.f32 %v166, %v222
    %v238 = vadd.f32 %v167, %v222
    %v239 = vadd.f32 %v168, %v222
    %v240 = vadd.f32 %v169, %v222
    %v241 = vadd.f32 %v170, %v222
    %v242 = vadd.f32 %v171, %v222
    %v243 = vadd.f32 %v172, %v222
    %v244 = vadd.f32 %v173, %v222
    %v245 = vadd.f32 %v174, %v222
    %v246 = vadd.f32 %v175, %v222
    %v247 = vadd.f32 %v176, %v222
    %v248 = vadd.f32 %v177, %v222
    %v249 = vadd.f32 %v178, %v222
    %v250 = vadd.f32 %v179, %v222
    %v251 = vadd.f32 %v180, %v222
    %v252 = vadd.f32 %v181, %v222
    %v253 = vadd.f32 %v182, %v222
    %v254 = vadd.f32 %v183, %v222
    %v255 = vadd.f32 %v184, %v222
    %v256 = vadd.f32 %v185, %v222
    %v257 = vadd.f32 %v186, %v222
    %v258 = vadd.f32 %v187, %v222
    %v259 = vadd.f32 %v188, %v222
    %v260 = vadd.f32 %v189, %v222
    %v261 = vadd.f32 %v190, %v222
    %v262 = vadd.f32 %v191, %v222
    %v263 = vadd.f32 %v192, %v222
    %v264 = vadd.f32 %v193, %v222
    %v265 = vadd.f32 %v194, %v222
    %v266 = vadd.f32 %v195, %v222
    %v267 = vadd.f32 %v196, %v222
    %v268 = vadd.f32 %v197, %v222
    %v269 = vadd.f32 %v198, %v222
    %v270 = vadd.f32 %v199, %v222
    %v271 = vadd.f32 %v200, %v222
    %v272 = vadd.f32 %v201, %v222
    %v273 = vadd.f32 %v202, %v222
    %v274 = vadd.f32 %v203, %v222
    %v275 = vadd.f32 %v204, %v222
    %v276 = vadd.f32 %v205, %v222
    %v277 = vadd.f32 %v206, %v222
    %v278 = vadd.f32 %v207, %v222
    %v279 = vadd.f32 %v208, %v222
    %v280 = vadd.f32 %v209, %v222
    %v281 = vadd.f32 %v210, %v222
    %v282 = vadd.f32 %v211, %v222
    %v283 = vadd.f32 %v212, %v222
    %v284 = vadd.f32 %v213, %v222
    %v285 = vadd.f32 %v214, %v222
    %v286 = vadd.f32 %v215, %v222
    %v287 = vadd.f32 %v216, %v222
    %v288 = vld [vmem:[%s3] sm:$0xff]
    %v289 = vld [vmem:[%s3 + $0x8] sm:$0xff]
    %v290 = vld [vmem:[%s3 + $0x10] sm:$0xff]
    %v291 = vld [vmem:[%s3 + $0x18] sm:$0xff]
    %v292 = vld [vmem:[%s3 + $0x20] sm:$0xff]
    %v293 = vld [vmem:[%s3 + $0x28] sm:$0xff]
    %v294 = vld [vmem:[%s3 + $0x30] sm:$0xff]
    %v295 = vld [vmem:[%s3 + $0x38] sm:$0xff]
    %v296 = vld [vmem:[%s3 + $0x40] sm:$0xff]
    %v297 = vld [vmem:[%s3 + $0x48] sm:$0xff]
    %v298 = vld [vmem:[%s3 + $0x50] sm:$0xff]
    %v299 = vld [vmem:[%s3 + $0x58] sm:$0xff]
    %v300 = vld [vmem:[%s3 + $0x60] sm:$0xff]
    %v301 = vld [vmem:[%s3 + $0x68] sm:$0xff]
    %v302 = vld [vmem:[%s3 + $0x70] sm:$0xff]
    %v303 = vld [vmem:[%s3 + $0x78] sm:$0xff]
    %v304 = vld [vmem:[%s3 + $0x80] sm:$0xff]
    %v305 = vld [vmem:[%s3 + $0x88] sm:$0xff]
    %v306 = vld [vmem:[%s3 + $0x90] sm:$0xff]
    %v307 = vld [vmem:[%s3 + $0x98] sm:$0xff]
    %v308 = vld [vmem:[%s3 + $0xa0] sm:$0xff]
    %v309 = vld [vmem:[%s3 + $0xa8] sm:$0xff]
    %v310 = vld [vmem:[%s3 + $0xb0] sm:$0xff]
    %v311 = vld [vmem:[%s3 + $0xb8] sm:$0xff]
    %v312 = vld [vmem:[%s3 + $0xc0] sm:$0xff]
    %v313 = vld [vmem:[%s3 + $0xc8] sm:$0xff]
    %v314 = vld [vmem:[%s3 + $0xd0] sm:$0xff]
    %v315 = vld [vmem:[%s3 + $0xd8] sm:$0xff]
    %v316 = vld [vmem:[%s3 + $0xe0] sm:$0xff]
    %v317 = vld [vmem:[%s3 + $0xe8] sm:$0xff]
    %v318 = vld [vmem:[%s3 + $0xf0] sm:$0xff]
    %v319 = vld [vmem:[%s3 + $0xf8] sm:$0xff]
    %v320 = vld [vmem:[%s3 + $0x100] sm:$0xff]
    %v321 = vld [vmem:[%s3 + $0x108] sm:$0xff]
    %v322 = vld [vmem:[%s3 + $0x110] sm:$0xff]
    %v323 = vld [vmem:[%s3 + $0x118] sm:$0xff]
    %v324 = vld [vmem:[%s3 + $0x120] sm:$0xff]
    %v325 = vld [vmem:[%s3 + $0x128] sm:$0xff]
    %v326 = vld [vmem:[%s3 + $0x130] sm:$0xff]
    %v327 = vld [vmem:[%s3 + $0x138] sm:$0xff]
    %v328 = vld [vmem:[%s3 + $0x140] sm:$0xff]
    %v329 = vld [vmem:[%s3 + $0x148] sm:$0xff]
    %v330 = vld [vmem:[%s3 + $0x150] sm:$0xff]
    %v331 = vld [vmem:[%s3 + $0x158] sm:$0xff]
    %v332 = vld [vmem:[%s3 + $0x160] sm:$0xff]
    %v333 = vld [vmem:[%s3 + $0x168] sm:$0xff]
    %v334 = vld [vmem:[%s3 + $0x170] sm:$0xff]
    %v335 = vld [vmem:[%s3 + $0x178] sm:$0xff]
    %v336 = vld [vmem:[%s3 + $0x180] sm:$0xff]
    %v337 = vld [vmem:[%s3 + $0x188] sm:$0xff]
    %v338 = vld [vmem:[%s3 + $0x190] sm:$0xff]
    %v339 = vld [vmem:[%s3 + $0x198] sm:$0xff]
    %v340 = vld [vmem:[%s3 + $0x1a0] sm:$0xff]
    %v341 = vld [vmem:[%s3 + $0x1a8] sm:$0xff]
    %v342 = vld [vmem:[%s3 + $0x1b0] sm:$0xff]
    %v343 = vld [vmem:[%s3 + $0x1b8] sm:$0xff]
    %v344 = vld [vmem:[%s3 + $0x1c0] sm:$0xff]
    %v345 = vld [vmem:[%s3 + $0x1c8] sm:$0xff]
    %v346 = vld [vmem:[%s3 + $0x1d0] sm:$0xff]
    %v347 = vld [vmem:[%s3 + $0x1d8] sm:$0xff]
    %v348 = vld [vmem:[%s3 + $0x1e0] sm:$0xff]
    %v349 = vld [vmem:[%s3 + $0x1e8] sm:$0xff]
    %v350 = vld [vmem:[%s3 + $0x1f0] sm:$0xff]
    %v351 = vld [vmem:[%s3 + $0x1f8] sm:$0xff]
    %v352 = vadd.f32 %v224, %v288
    %v353 = vadd.f32 %v225, %v289
    %v354 = vadd.f32 %v226, %v290
    %v355 = vadd.f32 %v227, %v291
    %v356 = vadd.f32 %v228, %v292
    %v357 = vadd.f32 %v229, %v293
    %v358 = vadd.f32 %v230, %v294
    %v359 = vadd.f32 %v231, %v295
    %v360 = vadd.f32 %v232, %v296
    %v361 = vadd.f32 %v233, %v297
    %v362 = vadd.f32 %v234, %v298
    %v363 = vadd.f32 %v235, %v299
    %v364 = vadd.f32 %v236, %v300
    %v365 = vadd.f32 %v237, %v301
    %v366 = vadd.f32 %v238, %v302
    %v367 = vadd.f32 %v239, %v303
    %v368 = vadd.f32 %v240, %v304
    %v369 = vadd.f32 %v241, %v305
    %v370 = vadd.f32 %v242, %v306
    %v371 = vadd.f32 %v243, %v307
    %v372 = vadd.f32 %v244, %v308
    %v373 = vadd.f32 %v245, %v309
    %v374 = vadd.f32 %v246, %v310
    %v375 = vadd.f32 %v247, %v311
    %v376 = vadd.f32 %v248, %v312
    %v377 = vadd.f32 %v249, %v313
    %v378 = vadd.f32 %v250, %v314
    %v379 = vadd.f32 %v251, %v315
    %v380 = vadd.f32 %v252, %v316
    %v381 = vadd.f32 %v253, %v317
    %v382 = vadd.f32 %v254, %v318
    %v383 = vadd.f32 %v255, %v319
    %v384 = vadd.f32 %v256, %v320
    %v385 = vadd.f32 %v257, %v321
    %v386 = vadd.f32 %v258, %v322
    %v387 = vadd.f32 %v259, %v323
    %v388 = vadd.f32 %v260, %v324
    %v389 = vadd.f32 %v261, %v325
    %v390 = vadd.f32 %v262, %v326
    %v391 = vadd.f32 %v263, %v327
    %v392 = vadd.f32 %v264, %v328
    %v393 = vadd.f32 %v265, %v329
    %v394 = vadd.f32 %v266, %v330
    %v395 = vadd.f32 %v267, %v331
    %v396 = vadd.f32 %v268, %v332
    %v397 = vadd.f32 %v269, %v333
    %v398 = vadd.f32 %v270, %v334
    %v399 = vadd.f32 %v271, %v335
    %v400 = vadd.f32 %v272, %v336
    %v401 = vadd.f32 %v273, %v337
    %v402 = vadd.f32 %v274, %v338
    %v403 = vadd.f32 %v275, %v339
    %v404 = vadd.f32 %v276, %v340
    %v405 = vadd.f32 %v277, %v341
    %v406 = vadd.f32 %v278, %v342
    %v407 = vadd.f32 %v279, %v343
    %v408 = vadd.f32 %v280, %v344
    %v409 = vadd.f32 %v281, %v345
    %v410 = vadd.f32 %v282, %v346
    %v411 = vadd.f32 %v283, %v347
    %v412 = vadd.f32 %v284, %v348
    %v413 = vadd.f32 %v285, %v349
    %v414 = vadd.f32 %v286, %v350
    %v415 = vadd.f32 %v287, %v351
    %v416 = vmax.f32 %v352, 0.0
    %v417 = vmax.f32 %v353, 0.0
    %v418 = vmax.f32 %v354, 0.0
    %v419 = vmax.f32 %v355, 0.0
    %v420 = vmax.f32 %v356, 0.0
    %v421 = vmax.f32 %v357, 0.0
    %v422 = vmax.f32 %v358, 0.0
    %v423 = vmax.f32 %v359, 0.0
    %v424 = vmax.f32 %v360, 0.0
    %v425 = vmax.f32 %v361, 0.0
    %v426 = vmax.f32 %v362, 0.0
    %v427 = vmax.f32 %v363, 0.0
    %v428 = vmax.f32 %v364, 0.0
    %v429 = vmax.f32 %v365, 0.0
    %v430 = vmax.f32 %v366, 0.0
    %v431 = vmax.f32 %v367, 0.0
    %v432 = vmax.f32 %v368, 0.0
    %v433 = vmax.f32 %v369, 0.0
    %v434 = vmax.f32 %v370, 0.0
    %v435 = vmax.f32 %v371, 0.0
    %v436 = vmax.f32 %v372, 0.0
    %v437 = vmax.f32 %v373, 0.0
    %v438 = vmax.f32 %v374, 0.0
    %v439 = vmax.f32 %v375, 0.0
    %v440 = vmax.f32 %v376, 0.0
    %v441 = vmax.f32 %v377, 0.0
    %v442 = vmax.f32 %v378, 0.0
    %v443 = vmax.f32 %v379, 0.0
    %v444 = vmax.f32 %v380, 0.0
    %v445 = vmax.f32 %v381, 0.0
    %v446 = vmax.f32 %v382, 0.0
    %v447 = vmax.f32 %v383, 0.0
    %v448 = vmax.f32 %v384, 0.0
    %v449 = vmax.f32 %v385, 0.0
    %v450 = vmax.f32 %v386, 0.0
    %v451 = vmax.f32 %v387, 0.0
    %v452 = vmax.f32 %v388, 0.0
    %v453 = vmax.f32 %v389, 0.0
    %v454 = vmax.f32 %v390, 0.0
    %v455 = vmax.f32 %v391, 0.0
    %v456 = vmax.f32 %v392, 0.0
    %v457 = vmax.f32 %v393, 0.0
    %v458 = vmax.f32 %v394, 0.0
    %v459 = vmax.f32 %v395, 0.0
    %v460 = vmax.f32 %v396, 0.0
    %v461 = vmax.f32 %v397, 0.0
    %v462 = vmax.f32 %v398, 0.0
    %v463 = vmax.f32 %v399, 0.0
    %v464 = vmax.f32 %v400, 0.0
    %v465 = vmax.f32 %v401, 0.0
    %v466 = vmax.f32 %v402, 0.0
    %v467 = vmax.f32 %v403, 0.0
    %v468 = vmax.f32 %v404, 0.0
    %v469 = vmax.f32 %v405, 0.0
    %v470 = vmax.f32 %v406, 0.0
    %v471 = vmax.f32 %v407, 0.0
    %v472 = vmax.f32 %v408, 0.0
    %v473 = vmax.f32 %v409, 0.0
    %v474 = vmax.f32 %v410, 0.0
    %v475 = vmax.f32 %v411, 0.0
    %v476 = vmax.f32 %v412, 0.0
    %v477 = vmax.f32 %v413, 0.0
    %v478 = vmax.f32 %v414, 0.0
    %v479 = vmax.f32 %v415, 0.0
    %vm480 = vcmask 261120
    %481 = vst.msk [vmem:[#allocation2] sm:$0xff] %vm480, %v416
    %482 = vst.msk [vmem:[#allocation2 + $0x8] sm:$0xff] %vm480, %v417
    %483 = vst.msk [vmem:[#allocation2 + $0x10] sm:$0xff] %vm480, %v418
    %484 = vst.msk [vmem:[#allocation2 + $0x18] sm:$0xff] %vm480, %v419
    %485 = vst.msk [vmem:[#allocation2 + $0x20] sm:$0xff] %vm480, %v420
    %486 = vst.msk [vmem:[#allocation2 + $0x28] sm:$0xff] %vm480, %v421
    %487 = vst.msk [vmem:[#allocation2 + $0x30] sm:$0xff] %vm480, %v422
    %488 = vst.msk [vmem:[#allocation2 + $0x38] sm:$0xff] %vm480, %v423
    %489 = vst.msk [vmem:[#allocation2 + $0x40] sm:$0xff] %vm480, %v424
    %490 = vst.msk [vmem:[#allocation2 + $0x48] sm:$0xff] %vm480, %v425
    %491 = vst.msk [vmem:[#allocation2 + $0x50] sm:$0xff] %vm480, %v426
    %492 = vst.msk [vmem:[#allocation2 + $0x58] sm:$0xff] %vm480, %v427
    %493 = vst.msk [vmem:[#allocation2 + $0x60] sm:$0xff] %vm480, %v428
    %494 = vst.msk [vmem:[#allocation2 + $0x68] sm:$0xff] %vm480, %v429
    %495 = vst.msk [vmem:[#allocation2 + $0x70] sm:$0xff] %vm480, %v430
    %496 = vst.msk [vmem:[#allocation2 + $0x78] sm:$0xff] %vm480, %v431
    %497 = vst.msk [vmem:[#allocation2 + $0x80] sm:$0xff] %vm480, %v432
    %498 = vst.msk [vmem:[#allocation2 + $0x88] sm:$0xff] %vm480, %v433
    %499 = vst.msk [vmem:[#allocation2 + $0x90] sm:$0xff] %vm480, %v434
    %500 = vst.msk [vmem:[#allocation2 + $0x98] sm:$0xff] %vm480, %v435
    %501 = vst.msk [vmem:[#allocation2 + $0xa0] sm:$0xff] %vm480, %v436
    %502 = vst.msk [vmem:[#allocation2 + $0xa8] sm:$0xff] %vm480, %v437
    %503 = vst.msk [vmem:[#allocation2 + $0xb0] sm:$0xff] %vm480, %v438
    %504 = vst.msk [vmem:[#allocation2 + $0xb8] sm:$0xff] %vm480, %v439
    %505 = vst.msk [vmem:[#allocation2 + $0xc0] sm:$0xff] %vm480, %v440
    %506 = vst.msk [vmem:[#allocation2 + $0xc8] sm:$0xff] %vm480, %v441
    %507 = vst.msk [vmem:[#allocation2 + $0xd0] sm:$0xff] %vm480, %v442
    %508 = vst.msk [vmem:[#allocation2 + $0xd8] sm:$0xff] %vm480, %v443
    %509 = vst.msk [vmem:[#allocation2 + $0xe0] sm:$0xff] %vm480, %v444
    %510 = vst.msk [vmem:[#allocation2 + $0xe8] sm:$0xff] %vm480, %v445
    %511 = vst.msk [vmem:[#allocation2 + $0xf0] sm:$0xff] %vm480, %v446
    %512 = vst.msk [vmem:[#allocation2 + $0xf8] sm:$0xff] %vm480, %v447
    %513 = vst.msk [vmem:[#allocation2 + $0x100] sm:$0xff] %vm480, %v448
    %514 = vst.msk [vmem:[#allocation2 + $0x108] sm:$0xff] %vm480, %v449
    %515 = vst.msk [vmem:[#allocation2 + $0x110] sm:$0xff] %vm480, %v450
    %516 = vst.msk [vmem:[#allocation2 + $0x118] sm:$0xff] %vm480, %v451
    %517 = vst.msk [vmem:[#allocation2 + $0x120] sm:$0xff] %vm480, %v452
    %518 = vst.msk [vmem:[#allocation2 + $0x128] sm:$0xff] %vm480, %v453
    %519 = vst.msk [vmem:[#allocation2 + $0x130] sm:$0xff] %vm480, %v454
    %520 = vst.msk [vmem:[#allocation2 + $0x138] sm:$0xff] %vm480, %v455
    %521 = vst.msk [vmem:[#allocation2 + $0x140] sm:$0xff] %vm480, %v456
    %522 = vst.msk [vmem:[#allocation2 + $0x148] sm:$0xff] %vm480, %v457
    %523 = vst.msk [vmem:[#allocation2 + $0x150] sm:$0xff] %vm480, %v458
    %524 = vst.msk [vmem:[#allocation2 + $0x158] sm:$0xff] %vm480, %v459
    %525 = vst.msk [vmem:[#allocation2 + $0x160] sm:$0xff] %vm480, %v460
    %526 = vst.msk [vmem:[#allocation2 + $0x168] sm:$0xff] %vm480, %v461
    %527 = vst.msk [vmem:[#allocation2 + $0x170] sm:$0xff] %vm480, %v462
    %528 = vst.msk [vmem:[#allocation2 + $0x178] sm:$0xff] %vm480, %v463
    %529 = vst.msk [vmem:[#allocation2 + $0x180] sm:$0xff] %vm480, %v464
    %530 = vst.msk [vmem:[#allocation2 + $0x188] sm:$0xff] %vm480, %v465
    %531 = vst.msk [vmem:[#allocation2 + $0x190] sm:$0xff] %vm480, %v466
    %532 = vst.msk [vmem:[#allocation2 + $0x198] sm:$0xff] %vm480, %v467
    %533 = vst.msk [vmem:[#allocation2 + $0x1a0] sm:$0xff] %vm480, %v468
    %534 = vst.msk [vmem:[#allocation2 + $0x1a8] sm:$0xff] %vm480, %v469
    %535 = vst.msk [vmem:[#allocation2 + $0x1b0] sm:$0xff] %vm480, %v470
    %536 = vst.msk [vmem:[#allocation2 + $0x1b8] sm:$0xff] %vm480, %v471
    %537 = vst.msk [vmem:[#allocation2 + $0x1c0] sm:$0xff] %vm480, %v472
    %538 = vst.msk [vmem:[#allocation2 + $0x1c8] sm:$0xff] %vm480, %v473
    %539 = vst.msk [vmem:[#allocation2 + $0x1d0] sm:$0xff] %vm480, %v474
    %540 = vst.msk [vmem:[#allocation2 + $0x1d8] sm:$0xff] %vm480, %v475
    %541 = vst.msk [vmem:[#allocation2 + $0x1e0] sm:$0xff] %vm480, %v476
    %542 = vst.msk [vmem:[#allocation2 + $0x1e8] sm:$0xff] %vm480, %v477
    %543 = vst.msk [vmem:[#allocation2 + $0x1f0] sm:$0xff] %vm480, %v478
    %544 = vst.msk [vmem:[#allocation2 + $0x1f8] sm:$0xff] %vm480, %v479
    // Predicated region
    $region18: #{bottleneck_pallas.7} parent=1 // pred_check
      _
    $region19: #{bottleneck_pallas.7} parent=1 // pred_check_branch
      %546 = sbr.rel (0) target = $region21
    $region20: #{bottleneck_pallas.7} parent=1 // pred_region
      %s548 = ssub.s32 8192, 8192
      %549 = vsyncadd [#allocation3], %s548
      %s550 = sshll.u32 [#allocation2], 4
      %s551 = int_to_ptr.vmem [resolvable:$true] %s550
      %556 = dma.vmem_to_hbm [thread:$0]  %s551, 8192, %s4, [#allocation3], 128, 128, 8
    $region21: #{bottleneck_pallas.7} parent=1 // pred_fallthru
      _
    // Predicated region
    $region22: #{bottleneck_pallas.7} parent=1 // pred_check
      _
    $region23: #{bottleneck_pallas.7} parent=1 // pred_check_branch
      %558 = sbr.rel (0) target = $region25
    $region24: #{bottleneck_pallas.7} parent=1 // pred_region
      %559 = dma.done [#allocation3], 8192
    $region25: #{bottleneck_pallas.7} parent=1 // pred_fallthru
      _
    %560 = vsyncpa [#allocation3], 1

// kernel: bottleneck_pallas.4
$region0: #{bottleneck_pallas.4}
  #allocation0 [shape = 'u32[]', space=smem, size = 0x4, offset = 0x4, fixed_abs, tag = 'smem constant byte address 0x4 - core index']
  #allocation1 [shape = 'u32[144,128]{1,0:T(1,128)}', space=vmem, size = 0x12000, scoped, tag = 'internal scratch']
  %s0 = inlined_call_operand.hbm [shape: f32[512,32], index: 0, kind: input, shape index: {}]
  %s1 = inlined_call_operand.vmem [shape: bf16[32,8], index: 1, kind: input, shape index: {}]
  %s2 = inlined_call_operand.vmem [shape: bf16[512,8], index: 2, kind: output, shape index: {0}]
  %s3 = inlined_call_operand.vmem [shape: f32[1,1,8], index: 3, kind: output, shape index: {1}]
  %s4 = inlined_call_operand.vmem [shape: f32[1,1,8], index: 4, kind: output, shape index: {2}]
  %5 = xla_tuple %s2, %s3, %s4
  %s6 = sld [smem:[#allocation0]]
  $region38: #{bottleneck_pallas.4} parent=0
    _
  %s8 = ssub.s32 1, %s6
  %s9 = scalar_select 0, %s8, %s6
  $region1: #{bottleneck_pallas.4} parent=0
    #allocation2 [shape = 'u8[262144]{0}', space=vmem, size = 0x40000, scoped, tag = 'input window, operand 0, single buffered']
    #allocation3 [shape = 's32[1]{0}', space=sflag, size = 0x4, scoped, tag = 'scoped memory for bottleneck_pallas.4']
    %10 = vsyncpa [#allocation3], 0
    // Predicated region
    $region2: #{bottleneck_pallas.4} parent=1 // pred_check
      _
    $region3: #{bottleneck_pallas.4} parent=1 // pred_check_branch
      %12 = sbr.rel (0) target = $region5
    $region4: #{bottleneck_pallas.4} parent=1 // pred_region
      %s14 = ssub.s32 8192, 8192
      %15 = vsyncadd [#allocation3], %s14
      %s16 = sshll.u32 [#allocation2], 4
      %s17 = int_to_ptr.vmem [resolvable:$true] %s16
      %22 = dma.hbm_to_vmem [thread:$0]  %s0, 8192, %s17, [#allocation3], 128, 128, 8
    $region5: #{bottleneck_pallas.4} parent=1 // pred_fallthru
      _
    // Predicated region
    $region6: #{bottleneck_pallas.4} parent=1 // pred_check
      _
    $region7: #{bottleneck_pallas.4} parent=1 // pred_check_branch
      %24 = sbr.rel (0) target = $region9
    $region8: #{bottleneck_pallas.4} parent=1 // pred_region
      _
    $region9: #{bottleneck_pallas.4} parent=1 // pred_fallthru
      _
    // Predicated region
    $region10: #{bottleneck_pallas.4} parent=1 // pred_check
      _
    $region11: #{bottleneck_pallas.4} parent=1 // pred_check_branch
      %26 = sbr.rel (0) target = $region13
    $region12: #{bottleneck_pallas.4} parent=1 // pred_region
      %27 = dma.done [#allocation3], 8192
    $region13: #{bottleneck_pallas.4} parent=1 // pred_fallthru
      _
    %v29 = vld [vmem:[#allocation2] sm:$0xff]
    %v30 = vld [vmem:[#allocation2 + $0x8] sm:$0xff]
    %v31 = vld [vmem:[#allocation2 + $0x10] sm:$0xff]
    %v32 = vld [vmem:[#allocation2 + $0x18] sm:$0xff]
    %v33 = vld [vmem:[#allocation2 + $0x20] sm:$0xff]
    %v34 = vld [vmem:[#allocation2 + $0x28] sm:$0xff]
    %v35 = vld [vmem:[#allocation2 + $0x30] sm:$0xff]
    %v36 = vld [vmem:[#allocation2 + $0x38] sm:$0xff]
    %v37 = vld [vmem:[#allocation2 + $0x40] sm:$0xff]
    %v38 = vld [vmem:[#allocation2 + $0x48] sm:$0xff]
    %v39 = vld [vmem:[#allocation2 + $0x50] sm:$0xff]
    %v40 = vld [vmem:[#allocation2 + $0x58] sm:$0xff]
    %v41 = vld [vmem:[#allocation2 + $0x60] sm:$0xff]
    %v42 = vld [vmem:[#allocation2 + $0x68] sm:$0xff]
    %v43 = vld [vmem:[#allocation2 + $0x70] sm:$0xff]
    %v44 = vld [vmem:[#allocation2 + $0x78] sm:$0xff]
    %v45 = vld [vmem:[#allocation2 + $0x80] sm:$0xff]
    %v46 = vld [vmem:[#allocation2 + $0x88] sm:$0xff]
    %v47 = vld [vmem:[#allocation2 + $0x90] sm:$0xff]
    %v48 = vld [vmem:[#allocation2 + $0x98] sm:$0xff]
    %v49 = vld [vmem:[#allocation2 + $0xa0] sm:$0xff]
    %v50 = vld [vmem:[#allocation2 + $0xa8] sm:$0xff]
    %v51 = vld [vmem:[#allocation2 + $0xb0] sm:$0xff]
    %v52 = vld [vmem:[#allocation2 + $0xb8] sm:$0xff]
    %v53 = vld [vmem:[#allocation2 + $0xc0] sm:$0xff]
    %v54 = vld [vmem:[#allocation2 + $0xc8] sm:$0xff]
    %v55 = vld [vmem:[#allocation2 + $0xd0] sm:$0xff]
    %v56 = vld [vmem:[#allocation2 + $0xd8] sm:$0xff]
    %v57 = vld [vmem:[#allocation2 + $0xe0] sm:$0xff]
    %v58 = vld [vmem:[#allocation2 + $0xe8] sm:$0xff]
    %v59 = vld [vmem:[#allocation2 + $0xf0] sm:$0xff]
    %v60 = vld [vmem:[#allocation2 + $0xf8] sm:$0xff]
    %v61 = vld [vmem:[#allocation2 + $0x100] sm:$0xff]
    %v62 = vld [vmem:[#allocation2 + $0x108] sm:$0xff]
    %v63 = vld [vmem:[#allocation2 + $0x110] sm:$0xff]
    %v64 = vld [vmem:[#allocation2 + $0x118] sm:$0xff]
    %v65 = vld [vmem:[#allocation2 + $0x120] sm:$0xff]
    %v66 = vld [vmem:[#allocation2 + $0x128] sm:$0xff]
    %v67 = vld [vmem:[#allocation2 + $0x130] sm:$0xff]
    %v68 = vld [vmem:[#allocation2 + $0x138] sm:$0xff]
    %v69 = vld [vmem:[#allocation2 + $0x140] sm:$0xff]
    %v70 = vld [vmem:[#allocation2 + $0x148] sm:$0xff]
    %v71 = vld [vmem:[#allocation2 + $0x150] sm:$0xff]
    %v72 = vld [vmem:[#allocation2 + $0x158] sm:$0xff]
    %v73 = vld [vmem:[#allocation2 + $0x160] sm:$0xff]
    %v74 = vld [vmem:[#allocation2 + $0x168] sm:$0xff]
    %v75 = vld [vmem:[#allocation2 + $0x170] sm:$0xff]
    %v76 = vld [vmem:[#allocation2 + $0x178] sm:$0xff]
    %v77 = vld [vmem:[#allocation2 + $0x180] sm:$0xff]
    %v78 = vld [vmem:[#allocation2 + $0x188] sm:$0xff]
    %v79 = vld [vmem:[#allocation2 + $0x190] sm:$0xff]
    %v80 = vld [vmem:[#allocation2 + $0x198] sm:$0xff]
    %v81 = vld [vmem:[#allocation2 + $0x1a0] sm:$0xff]
    %v82 = vld [vmem:[#allocation2 + $0x1a8] sm:$0xff]
    %v83 = vld [vmem:[#allocation2 + $0x1b0] sm:$0xff]
    %v84 = vld [vmem:[#allocation2 + $0x1b8] sm:$0xff]
    %v85 = vld [vmem:[#allocation2 + $0x1c0] sm:$0xff]
    %v86 = vld [vmem:[#allocation2 + $0x1c8] sm:$0xff]
    %v87 = vld [vmem:[#allocation2 + $0x1d0] sm:$0xff]
    %v88 = vld [vmem:[#allocation2 + $0x1d8] sm:$0xff]
    %v89 = vld [vmem:[#allocation2 + $0x1e0] sm:$0xff]
    %v90 = vld [vmem:[#allocation2 + $0x1e8] sm:$0xff]
    %v91 = vld [vmem:[#allocation2 + $0x1f0] sm:$0xff]
    %v92 = vld [vmem:[#allocation2 + $0x1f8] sm:$0xff]
    %v93 = vpack.c.bf16 %v30, %v29
    %v94 = vpack.c.bf16 %v32, %v31
    %v95 = vpack.c.bf16 %v34, %v33
    %v96 = vpack.c.bf16 %v36, %v35
    %v97 = vpack.c.bf16 %v38, %v37
    %v98 = vpack.c.bf16 %v40, %v39
    %v99 = vpack.c.bf16 %v42, %v41
    %v100 = vpack.c.bf16 %v44, %v43
    %v101 = vpack.c.bf16 %v46, %v45
    %v102 = vpack.c.bf16 %v48, %v47
    %v103 = vpack.c.bf16 %v50, %v49
    %v104 = vpack.c.bf16 %v52, %v51
    %v105 = vpack.c.bf16 %v54, %v53
    %v106 = vpack.c.bf16 %v56, %v55
    %v107 = vpack.c.bf16 %v58, %v57
    %v108 = vpack.c.bf16 %v60, %v59
    %v109 = vpack.c.bf16 %v62, %v61
    %v110 = vpack.c.bf16 %v64, %v63
    %v111 = vpack.c.bf16 %v66, %v65
    %v112 = vpack.c.bf16 %v68, %v67
    %v113 = vpack.c.bf16 %v70, %v69
    %v114 = vpack.c.bf16 %v72, %v71
    %v115 = vpack.c.bf16 %v74, %v73
    %v116 = vpack.c.bf16 %v76, %v75
    %v117 = vpack.c.bf16 %v78, %v77
    %v118 = vpack.c.bf16 %v80, %v79
    %v119 = vpack.c.bf16 %v82, %v81
    %v120 = vpack.c.bf16 %v84, %v83
    %v121 = vpack.c.bf16 %v86, %v85
    %v122 = vpack.c.bf16 %v88, %v87
    %v123 = vpack.c.bf16 %v90, %v89
    %v124 = vpack.c.bf16 %v92, %v91
    %v125 = vld [vmem:[%s1] sm:$0xf]
    %v126 = vld [vmem:[%s1 + $0x4] sm:$0xf]
    %v127 = vld [vmem:[%s1 + $0x8] sm:$0xf]
    %v128 = vld [vmem:[%s1 + $0xc] sm:$0xf]
    %v133 = vunpack.c.l.b16 %v125
    %v134 = vunpack.c.l.b16 %v126
    %v135 = vunpack.c.l.b16 %v127
    %v136 = vunpack.c.l.b16 %v128
    %v137 = vpack.c.b16 %v134, %v133
    %v138 = vpack.c.b16 %v136, %v135
    %vm141 = vcmask 261120
    %v143 = vsel %vm141, %v93, 0
    %v146 = vsel %vm141, %v94, 0
    %v149 = vsel %vm141, %v95, 0
    %v152 = vsel %vm141, %v96, 0
    %v155 = vsel %vm141, %v97, 0
    %v158 = vsel %vm141, %v98, 0
    %v161 = vsel %vm141, %v99, 0
    %v164 = vsel %vm141, %v100, 0
    %v167 = vsel %vm141, %v101, 0
    %v170 = vsel %vm141, %v102, 0
    %v173 = vsel %vm141, %v103, 0
    %v176 = vsel %vm141, %v104, 0
    %v179 = vsel %vm141, %v105, 0
    %v182 = vsel %vm141, %v106, 0
    %v185 = vsel %vm141, %v107, 0
    %v188 = vsel %vm141, %v108, 0
    %v191 = vsel %vm141, %v109, 0
    %v194 = vsel %vm141, %v110, 0
    %v197 = vsel %vm141, %v111, 0
    %v200 = vsel %vm141, %v112, 0
    %v203 = vsel %vm141, %v113, 0
    %v206 = vsel %vm141, %v114, 0
    %v209 = vsel %vm141, %v115, 0
    %v212 = vsel %vm141, %v116, 0
    %v215 = vsel %vm141, %v117, 0
    %v218 = vsel %vm141, %v118, 0
    %v221 = vsel %vm141, %v119, 0
    %v224 = vsel %vm141, %v120, 0
    %v227 = vsel %vm141, %v121, 0
    %v230 = vsel %vm141, %v122, 0
    %v233 = vsel %vm141, %v123, 0
    %v236 = vsel %vm141, %v124, 0
    %238 = vmatprep.subr.bf16.mxu0 0
    %239 = vmatpush1.bf16.msra.mxu0 %v137
    %240 = vmatprep.subr.bf16.mxu0 0
    %241 = vmatpush1.bf16.msra.mxu0 %v138
    %242 = vmatprep.subr.bf16.mxu0 0
    %243 = vmatpush1.bf16.msra.mxu0 0
    %244 = vmatprep.subr.bf16.mxu0 0
    %245 = vmatpush1.bf16.msra.mxu0 0
    %246 = vmatprep.subr.bf16.mxu0 0
    %247 = vmatpush1.bf16.msra.mxu0 0
    %248 = vmatprep.subr.bf16.mxu0 0
    %249 = vmatpush1.bf16.msra.mxu0 0
    %250 = vmatprep.subr.bf16.mxu0 0
    %251 = vmatpush1.bf16.msra.mxu0 0
    %252 = vmatprep.subr.bf16.mxu0 0
    %253 = vmatpush1.bf16.msra.mxu0 0
    %254 = vmatprep.subr.bf16.mxu0 0
    %255 = vmatpush1.bf16.msra.mxu0 0
    %256 = vmatprep.subr.bf16.mxu0 0
    %257 = vmatpush1.bf16.msra.mxu0 0
    %258 = vmatprep.subr.bf16.mxu0 0
    %259 = vmatpush1.bf16.msra.mxu0 0
    %260 = vmatprep.subr.bf16.mxu0 0
    %261 = vmatpush1.bf16.msra.mxu0 0
    %262 = vmatprep.subr.bf16.mxu0 0
    %263 = vmatpush1.bf16.msra.mxu0 0
    %264 = vmatprep.subr.bf16.mxu0 0
    %265 = vmatpush1.bf16.msra.mxu0 0
    %266 = vmatprep.subr.bf16.mxu0 0
    %267 = vmatpush1.bf16.msra.mxu0 0
    %268 = vmatprep.subr.bf16.mxu0 0
    %269 = vmatpush1.bf16.msra.mxu0 0
    %270 = vmatprep.mubr.bf16.mxu0 0
    %271 = vmatmul.mubr.bf16.gmra.mrb[0].mxu0 %v143
    %v272 = vpop.f32.mrb[0].mxu0
    %v273 = vadd.f32 0.0, %v272
    %v274 = vpop.f32.mrb[0].mxu0
    %v275 = vpop.f32.mrb[0].mxu0
    %v276 = vadd.f32 0.0, %v275
    %v277 = vpop.f32.mrb[0].mxu0
    %278 = vmatprep.mubr.bf16.mxu0 0
    %279 = vmatmul.mubr.bf16.gmra.mrb[0].mxu0 %v146
    %v280 = vpop.f32.mrb[0].mxu0
    %v281 = vadd.f32 0.0, %v280
    %v282 = vpop.f32.mrb[0].mxu0
    %v283 = vpop.f32.mrb[0].mxu0
    %v284 = vadd.f32 0.0, %v283
    %v285 = vpop.f32.mrb[0].mxu0
    %286 = vmatprep.mubr.bf16.mxu0 0
    %287 = vmatmul.mubr.bf16.gmra.mrb[0].mxu0 %v149
    %v288 = vpop.f32.mrb[0].mxu0
    %v289 = vadd.f32 0.0, %v288
    %v290 = vpop.f32.mrb[0].mxu0
    %v291 = vpop.f32.mrb[0].mxu0
    %v292 = vadd.f32 0.0, %v291
    %v293 = vpop.f32.mrb[0].mxu0
    %294 = vmatprep.mubr.bf16.mxu0 0
    %295 = vmatmul.mubr.bf16.gmra.mrb[0].mxu0 %v152
    %v296 = vpop.f32.mrb[0].mxu0
    %v297 = vadd.f32 0.0, %v296
    %v298 = vpop.f32.mrb[0].mxu0
    %v299 = vpop.f32.mrb[0].mxu0
    %v300 = vadd.f32 0.0, %v299
    %v301 = vpop.f32.mrb[0].mxu0
    %302 = vmatprep.mubr.bf16.mxu0 0
    %303 = vmatmul.mubr.bf16.gmra.mrb[0].mxu0 %v155
    %v304 = vpop.f32.mrb[0].mxu0
    %v305 = vadd.f32 0.0, %v304
    %v306 = vpop.f32.mrb[0].mxu0
    %v307 = vpop.f32.mrb[0].mxu0
    %v308 = vadd.f32 0.0, %v307
    %v309 = vpop.f32.mrb[0].mxu0
    %310 = vmatprep.mubr.bf16.mxu0 0
    %311 = vmatmul.mubr.bf16.gmra.mrb[0].mxu0 %v158
    %v312 = vpop.f32.mrb[0].mxu0
    %v313 = vadd.f32 0.0, %v312
    %v314 = vpop.f32.mrb[0].mxu0
    %v315 = vpop.f32.mrb[0].mxu0
    %v316 = vadd.f32 0.0, %v315
    %v317 = vpop.f32.mrb[0].mxu0
    %318 = vmatprep.mubr.bf16.mxu0 0
    %319 = vmatmul.mubr.bf16.gmra.mrb[0].mxu0 %v161
    %v320 = vpop.f32.mrb[0].mxu0
    %v321 = vadd.f32 0.0, %v320
    %v322 = vpop.f32.mrb[0].mxu0
    %v323 = vpop.f32.mrb[0].mxu0
    %v324 = vadd.f32 0.0, %v323
    %v325 = vpop.f32.mrb[0].mxu0
    %326 = vmatprep.mubr.bf16.mxu0 0
    %327 = vmatmul.mubr.bf16.gmra.mrb[0].mxu0 %v164
    %v328 = vpop.f32.mrb[0].mxu0
    %v329 = vadd.f32 0.0, %v328
    %v330 = vpop.f32.mrb[0].mxu0
    %v331 = vpop.f32.mrb[0].mxu0
    %v332 = vadd.f32 0.0, %v331
    %v333 = vpop.f32.mrb[0].mxu0
    %334 = vmatprep.mubr.bf16.mxu0 0
    %335 = vmatmul.mubr.bf16.gmra.mrb[0].mxu0 %v167
    %v336 = vpop.f32.mrb[0].mxu0
    %v337 = vadd.f32 0.0, %v336
    %v338 = vpop.f32.mrb[0].mxu0
    %v339 = vpop.f32.mrb[0].mxu0
    %v340 = vadd.f32 0.0, %v339
    %v341 = vpop.f32.mrb[0].mxu0
    %342 = vmatprep.mubr.bf16.mxu0 0
    %343 = vmatmul.mubr.bf16.gmra.mrb[0].mxu0 %v170
    %v344 = vpop.f32.mrb[0].mxu0
    %v345 = vadd.f32 0.0, %v344
    %v346 = vpop.f32.mrb[0].mxu0
    %v347 = vpop.f32.mrb[0].mxu0
    %v348 = vadd.f32 0.0, %v347
    %v349 = vpop.f32.mrb[0].mxu0
    %350 = vmatprep.mubr.bf16.mxu0 0
    %351 = vmatmul.mubr.bf16.gmra.mrb[0].mxu0 %v173
    %v352 = vpop.f32.mrb[0].mxu0
    %v353 = vadd.f32 0.0, %v352
    %v354 = vpop.f32.mrb[0].mxu0
    %v355 = vpop.f32.mrb[0].mxu0
    %v356 = vadd.f32 0.0, %v355
    %v357 = vpop.f32.mrb[0].mxu0
    %358 = vmatprep.mubr.bf16.mxu0 0
    %359 = vmatmul.mubr.bf16.gmra.mrb[0].mxu0 %v176
    %v360 = vpop.f32.mrb[0].mxu0
    %v361 = vadd.f32 0.0, %v360
    %v362 = vpop.f32.mrb[0].mxu0
    %v363 = vpop.f32.mrb[0].mxu0
    %v364 = vadd.f32 0.0, %v363
    %v365 = vpop.f32.mrb[0].mxu0
    %366 = vmatprep.mubr.bf16.mxu0 0
    %367 = vmatmul.mubr.bf16.gmra.mrb[0].mxu0 %v179
    %v368 = vpop.f32.mrb[0].mxu0
    %v369 = vadd.f32 0.0, %v368
    %v370 = vpop.f32.mrb[0].mxu0
    %v371 = vpop.f32.mrb[0].mxu0
    %v372 = vadd.f32 0.0, %v371
    %v373 = vpop.f32.mrb[0].mxu0
    %374 = vmatprep.mubr.bf16.mxu0 0
    %375 = vmatmul.mubr.bf16.gmra.mrb[0].mxu0 %v182
    %v376 = vpop.f32.mrb[0].mxu0
    %v377 = vadd.f32 0.0, %v376
    %v378 = vpop.f32.mrb[0].mxu0
    %v379 = vpop.f32.mrb[0].mxu0
    %v380 = vadd.f32 0.0, %v379
    %v381 = vpop.f32.mrb[0].mxu0
    %382 = vmatprep.mubr.bf16.mxu0 0
    %383 = vmatmul.mubr.bf16.gmra.mrb[0].mxu0 %v185
    %v384 = vpop.f32.mrb[0].mxu0
    %v385 = vadd.f32 0.0, %v384
    %v386 = vpop.f32.mrb[0].mxu0
    %v387 = vpop.f32.mrb[0].mxu0
    %v388 = vadd.f32 0.0, %v387
    %v389 = vpop.f32.mrb[0].mxu0
    %390 = vmatprep.mubr.bf16.mxu0 0
    %391 = vmatmul.mubr.bf16.gmra.mrb[0].mxu0 %v188
    %v392 = vpop.f32.mrb[0].mxu0
    %v393 = vadd.f32 0.0, %v392
    %v394 = vpop.f32.mrb[0].mxu0
    %v395 = vpop.f32.mrb[0].mxu0
    %v396 = vadd.f32 0.0, %v395
    %v397 = vpop.f32.mrb[0].mxu0
    %398 = vmatprep.mubr.bf16.mxu0 0
    %399 = vmatmul.mubr.bf16.gmra.mrb[0].mxu0 %v191
    %v400 = vpop.f32.mrb[0].mxu0
    %v401 = vadd.f32 0.0, %v400
    %v402 = vpop.f32.mrb[0].mxu0
    %v403 = vpop.f32.mrb[0].mxu0
    %v404 = vadd.f32 0.0, %v403
    %v405 = vpop.f32.mrb[0].mxu0
    %406 = vmatprep.mubr.bf16.mxu0 0
    %407 = vmatmul.mubr.bf16.gmra.mrb[0].mxu0 %v194
    %v408 = vpop.f32.mrb[0].mxu0
    %v409 = vadd.f32 0.0, %v408
    %v410 = vpop.f32.mrb[0].mxu0
    %v411 = vpop.f32.mrb[0].mxu0
    %v412 = vadd.f32 0.0, %v411
    %v413 = vpop.f32.mrb[0].mxu0
    %414 = vmatprep.mubr.bf16.mxu0 0
    %415 = vmatmul.mubr.bf16.gmra.mrb[0].mxu0 %v197
    %v416 = vpop.f32.mrb[0].mxu0
    %v417 = vadd.f32 0.0, %v416
    %v418 = vpop.f32.mrb[0].mxu0
    %v419 = vpop.f32.mrb[0].mxu0
    %v420 = vadd.f32 0.0, %v419
    %v421 = vpop.f32.mrb[0].mxu0
    %422 = vmatprep.mubr.bf16.mxu0 0
    %423 = vmatmul.mubr.bf16.gmra.mrb[0].mxu0 %v200
    %v424 = vpop.f32.mrb[0].mxu0
    %v425 = vadd.f32 0.0, %v424
    %v426 = vpop.f32.mrb[0].mxu0
    %v427 = vpop.f32.mrb[0].mxu0
    %v428 = vadd.f32 0.0, %v427
    %v429 = vpop.f32.mrb[0].mxu0
    %430 = vmatprep.mubr.bf16.mxu0 0
    %431 = vmatmul.mubr.bf16.gmra.mrb[0].mxu0 %v203
    %v432 = vpop.f32.mrb[0].mxu0
    %v433 = vadd.f32 0.0, %v432
    %v434 = vpop.f32.mrb[0].mxu0
    %v435 = vpop.f32.mrb[0].mxu0
    %v436 = vadd.f32 0.0, %v435
    %v437 = vpop.f32.mrb[0].mxu0
    %438 = vmatprep.mubr.bf16.mxu0 0
    %439 = vmatmul.mubr.bf16.gmra.mrb[0].mxu0 %v206
    %v440 = vpop.f32.mrb[0].mxu0
    %v441 = vadd.f32 0.0, %v440
    %v442 = vpop.f32.mrb[0].mxu0
    %v443 = vpop.f32.mrb[0].mxu0
    %v444 = vadd.f32 0.0, %v443
    %v445 = vpop.f32.mrb[0].mxu0
    %446 = vmatprep.mubr.bf16.mxu0 0
    %447 = vmatmul.mubr.bf16.gmra.mrb[0].mxu0 %v209
    %v448 = vpop.f32.mrb[0].mxu0
    %v449 = vadd.f32 0.0, %v448
    %v450 = vpop.f32.mrb[0].mxu0
    %v451 = vpop.f32.mrb[0].mxu0
    %v452 = vadd.f32 0.0, %v451
    %v453 = vpop.f32.mrb[0].mxu0
    %454 = vmatprep.mubr.bf16.mxu0 0
    %455 = vmatmul.mubr.bf16.gmra.mrb[0].mxu0 %v212
    %v456 = vpop.f32.mrb[0].mxu0
    %v457 = vadd.f32 0.0, %v456
    %v458 = vpop.f32.mrb[0].mxu0
    %v459 = vpop.f32.mrb[0].mxu0
    %v460 = vadd.f32 0.0, %v459
    %v461 = vpop.f32.mrb[0].mxu0
    %462 = vmatprep.mubr.bf16.mxu0 0
    %463 = vmatmul.mubr.bf16.gmra.mrb[0].mxu0 %v215
    %v464 = vpop.f32.mrb[0].mxu0
    %v465 = vadd.f32 0.0, %v464
    %v466 = vpop.f32.mrb[0].mxu0
    %v467 = vpop.f32.mrb[0].mxu0
    %v468 = vadd.f32 0.0, %v467
    %v469 = vpop.f32.mrb[0].mxu0
    %470 = vmatprep.mubr.bf16.mxu0 0
    %471 = vmatmul.mubr.bf16.gmra.mrb[0].mxu0 %v218
    %v472 = vpop.f32.mrb[0].mxu0
    %v473 = vadd.f32 0.0, %v472
    %v474 = vpop.f32.mrb[0].mxu0
    %v475 = vpop.f32.mrb[0].mxu0
    %v476 = vadd.f32 0.0, %v475
    %v477 = vpop.f32.mrb[0].mxu0
    %478 = vmatprep.mubr.bf16.mxu0 0
    %479 = vmatmul.mubr.bf16.gmra.mrb[0].mxu0 %v221
    %v480 = vpop.f32.mrb[0].mxu0
    %v481 = vadd.f32 0.0, %v480
    %v482 = vpop.f32.mrb[0].mxu0
    %v483 = vpop.f32.mrb[0].mxu0
    %v484 = vadd.f32 0.0, %v483
    %v485 = vpop.f32.mrb[0].mxu0
    %486 = vmatprep.mubr.bf16.mxu0 0
    %487 = vmatmul.mubr.bf16.gmra.mrb[0].mxu0 %v224
    %v488 = vpop.f32.mrb[0].mxu0
    %v489 = vadd.f32 0.0, %v488
    %v490 = vpop.f32.mrb[0].mxu0
    %v491 = vpop.f32.mrb[0].mxu0
    %v492 = vadd.f32 0.0, %v491
    %v493 = vpop.f32.mrb[0].mxu0
    %494 = vmatprep.mubr.bf16.mxu0 0
    %495 = vmatmul.mubr.bf16.gmra.mrb[0].mxu0 %v227
    %v496 = vpop.f32.mrb[0].mxu0
    %v497 = vadd.f32 0.0, %v496
    %v498 = vpop.f32.mrb[0].mxu0
    %v499 = vpop.f32.mrb[0].mxu0
    %v500 = vadd.f32 0.0, %v499
    %v501 = vpop.f32.mrb[0].mxu0
    %502 = vmatprep.mubr.bf16.mxu0 0
    %503 = vmatmul.mubr.bf16.gmra.mrb[0].mxu0 %v230
    %v504 = vpop.f32.mrb[0].mxu0
    %v505 = vadd.f32 0.0, %v504
    %v506 = vpop.f32.mrb[0].mxu0
    %v507 = vpop.f32.mrb[0].mxu0
    %v508 = vadd.f32 0.0, %v507
    %v509 = vpop.f32.mrb[0].mxu0
    %510 = vmatprep.mubr.bf16.mxu0 0
    %511 = vmatmul.mubr.bf16.gmra.mrb[0].mxu0 %v233
    %v512 = vpop.f32.mrb[0].mxu0
    %v513 = vadd.f32 0.0, %v512
    %v514 = vpop.f32.mrb[0].mxu0
    %v515 = vpop.f32.mrb[0].mxu0
    %v516 = vadd.f32 0.0, %v515
    %v517 = vpop.f32.mrb[0].mxu0
    %518 = vmatprep.mubr.bf16.mxu0 0
    %519 = vmatmul.mubr.bf16.gmra.mrb[0].mxu0 %v236
    %v520 = vpop.f32.mrb[0].mxu0
    %v521 = vadd.f32 0.0, %v520
    %v522 = vpop.f32.mrb[0].mxu0
    %v523 = vpop.f32.mrb[0].mxu0
    %v524 = vadd.f32 0.0, %v523
    %v525 = vpop.f32.mrb[0].mxu0
    %526 = vdwg.mxu0
    %v527 = vpack.c.bf16 %v276, %v273
    %v528 = vpack.c.bf16 %v284, %v281
    %v529 = vpack.c.bf16 %v292, %v289
    %v530 = vpack.c.bf16 %v300, %v297
    %v531 = vpack.c.bf16 %v308, %v305
    %v532 = vpack.c.bf16 %v316, %v313
    %v533 = vpack.c.bf16 %v324, %v321
    %v534 = vpack.c.bf16 %v332, %v329
    %v535 = vpack.c.bf16 %v340, %v337
    %v536 = vpack.c.bf16 %v348, %v345
    %v537 = vpack.c.bf16 %v356, %v353
    %v538 = vpack.c.bf16 %v364, %v361
    %v539 = vpack.c.bf16 %v372, %v369
    %v540 = vpack.c.bf16 %v380, %v377
    %v541 = vpack.c.bf16 %v388, %v385
    %v542 = vpack.c.bf16 %v396, %v393
    %v543 = vpack.c.bf16 %v404, %v401
    %v544 = vpack.c.bf16 %v412, %v409
    %v545 = vpack.c.bf16 %v420, %v417
    %v546 = vpack.c.bf16 %v428, %v425
    %v547 = vpack.c.bf16 %v436, %v433
    %v548 = vpack.c.bf16 %v444, %v441
    %v549 = vpack.c.bf16 %v452, %v449
    %v550 = vpack.c.bf16 %v460, %v457
    %v551 = vpack.c.bf16 %v468, %v465
    %v552 = vpack.c.bf16 %v476, %v473
    %v553 = vpack.c.bf16 %v484, %v481
    %v554 = vpack.c.bf16 %v492, %v489
    %v555 = vpack.c.bf16 %v500, %v497
    %v556 = vpack.c.bf16 %v508, %v505
    %v557 = vpack.c.bf16 %v516, %v513
    %v558 = vpack.c.bf16 %v524, %v521
    %v591 = vunpack.c.l.b16 %v527
    %v592 = vunpack.c.h.b16 %v527
    %v593 = vunpack.c.l.b16 %v528
    %v594 = vunpack.c.h.b16 %v528
    %v595 = vunpack.c.l.b16 %v529
    %v596 = vunpack.c.h.b16 %v529
    %v597 = vunpack.c.l.b16 %v530
    %v598 = vunpack.c.h.b16 %v530
    %v599 = vunpack.c.l.b16 %v531
    %v600 = vunpack.c.h.b16 %v531
    %v601 = vunpack.c.l.b16 %v532
    %v602 = vunpack.c.h.b16 %v532
    %v603 = vunpack.c.l.b16 %v533
    %v604 = vunpack.c.h.b16 %v533
    %v605 = vunpack.c.l.b16 %v534
    %v606 = vunpack.c.h.b16 %v534
    %v607 = vunpack.c.l.b16 %v535
    %v608 = vunpack.c.h.b16 %v535
    %v609 = vunpack.c.l.b16 %v536
    %v610 = vunpack.c.h.b16 %v536
    %v611 = vunpack.c.l.b16 %v537
    %v612 = vunpack.c.h.b16 %v537
    %v613 = vunpack.c.l.b16 %v538
    %v614 = vunpack.c.h.b16 %v538
    %v615 = vunpack.c.l.b16 %v539
    %v616 = vunpack.c.h.b16 %v539
    %v617 = vunpack.c.l.b16 %v540
    %v618 = vunpack.c.h.b16 %v540
    %v619 = vunpack.c.l.b16 %v541
    %v620 = vunpack.c.h.b16 %v541
    %v621 = vunpack.c.l.b16 %v542
    %v622 = vunpack.c.h.b16 %v542
    %v623 = vunpack.c.l.b16 %v543
    %v624 = vunpack.c.h.b16 %v543
    %v625 = vunpack.c.l.b16 %v544
    %v626 = vunpack.c.h.b16 %v544
    %v627 = vunpack.c.l.b16 %v545
    %v628 = vunpack.c.h.b16 %v545
    %v629 = vunpack.c.l.b16 %v546
    %v630 = vunpack.c.h.b16 %v546
    %v631 = vunpack.c.l.b16 %v547
    %v632 = vunpack.c.h.b16 %v547
    %v633 = vunpack.c.l.b16 %v548
    %v634 = vunpack.c.h.b16 %v548
    %v635 = vunpack.c.l.b16 %v549
    %v636 = vunpack.c.h.b16 %v549
    %v637 = vunpack.c.l.b16 %v550
    %v638 = vunpack.c.h.b16 %v550
    %v639 = vunpack.c.l.b16 %v551
    %v640 = vunpack.c.h.b16 %v551
    %v641 = vunpack.c.l.b16 %v552
    %v642 = vunpack.c.h.b16 %v552
    %v643 = vunpack.c.l.b16 %v553
    %v644 = vunpack.c.h.b16 %v553
    %v645 = vunpack.c.l.b16 %v554
    %v646 = vunpack.c.h.b16 %v554
    %v647 = vunpack.c.l.b16 %v555
    %v648 = vunpack.c.h.b16 %v555
    %v649 = vunpack.c.l.b16 %v556
    %v650 = vunpack.c.h.b16 %v556
    %v651 = vunpack.c.l.b16 %v557
    %v652 = vunpack.c.h.b16 %v557
    %v653 = vunpack.c.l.b16 %v558
    %v654 = vunpack.c.h.b16 %v558
    %v655 = vpack.c.b16 %v591, %v591
    %v656 = vpack.c.b16 %v592, %v592
    %v657 = vpack.c.b16 %v593, %v593
    %v658 = vpack.c.b16 %v594, %v594
    %v659 = vpack.c.b16 %v595, %v595
    %v660 = vpack.c.b16 %v596, %v596
    %v661 = vpack.c.b16 %v597, %v597
    %v662 = vpack.c.b16 %v598, %v598
    %v663 = vpack.c.b16 %v599, %v599
    %v664 = vpack.c.b16 %v600, %v600
    %v665 = vpack.c.b16 %v601, %v601
    %v666 = vpack.c.b16 %v602, %v602
    %v667 = vpack.c.b16 %v603, %v603
    %v668 = vpack.c.b16 %v604, %v604
    %v669 = vpack.c.b16 %v605, %v605
    %v670 = vpack.c.b16 %v606, %v606
    %v671 = vpack.c.b16 %v607, %v607
    %v672 = vpack.c.b16 %v608, %v608
    %v673 = vpack.c.b16 %v609, %v609
    %v674 = vpack.c.b16 %v610, %v610
    %v675 = vpack.c.b16 %v611, %v611
    %v676 = vpack.c.b16 %v612, %v612
    %v677 = vpack.c.b16 %v613, %v613
    %v678 = vpack.c.b16 %v614, %v614
    %v679 = vpack.c.b16 %v615, %v615
    %v680 = vpack.c.b16 %v616, %v616
    %v681 = vpack.c.b16 %v617, %v617
    %v682 = vpack.c.b16 %v618, %v618
    %v683 = vpack.c.b16 %v619, %v619
    %v684 = vpack.c.b16 %v620, %v620
    %v685 = vpack.c.b16 %v621, %v621
    %v686 = vpack.c.b16 %v622, %v622
    %v687 = vpack.c.b16 %v623, %v623
    %v688 = vpack.c.b16 %v624, %v624
    %v689 = vpack.c.b16 %v625, %v625
    %v690 = vpack.c.b16 %v626, %v626
    %v691 = vpack.c.b16 %v627, %v627
    %v692 = vpack.c.b16 %v628, %v628
    %v693 = vpack.c.b16 %v629, %v629
    %v694 = vpack.c.b16 %v630, %v630
    %v695 = vpack.c.b16 %v631, %v631
    %v696 = vpack.c.b16 %v632, %v632
    %v697 = vpack.c.b16 %v633, %v633
    %v698 = vpack.c.b16 %v634, %v634
    %v699 = vpack.c.b16 %v635, %v635
    %v700 = vpack.c.b16 %v636, %v636
    %v701 = vpack.c.b16 %v637, %v637
    %v702 = vpack.c.b16 %v638, %v638
    %v703 = vpack.c.b16 %v639, %v639
    %v704 = vpack.c.b16 %v640, %v640
    %v705 = vpack.c.b16 %v641, %v641
    %v706 = vpack.c.b16 %v642, %v642
    %v707 = vpack.c.b16 %v643, %v643
    %v708 = vpack.c.b16 %v644, %v644
    %v709 = vpack.c.b16 %v645, %v645
    %v710 = vpack.c.b16 %v646, %v646
    %v711 = vpack.c.b16 %v647, %v647
    %v712 = vpack.c.b16 %v648, %v648
    %v713 = vpack.c.b16 %v649, %v649
    %v714 = vpack.c.b16 %v650, %v650
    %v715 = vpack.c.b16 %v651, %v651
    %v716 = vpack.c.b16 %v652, %v652
    %v717 = vpack.c.b16 %v653, %v653
    %v718 = vpack.c.b16 %v654, %v654
    %vm783 = vcmask 60416
    %784 = vst.msk [vmem:[%s2] sm:$0xf] %vm783, %v655
    %785 = vst.msk [vmem:[%s2 + $0x4] sm:$0xf] %vm783, %v656
    %786 = vst.msk [vmem:[%s2 + $0x8] sm:$0xf] %vm783, %v657
    %787 = vst.msk [vmem:[%s2 + $0xc] sm:$0xf] %vm783, %v658
    %788 = vst.msk [vmem:[%s2 + $0x10] sm:$0xf] %vm783, %v659
    %789 = vst.msk [vmem:[%s2 + $0x14] sm:$0xf] %vm783, %v660
    %790 = vst.msk [vmem:[%s2 + $0x18] sm:$0xf] %vm783, %v661
    %791 = vst.msk [vmem:[%s2 + $0x1c] sm:$0xf] %vm783, %v662
    %792 = vst.msk [vmem:[%s2 + $0x20] sm:$0xf] %vm783, %v663
    %793 = vst.msk [vmem:[%s2 + $0x24] sm:$0xf] %vm783, %v664
    %794 = vst.msk [vmem:[%s2 + $0x28] sm:$0xf] %vm783, %v665
    %795 = vst.msk [vmem:[%s2 + $0x2c] sm:$0xf] %vm783, %v666
    %796 = vst.msk [vmem:[%s2 + $0x30] sm:$0xf] %vm783, %v667
    %797 = vst.msk [vmem:[%s2 + $0x34] sm:$0xf] %vm783, %v668
    %798 = vst.msk [vmem:[%s2 + $0x38] sm:$0xf] %vm783, %v669
    %799 = vst.msk [vmem:[%s2 + $0x3c] sm:$0xf] %vm783, %v670
    %800 = vst.msk [vmem:[%s2 + $0x40] sm:$0xf] %vm783, %v671
    %801 = vst.msk [vmem:[%s2 + $0x44] sm:$0xf] %vm783, %v672
    %802 = vst.msk [vmem:[%s2 + $0x48] sm:$0xf] %vm783, %v673
    %803 = vst.msk [vmem:[%s2 + $0x4c] sm:$0xf] %vm783, %v674
    %804 = vst.msk [vmem:[%s2 + $0x50] sm:$0xf] %vm783, %v675
    %805 = vst.msk [vmem:[%s2 + $0x54] sm:$0xf] %vm783, %v676
    %806 = vst.msk [vmem:[%s2 + $0x58] sm:$0xf] %vm783, %v677
    %807 = vst.msk [vmem:[%s2 + $0x5c] sm:$0xf] %vm783, %v678
    %808 = vst.msk [vmem:[%s2 + $0x60] sm:$0xf] %vm783, %v679
    %809 = vst.msk [vmem:[%s2 + $0x64] sm:$0xf] %vm783, %v680
    %810 = vst.msk [vmem:[%s2 + $0x68] sm:$0xf] %vm783, %v681
    %811 = vst.msk [vmem:[%s2 + $0x6c] sm:$0xf] %vm783, %v682
    %812 = vst.msk [vmem:[%s2 + $0x70] sm:$0xf] %vm783, %v683
    %813 = vst.msk [vmem:[%s2 + $0x74] sm:$0xf] %vm783, %v684
    %814 = vst.msk [vmem:[%s2 + $0x78] sm:$0xf] %vm783, %v685
    %815 = vst.msk [vmem:[%s2 + $0x7c] sm:$0xf] %vm783, %v686
    %816 = vst.msk [vmem:[%s2 + $0x80] sm:$0xf] %vm783, %v687
    %817 = vst.msk [vmem:[%s2 + $0x84] sm:$0xf] %vm783, %v688
    %818 = vst.msk [vmem:[%s2 + $0x88] sm:$0xf] %vm783, %v689
    %819 = vst.msk [vmem:[%s2 + $0x8c] sm:$0xf] %vm783, %v690
    %820 = vst.msk [vmem:[%s2 + $0x90] sm:$0xf] %vm783, %v691
    %821 = vst.msk [vmem:[%s2 + $0x94] sm:$0xf] %vm783, %v692
    %822 = vst.msk [vmem:[%s2 + $0x98] sm:$0xf] %vm783, %v693
    %823 = vst.msk [vmem:[%s2 + $0x9c] sm:$0xf] %vm783, %v694
    %824 = vst.msk [vmem:[%s2 + $0xa0] sm:$0xf] %vm783, %v695
    %825 = vst.msk [vmem:[%s2 + $0xa4] sm:$0xf] %vm783, %v696
    %826 = vst.msk [vmem:[%s2 + $0xa8] sm:$0xf] %vm783, %v697
    %827 = vst.msk [vmem:[%s2 + $0xac] sm:$0xf] %vm783, %v698
    %828 = vst.msk [vmem:[%s2 + $0xb0] sm:$0xf] %vm783, %v699
    %829 = vst.msk [vmem:[%s2 + $0xb4] sm:$0xf] %vm783, %v700
    %830 = vst.msk [vmem:[%s2 + $0xb8] sm:$0xf] %vm783, %v701
    %831 = vst.msk [vmem:[%s2 + $0xbc] sm:$0xf] %vm783, %v702
    %832 = vst.msk [vmem:[%s2 + $0xc0] sm:$0xf] %vm783, %v703
    %833 = vst.msk [vmem:[%s2 + $0xc4] sm:$0xf] %vm783, %v704
    %834 = vst.msk [vmem:[%s2 + $0xc8] sm:$0xf] %vm783, %v705
    %835 = vst.msk [vmem:[%s2 + $0xcc] sm:$0xf] %vm783, %v706
    %836 = vst.msk [vmem:[%s2 + $0xd0] sm:$0xf] %vm783, %v707
    %837 = vst.msk [vmem:[%s2 + $0xd4] sm:$0xf] %vm783, %v708
    %838 = vst.msk [vmem:[%s2 + $0xd8] sm:$0xf] %vm783, %v709
    %839 = vst.msk [vmem:[%s2 + $0xdc] sm:$0xf] %vm783, %v710
    %840 = vst.msk [vmem:[%s2 + $0xe0] sm:$0xf] %vm783, %v711
    %841 = vst.msk [vmem:[%s2 + $0xe4] sm:$0xf] %vm783, %v712
    %842 = vst.msk [vmem:[%s2 + $0xe8] sm:$0xf] %vm783, %v713
    %843 = vst.msk [vmem:[%s2 + $0xec] sm:$0xf] %vm783, %v714
    %844 = vst.msk [vmem:[%s2 + $0xf0] sm:$0xf] %vm783, %v715
    %845 = vst.msk [vmem:[%s2 + $0xf4] sm:$0xf] %vm783, %v716
    %846 = vst.msk [vmem:[%s2 + $0xf8] sm:$0xf] %vm783, %v717
    %847 = vst.msk [vmem:[%s2 + $0xfc] sm:$0xf] %vm783, %v718
    %vm848 = vcmask 64512
    %v849 = vsel %vm848, %v273, 0.0
    %v850 = vsel %vm848, %v276, 0.0
    %v851 = vadd.f32 %v849, %v850
    %v852 = vsel %vm848, %v281, 0.0
    %v853 = vadd.f32 %v851, %v852
    %v854 = vsel %vm848, %v284, 0.0
    %v855 = vadd.f32 %v853, %v854
    %v856 = vsel %vm848, %v289, 0.0
    %v857 = vadd.f32 %v855, %v856
    %v858 = vsel %vm848, %v292, 0.0
    %v859 = vadd.f32 %v857, %v858
    %v860 = vsel %vm848, %v297, 0.0
    %v861 = vadd.f32 %v859, %v860
    %v862 = vsel %vm848, %v300, 0.0
    %v863 = vadd.f32 %v861, %v862
    %v864 = vsel %vm848, %v305, 0.0
    %v865 = vadd.f32 %v863, %v864
    %v866 = vsel %vm848, %v308, 0.0
    %v867 = vadd.f32 %v865, %v866
    %v868 = vsel %vm848, %v313, 0.0
    %v869 = vadd.f32 %v867, %v868
    %v870 = vsel %vm848, %v316, 0.0
    %v871 = vadd.f32 %v869, %v870
    %v872 = vsel %vm848, %v321, 0.0
    %v873 = vadd.f32 %v871, %v872
    %v874 = vsel %vm848, %v324, 0.0
    %v875 = vadd.f32 %v873, %v874
    %v876 = vsel %vm848, %v329, 0.0
    %v877 = vadd.f32 %v875, %v876
    %v878 = vsel %vm848, %v332, 0.0
    %v879 = vadd.f32 %v877, %v878
    %v880 = vsel %vm848, %v337, 0.0
    %v881 = vadd.f32 %v879, %v880
    %v882 = vsel %vm848, %v340, 0.0
    %v883 = vadd.f32 %v881, %v882
    %v884 = vsel %vm848, %v345, 0.0
    %v885 = vadd.f32 %v883, %v884
    %v886 = vsel %vm848, %v348, 0.0
    %v887 = vadd.f32 %v885, %v886
    %v888 = vsel %vm848, %v353, 0.0
    %v889 = vadd.f32 %v887, %v888
    %v890 = vsel %vm848, %v356, 0.0
    %v891 = vadd.f32 %v889, %v890
    %v892 = vsel %vm848, %v361, 0.0
    %v893 = vadd.f32 %v891, %v892
    %v894 = vsel %vm848, %v364, 0.0
    %v895 = vadd.f32 %v893, %v894
    %v896 = vsel %vm848, %v369, 0.0
    %v897 = vadd.f32 %v895, %v896
    %v898 = vsel %vm848, %v372, 0.0
    %v899 = vadd.f32 %v897, %v898
    %v900 = vsel %vm848, %v377, 0.0
    %v901 = vadd.f32 %v899, %v900
    %v902 = vsel %vm848, %v380, 0.0
    %v903 = vadd.f32 %v901, %v902
    %v904 = vsel %vm848, %v385, 0.0
    %v905 = vadd.f32 %v903, %v904
    %v906 = vsel %vm848, %v388, 0.0
    %v907 = vadd.f32 %v905, %v906
    %v908 = vsel %vm848, %v393, 0.0
    %v909 = vadd.f32 %v907, %v908
    %v910 = vsel %vm848, %v396, 0.0
    %v911 = vadd.f32 %v909, %v910
    %v912 = vsel %vm848, %v401, 0.0
    %v913 = vadd.f32 %v911, %v912
    %v914 = vsel %vm848, %v404, 0.0
    %v915 = vadd.f32 %v913, %v914
    %v916 = vsel %vm848, %v409, 0.0
    %v917 = vadd.f32 %v915, %v916
    %v918 = vsel %vm848, %v412, 0.0
    %v919 = vadd.f32 %v917, %v918
    %v920 = vsel %vm848, %v417, 0.0
    %v921 = vadd.f32 %v919, %v920
    %v922 = vsel %vm848, %v420, 0.0
    %v923 = vadd.f32 %v921, %v922
    %v924 = vsel %vm848, %v425, 0.0
    %v925 = vadd.f32 %v923, %v924
    %v926 = vsel %vm848, %v428, 0.0
    %v927 = vadd.f32 %v925, %v926
    %v928 = vsel %vm848, %v433, 0.0
    %v929 = vadd.f32 %v927, %v928
    %v930 = vsel %vm848, %v436, 0.0
    %v931 = vadd.f32 %v929, %v930
    %v932 = vsel %vm848, %v441, 0.0
    %v933 = vadd.f32 %v931, %v932
    %v934 = vsel %vm848, %v444, 0.0
    %v935 = vadd.f32 %v933, %v934
    %v936 = vsel %vm848, %v449, 0.0
    %v937 = vadd.f32 %v935, %v936
    %v938 = vsel %vm848, %v452, 0.0
    %v939 = vadd.f32 %v937, %v938
    %v940 = vsel %vm848, %v457, 0.0
    %v941 = vadd.f32 %v939, %v940
    %v942 = vsel %vm848, %v460, 0.0
    %v943 = vadd.f32 %v941, %v942
    %v944 = vsel %vm848, %v465, 0.0
    %v945 = vadd.f32 %v943, %v944
    %v946 = vsel %vm848, %v468, 0.0
    %v947 = vadd.f32 %v945, %v946
    %v948 = vsel %vm848, %v473, 0.0
    %v949 = vadd.f32 %v947, %v948
    %v950 = vsel %vm848, %v476, 0.0
    %v951 = vadd.f32 %v949, %v950
    %v952 = vsel %vm848, %v481, 0.0
    %v953 = vadd.f32 %v951, %v952
    %v954 = vsel %vm848, %v484, 0.0
    %v955 = vadd.f32 %v953, %v954
    %v956 = vsel %vm848, %v489, 0.0
    %v957 = vadd.f32 %v955, %v956
    %v958 = vsel %vm848, %v492, 0.0
    %v959 = vadd.f32 %v957, %v958
    %v960 = vsel %vm848, %v497, 0.0
    %v961 = vadd.f32 %v959, %v960
    %v962 = vsel %vm848, %v500, 0.0
    %v963 = vadd.f32 %v961, %v962
    %v964 = vsel %vm848, %v505, 0.0
    %v965 = vadd.f32 %v963, %v964
    %v966 = vsel %vm848, %v508, 0.0
    %v967 = vadd.f32 %v965, %v966
    %v968 = vsel %vm848, %v513, 0.0
    %v969 = vadd.f32 %v967, %v968
    %v970 = vsel %vm848, %v516, 0.0
    %v971 = vadd.f32 %v969, %v970
    %v972 = vsel %vm848, %v521, 0.0
    %v973 = vadd.f32 %v971, %v972
    %v974 = vsel %vm848, %v524, 0.0
    %v975 = vadd.f32 %v973, %v974
    %v976 = vrot.slane %v975, 4
    %v977 = vadd.f32 %v975, %v976
    %v978 = vrot.slane %v977, 2
    %v979 = vadd.f32 %v977, %v978
    %v980 = vrot.slane %v979, 1
    %v981 = vadd.f32 %v979, %v980
    %vm982 = vcmask 57344
    %983 = vst.msk [vmem:[%s3] sm:$0x1] %vm982, %v981
    %v984 = vmul.f32 %v273, %v273
    %v985 = vmul.f32 %v276, %v276
    %v986 = vmul.f32 %v281, %v281
    %v987 = vmul.f32 %v284, %v284
    %v988 = vmul.f32 %v289, %v289
    %v989 = vmul.f32 %v292, %v292
    %v990 = vmul.f32 %v297, %v297
    %v991 = vmul.f32 %v300, %v300
    %v992 = vmul.f32 %v305, %v305
    %v993 = vmul.f32 %v308, %v308
    %v994 = vmul.f32 %v313, %v313
    %v995 = vmul.f32 %v316, %v316
    %v996 = vmul.f32 %v321, %v321
    %v997 = vmul.f32 %v324, %v324
    %v998 = vmul.f32 %v329, %v329
    %v999 = vmul.f32 %v332, %v332
    %v1000 = vmul.f32 %v337, %v337
    %v1001 = vmul.f32 %v340, %v340
    %v1002 = vmul.f32 %v345, %v345
    %v1003 = vmul.f32 %v348, %v348
    %v1004 = vmul.f32 %v353, %v353
    %v1005 = vmul.f32 %v356, %v356
    %v1006 = vmul.f32 %v361, %v361
    %v1007 = vmul.f32 %v364, %v364
    %v1008 = vmul.f32 %v369, %v369
    %v1009 = vmul.f32 %v372, %v372
    %v1010 = vmul.f32 %v377, %v377
    %v1011 = vmul.f32 %v380, %v380
    %v1012 = vmul.f32 %v385, %v385
    %v1013 = vmul.f32 %v388, %v388
    %v1014 = vmul.f32 %v393, %v393
    %v1015 = vmul.f32 %v396, %v396
    %v1016 = vmul.f32 %v401, %v401
    %v1017 = vmul.f32 %v404, %v404
    %v1018 = vmul.f32 %v409, %v409
    %v1019 = vmul.f32 %v412, %v412
    %v1020 = vmul.f32 %v417, %v417
    %v1021 = vmul.f32 %v420, %v420
    %v1022 = vmul.f32 %v425, %v425
    %v1023 = vmul.f32 %v428, %v428
    %v1024 = vmul.f32 %v433, %v433
    %v1025 = vmul.f32 %v436, %v436
    %v1026 = vmul.f32 %v441, %v441
    %v1027 = vmul.f32 %v444, %v444
    %v1028 = vmul.f32 %v449, %v449
    %v1029 = vmul.f32 %v452, %v452
    %v1030 = vmul.f32 %v457, %v457
    %v1031 = vmul.f32 %v460, %v460
    %v1032 = vmul.f32 %v465, %v465
    %v1033 = vmul.f32 %v468, %v468
    %v1034 = vmul.f32 %v473, %v473
    %v1035 = vmul.f32 %v476, %v476
    %v1036 = vmul.f32 %v481, %v481
    %v1037 = vmul.f32 %v484, %v484
    %v1038 = vmul.f32 %v489, %v489
    %v1039 = vmul.f32 %v492, %v492
    %v1040 = vmul.f32 %v497, %v497
    %v1041 = vmul.f32 %v500, %v500
    %v1042 = vmul.f32 %v505, %v505
    %v1043 = vmul.f32 %v508, %v508
    %v1044 = vmul.f32 %v513, %v513
    %v1045 = vmul.f32 %v516, %v516
    %v1046 = vmul.f32 %v521, %v521
    %v1047 = vmul.f32 %v524, %v524
    %v1048 = vsel %vm848, %v984, 0.0
    %v1049 = vsel %vm848, %v985, 0.0
    %v1050 = vadd.f32 %v1048, %v1049
    %v1051 = vsel %vm848, %v986, 0.0
    %v1052 = vadd.f32 %v1050, %v1051
    %v1053 = vsel %vm848, %v987, 0.0
    %v1054 = vadd.f32 %v1052, %v1053
    %v1055 = vsel %vm848, %v988, 0.0
    %v1056 = vadd.f32 %v1054, %v1055
    %v1057 = vsel %vm848, %v989, 0.0
    %v1058 = vadd.f32 %v1056, %v1057
    %v1059 = vsel %vm848, %v990, 0.0
    %v1060 = vadd.f32 %v1058, %v1059
    %v1061 = vsel %vm848, %v991, 0.0
    %v1062 = vadd.f32 %v1060, %v1061
    %v1063 = vsel %vm848, %v992, 0.0
    %v1064 = vadd.f32 %v1062, %v1063
    %v1065 = vsel %vm848, %v993, 0.0
    %v1066 = vadd.f32 %v1064, %v1065
    %v1067 = vsel %vm848, %v994, 0.0
    %v1068 = vadd.f32 %v1066, %v1067
    %v1069 = vsel %vm848, %v995, 0.0
    %v1070 = vadd.f32 %v1068, %v1069
    %v1071 = vsel %vm848, %v996, 0.0
    %v1072 = vadd.f32 %v1070, %v1071
    %v1073 = vsel %vm848, %v997, 0.0
    %v1074 = vadd.f32 %v1072, %v1073
    %v1075 = vsel %vm848, %v998, 0.0
    %v1076 = vadd.f32 %v1074, %v1075
    %v1077 = vsel %vm848, %v999, 0.0
    %v1078 = vadd.f32 %v1076, %v1077
    %v1079 = vsel %vm848, %v1000, 0.0
    %v1080 = vadd.f32 %v1078, %v1079
    %v1081 = vsel %vm848, %v1001, 0.0
    %v1082 = vadd.f32 %v1080, %v1081
    %v1083 = vsel %vm848, %v1002, 0.0
    %v1084 = vadd.f32 %v1082, %v1083
    %v1085 = vsel %vm848, %v1003, 0.0
    %v1086 = vadd.f32 %v1084, %v1085
    %v1087 = vsel %vm848, %v1004, 0.0
    %v1088 = vadd.f32 %v1086, %v1087
    %v1089 = vsel %vm848, %v1005, 0.0
    %v1090 = vadd.f32 %v1088, %v1089
    %v1091 = vsel %vm848, %v1006, 0.0
    %v1092 = vadd.f32 %v1090, %v1091
    %v1093 = vsel %vm848, %v1007, 0.0
    %v1094 = vadd.f32 %v1092, %v1093
    %v1095 = vsel %vm848, %v1008, 0.0
    %v1096 = vadd.f32 %v1094, %v1095
    %v1097 = vsel %vm848, %v1009, 0.0
    %v1098 = vadd.f32 %v1096, %v1097
    %v1099 = vsel %vm848, %v1010, 0.0
    %v1100 = vadd.f32 %v1098, %v1099
    %v1101 = vsel %vm848, %v1011, 0.0
    %v1102 = vadd.f32 %v1100, %v1101
    %v1103 = vsel %vm848, %v1012, 0.0
    %v1104 = vadd.f32 %v1102, %v1103
    %v1105 = vsel %vm848, %v1013, 0.0
    %v1106 = vadd.f32 %v1104, %v1105
    %v1107 = vsel %vm848, %v1014, 0.0
    %v1108 = vadd.f32 %v1106, %v1107
    %v1109 = vsel %vm848, %v1015, 0.0
    %v1110 = vadd.f32 %v1108, %v1109
    %v1111 = vsel %vm848, %v1016, 0.0
    %v1112 = vadd.f32 %v1110, %v1111
    %v1113 = vsel %vm848, %v1017, 0.0
    %v1114 = vadd.f32 %v1112, %v1113
    %v1115 = vsel %vm848, %v1018, 0.0
    %v1116 = vadd.f32 %v1114, %v1115
    %v1117 = vsel %vm848, %v1019, 0.0
    %v1118 = vadd.f32 %v1116, %v1117
    %v1119 = vsel %vm848, %v1020, 0.0
    %v1120 = vadd.f32 %v1118, %v1119
    %v1121 = vsel %vm848, %v1021, 0.0
    %v1122 = vadd.f32 %v1120, %v1121
    %v1123 = vsel %vm848, %v1022, 0.0
    %v1124 = vadd.f32 %v1122, %v1123
    %v1125 = vsel %vm848, %v1023, 0.0
    %v1126 = vadd.f32 %v1124, %v1125
    %v1127 = vsel %vm848, %v1024, 0.0
    %v1128 = vadd.f32 %v1126, %v1127
    %v1129 = vsel %vm848, %v1025, 0.0
    %v1130 = vadd.f32 %v1128, %v1129
    %v1131 = vsel %vm848, %v1026, 0.0
    %v1132 = vadd.f32 %v1130, %v1131
    %v1133 = vsel %vm848, %v1027, 0.0
    %v1134 = vadd.f32 %v1132, %v1133
    %v1135 = vsel %vm848, %v1028, 0.0
    %v1136 = vadd.f32 %v1134, %v1135
    %v1137 = vsel %vm848, %v1029, 0.0
    %v1138 = vadd.f32 %v1136, %v1137
    %v1139 = vsel %vm848, %v1030, 0.0
    %v1140 = vadd.f32 %v1138, %v1139
    %v1141 = vsel %vm848, %v1031, 0.0
    %v1142 = vadd.f32 %v1140, %v1141
    %v1143 = vsel %vm848, %v1032, 0.0
    %v1144 = vadd.f32 %v1142, %v1143
    %v1145 = vsel %vm848, %v1033, 0.0
    %v1146 = vadd.f32 %v1144, %v1145
    %v1147 = vsel %vm848, %v1034, 0.0
    %v1148 = vadd.f32 %v1146, %v1147
    %v1149 = vsel %vm848, %v1035, 0.0
    %v1150 = vadd.f32 %v1148, %v1149
    %v1151 = vsel %vm848, %v1036, 0.0
    %v1152 = vadd.f32 %v1150, %v1151
    %v1153 = vsel %vm848, %v1037, 0.0
    %v1154 = vadd.f32 %v1152, %v1153
    %v1155 = vsel %vm848, %v1038, 0.0
    %v1156 = vadd.f32 %v1154, %v1155
    %v1157 = vsel %vm848, %v1039, 0.0
    %v1158 = vadd.f32 %v1156, %v1157
    %v1159 = vsel %vm848, %v1040, 0.0
    %v1160 = vadd.f32 %v1158, %v1159
    %v1161 = vsel %vm848, %v1041, 0.0
    %v1162 = vadd.f32 %v1160, %v1161
    %v1163 = vsel %vm848, %v1042, 0.0
    %v1164 = vadd.f32 %v1162, %v1163
    %v1165 = vsel %vm848, %v1043, 0.0
    %v1166 = vadd.f32 %v1164, %v1165
    %v1167 = vsel %vm848, %v1044, 0.0
    %v1168 = vadd.f32 %v1166, %v1167
    %v1169 = vsel %vm848, %v1045, 0.0
    %v1170 = vadd.f32 %v1168, %v1169
    %v1171 = vsel %vm848, %v1046, 0.0
    %v1172 = vadd.f32 %v1170, %v1171
    %v1173 = vsel %vm848, %v1047, 0.0
    %v1174 = vadd.f32 %v1172, %v1173
    %v1175 = vrot.slane %v1174, 4
    %v1176 = vadd.f32 %v1174, %v1175
    %v1177 = vrot.slane %v1176, 2
    %v1178 = vadd.f32 %v1176, %v1177
    %v1179 = vrot.slane %v1178, 1
    %v1180 = vadd.f32 %v1178, %v1179
    %1181 = vst.msk [vmem:[%s4] sm:$0x1] %vm982, %v1180
    // Predicated region
    $region14: #{bottleneck_pallas.4} parent=1 // pred_check
      _
    $region15: #{bottleneck_pallas.4} parent=1 // pred_check_branch
      %1183 = sbr.rel (0) target = $region17
    $region16: #{bottleneck_pallas.4} parent=1 // pred_region
      _
    $region17: #{bottleneck_pallas.4} parent=1 // pred_fallthru
      _
    // Predicated region
    $region18: #{bottleneck_pallas.4} parent=1 // pred_check
      _
    $region19: #{bottleneck_pallas.4} parent=1 // pred_check_branch
      %1185 = sbr.rel (0) target = $region21
    $region20: #{bottleneck_pallas.4} parent=1 // pred_region
      _
    $region21: #{bottleneck_pallas.4} parent=1 // pred_fallthru
      _
    // Predicated region
    $region22: #{bottleneck_pallas.4} parent=1 // pred_check
      _
    $region23: #{bottleneck_pallas.4} parent=1 // pred_check_branch
      %1187 = sbr.rel (0) target = $region25
    $region24: #{bottleneck_pallas.4} parent=1 // pred_region
      _
    $region25: #{bottleneck_pallas.4} parent=1 // pred_fallthru
      _
    // Predicated region
    $region26: #{bottleneck_pallas.4} parent=1 // pred_check
      _
    $region27: #{bottleneck_pallas.4} parent=1 // pred_check_branch
      %1189 = sbr.rel (0) target = $region29
    $region28: #{bottleneck_pallas.4} parent=1 // pred_region
      _
    $region29: #{bottleneck_pallas.4} parent=1 // pred_fallthru
      _
    // Predicated region
    $region30: #{bottleneck_pallas.4} parent=1 // pred_check
      _
    $region31: #{bottleneck_pallas.4} parent=1 // pred_check_branch
      %1191 = sbr.rel (0) target = $region33
    $region32: #{bottleneck_pallas.4} parent=1 // pred_region
      _
    $region33: #{bottleneck_pallas.4} parent=1 // pred_fallthru
      _
    // Predicated region
    $region34: #{bottleneck_pallas.4} parent=1 // pred_check
      _
    $region35: #{bottleneck_pallas.4} parent=1 // pred_check_branch
      %1193 = sbr.rel (0) target = $region37
    $region36: #{bottleneck_pallas.4} parent=1 // pred_region
      _
    $region37: #{bottleneck_pallas.4} parent=1 // pred_fallthru
      _
    %1194 = vsyncpa [#allocation3], 1

// kernel: bottleneck_pallas.6
$region0: #{bottleneck_pallas.6}
  #allocation0 [shape = 'u32[]', space=smem, size = 0x4, offset = 0x4, fixed_abs, tag = 'smem constant byte address 0x4 - core index']
  #allocation1 [shape = 'u32[144,128]{1,0:T(1,128)}', space=vmem, size = 0x12000, scoped, tag = 'internal scratch']
  %s0 = inlined_call_operand.vmem [shape: bf16[512,8], index: 0, kind: input, shape index: {}]
  %s1 = inlined_call_operand.vmem [shape: f32[1,8], index: 1, kind: input, shape index: {}]
  %s2 = inlined_call_operand.vmem [shape: f32[1,8], index: 2, kind: input, shape index: {}]
  %s3 = inlined_call_operand.vmem [shape: bf16[8,32], index: 3, kind: input, shape index: {}]
  %s4 = inlined_call_operand.vmem [shape: bf16[512,32], index: 4, kind: output, shape index: {0}]
  %s5 = inlined_call_operand.vmem [shape: f32[1,1,32], index: 5, kind: output, shape index: {1}]
  %s6 = inlined_call_operand.vmem [shape: f32[1,1,32], index: 6, kind: output, shape index: {2}]
  %7 = xla_tuple %s4, %s5, %s6
  %s8 = sld [smem:[#allocation0]]
  $region42: #{bottleneck_pallas.6} parent=0
    _
  %s10 = ssub.s32 1, %s8
  %s11 = scalar_select 0, %s10, %s8
  // Predicated region
  $region2: #{bottleneck_pallas.6} parent=0 // pred_check
    _
  $region3: #{bottleneck_pallas.6} parent=0 // pred_check_branch
    %13 = sbr.rel (0) target = $region5
  $region4: #{bottleneck_pallas.6} parent=0 // pred_region
    _
  $region5: #{bottleneck_pallas.6} parent=0 // pred_fallthru
    _
  // Predicated region
  $region6: #{bottleneck_pallas.6} parent=0 // pred_check
    _
  $region7: #{bottleneck_pallas.6} parent=0 // pred_check_branch
    %15 = sbr.rel (0) target = $region9
  $region8: #{bottleneck_pallas.6} parent=0 // pred_region
    _
  $region9: #{bottleneck_pallas.6} parent=0 // pred_fallthru
    _
  // Predicated region
  $region10: #{bottleneck_pallas.6} parent=0 // pred_check
    _
  $region11: #{bottleneck_pallas.6} parent=0 // pred_check_branch
    %17 = sbr.rel (0) target = $region13
  $region12: #{bottleneck_pallas.6} parent=0 // pred_region
    _
  $region13: #{bottleneck_pallas.6} parent=0 // pred_fallthru
    _
  // Predicated region
  $region14: #{bottleneck_pallas.6} parent=0 // pred_check
    _
  $region15: #{bottleneck_pallas.6} parent=0 // pred_check_branch
    %19 = sbr.rel (0) target = $region17
  $region16: #{bottleneck_pallas.6} parent=0 // pred_region
    _
  $region17: #{bottleneck_pallas.6} parent=0 // pred_fallthru
    _
  %v21 = vld [vmem:[%s0] sm:$0xf]
  %v22 = vld [vmem:[%s0 + $0x4] sm:$0xf]
  %v23 = vld [vmem:[%s0 + $0x8] sm:$0xf]
  %v24 = vld [vmem:[%s0 + $0xc] sm:$0xf]
  %v25 = vld [vmem:[%s0 + $0x10] sm:$0xf]
  %v26 = vld [vmem:[%s0 + $0x14] sm:$0xf]
  %v27 = vld [vmem:[%s0 + $0x18] sm:$0xf]
  %v28 = vld [vmem:[%s0 + $0x1c] sm:$0xf]
  %v29 = vld [vmem:[%s0 + $0x20] sm:$0xf]
  %v30 = vld [vmem:[%s0 + $0x24] sm:$0xf]
  %v31 = vld [vmem:[%s0 + $0x28] sm:$0xf]
  %v32 = vld [vmem:[%s0 + $0x2c] sm:$0xf]
  %v33 = vld [vmem:[%s0 + $0x30] sm:$0xf]
  %v34 = vld [vmem:[%s0 + $0x34] sm:$0xf]
  %v35 = vld [vmem:[%s0 + $0x38] sm:$0xf]
  %v36 = vld [vmem:[%s0 + $0x3c] sm:$0xf]
  %v37 = vld [vmem:[%s0 + $0x40] sm:$0xf]
  %v38 = vld [vmem:[%s0 + $0x44] sm:$0xf]
  %v39 = vld [vmem:[%s0 + $0x48] sm:$0xf]
  %v40 = vld [vmem:[%s0 + $0x4c] sm:$0xf]
  %v41 = vld [vmem:[%s0 + $0x50] sm:$0xf]
  %v42 = vld [vmem:[%s0 + $0x54] sm:$0xf]
  %v43 = vld [vmem:[%s0 + $0x58] sm:$0xf]
  %v44 = vld [vmem:[%s0 + $0x5c] sm:$0xf]
  %v45 = vld [vmem:[%s0 + $0x60] sm:$0xf]
  %v46 = vld [vmem:[%s0 + $0x64] sm:$0xf]
  %v47 = vld [vmem:[%s0 + $0x68] sm:$0xf]
  %v48 = vld [vmem:[%s0 + $0x6c] sm:$0xf]
  %v49 = vld [vmem:[%s0 + $0x70] sm:$0xf]
  %v50 = vld [vmem:[%s0 + $0x74] sm:$0xf]
  %v51 = vld [vmem:[%s0 + $0x78] sm:$0xf]
  %v52 = vld [vmem:[%s0 + $0x7c] sm:$0xf]
  %v53 = vld [vmem:[%s0 + $0x80] sm:$0xf]
  %v54 = vld [vmem:[%s0 + $0x84] sm:$0xf]
  %v55 = vld [vmem:[%s0 + $0x88] sm:$0xf]
  %v56 = vld [vmem:[%s0 + $0x8c] sm:$0xf]
  %v57 = vld [vmem:[%s0 + $0x90] sm:$0xf]
  %v58 = vld [vmem:[%s0 + $0x94] sm:$0xf]
  %v59 = vld [vmem:[%s0 + $0x98] sm:$0xf]
  %v60 = vld [vmem:[%s0 + $0x9c] sm:$0xf]
  %v61 = vld [vmem:[%s0 + $0xa0] sm:$0xf]
  %v62 = vld [vmem:[%s0 + $0xa4] sm:$0xf]
  %v63 = vld [vmem:[%s0 + $0xa8] sm:$0xf]
  %v64 = vld [vmem:[%s0 + $0xac] sm:$0xf]
  %v65 = vld [vmem:[%s0 + $0xb0] sm:$0xf]
  %v66 = vld [vmem:[%s0 + $0xb4] sm:$0xf]
  %v67 = vld [vmem:[%s0 + $0xb8] sm:$0xf]
  %v68 = vld [vmem:[%s0 + $0xbc] sm:$0xf]
  %v69 = vld [vmem:[%s0 + $0xc0] sm:$0xf]
  %v70 = vld [vmem:[%s0 + $0xc4] sm:$0xf]
  %v71 = vld [vmem:[%s0 + $0xc8] sm:$0xf]
  %v72 = vld [vmem:[%s0 + $0xcc] sm:$0xf]
  %v73 = vld [vmem:[%s0 + $0xd0] sm:$0xf]
  %v74 = vld [vmem:[%s0 + $0xd4] sm:$0xf]
  %v75 = vld [vmem:[%s0 + $0xd8] sm:$0xf]
  %v76 = vld [vmem:[%s0 + $0xdc] sm:$0xf]
  %v77 = vld [vmem:[%s0 + $0xe0] sm:$0xf]
  %v78 = vld [vmem:[%s0 + $0xe4] sm:$0xf]
  %v79 = vld [vmem:[%s0 + $0xe8] sm:$0xf]
  %v80 = vld [vmem:[%s0 + $0xec] sm:$0xf]
  %v81 = vld [vmem:[%s0 + $0xf0] sm:$0xf]
  %v82 = vld [vmem:[%s0 + $0xf4] sm:$0xf]
  %v83 = vld [vmem:[%s0 + $0xf8] sm:$0xf]
  %v84 = vld [vmem:[%s0 + $0xfc] sm:$0xf]
  %v85 = vunpack.c.l.bf16 %v21
  %v86 = vunpack.c.l.bf16 %v22
  %v87 = vunpack.c.l.bf16 %v23
  %v88 = vunpack.c.l.bf16 %v24
  %v89 = vunpack.c.l.bf16 %v25
  %v90 = vunpack.c.l.bf16 %v26
  %v91 = vunpack.c.l.bf16 %v27
  %v92 = vunpack.c.l.bf16 %v28
  %v93 = vunpack.c.l.bf16 %v29
  %v94 = vunpack.c.l.bf16 %v30
  %v95 = vunpack.c.l.bf16 %v31
  %v96 = vunpack.c.l.bf16 %v32
  %v97 = vunpack.c.l.bf16 %v33
  %v98 = vunpack.c.l.bf16 %v34
  %v99 = vunpack.c.l.bf16 %v35
  %v100 = vunpack.c.l.bf16 %v36
  %v101 = vunpack.c.l.bf16 %v37
  %v102 = vunpack.c.l.bf16 %v38
  %v103 = vunpack.c.l.bf16 %v39
  %v104 = vunpack.c.l.bf16 %v40
  %v105 = vunpack.c.l.bf16 %v41
  %v106 = vunpack.c.l.bf16 %v42
  %v107 = vunpack.c.l.bf16 %v43
  %v108 = vunpack.c.l.bf16 %v44
  %v109 = vunpack.c.l.bf16 %v45
  %v110 = vunpack.c.l.bf16 %v46
  %v111 = vunpack.c.l.bf16 %v47
  %v112 = vunpack.c.l.bf16 %v48
  %v113 = vunpack.c.l.bf16 %v49
  %v114 = vunpack.c.l.bf16 %v50
  %v115 = vunpack.c.l.bf16 %v51
  %v116 = vunpack.c.l.bf16 %v52
  %v117 = vunpack.c.l.bf16 %v53
  %v118 = vunpack.c.l.bf16 %v54
  %v119 = vunpack.c.l.bf16 %v55
  %v120 = vunpack.c.l.bf16 %v56
  %v121 = vunpack.c.l.bf16 %v57
  %v122 = vunpack.c.l.bf16 %v58
  %v123 = vunpack.c.l.bf16 %v59
  %v124 = vunpack.c.l.bf16 %v60
  %v125 = vunpack.c.l.bf16 %v61
  %v126 = vunpack.c.l.bf16 %v62
  %v127 = vunpack.c.l.bf16 %v63
  %v128 = vunpack.c.l.bf16 %v64
  %v129 = vunpack.c.l.bf16 %v65
  %v130 = vunpack.c.l.bf16 %v66
  %v131 = vunpack.c.l.bf16 %v67
  %v132 = vunpack.c.l.bf16 %v68
  %v133 = vunpack.c.l.bf16 %v69
  %v134 = vunpack.c.l.bf16 %v70
  %v135 = vunpack.c.l.bf16 %v71
  %v136 = vunpack.c.l.bf16 %v72
  %v137 = vunpack.c.l.bf16 %v73
  %v138 = vunpack.c.l.bf16 %v74
  %v139 = vunpack.c.l.bf16 %v75
  %v140 = vunpack.c.l.bf16 %v76
  %v141 = vunpack.c.l.bf16 %v77
  %v142 = vunpack.c.l.bf16 %v78
  %v143 = vunpack.c.l.bf16 %v79
  %v144 = vunpack.c.l.bf16 %v80
  %v145 = vunpack.c.l.bf16 %v81
  %v146 = vunpack.c.l.bf16 %v82
  %v147 = vunpack.c.l.bf16 %v83
  %v148 = vunpack.c.l.bf16 %v84
  %v149 = vld [vmem:[%s1] sm:$0x1]
  %v151 = vlaneseq
  %v152 = vshrl.u32 %v151, 7
  %v153 = vsub.s32 0, %v152
  %v154 = vrot.slane %v149, %v153
  %v156 = vmul.f32 %v85, %v154
  %v157 = vmul.f32 %v86, %v154
  %v158 = vmul.f32 %v87, %v154
  %v159 = vmul.f32 %v88, %v154
  %v160 = vmul.f32 %v89, %v154
  %v161 = vmul.f32 %v90, %v154
  %v162 = vmul.f32 %v91, %v154
  %v163 = vmul.f32 %v92, %v154
  %v164 = vmul.f32 %v93, %v154
  %v165 = vmul.f32 %v94, %v154
  %v166 = vmul.f32 %v95, %v154
  %v167 = vmul.f32 %v96, %v154
  %v168 = vmul.f32 %v97, %v154
  %v169 = vmul.f32 %v98, %v154
  %v170 = vmul.f32 %v99, %v154
  %v171 = vmul.f32 %v100, %v154
  %v172 = vmul.f32 %v101, %v154
  %v173 = vmul.f32 %v102, %v154
  %v174 = vmul.f32 %v103, %v154
  %v175 = vmul.f32 %v104, %v154
  %v176 = vmul.f32 %v105, %v154
  %v177 = vmul.f32 %v106, %v154
  %v178 = vmul.f32 %v107, %v154
  %v179 = vmul.f32 %v108, %v154
  %v180 = vmul.f32 %v109, %v154
  %v181 = vmul.f32 %v110, %v154
  %v182 = vmul.f32 %v111, %v154
  %v183 = vmul.f32 %v112, %v154
  %v184 = vmul.f32 %v113, %v154
  %v185 = vmul.f32 %v114, %v154
  %v186 = vmul.f32 %v115, %v154
  %v187 = vmul.f32 %v116, %v154
  %v188 = vmul.f32 %v117, %v154
  %v189 = vmul.f32 %v118, %v154
  %v190 = vmul.f32 %v119, %v154
  %v191 = vmul.f32 %v120, %v154
  %v192 = vmul.f32 %v121, %v154
  %v193 = vmul.f32 %v122, %v154
  %v194 = vmul.f32 %v123, %v154
  %v195 = vmul.f32 %v124, %v154
  %v196 = vmul.f32 %v125, %v154
  %v197 = vmul.f32 %v126, %v154
  %v198 = vmul.f32 %v127, %v154
  %v199 = vmul.f32 %v128, %v154
  %v200 = vmul.f32 %v129, %v154
  %v201 = vmul.f32 %v130, %v154
  %v202 = vmul.f32 %v131, %v154
  %v203 = vmul.f32 %v132, %v154
  %v204 = vmul.f32 %v133, %v154
  %v205 = vmul.f32 %v134, %v154
  %v206 = vmul.f32 %v135, %v154
  %v207 = vmul.f32 %v136, %v154
  %v208 = vmul.f32 %v137, %v154
  %v209 = vmul.f32 %v138, %v154
  %v210 = vmul.f32 %v139, %v154
  %v211 = vmul.f32 %v140, %v154
  %v212 = vmul.f32 %v141, %v154
  %v213 = vmul.f32 %v142, %v154
  %v214 = vmul.f32 %v143, %v154
  %v215 = vmul.f32 %v144, %v154
  %v216 = vmul.f32 %v145, %v154
  %v217 = vmul.f32 %v146, %v154
  %v218 = vmul.f32 %v147, %v154
  %v219 = vmul.f32 %v148, %v154
  %v220 = vld [vmem:[%s2] sm:$0x1]
  %v222 = vlaneseq
  %v223 = vshrl.u32 %v222, 7
  %v224 = vsub.s32 0, %v223
  %v225 = vrot.slane %v220, %v224
  %v227 = vadd.f32 %v156, %v225
  %v228 = vadd.f32 %v157, %v225
  %v229 = vadd.f32 %v158, %v225
  %v230 = vadd.f32 %v159, %v225
  %v231 = vadd.f32 %v160, %v225
  %v232 = vadd.f32 %v161, %v225
  %v233 = vadd.f32 %v162, %v225
  %v234 = vadd.f32 %v163, %v225
  %v235 = vadd.f32 %v164, %v225
  %v236 = vadd.f32 %v165, %v225
  %v237 = vadd.f32 %v166, %v225
  %v238 = vadd.f32 %v167, %v225
  %v239 = vadd.f32 %v168, %v225
  %v240 = vadd.f32 %v169, %v225
  %v241 = vadd.f32 %v170, %v225
  %v242 = vadd.f32 %v171, %v225
  %v243 = vadd.f32 %v172, %v225
  %v244 = vadd.f32 %v173, %v225
  %v245 = vadd.f32 %v174, %v225
  %v246 = vadd.f32 %v175, %v225
  %v247 = vadd.f32 %v176, %v225
  %v248 = vadd.f32 %v177, %v225
  %v249 = vadd.f32 %v178, %v225
  %v250 = vadd.f32 %v179, %v225
  %v251 = vadd.f32 %v180, %v225
  %v252 = vadd.f32 %v181, %v225
  %v253 = vadd.f32 %v182, %v225
  %v254 = vadd.f32 %v183, %v225
  %v255 = vadd.f32 %v184, %v225
  %v256 = vadd.f32 %v185, %v225
  %v257 = vadd.f32 %v186, %v225
  %v258 = vadd.f32 %v187, %v225
  %v259 = vadd.f32 %v188, %v225
  %v260 = vadd.f32 %v189, %v225
  %v261 = vadd.f32 %v190, %v225
  %v262 = vadd.f32 %v191, %v225
  %v263 = vadd.f32 %v192, %v225
  %v264 = vadd.f32 %v193, %v225
  %v265 = vadd.f32 %v194, %v225
  %v266 = vadd.f32 %v195, %v225
  %v267 = vadd.f32 %v196, %v225
  %v268 = vadd.f32 %v197, %v225
  %v269 = vadd.f32 %v198, %v225
  %v270 = vadd.f32 %v199, %v225
  %v271 = vadd.f32 %v200, %v225
  %v272 = vadd.f32 %v201, %v225
  %v273 = vadd.f32 %v202, %v225
  %v274 = vadd.f32 %v203, %v225
  %v275 = vadd.f32 %v204, %v225
  %v276 = vadd.f32 %v205, %v225
  %v277 = vadd.f32 %v206, %v225
  %v278 = vadd.f32 %v207, %v225
  %v279 = vadd.f32 %v208, %v225
  %v280 = vadd.f32 %v209, %v225
  %v281 = vadd.f32 %v210, %v225
  %v282 = vadd.f32 %v211, %v225
  %v283 = vadd.f32 %v212, %v225
  %v284 = vadd.f32 %v213, %v225
  %v285 = vadd.f32 %v214, %v225
  %v286 = vadd.f32 %v215, %v225
  %v287 = vadd.f32 %v216, %v225
  %v288 = vadd.f32 %v217, %v225
  %v289 = vadd.f32 %v218, %v225
  %v290 = vadd.f32 %v219, %v225
  %v291 = vmax.f32 %v227, 0.0
  %v292 = vmax.f32 %v228, 0.0
  %v293 = vmax.f32 %v229, 0.0
  %v294 = vmax.f32 %v230, 0.0
  %v295 = vmax.f32 %v231, 0.0
  %v296 = vmax.f32 %v232, 0.0
  %v297 = vmax.f32 %v233, 0.0
  %v298 = vmax.f32 %v234, 0.0
  %v299 = vmax.f32 %v235, 0.0
  %v300 = vmax.f32 %v236, 0.0
  %v301 = vmax.f32 %v237, 0.0
  %v302 = vmax.f32 %v238, 0.0
  %v303 = vmax.f32 %v239, 0.0
  %v304 = vmax.f32 %v240, 0.0
  %v305 = vmax.f32 %v241, 0.0
  %v306 = vmax.f32 %v242, 0.0
  %v307 = vmax.f32 %v243, 0.0
  %v308 = vmax.f32 %v244, 0.0
  %v309 = vmax.f32 %v245, 0.0
  %v310 = vmax.f32 %v246, 0.0
  %v311 = vmax.f32 %v247, 0.0
  %v312 = vmax.f32 %v248, 0.0
  %v313 = vmax.f32 %v249, 0.0
  %v314 = vmax.f32 %v250, 0.0
  %v315 = vmax.f32 %v251, 0.0
  %v316 = vmax.f32 %v252, 0.0
  %v317 = vmax.f32 %v253, 0.0
  %v318 = vmax.f32 %v254, 0.0
  %v319 = vmax.f32 %v255, 0.0
  %v320 = vmax.f32 %v256, 0.0
  %v321 = vmax.f32 %v257, 0.0
  %v322 = vmax.f32 %v258, 0.0
  %v323 = vmax.f32 %v259, 0.0
  %v324 = vmax.f32 %v260, 0.0
  %v325 = vmax.f32 %v261, 0.0
  %v326 = vmax.f32 %v262, 0.0
  %v327 = vmax.f32 %v263, 0.0
  %v328 = vmax.f32 %v264, 0.0
  %v329 = vmax.f32 %v265, 0.0
  %v330 = vmax.f32 %v266, 0.0
  %v331 = vmax.f32 %v267, 0.0
  %v332 = vmax.f32 %v268, 0.0
  %v333 = vmax.f32 %v269, 0.0
  %v334 = vmax.f32 %v270, 0.0
  %v335 = vmax.f32 %v271, 0.0
  %v336 = vmax.f32 %v272, 0.0
  %v337 = vmax.f32 %v273, 0.0
  %v338 = vmax.f32 %v274, 0.0
  %v339 = vmax.f32 %v275, 0.0
  %v340 = vmax.f32 %v276, 0.0
  %v341 = vmax.f32 %v277, 0.0
  %v342 = vmax.f32 %v278, 0.0
  %v343 = vmax.f32 %v279, 0.0
  %v344 = vmax.f32 %v280, 0.0
  %v345 = vmax.f32 %v281, 0.0
  %v346 = vmax.f32 %v282, 0.0
  %v347 = vmax.f32 %v283, 0.0
  %v348 = vmax.f32 %v284, 0.0
  %v349 = vmax.f32 %v285, 0.0
  %v350 = vmax.f32 %v286, 0.0
  %v351 = vmax.f32 %v287, 0.0
  %v352 = vmax.f32 %v288, 0.0
  %v353 = vmax.f32 %v289, 0.0
  %v354 = vmax.f32 %v290, 0.0
  %v355 = vpack.c.bf16 %v292, %v291
  %v356 = vpack.c.bf16 %v294, %v293
  %v357 = vpack.c.bf16 %v296, %v295
  %v358 = vpack.c.bf16 %v298, %v297
  %v359 = vpack.c.bf16 %v300, %v299
  %v360 = vpack.c.bf16 %v302, %v301
  %v361 = vpack.c.bf16 %v304, %v303
  %v362 = vpack.c.bf16 %v306, %v305
  %v363 = vpack.c.bf16 %v308, %v307
  %v364 = vpack.c.bf16 %v310, %v309
  %v365 = vpack.c.bf16 %v312, %v311
  %v366 = vpack.c.bf16 %v314, %v313
  %v367 = vpack.c.bf16 %v316, %v315
  %v368 = vpack.c.bf16 %v318, %v317
  %v369 = vpack.c.bf16 %v320, %v319
  %v370 = vpack.c.bf16 %v322, %v321
  %v371 = vpack.c.bf16 %v324, %v323
  %v372 = vpack.c.bf16 %v326, %v325
  %v373 = vpack.c.bf16 %v328, %v327
  %v374 = vpack.c.bf16 %v330, %v329
  %v375 = vpack.c.bf16 %v332, %v331
  %v376 = vpack.c.bf16 %v334, %v333
  %v377 = vpack.c.bf16 %v336, %v335
  %v378 = vpack.c.bf16 %v338, %v337
  %v379 = vpack.c.bf16 %v340, %v339
  %v380 = vpack.c.bf16 %v342, %v341
  %v381 = vpack.c.bf16 %v344, %v343
  %v382 = vpack.c.bf16 %v346, %v345
  %v383 = vpack.c.bf16 %v348, %v347
  %v384 = vpack.c.bf16 %v350, %v349
  %v385 = vpack.c.bf16 %v352, %v351
  %v386 = vpack.c.bf16 %v354, %v353
  %v387 = vld [vmem:[%s3] sm:$0xf]
  %vm388 = vcmask 64512
  %v390 = vsel %vm388, %v355, 0
  %v393 = vsel %vm388, %v356, 0
  %v396 = vsel %vm388, %v357, 0
  %v399 = vsel %vm388, %v358, 0
  %v402 = vsel %vm388, %v359, 0
  %v405 = vsel %vm388, %v360, 0
  %v408 = vsel %vm388, %v361, 0
  %v411 = vsel %vm388, %v362, 0
  %v414 = vsel %vm388, %v363, 0
  %v417 = vsel %vm388, %v364, 0
  %v420 = vsel %vm388, %v365, 0
  %v423 = vsel %vm388, %v366, 0
  %v426 = vsel %vm388, %v367, 0
  %v429 = vsel %vm388, %v368, 0
  %v432 = vsel %vm388, %v369, 0
  %v435 = vsel %vm388, %v370, 0
  %v438 = vsel %vm388, %v371, 0
  %v441 = vsel %vm388, %v372, 0
  %v444 = vsel %vm388, %v373, 0
  %v447 = vsel %vm388, %v374, 0
  %v450 = vsel %vm388, %v375, 0
  %v453 = vsel %vm388, %v376, 0
  %v456 = vsel %vm388, %v377, 0
  %v459 = vsel %vm388, %v378, 0
  %v462 = vsel %vm388, %v379, 0
  %v465 = vsel %vm388, %v380, 0
  %v468 = vsel %vm388, %v381, 0
  %v471 = vsel %vm388, %v382, 0
  %v474 = vsel %vm388, %v383, 0
  %v477 = vsel %vm388, %v384, 0
  %v480 = vsel %vm388, %v385, 0
  %v483 = vsel %vm388, %v386, 0
  %vm485 = vcmask 1043456
  %v487 = vsel %vm485, %v387, 0
  %489 = vmatprep.subr.bf16.mxu0 0
  %490 = vmatpush1.bf16.msra.mxu0 %v487
  %491 = vmatprep.subr.bf16.mxu0 0
  %492 = vmatpush1.bf16.msra.mxu0 0
  %493 = vmatprep.subr.bf16.mxu0 0
  %494 = vmatpush1.bf16.msra.mxu0 0
  %495 = vmatprep.subr.bf16.mxu0 0
  %496 = vmatpush1.bf16.msra.mxu0 0
  %497 = vmatprep.subr.bf16.mxu0 0
  %498 = vmatpush1.bf16.msra.mxu0 0
  %499 = vmatprep.subr.bf16.mxu0 0
  %500 = vmatpush1.bf16.msra.mxu0 0
  %501 = vmatprep.subr.bf16.mxu0 0
  %502 = vmatpush1.bf16.msra.mxu0 0
  %503 = vmatprep.subr.bf16.mxu0 0
  %504 = vmatpush1.bf16.msra.mxu0 0
  %505 = vmatprep.subr.bf16.mxu0 0
  %506 = vmatpush1.bf16.msra.mxu0 0
  %507 = vmatprep.subr.bf16.mxu0 0
  %508 = vmatpush1.bf16.msra.mxu0 0
  %509 = vmatprep.subr.bf16.mxu0 0
  %510 = vmatpush1.bf16.msra.mxu0 0
  %511 = vmatprep.subr.bf16.mxu0 0
  %512 = vmatpush1.bf16.msra.mxu0 0
  %513 = vmatprep.subr.bf16.mxu0 0
  %514 = vmatpush1.bf16.msra.mxu0 0
  %515 = vmatprep.subr.bf16.mxu0 0
  %516 = vmatpush1.bf16.msra.mxu0 0
  %517 = vmatprep.subr.bf16.mxu0 0
  %518 = vmatpush1.bf16.msra.mxu0 0
  %519 = vmatprep.subr.bf16.mxu0 0
  %520 = vmatpush1.bf16.msra.mxu0 0
  %521 = vmatprep.mubr.bf16.mxu0 0
  %522 = vmatmul.mubr.bf16.gmra.mrb[0].mxu0 %v390
  %v523 = vpop.f32.mrb[0].mxu0
  %v524 = vadd.f32 0.0, %v523
  %v525 = vpop.f32.mrb[0].mxu0
  %v526 = vpop.f32.mrb[0].mxu0
  %v527 = vadd.f32 0.0, %v526
  %v528 = vpop.f32.mrb[0].mxu0
  %529 = vmatprep.mubr.bf16.mxu0 0
  %530 = vmatmul.mubr.bf16.gmra.mrb[0].mxu0 %v393
  %v531 = vpop.f32.mrb[0].mxu0
  %v532 = vadd.f32 0.0, %v531
  %v533 = vpop.f32.mrb[0].mxu0
  %v534 = vpop.f32.mrb[0].mxu0
  %v535 = vadd.f32 0.0, %v534
  %v536 = vpop.f32.mrb[0].mxu0
  %537 = vmatprep.mubr.bf16.mxu0 0
  %538 = vmatmul.mubr.bf16.gmra.mrb[0].mxu0 %v396
  %v539 = vpop.f32.mrb[0].mxu0
  %v540 = vadd.f32 0.0, %v539
  %v541 = vpop.f32.mrb[0].mxu0
  %v542 = vpop.f32.mrb[0].mxu0
  %v543 = vadd.f32 0.0, %v542
  %v544 = vpop.f32.mrb[0].mxu0
  %545 = vmatprep.mubr.bf16.mxu0 0
  %546 = vmatmul.mubr.bf16.gmra.mrb[0].mxu0 %v399
  %v547 = vpop.f32.mrb[0].mxu0
  %v548 = vadd.f32 0.0, %v547
  %v549 = vpop.f32.mrb[0].mxu0
  %v550 = vpop.f32.mrb[0].mxu0
  %v551 = vadd.f32 0.0, %v550
  %v552 = vpop.f32.mrb[0].mxu0
  %553 = vmatprep.mubr.bf16.mxu0 0
  %554 = vmatmul.mubr.bf16.gmra.mrb[0].mxu0 %v402
  %v555 = vpop.f32.mrb[0].mxu0
  %v556 = vadd.f32 0.0, %v555
  %v557 = vpop.f32.mrb[0].mxu0
  %v558 = vpop.f32.mrb[0].mxu0
  %v559 = vadd.f32 0.0, %v558
  %v560 = vpop.f32.mrb[0].mxu0
  %561 = vmatprep.mubr.bf16.mxu0 0
  %562 = vmatmul.mubr.bf16.gmra.mrb[0].mxu0 %v405
  %v563 = vpop.f32.mrb[0].mxu0
  %v564 = vadd.f32 0.0, %v563
  %v565 = vpop.f32.mrb[0].mxu0
  %v566 = vpop.f32.mrb[0].mxu0
  %v567 = vadd.f32 0.0, %v566
  %v568 = vpop.f32.mrb[0].mxu0
  %569 = vmatprep.mubr.bf16.mxu0 0
  %570 = vmatmul.mubr.bf16.gmra.mrb[0].mxu0 %v408
  %v571 = vpop.f32.mrb[0].mxu0
  %v572 = vadd.f32 0.0, %v571
  %v573 = vpop.f32.mrb[0].mxu0
  %v574 = vpop.f32.mrb[0].mxu0
  %v575 = vadd.f32 0.0, %v574
  %v576 = vpop.f32.mrb[0].mxu0
  %577 = vmatprep.mubr.bf16.mxu0 0
  %578 = vmatmul.mubr.bf16.gmra.mrb[0].mxu0 %v411
  %v579 = vpop.f32.mrb[0].mxu0
  %v580 = vadd.f32 0.0, %v579
  %v581 = vpop.f32.mrb[0].mxu0
  %v582 = vpop.f32.mrb[0].mxu0
  %v583 = vadd.f32 0.0, %v582
  %v584 = vpop.f32.mrb[0].mxu0
  %585 = vmatprep.mubr.bf16.mxu0 0
  %586 = vmatmul.mubr.bf16.gmra.mrb[0].mxu0 %v414
  %v587 = vpop.f32.mrb[0].mxu0
  %v588 = vadd.f32 0.0, %v587
  %v589 = vpop.f32.mrb[0].mxu0
  %v590 = vpop.f32.mrb[0].mxu0
  %v591 = vadd.f32 0.0, %v590
  %v592 = vpop.f32.mrb[0].mxu0
  %593 = vmatprep.mubr.bf16.mxu0 0
  %594 = vmatmul.mubr.bf16.gmra.mrb[0].mxu0 %v417
  %v595 = vpop.f32.mrb[0].mxu0
  %v596 = vadd.f32 0.0, %v595
  %v597 = vpop.f32.mrb[0].mxu0
  %v598 = vpop.f32.mrb[0].mxu0
  %v599 = vadd.f32 0.0, %v598
  %v600 = vpop.f32.mrb[0].mxu0
  %601 = vmatprep.mubr.bf16.mxu0 0
  %602 = vmatmul.mubr.bf16.gmra.mrb[0].mxu0 %v420
  %v603 = vpop.f32.mrb[0].mxu0
  %v604 = vadd.f32 0.0, %v603
  %v605 = vpop.f32.mrb[0].mxu0
  %v606 = vpop.f32.mrb[0].mxu0
  %v607 = vadd.f32 0.0, %v606
  %v608 = vpop.f32.mrb[0].mxu0
  %609 = vmatprep.mubr.bf16.mxu0 0
  %610 = vmatmul.mubr.bf16.gmra.mrb[0].mxu0 %v423
  %v611 = vpop.f32.mrb[0].mxu0
  %v612 = vadd.f32 0.0, %v611
  %v613 = vpop.f32.mrb[0].mxu0
  %v614 = vpop.f32.mrb[0].mxu0
  %v615 = vadd.f32 0.0, %v614
  %v616 = vpop.f32.mrb[0].mxu0
  %617 = vmatprep.mubr.bf16.mxu0 0
  %618 = vmatmul.mubr.bf16.gmra.mrb[0].mxu0 %v426
  %v619 = vpop.f32.mrb[0].mxu0
  %v620 = vadd.f32 0.0, %v619
  %v621 = vpop.f32.mrb[0].mxu0
  %v622 = vpop.f32.mrb[0].mxu0
  %v623 = vadd.f32 0.0, %v622
  %v624 = vpop.f32.mrb[0].mxu0
  %625 = vmatprep.mubr.bf16.mxu0 0
  %626 = vmatmul.mubr.bf16.gmra.mrb[0].mxu0 %v429
  %v627 = vpop.f32.mrb[0].mxu0
  %v628 = vadd.f32 0.0, %v627
  %v629 = vpop.f32.mrb[0].mxu0
  %v630 = vpop.f32.mrb[0].mxu0
  %v631 = vadd.f32 0.0, %v630
  %v632 = vpop.f32.mrb[0].mxu0
  %633 = vmatprep.mubr.bf16.mxu0 0
  %634 = vmatmul.mubr.bf16.gmra.mrb[0].mxu0 %v432
  %v635 = vpop.f32.mrb[0].mxu0
  %v636 = vadd.f32 0.0, %v635
  %v637 = vpop.f32.mrb[0].mxu0
  %v638 = vpop.f32.mrb[0].mxu0
  %v639 = vadd.f32 0.0, %v638
  %v640 = vpop.f32.mrb[0].mxu0
  %641 = vmatprep.mubr.bf16.mxu0 0
  %642 = vmatmul.mubr.bf16.gmra.mrb[0].mxu0 %v435
  %v643 = vpop.f32.mrb[0].mxu0
  %v644 = vadd.f32 0.0, %v643
  %v645 = vpop.f32.mrb[0].mxu0
  %v646 = vpop.f32.mrb[0].mxu0
  %v647 = vadd.f32 0.0, %v646
  %v648 = vpop.f32.mrb[0].mxu0
  %649 = vmatprep.mubr.bf16.mxu0 0
  %650 = vmatmul.mubr.bf16.gmra.mrb[0].mxu0 %v438
  %v651 = vpop.f32.mrb[0].mxu0
  %v652 = vadd.f32 0.0, %v651
  %v653 = vpop.f32.mrb[0].mxu0
  %v654 = vpop.f32.mrb[0].mxu0
  %v655 = vadd.f32 0.0, %v654
  %v656 = vpop.f32.mrb[0].mxu0
  %657 = vmatprep.mubr.bf16.mxu0 0
  %658 = vmatmul.mubr.bf16.gmra.mrb[0].mxu0 %v441
  %v659 = vpop.f32.mrb[0].mxu0
  %v660 = vadd.f32 0.0, %v659
  %v661 = vpop.f32.mrb[0].mxu0
  %v662 = vpop.f32.mrb[0].mxu0
  %v663 = vadd.f32 0.0, %v662
  %v664 = vpop.f32.mrb[0].mxu0
  %665 = vmatprep.mubr.bf16.mxu0 0
  %666 = vmatmul.mubr.bf16.gmra.mrb[0].mxu0 %v444
  %v667 = vpop.f32.mrb[0].mxu0
  %v668 = vadd.f32 0.0, %v667
  %v669 = vpop.f32.mrb[0].mxu0
  %v670 = vpop.f32.mrb[0].mxu0
  %v671 = vadd.f32 0.0, %v670
  %v672 = vpop.f32.mrb[0].mxu0
  %673 = vmatprep.mubr.bf16.mxu0 0
  %674 = vmatmul.mubr.bf16.gmra.mrb[0].mxu0 %v447
  %v675 = vpop.f32.mrb[0].mxu0
  %v676 = vadd.f32 0.0, %v675
  %v677 = vpop.f32.mrb[0].mxu0
  %v678 = vpop.f32.mrb[0].mxu0
  %v679 = vadd.f32 0.0, %v678
  %v680 = vpop.f32.mrb[0].mxu0
  %681 = vmatprep.mubr.bf16.mxu0 0
  %682 = vmatmul.mubr.bf16.gmra.mrb[0].mxu0 %v450
  %v683 = vpop.f32.mrb[0].mxu0
  %v684 = vadd.f32 0.0, %v683
  %v685 = vpop.f32.mrb[0].mxu0
  %v686 = vpop.f32.mrb[0].mxu0
  %v687 = vadd.f32 0.0, %v686
  %v688 = vpop.f32.mrb[0].mxu0
  %689 = vmatprep.mubr.bf16.mxu0 0
  %690 = vmatmul.mubr.bf16.gmra.mrb[0].mxu0 %v453
  %v691 = vpop.f32.mrb[0].mxu0
  %v692 = vadd.f32 0.0, %v691
  %v693 = vpop.f32.mrb[0].mxu0
  %v694 = vpop.f32.mrb[0].mxu0
  %v695 = vadd.f32 0.0, %v694
  %v696 = vpop.f32.mrb[0].mxu0
  %697 = vmatprep.mubr.bf16.mxu0 0
  %698 = vmatmul.mubr.bf16.gmra.mrb[0].mxu0 %v456
  %v699 = vpop.f32.mrb[0].mxu0
  %v700 = vadd.f32 0.0, %v699
  %v701 = vpop.f32.mrb[0].mxu0
  %v702 = vpop.f32.mrb[0].mxu0
  %v703 = vadd.f32 0.0, %v702
  %v704 = vpop.f32.mrb[0].mxu0
  %705 = vmatprep.mubr.bf16.mxu0 0
  %706 = vmatmul.mubr.bf16.gmra.mrb[0].mxu0 %v459
  %v707 = vpop.f32.mrb[0].mxu0
  %v708 = vadd.f32 0.0, %v707
  %v709 = vpop.f32.mrb[0].mxu0
  %v710 = vpop.f32.mrb[0].mxu0
  %v711 = vadd.f32 0.0, %v710
  %v712 = vpop.f32.mrb[0].mxu0
  %713 = vmatprep.mubr.bf16.mxu0 0
  %714 = vmatmul.mubr.bf16.gmra.mrb[0].mxu0 %v462
  %v715 = vpop.f32.mrb[0].mxu0
  %v716 = vadd.f32 0.0, %v715
  %v717 = vpop.f32.mrb[0].mxu0
  %v718 = vpop.f32.mrb[0].mxu0
  %v719 = vadd.f32 0.0, %v718
  %v720 = vpop.f32.mrb[0].mxu0
  %721 = vmatprep.mubr.bf16.mxu0 0
  %722 = vmatmul.mubr.bf16.gmra.mrb[0].mxu0 %v465
  %v723 = vpop.f32.mrb[0].mxu0
  %v724 = vadd.f32 0.0, %v723
  %v725 = vpop.f32.mrb[0].mxu0
  %v726 = vpop.f32.mrb[0].mxu0
  %v727 = vadd.f32 0.0, %v726
  %v728 = vpop.f32.mrb[0].mxu0
  %729 = vmatprep.mubr.bf16.mxu0 0
  %730 = vmatmul.mubr.bf16.gmra.mrb[0].mxu0 %v468
  %v731 = vpop.f32.mrb[0].mxu0
  %v732 = vadd.f32 0.0, %v731
  %v733 = vpop.f32.mrb[0].mxu0
  %v734 = vpop.f32.mrb[0].mxu0
  %v735 = vadd.f32 0.0, %v734
  %v736 = vpop.f32.mrb[0].mxu0
  %737 = vmatprep.mubr.bf16.mxu0 0
  %738 = vmatmul.mubr.bf16.gmra.mrb[0].mxu0 %v471
  %v739 = vpop.f32.mrb[0].mxu0
  %v740 = vadd.f32 0.0, %v739
  %v741 = vpop.f32.mrb[0].mxu0
  %v742 = vpop.f32.mrb[0].mxu0
  %v743 = vadd.f32 0.0, %v742
  %v744 = vpop.f32.mrb[0].mxu0
  %745 = vmatprep.mubr.bf16.mxu0 0
  %746 = vmatmul.mubr.bf16.gmra.mrb[0].mxu0 %v474
  %v747 = vpop.f32.mrb[0].mxu0
  %v748 = vadd.f32 0.0, %v747
  %v749 = vpop.f32.mrb[0].mxu0
  %v750 = vpop.f32.mrb[0].mxu0
  %v751 = vadd.f32 0.0, %v750
  %v752 = vpop.f32.mrb[0].mxu0
  %753 = vmatprep.mubr.bf16.mxu0 0
  %754 = vmatmul.mubr.bf16.gmra.mrb[0].mxu0 %v477
  %v755 = vpop.f32.mrb[0].mxu0
  %v756 = vadd.f32 0.0, %v755
  %v757 = vpop.f32.mrb[0].mxu0
  %v758 = vpop.f32.mrb[0].mxu0
  %v759 = vadd.f32 0.0, %v758
  %v760 = vpop.f32.mrb[0].mxu0
  %761 = vmatprep.mubr.bf16.mxu0 0
  %762 = vmatmul.mubr.bf16.gmra.mrb[0].mxu0 %v480
  %v763 = vpop.f32.mrb[0].mxu0
  %v764 = vadd.f32 0.0, %v763
  %v765 = vpop.f32.mrb[0].mxu0
  %v766 = vpop.f32.mrb[0].mxu0
  %v767 = vadd.f32 0.0, %v766
  %v768 = vpop.f32.mrb[0].mxu0
  %769 = vmatprep.mubr.bf16.mxu0 0
  %770 = vmatmul.mubr.bf16.gmra.mrb[0].mxu0 %v483
  %v771 = vpop.f32.mrb[0].mxu0
  %v772 = vadd.f32 0.0, %v771
  %v773 = vpop.f32.mrb[0].mxu0
  %v774 = vpop.f32.mrb[0].mxu0
  %v775 = vadd.f32 0.0, %v774
  %v776 = vpop.f32.mrb[0].mxu0
  %777 = vdwg.mxu0
  %v778 = vpack.c.bf16 %v527, %v524
  %v779 = vpack.c.bf16 %v535, %v532
  %v780 = vpack.c.bf16 %v543, %v540
  %v781 = vpack.c.bf16 %v551, %v548
  %v782 = vpack.c.bf16 %v559, %v556
  %v783 = vpack.c.bf16 %v567, %v564
  %v784 = vpack.c.bf16 %v575, %v572
  %v785 = vpack.c.bf16 %v583, %v580
  %v786 = vpack.c.bf16 %v591, %v588
  %v787 = vpack.c.bf16 %v599, %v596
  %v788 = vpack.c.bf16 %v607, %v604
  %v789 = vpack.c.bf16 %v615, %v612
  %v790 = vpack.c.bf16 %v623, %v620
  %v791 = vpack.c.bf16 %v631, %v628
  %v792 = vpack.c.bf16 %v639, %v636
  %v793 = vpack.c.bf16 %v647, %v644
  %v794 = vpack.c.bf16 %v655, %v652
  %v795 = vpack.c.bf16 %v663, %v660
  %v796 = vpack.c.bf16 %v671, %v668
  %v797 = vpack.c.bf16 %v679, %v676
  %v798 = vpack.c.bf16 %v687, %v684
  %v799 = vpack.c.bf16 %v695, %v692
  %v800 = vpack.c.bf16 %v703, %v700
  %v801 = vpack.c.bf16 %v711, %v708
  %v802 = vpack.c.bf16 %v719, %v716
  %v803 = vpack.c.bf16 %v727, %v724
  %v804 = vpack.c.bf16 %v735, %v732
  %v805 = vpack.c.bf16 %v743, %v740
  %v806 = vpack.c.bf16 %v751, %v748
  %v807 = vpack.c.bf16 %v759, %v756
  %v808 = vpack.c.bf16 %v767, %v764
  %v809 = vpack.c.bf16 %v775, %v772
  %v842 = vunpack.c.l.b16 %v778
  %v843 = vunpack.c.h.b16 %v778
  %v844 = vunpack.c.l.b16 %v779
  %v845 = vunpack.c.h.b16 %v779
  %v846 = vunpack.c.l.b16 %v780
  %v847 = vunpack.c.h.b16 %v780
  %v848 = vunpack.c.l.b16 %v781
  %v849 = vunpack.c.h.b16 %v781
  %v850 = vunpack.c.l.b16 %v782
  %v851 = vunpack.c.h.b16 %v782
  %v852 = vunpack.c.l.b16 %v783
  %v853 = vunpack.c.h.b16 %v783
  %v854 = vunpack.c.l.b16 %v784
  %v855 = vunpack.c.h.b16 %v784
  %v856 = vunpack.c.l.b16 %v785
  %v857 = vunpack.c.h.b16 %v785
  %v858 = vunpack.c.l.b16 %v786
  %v859 = vunpack.c.h.b16 %v786
  %v860 = vunpack.c.l.b16 %v787
  %v861 = vunpack.c.h.b16 %v787
  %v862 = vunpack.c.l.b16 %v788
  %v863 = vunpack.c.h.b16 %v788
  %v864 = vunpack.c.l.b16 %v789
  %v865 = vunpack.c.h.b16 %v789
  %v866 = vunpack.c.l.b16 %v790
  %v867 = vunpack.c.h.b16 %v790
  %v868 = vunpack.c.l.b16 %v791
  %v869 = vunpack.c.h.b16 %v791
  %v870 = vunpack.c.l.b16 %v792
  %v871 = vunpack.c.h.b16 %v792
  %v872 = vunpack.c.l.b16 %v793
  %v873 = vunpack.c.h.b16 %v793
  %v874 = vunpack.c.l.b16 %v794
  %v875 = vunpack.c.h.b16 %v794
  %v876 = vunpack.c.l.b16 %v795
  %v877 = vunpack.c.h.b16 %v795
  %v878 = vunpack.c.l.b16 %v796
  %v879 = vunpack.c.h.b16 %v796
  %v880 = vunpack.c.l.b16 %v797
  %v881 = vunpack.c.h.b16 %v797
  %v882 = vunpack.c.l.b16 %v798
  %v883 = vunpack.c.h.b16 %v798
  %v884 = vunpack.c.l.b16 %v799
  %v885 = vunpack.c.h.b16 %v799
  %v886 = vunpack.c.l.b16 %v800
  %v887 = vunpack.c.h.b16 %v800
  %v888 = vunpack.c.l.b16 %v801
  %v889 = vunpack.c.h.b16 %v801
  %v890 = vunpack.c.l.b16 %v802
  %v891 = vunpack.c.h.b16 %v802
  %v892 = vunpack.c.l.b16 %v803
  %v893 = vunpack.c.h.b16 %v803
  %v894 = vunpack.c.l.b16 %v804
  %v895 = vunpack.c.h.b16 %v804
  %v896 = vunpack.c.l.b16 %v805
  %v897 = vunpack.c.h.b16 %v805
  %v898 = vunpack.c.l.b16 %v806
  %v899 = vunpack.c.h.b16 %v806
  %v900 = vunpack.c.l.b16 %v807
  %v901 = vunpack.c.h.b16 %v807
  %v902 = vunpack.c.l.b16 %v808
  %v903 = vunpack.c.h.b16 %v808
  %v904 = vunpack.c.l.b16 %v809
  %v905 = vunpack.c.h.b16 %v809
  %v906 = vpack.c.b16 %v842, %v842
  %v907 = vpack.c.b16 %v843, %v843
  %v908 = vpack.c.b16 %v844, %v844
  %v909 = vpack.c.b16 %v845, %v845
  %v910 = vpack.c.b16 %v846, %v846
  %v911 = vpack.c.b16 %v847, %v847
  %v912 = vpack.c.b16 %v848, %v848
  %v913 = vpack.c.b16 %v849, %v849
  %v914 = vpack.c.b16 %v850, %v850
  %v915 = vpack.c.b16 %v851, %v851
  %v916 = vpack.c.b16 %v852, %v852
  %v917 = vpack.c.b16 %v853, %v853
  %v918 = vpack.c.b16 %v854, %v854
  %v919 = vpack.c.b16 %v855, %v855
  %v920 = vpack.c.b16 %v856, %v856
  %v921 = vpack.c.b16 %v857, %v857
  %v922 = vpack.c.b16 %v858, %v858
  %v923 = vpack.c.b16 %v859, %v859
  %v924 = vpack.c.b16 %v860, %v860
  %v925 = vpack.c.b16 %v861, %v861
  %v926 = vpack.c.b16 %v862, %v862
  %v927 = vpack.c.b16 %v863, %v863
  %v928 = vpack.c.b16 %v864, %v864
  %v929 = vpack.c.b16 %v865, %v865
  %v930 = vpack.c.b16 %v866, %v866
  %v931 = vpack.c.b16 %v867, %v867
  %v932 = vpack.c.b16 %v868, %v868
  %v933 = vpack.c.b16 %v869, %v869
  %v934 = vpack.c.b16 %v870, %v870
  %v935 = vpack.c.b16 %v871, %v871
  %v936 = vpack.c.b16 %v872, %v872
  %v937 = vpack.c.b16 %v873, %v873
  %v938 = vpack.c.b16 %v874, %v874
  %v939 = vpack.c.b16 %v875, %v875
  %v940 = vpack.c.b16 %v876, %v876
  %v941 = vpack.c.b16 %v877, %v877
  %v942 = vpack.c.b16 %v878, %v878
  %v943 = vpack.c.b16 %v879, %v879
  %v944 = vpack.c.b16 %v880, %v880
  %v945 = vpack.c.b16 %v881, %v881
  %v946 = vpack.c.b16 %v882, %v882
  %v947 = vpack.c.b16 %v883, %v883
  %v948 = vpack.c.b16 %v884, %v884
  %v949 = vpack.c.b16 %v885, %v885
  %v950 = vpack.c.b16 %v886, %v886
  %v951 = vpack.c.b16 %v887, %v887
  %v952 = vpack.c.b16 %v888, %v888
  %v953 = vpack.c.b16 %v889, %v889
  %v954 = vpack.c.b16 %v890, %v890
  %v955 = vpack.c.b16 %v891, %v891
  %v956 = vpack.c.b16 %v892, %v892
  %v957 = vpack.c.b16 %v893, %v893
  %v958 = vpack.c.b16 %v894, %v894
  %v959 = vpack.c.b16 %v895, %v895
  %v960 = vpack.c.b16 %v896, %v896
  %v961 = vpack.c.b16 %v897, %v897
  %v962 = vpack.c.b16 %v898, %v898
  %v963 = vpack.c.b16 %v899, %v899
  %v964 = vpack.c.b16 %v900, %v900
  %v965 = vpack.c.b16 %v901, %v901
  %v966 = vpack.c.b16 %v902, %v902
  %v967 = vpack.c.b16 %v903, %v903
  %v968 = vpack.c.b16 %v904, %v904
  %v969 = vpack.c.b16 %v905, %v905
  %vm1034 = vcmask 257024
  %1035 = vst.msk [vmem:[%s4] sm:$0xf] %vm1034, %v906
  %1036 = vst.msk [vmem:[%s4 + $0x4] sm:$0xf] %vm1034, %v907
  %1037 = vst.msk [vmem:[%s4 + $0x8] sm:$0xf] %vm1034, %v908
  %1038 = vst.msk [vmem:[%s4 + $0xc] sm:$0xf] %vm1034, %v909
  %1039 = vst.msk [vmem:[%s4 + $0x10] sm:$0xf] %vm1034, %v910
  %1040 = vst.msk [vmem:[%s4 + $0x14] sm:$0xf] %vm1034, %v911
  %1041 = vst.msk [vmem:[%s4 + $0x18] sm:$0xf] %vm1034, %v912
  %1042 = vst.msk [vmem:[%s4 + $0x1c] sm:$0xf] %vm1034, %v913
  %1043 = vst.msk [vmem:[%s4 + $0x20] sm:$0xf] %vm1034, %v914
  %1044 = vst.msk [vmem:[%s4 + $0x24] sm:$0xf] %vm1034, %v915
  %1045 = vst.msk [vmem:[%s4 + $0x28] sm:$0xf] %vm1034, %v916
  %1046 = vst.msk [vmem:[%s4 + $0x2c] sm:$0xf] %vm1034, %v917
  %1047 = vst.msk [vmem:[%s4 + $0x30] sm:$0xf] %vm1034, %v918
  %1048 = vst.msk [vmem:[%s4 + $0x34] sm:$0xf] %vm1034, %v919
  %1049 = vst.msk [vmem:[%s4 + $0x38] sm:$0xf] %vm1034, %v920
  %1050 = vst.msk [vmem:[%s4 + $0x3c] sm:$0xf] %vm1034, %v921
  %1051 = vst.msk [vmem:[%s4 + $0x40] sm:$0xf] %vm1034, %v922
  %1052 = vst.msk [vmem:[%s4 + $0x44] sm:$0xf] %vm1034, %v923
  %1053 = vst.msk [vmem:[%s4 + $0x48] sm:$0xf] %vm1034, %v924
  %1054 = vst.msk [vmem:[%s4 + $0x4c] sm:$0xf] %vm1034, %v925
  %1055 = vst.msk [vmem:[%s4 + $0x50] sm:$0xf] %vm1034, %v926
  %1056 = vst.msk [vmem:[%s4 + $0x54] sm:$0xf] %vm1034, %v927
  %1057 = vst.msk [vmem:[%s4 + $0x58] sm:$0xf] %vm1034, %v928
  %1058 = vst.msk [vmem:[%s4 + $0x5c] sm:$0xf] %vm1034, %v929
  %1059 = vst.msk [vmem:[%s4 + $0x60] sm:$0xf] %vm1034, %v930
  %1060 = vst.msk [vmem:[%s4 + $0x64] sm:$0xf] %vm1034, %v931
  %1061 = vst.msk [vmem:[%s4 + $0x68] sm:$0xf] %vm1034, %v932
  %1062 = vst.msk [vmem:[%s4 + $0x6c] sm:$0xf] %vm1034, %v933
  %1063 = vst.msk [vmem:[%s4 + $0x70] sm:$0xf] %vm1034, %v934
  %1064 = vst.msk [vmem:[%s4 + $0x74] sm:$0xf] %vm1034, %v935
  %1065 = vst.msk [vmem:[%s4 + $0x78] sm:$0xf] %vm1034, %v936
  %1066 = vst.msk [vmem:[%s4 + $0x7c] sm:$0xf] %vm1034, %v937
  %1067 = vst.msk [vmem:[%s4 + $0x80] sm:$0xf] %vm1034, %v938
  %1068 = vst.msk [vmem:[%s4 + $0x84] sm:$0xf] %vm1034, %v939
  %1069 = vst.msk [vmem:[%s4 + $0x88] sm:$0xf] %vm1034, %v940
  %1070 = vst.msk [vmem:[%s4 + $0x8c] sm:$0xf] %vm1034, %v941
  %1071 = vst.msk [vmem:[%s4 + $0x90] sm:$0xf] %vm1034, %v942
  %1072 = vst.msk [vmem:[%s4 + $0x94] sm:$0xf] %vm1034, %v943
  %1073 = vst.msk [vmem:[%s4 + $0x98] sm:$0xf] %vm1034, %v944
  %1074 = vst.msk [vmem:[%s4 + $0x9c] sm:$0xf] %vm1034, %v945
  %1075 = vst.msk [vmem:[%s4 + $0xa0] sm:$0xf] %vm1034, %v946
  %1076 = vst.msk [vmem:[%s4 + $0xa4] sm:$0xf] %vm1034, %v947
  %1077 = vst.msk [vmem:[%s4 + $0xa8] sm:$0xf] %vm1034, %v948
  %1078 = vst.msk [vmem:[%s4 + $0xac] sm:$0xf] %vm1034, %v949
  %1079 = vst.msk [vmem:[%s4 + $0xb0] sm:$0xf] %vm1034, %v950
  %1080 = vst.msk [vmem:[%s4 + $0xb4] sm:$0xf] %vm1034, %v951
  %1081 = vst.msk [vmem:[%s4 + $0xb8] sm:$0xf] %vm1034, %v952
  %1082 = vst.msk [vmem:[%s4 + $0xbc] sm:$0xf] %vm1034, %v953
  %1083 = vst.msk [vmem:[%s4 + $0xc0] sm:$0xf] %vm1034, %v954
  %1084 = vst.msk [vmem:[%s4 + $0xc4] sm:$0xf] %vm1034, %v955
  %1085 = vst.msk [vmem:[%s4 + $0xc8] sm:$0xf] %vm1034, %v956
  %1086 = vst.msk [vmem:[%s4 + $0xcc] sm:$0xf] %vm1034, %v957
  %1087 = vst.msk [vmem:[%s4 + $0xd0] sm:$0xf] %vm1034, %v958
  %1088 = vst.msk [vmem:[%s4 + $0xd4] sm:$0xf] %vm1034, %v959
  %1089 = vst.msk [vmem:[%s4 + $0xd8] sm:$0xf] %vm1034, %v960
  %1090 = vst.msk [vmem:[%s4 + $0xdc] sm:$0xf] %vm1034, %v961
  %1091 = vst.msk [vmem:[%s4 + $0xe0] sm:$0xf] %vm1034, %v962
  %1092 = vst.msk [vmem:[%s4 + $0xe4] sm:$0xf] %vm1034, %v963
  %1093 = vst.msk [vmem:[%s4 + $0xe8] sm:$0xf] %vm1034, %v964
  %1094 = vst.msk [vmem:[%s4 + $0xec] sm:$0xf] %vm1034, %v965
  %1095 = vst.msk [vmem:[%s4 + $0xf0] sm:$0xf] %vm1034, %v966
  %1096 = vst.msk [vmem:[%s4 + $0xf4] sm:$0xf] %vm1034, %v967
  %1097 = vst.msk [vmem:[%s4 + $0xf8] sm:$0xf] %vm1034, %v968
  %1098 = vst.msk [vmem:[%s4 + $0xfc] sm:$0xf] %vm1034, %v969
  %vm1099 = vcmask 261120
  %v1100 = vsel %vm1099, %v524, 0.0
  %v1101 = vsel %vm1099, %v527, 0.0
  %v1102 = vadd.f32 %v1100, %v1101
  %v1103 = vsel %vm1099, %v532, 0.0
  %v1104 = vadd.f32 %v1102, %v1103
  %v1105 = vsel %vm1099, %v535, 0.0
  %v1106 = vadd.f32 %v1104, %v1105
  %v1107 = vsel %vm1099, %v540, 0.0
  %v1108 = vadd.f32 %v1106, %v1107
  %v1109 = vsel %vm1099, %v543, 0.0
  %v1110 = vadd.f32 %v1108, %v1109
  %v1111 = vsel %vm1099, %v548, 0.0
  %v1112 = vadd.f32 %v1110, %v1111
  %v1113 = vsel %vm1099, %v551, 0.0
  %v1114 = vadd.f32 %v1112, %v1113
  %v1115 = vsel %vm1099, %v556, 0.0
  %v1116 = vadd.f32 %v1114, %v1115
  %v1117 = vsel %vm1099, %v559, 0.0
  %v1118 = vadd.f32 %v1116, %v1117
  %v1119 = vsel %vm1099, %v564, 0.0
  %v1120 = vadd.f32 %v1118, %v1119
  %v1121 = vsel %vm1099, %v567, 0.0
  %v1122 = vadd.f32 %v1120, %v1121
  %v1123 = vsel %vm1099, %v572, 0.0
  %v1124 = vadd.f32 %v1122, %v1123
  %v1125 = vsel %vm1099, %v575, 0.0
  %v1126 = vadd.f32 %v1124, %v1125
  %v1127 = vsel %vm1099, %v580, 0.0
  %v1128 = vadd.f32 %v1126, %v1127
  %v1129 = vsel %vm1099, %v583, 0.0
  %v1130 = vadd.f32 %v1128, %v1129
  %v1131 = vsel %vm1099, %v588, 0.0
  %v1132 = vadd.f32 %v1130, %v1131
  %v1133 = vsel %vm1099, %v591, 0.0
  %v1134 = vadd.f32 %v1132, %v1133
  %v1135 = vsel %vm1099, %v596, 0.0
  %v1136 = vadd.f32 %v1134, %v1135
  %v1137 = vsel %vm1099, %v599, 0.0
  %v1138 = vadd.f32 %v1136, %v1137
  %v1139 = vsel %vm1099, %v604, 0.0
  %v1140 = vadd.f32 %v1138, %v1139
  %v1141 = vsel %vm1099, %v607, 0.0
  %v1142 = vadd.f32 %v1140, %v1141
  %v1143 = vsel %vm1099, %v612, 0.0
  %v1144 = vadd.f32 %v1142, %v1143
  %v1145 = vsel %vm1099, %v615, 0.0
  %v1146 = vadd.f32 %v1144, %v1145
  %v1147 = vsel %vm1099, %v620, 0.0
  %v1148 = vadd.f32 %v1146, %v1147
  %v1149 = vsel %vm1099, %v623, 0.0
  %v1150 = vadd.f32 %v1148, %v1149
  %v1151 = vsel %vm1099, %v628, 0.0
  %v1152 = vadd.f32 %v1150, %v1151
  %v1153 = vsel %vm1099, %v631, 0.0
  %v1154 = vadd.f32 %v1152, %v1153
  %v1155 = vsel %vm1099, %v636, 0.0
  %v1156 = vadd.f32 %v1154, %v1155
  %v1157 = vsel %vm1099, %v639, 0.0
  %v1158 = vadd.f32 %v1156, %v1157
  %v1159 = vsel %vm1099, %v644, 0.0
  %v1160 = vadd.f32 %v1158, %v1159
  %v1161 = vsel %vm1099, %v647, 0.0
  %v1162 = vadd.f32 %v1160, %v1161
  %v1163 = vsel %vm1099, %v652, 0.0
  %v1164 = vadd.f32 %v1162, %v1163
  %v1165 = vsel %vm1099, %v655, 0.0
  %v1166 = vadd.f32 %v1164, %v1165
  %v1167 = vsel %vm1099, %v660, 0.0
  %v1168 = vadd.f32 %v1166, %v1167
  %v1169 = vsel %vm1099, %v663, 0.0
  %v1170 = vadd.f32 %v1168, %v1169
  %v1171 = vsel %vm1099, %v668, 0.0
  %v1172 = vadd.f32 %v1170, %v1171
  %v1173 = vsel %vm1099, %v671, 0.0
  %v1174 = vadd.f32 %v1172, %v1173
  %v1175 = vsel %vm1099, %v676, 0.0
  %v1176 = vadd.f32 %v1174, %v1175
  %v1177 = vsel %vm1099, %v679, 0.0
  %v1178 = vadd.f32 %v1176, %v1177
  %v1179 = vsel %vm1099, %v684, 0.0
  %v1180 = vadd.f32 %v1178, %v1179
  %v1181 = vsel %vm1099, %v687, 0.0
  %v1182 = vadd.f32 %v1180, %v1181
  %v1183 = vsel %vm1099, %v692, 0.0
  %v1184 = vadd.f32 %v1182, %v1183
  %v1185 = vsel %vm1099, %v695, 0.0
  %v1186 = vadd.f32 %v1184, %v1185
  %v1187 = vsel %vm1099, %v700, 0.0
  %v1188 = vadd.f32 %v1186, %v1187
  %v1189 = vsel %vm1099, %v703, 0.0
  %v1190 = vadd.f32 %v1188, %v1189
  %v1191 = vsel %vm1099, %v708, 0.0
  %v1192 = vadd.f32 %v1190, %v1191
  %v1193 = vsel %vm1099, %v711, 0.0
  %v1194 = vadd.f32 %v1192, %v1193
  %v1195 = vsel %vm1099, %v716, 0.0
  %v1196 = vadd.f32 %v1194, %v1195
  %v1197 = vsel %vm1099, %v719, 0.0
  %v1198 = vadd.f32 %v1196, %v1197
  %v1199 = vsel %vm1099, %v724, 0.0
  %v1200 = vadd.f32 %v1198, %v1199
  %v1201 = vsel %vm1099, %v727, 0.0
  %v1202 = vadd.f32 %v1200, %v1201
  %v1203 = vsel %vm1099, %v732, 0.0
  %v1204 = vadd.f32 %v1202, %v1203
  %v1205 = vsel %vm1099, %v735, 0.0
  %v1206 = vadd.f32 %v1204, %v1205
  %v1207 = vsel %vm1099, %v740, 0.0
  %v1208 = vadd.f32 %v1206, %v1207
  %v1209 = vsel %vm1099, %v743, 0.0
  %v1210 = vadd.f32 %v1208, %v1209
  %v1211 = vsel %vm1099, %v748, 0.0
  %v1212 = vadd.f32 %v1210, %v1211
  %v1213 = vsel %vm1099, %v751, 0.0
  %v1214 = vadd.f32 %v1212, %v1213
  %v1215 = vsel %vm1099, %v756, 0.0
  %v1216 = vadd.f32 %v1214, %v1215
  %v1217 = vsel %vm1099, %v759, 0.0
  %v1218 = vadd.f32 %v1216, %v1217
  %v1219 = vsel %vm1099, %v764, 0.0
  %v1220 = vadd.f32 %v1218, %v1219
  %v1221 = vsel %vm1099, %v767, 0.0
  %v1222 = vadd.f32 %v1220, %v1221
  %v1223 = vsel %vm1099, %v772, 0.0
  %v1224 = vadd.f32 %v1222, %v1223
  %v1225 = vsel %vm1099, %v775, 0.0
  %v1226 = vadd.f32 %v1224, %v1225
  %v1227 = vrot.slane %v1226, 4
  %v1228 = vadd.f32 %v1226, %v1227
  %v1229 = vrot.slane %v1228, 2
  %v1230 = vadd.f32 %v1228, %v1229
  %v1231 = vrot.slane %v1230, 1
  %v1232 = vadd.f32 %v1230, %v1231
  %vm1233 = vcmask 253952
  %1234 = vst.msk [vmem:[%s5] sm:$0x1] %vm1233, %v1232
  %v1235 = vmul.f32 %v524, %v524
  %v1236 = vmul.f32 %v527, %v527
  %v1237 = vmul.f32 %v532, %v532
  %v1238 = vmul.f32 %v535, %v535
  %v1239 = vmul.f32 %v540, %v540
  %v1240 = vmul.f32 %v543, %v543
  %v1241 = vmul.f32 %v548, %v548
  %v1242 = vmul.f32 %v551, %v551
  %v1243 = vmul.f32 %v556, %v556
  %v1244 = vmul.f32 %v559, %v559
  %v1245 = vmul.f32 %v564, %v564
  %v1246 = vmul.f32 %v567, %v567
  %v1247 = vmul.f32 %v572, %v572
  %v1248 = vmul.f32 %v575, %v575
  %v1249 = vmul.f32 %v580, %v580
  %v1250 = vmul.f32 %v583, %v583
  %v1251 = vmul.f32 %v588, %v588
  %v1252 = vmul.f32 %v591, %v591
  %v1253 = vmul.f32 %v596, %v596
  %v1254 = vmul.f32 %v599, %v599
  %v1255 = vmul.f32 %v604, %v604
  %v1256 = vmul.f32 %v607, %v607
  %v1257 = vmul.f32 %v612, %v612
  %v1258 = vmul.f32 %v615, %v615
  %v1259 = vmul.f32 %v620, %v620
  %v1260 = vmul.f32 %v623, %v623
  %v1261 = vmul.f32 %v628, %v628
  %v1262 = vmul.f32 %v631, %v631
  %v1263 = vmul.f32 %v636, %v636
  %v1264 = vmul.f32 %v639, %v639
  %v1265 = vmul.f32 %v644, %v644
  %v1266 = vmul.f32 %v647, %v647
  %v1267 = vmul.f32 %v652, %v652
  %v1268 = vmul.f32 %v655, %v655
  %v1269 = vmul.f32 %v660, %v660
  %v1270 = vmul.f32 %v663, %v663
  %v1271 = vmul.f32 %v668, %v668
  %v1272 = vmul.f32 %v671, %v671
  %v1273 = vmul.f32 %v676, %v676
  %v1274 = vmul.f32 %v679, %v679
  %v1275 = vmul.f32 %v684, %v684
  %v1276 = vmul.f32 %v687, %v687
  %v1277 = vmul.f32 %v692, %v692
  %v1278 = vmul.f32 %v695, %v695
  %v1279 = vmul.f32 %v700, %v700
  %v1280 = vmul.f32 %v703, %v703
  %v1281 = vmul.f32 %v708, %v708
  %v1282 = vmul.f32 %v711, %v711
  %v1283 = vmul.f32 %v716, %v716
  %v1284 = vmul.f32 %v719, %v719
  %v1285 = vmul.f32 %v724, %v724
  %v1286 = vmul.f32 %v727, %v727
  %v1287 = vmul.f32 %v732, %v732
  %v1288 = vmul.f32 %v735, %v735
  %v1289 = vmul.f32 %v740, %v740
  %v1290 = vmul.f32 %v743, %v743
  %v1291 = vmul.f32 %v748, %v748
  %v1292 = vmul.f32 %v751, %v751
  %v1293 = vmul.f32 %v756, %v756
  %v1294 = vmul.f32 %v759, %v759
  %v1295 = vmul.f32 %v764, %v764
  %v1296 = vmul.f32 %v767, %v767
  %v1297 = vmul.f32 %v772, %v772
  %v1298 = vmul.f32 %v775, %v775
  %v1299 = vsel %vm1099, %v1235, 0.0
  %v1300 = vsel %vm1099, %v1236, 0.0
  %v1301 = vadd.f32 %v1299, %v1300
  %v1302 = vsel %vm1099, %v1237, 0.0
  %v1303 = vadd.f32 %v1301, %v1302
  %v1304 = vsel %vm1099, %v1238, 0.0
  %v1305 = vadd.f32 %v1303, %v1304
  %v1306 = vsel %vm1099, %v1239, 0.0
  %v1307 = vadd.f32 %v1305, %v1306
  %v1308 = vsel %vm1099, %v1240, 0.0
  %v1309 = vadd.f32 %v1307, %v1308
  %v1310 = vsel %vm1099, %v1241, 0.0
  %v1311 = vadd.f32 %v1309, %v1310
  %v1312 = vsel %vm1099, %v1242, 0.0
  %v1313 = vadd.f32 %v1311, %v1312
  %v1314 = vsel %vm1099, %v1243, 0.0
  %v1315 = vadd.f32 %v1313, %v1314
  %v1316 = vsel %vm1099, %v1244, 0.0
  %v1317 = vadd.f32 %v1315, %v1316
  %v1318 = vsel %vm1099, %v1245, 0.0
  %v1319 = vadd.f32 %v1317, %v1318
  %v1320 = vsel %vm1099, %v1246, 0.0
  %v1321 = vadd.f32 %v1319, %v1320
  %v1322 = vsel %vm1099, %v1247, 0.0
  %v1323 = vadd.f32 %v1321, %v1322
  %v1324 = vsel %vm1099, %v1248, 0.0
  %v1325 = vadd.f32 %v1323, %v1324
  %v1326 = vsel %vm1099, %v1249, 0.0
  %v1327 = vadd.f32 %v1325, %v1326
  %v1328 = vsel %vm1099, %v1250, 0.0
  %v1329 = vadd.f32 %v1327, %v1328
  %v1330 = vsel %vm1099, %v1251, 0.0
  %v1331 = vadd.f32 %v1329, %v1330
  %v1332 = vsel %vm1099, %v1252, 0.0
  %v1333 = vadd.f32 %v1331, %v1332
  %v1334 = vsel %vm1099, %v1253, 0.0
  %v1335 = vadd.f32 %v1333, %v1334
  %v1336 = vsel %vm1099, %v1254, 0.0
  %v1337 = vadd.f32 %v1335, %v1336
  %v1338 = vsel %vm1099, %v1255, 0.0
  %v1339 = vadd.f32 %v1337, %v1338
  %v1340 = vsel %vm1099, %v1256, 0.0
  %v1341 = vadd.f32 %v1339, %v1340
  %v1342 = vsel %vm1099, %v1257, 0.0
  %v1343 = vadd.f32 %v1341, %v1342
  %v1344 = vsel %vm1099, %v1258, 0.0
  %v1345 = vadd.f32 %v1343, %v1344
  %v1346 = vsel %vm1099, %v1259, 0.0
  %v1347 = vadd.f32 %v1345, %v1346
  %v1348 = vsel %vm1099, %v1260, 0.0
  %v1349 = vadd.f32 %v1347, %v1348
  %v1350 = vsel %vm1099, %v1261, 0.0
  %v1351 = vadd.f32 %v1349, %v1350
  %v1352 = vsel %vm1099, %v1262, 0.0
  %v1353 = vadd.f32 %v1351, %v1352
  %v1354 = vsel %vm1099, %v1263, 0.0
  %v1355 = vadd.f32 %v1353, %v1354
  %v1356 = vsel %vm1099, %v1264, 0.0
  %v1357 = vadd.f32 %v1355, %v1356
  %v1358 = vsel %vm1099, %v1265, 0.0
  %v1359 = vadd.f32 %v1357, %v1358
  %v1360 = vsel %vm1099, %v1266, 0.0
  %v1361 = vadd.f32 %v1359, %v1360
  %v1362 = vsel %vm1099, %v1267, 0.0
  %v1363 = vadd.f32 %v1361, %v1362
  %v1364 = vsel %vm1099, %v1268, 0.0
  %v1365 = vadd.f32 %v1363, %v1364
  %v1366 = vsel %vm1099, %v1269, 0.0
  %v1367 = vadd.f32 %v1365, %v1366
  %v1368 = vsel %vm1099, %v1270, 0.0
  %v1369 = vadd.f32 %v1367, %v1368
  %v1370 = vsel %vm1099, %v1271, 0.0
  %v1371 = vadd.f32 %v1369, %v1370
  %v1372 = vsel %vm1099, %v1272, 0.0
  %v1373 = vadd.f32 %v1371, %v1372
  %v1374 = vsel %vm1099, %v1273, 0.0
  %v1375 = vadd.f32 %v1373, %v1374
  %v1376 = vsel %vm1099, %v1274, 0.0
  %v1377 = vadd.f32 %v1375, %v1376
  %v1378 = vsel %vm1099, %v1275, 0.0
  %v1379 = vadd.f32 %v1377, %v1378
  %v1380 = vsel %vm1099, %v1276, 0.0
  %v1381 = vadd.f32 %v1379, %v1380
  %v1382 = vsel %vm1099, %v1277, 0.0
  %v1383 = vadd.f32 %v1381, %v1382
  %v1384 = vsel %vm1099, %v1278, 0.0
  %v1385 = vadd.f32 %v1383, %v1384
  %v1386 = vsel %vm1099, %v1279, 0.0
  %v1387 = vadd.f32 %v1385, %v1386
  %v1388 = vsel %vm1099, %v1280, 0.0
  %v1389 = vadd.f32 %v1387, %v1388
  %v1390 = vsel %vm1099, %v1281, 0.0
  %v1391 = vadd.f32 %v1389, %v1390
  %v1392 = vsel %vm1099, %v1282, 0.0
  %v1393 = vadd.f32 %v1391, %v1392
  %v1394 = vsel %vm1099, %v1283, 0.0
  %v1395 = vadd.f32 %v1393, %v1394
  %v1396 = vsel %vm1099, %v1284, 0.0
  %v1397 = vadd.f32 %v1395, %v1396
  %v1398 = vsel %vm1099, %v1285, 0.0
  %v1399 = vadd.f32 %v1397, %v1398
  %v1400 = vsel %vm1099, %v1286, 0.0
  %v1401 = vadd.f32 %v1399, %v1400
  %v1402 = vsel %vm1099, %v1287, 0.0
  %v1403 = vadd.f32 %v1401, %v1402
  %v1404 = vsel %vm1099, %v1288, 0.0
  %v1405 = vadd.f32 %v1403, %v1404
  %v1406 = vsel %vm1099, %v1289, 0.0
  %v1407 = vadd.f32 %v1405, %v1406
  %v1408 = vsel %vm1099, %v1290, 0.0
  %v1409 = vadd.f32 %v1407, %v1408
  %v1410 = vsel %vm1099, %v1291, 0.0
  %v1411 = vadd.f32 %v1409, %v1410
  %v1412 = vsel %vm1099, %v1292, 0.0
  %v1413 = vadd.f32 %v1411, %v1412
  %v1414 = vsel %vm1099, %v1293, 0.0
  %v1415 = vadd.f32 %v1413, %v1414
  %v1416 = vsel %vm1099, %v1294, 0.0
  %v1417 = vadd.f32 %v1415, %v1416
  %v1418 = vsel %vm1099, %v1295, 0.0
  %v1419 = vadd.f32 %v1417, %v1418
  %v1420 = vsel %vm1099, %v1296, 0.0
  %v1421 = vadd.f32 %v1419, %v1420
  %v1422 = vsel %vm1099, %v1297, 0.0
  %v1423 = vadd.f32 %v1421, %v1422
  %v1424 = vsel %vm1099, %v1298, 0.0
  %v1425 = vadd.f32 %v1423, %v1424
  %v1426 = vrot.slane %v1425, 4
  %v1427 = vadd.f32 %v1425, %v1426
  %v1428 = vrot.slane %v1427, 2
  %v1429 = vadd.f32 %v1427, %v1428
  %v1430 = vrot.slane %v1429, 1
  %v1431 = vadd.f32 %v1429, %v1430
  %1432 = vst.msk [vmem:[%s6] sm:$0x1] %vm1233, %v1431
  // Predicated region
  $region18: #{bottleneck_pallas.6} parent=0 // pred_check
    _
  $region19: #{bottleneck_pallas.6} parent=0 // pred_check_branch
    %1434 = sbr.rel (0) target = $region21
  $region20: #{bottleneck_pallas.6} parent=0 // pred_region
    _
  $region21: #{bottleneck_pallas.6} parent=0 // pred_fallthru
    _
  // Predicated region
  $region22: #{bottleneck_pallas.6} parent=0 // pred_check
    _
  $region23: #{bottleneck_pallas.6} parent=0 // pred_check_branch
    %1436 = sbr.rel (0) target = $region25
  $region24: #{bottleneck_pallas.6} parent=0 // pred_region
    _
  $region25: #{bottleneck_pallas.6} parent=0 // pred_fallthru
    _
  // Predicated region
  $region26: #{bottleneck_pallas.6} parent=0 // pred_check
    _
  $region27: #{bottleneck_pallas.6} parent=0 // pred_check_branch
    %1438 = sbr.rel (0) target = $region29
  $region28: #{bottleneck_pallas.6} parent=0 // pred_region
    _
  $region29: #{bottleneck_pallas.6} parent=0 // pred_fallthru
    _
  // Predicated region
  $region30: #{bottleneck_pallas.6} parent=0 // pred_check
    _
  $region31: #{bottleneck_pallas.6} parent=0 // pred_check_branch
    %1440 = sbr.rel (0) target = $region33
  $region32: #{bottleneck_pallas.6} parent=0 // pred_region
    _
  $region33: #{bottleneck_pallas.6} parent=0 // pred_fallthru
    _
  // Predicated region
  $region34: #{bottleneck_pallas.6} parent=0 // pred_check
    _
  $region35: #{bottleneck_pallas.6} parent=0 // pred_check_branch
    %1442 = sbr.rel (0) target = $region37
  $region36: #{bottleneck_pallas.6} parent=0 // pred_region
    _
  $region37: #{bottleneck_pallas.6} parent=0 // pred_fallthru
    _
  // Predicated region
  $region38: #{bottleneck_pallas.6} parent=0 // pred_check
    _
  $region39: #{bottleneck_pallas.6} parent=0 // pred_check_branch
    %1444 = sbr.rel (0) target = $region41
  $region40: #{bottleneck_pallas.6} parent=0 // pred_region
    _
  $region41: #{bottleneck_pallas.6} parent=0 // pred_fallthru
    _

// kernel: bottleneck_pallas.5
$region0: #{bottleneck_pallas.5}
  #allocation0 [shape = 'u32[]', space=smem, size = 0x4, offset = 0x4, fixed_abs, tag = 'smem constant byte address 0x4 - core index']
  #allocation1 [shape = 'u32[144,128]{1,0:T(1,128)}', space=vmem, size = 0x12000, scoped, tag = 'internal scratch']
  #allocation2 [shape = 'bf16[18,18,8]{2,1,0:T(8,128)(2,1)}', space=vmem, size = 0x1b000, scoped, tag = 'scratch operand']
  %s0 = inlined_call_operand.vmem [shape: bf16[2,16,16,8], index: 0, kind: input, shape index: {}]
  %s1 = inlined_call_operand.vmem [shape: f32[1,8], index: 1, kind: input, shape index: {}]
  %s2 = inlined_call_operand.vmem [shape: f32[1,8], index: 2, kind: input, shape index: {}]
  %s3 = inlined_call_operand.vmem [shape: bf16[3,3,8,8], index: 3, kind: input, shape index: {}]
  %s4 = inlined_call_operand.vmem [shape: bf16[2,16,16,8], index: 4, kind: output, shape index: {0}]
  %s5 = inlined_call_operand.vmem [shape: f32[2,1,8], index: 5, kind: output, shape index: {1}]
  %s6 = inlined_call_operand.vmem [shape: f32[2,1,8], index: 6, kind: output, shape index: {2}]
  %7 = xla_tuple %s4, %s5, %s6
  %s8 = sld [smem:[#allocation0]]
  $region65: #{bottleneck_pallas.5} parent=0
    _
  %s10 = ssub.s32 1, %s8
  %s11 = scalar_select 0, %s10, %s8
  loop: start=0, step=1, limit=4
  $region2: #{bottleneck_pallas.5} parent=0 // loop_pre_header
    _
  $region3: #{bottleneck_pallas.5} parent=0 // loop_header
    %s13 = sphi 0, %s17
    %p14 = scmp.ge.s32.totalorder %s13, 4
    %s23 = sphi 0, %s25
    %s26 = sphi 0, %s23
    %s27 = sphi 0, %s26
    %s43 = sphi 0, %s27
    %s47 = sphi 0, %s47
    %s49 = sphi 0, %s47
    %s50 = sphi 0, %s49
    %s64 = sphi 0, %s50
    %s68 = sphi 0, %s68
    %s70 = sphi 0, %s68
    %s71 = sphi 0, %s70
    %s85 = sphi 0, %s71
    %s89 = sphi 0, %s89
    %s91 = sphi 0, %s89
    %s92 = sphi 0, %s91
    %s106 = sphi 0, %s92
    %s112 = sphi 0, %s114
    %s115 = sphi 0, %s112
    %s116 = sphi 0, %s115
    %s132 = sphi 0, %s116
    %s138 = sphi 0, %s140
    %s141 = sphi 0, %s138
    %s142 = sphi 0, %s141
    %s158 = sphi 0, %s142
    %s164 = sphi 0, %s166
    %s167 = sphi 0, %s164
    %s168 = sphi 0, %s167
    %s184 = sphi 0, %s168
  $region4: #{bottleneck_pallas.5} parent=0 // loop_header_branch
    %16 = sbr.rel (%p14) target = $region8
  $region5: #{bottleneck_pallas.5} parent=0 // loop_body
    %s18 = ssub.s32 %s13, 1
    %s19 = ssub.s32 %s13, 2
    %s20 = sadd.s32 %s13, 1
    %s21 = ssub.s32 %s13, %s20
    %p22 = scmp.eq.s32.totalorder %s21, 0
    %s24 = sadd.s32 %s23, 1
    %s25 = scalar_select %p22, %s23, %s24
    %p28 = pneg %p22
    %p29 = scmp.eq.s32.totalorder %s13, 1
    %p30 = por %p28, %p29
    %p31 = scmp.ne.s32.totalorder %s23, %s26
    %p32 = scmp.eq.s32.totalorder %s13, 0
    %p33 = por %p31, %p32
    %p34 = scmp.ne.s32.totalorder %s23, %s26
    %p35 = scmp.eq.s32.totalorder %s18, 1
    %p36 = por %p34, %p35
    %p37 = scmp.ne.s32.totalorder %s26, %s27
    %p38 = scmp.eq.s32.totalorder %s18, 0
    %p39 = por %p37, %p38
    %p40 = scmp.ne.s32.totalorder %s26, %s27
    %p41 = scmp.eq.s32.totalorder %s19, 1
    %p42 = por %p40, %p41
    %p44 = scmp.ne.s32.totalorder %s27, %s43
    %p45 = scmp.eq.s32.totalorder %s19, 0
    %p46 = por %p44, %p45
    %s48 = sadd.s32 %s47, 1
    %p51 = scmp.eq.s32.totalorder %s13, 1
    %p52 = scmp.ne.s32.totalorder %s47, %s49
    %p53 = scmp.eq.s32.totalorder %s13, 0
    %p54 = por %p52, %p53
    %p55 = scmp.ne.s32.totalorder %s47, %s49
    %p56 = scmp.eq.s32.totalorder %s18, 1
    %p57 = por %p55, %p56
    %p58 = scmp.ne.s32.totalorder %s49, %s50
    %p59 = scmp.eq.s32.totalorder %s18, 0
    %p60 = por %p58, %p59
    %p61 = scmp.ne.s32.totalorder %s49, %s50
    %p62 = scmp.eq.s32.totalorder %s19, 1
    %p63 = por %p61, %p62
    %p65 = scmp.ne.s32.totalorder %s50, %s64
    %p66 = scmp.eq.s32.totalorder %s19, 0
    %p67 = por %p65, %p66
    %s69 = sadd.s32 %s68, 1
    %p72 = scmp.eq.s32.totalorder %s13, 1
    %p73 = scmp.ne.s32.totalorder %s68, %s70
    %p74 = scmp.eq.s32.totalorder %s13, 0
    %p75 = por %p73, %p74
    %p76 = scmp.ne.s32.totalorder %s68, %s70
    %p77 = scmp.eq.s32.totalorder %s18, 1
    %p78 = por %p76, %p77
    %p79 = scmp.ne.s32.totalorder %s70, %s71
    %p80 = scmp.eq.s32.totalorder %s18, 0
    %p81 = por %p79, %p80
    %p82 = scmp.ne.s32.totalorder %s70, %s71
    %p83 = scmp.eq.s32.totalorder %s19, 1
    %p84 = por %p82, %p83
    %p86 = scmp.ne.s32.totalorder %s71, %s85
    %p87 = scmp.eq.s32.totalorder %s19, 0
    %p88 = por %p86, %p87
    %s90 = sadd.s32 %s89, 1
    %p93 = scmp.eq.s32.totalorder %s13, 1
    %p94 = scmp.ne.s32.totalorder %s89, %s91
    %p95 = scmp.eq.s32.totalorder %s13, 0
    %p96 = por %p94, %p95
    %p97 = scmp.ne.s32.totalorder %s89, %s91
    %p98 = scmp.eq.s32.totalorder %s18, 1
    %p99 = por %p97, %p98
    %p100 = scmp.ne.s32.totalorder %s91, %s92
    %p101 = scmp.eq.s32.totalorder %s18, 0
    %p102 = por %p100, %p101
    %p103 = scmp.ne.s32.totalorder %s91, %s92
    %p104 = scmp.eq.s32.totalorder %s19, 1
    %p105 = por %p103, %p104
    %p107 = scmp.ne.s32.totalorder %s92, %s106
    %p108 = scmp.eq.s32.totalorder %s19, 0
    %p109 = por %p107, %p108
    %s110 = ssub.s32 %s13, %s20
    %p111 = scmp.eq.s32.totalorder %s110, 0
    %s113 = sadd.s32 %s112, 1
    %s114 = scalar_select %p111, %s112, %s113
    %p117 = pneg %p111
    %p118 = scmp.eq.s32.totalorder %s13, 1
    %p119 = por %p117, %p118
    %p120 = scmp.ne.s32.totalorder %s112, %s115
    %p121 = scmp.eq.s32.totalorder %s13, 0
    %p122 = por %p120, %p121
    %p123 = scmp.ne.s32.totalorder %s112, %s115
    %p124 = scmp.eq.s32.totalorder %s18, 1
    %p125 = por %p123, %p124
    %p126 = scmp.ne.s32.totalorder %s115, %s116
    %p127 = scmp.eq.s32.totalorder %s18, 0
    %p128 = por %p126, %p127
    %p129 = scmp.ne.s32.totalorder %s115, %s116
    %p130 = scmp.eq.s32.totalorder %s19, 1
    %p131 = por %p129, %p130
    %p133 = scmp.ne.s32.totalorder %s116, %s132
    %p134 = scmp.eq.s32.totalorder %s19, 0
    %p135 = por %p133, %p134
    %s136 = ssub.s32 %s13, %s20
    %p137 = scmp.eq.s32.totalorder %s136, 0
    %s139 = sadd.s32 %s138, 1
    %s140 = scalar_select %p137, %s138, %s139
    %p143 = pneg %p137
    %p144 = scmp.eq.s32.totalorder %s13, 1
    %p145 = por %p143, %p144
    %p146 = scmp.ne.s32.totalorder %s138, %s141
    %p147 = scmp.eq.s32.totalorder %s13, 0
    %p148 = por %p146, %p147
    %p149 = scmp.ne.s32.totalorder %s138, %s141
    %p150 = scmp.eq.s32.totalorder %s18, 1
    %p151 = por %p149, %p150
    %p152 = scmp.ne.s32.totalorder %s141, %s142
    %p153 = scmp.eq.s32.totalorder %s18, 0
    %p154 = por %p152, %p153
    %p155 = scmp.ne.s32.totalorder %s141, %s142
    %p156 = scmp.eq.s32.totalorder %s19, 1
    %p157 = por %p155, %p156
    %p159 = scmp.ne.s32.totalorder %s142, %s158
    %p160 = scmp.eq.s32.totalorder %s19, 0
    %p161 = por %p159, %p160
    %s162 = ssub.s32 %s13, %s20
    %p163 = scmp.eq.s32.totalorder %s162, 0
    %s165 = sadd.s32 %s164, 1
    %s166 = scalar_select %p163, %s164, %s165
    %p169 = pneg %p163
    %p170 = scmp.eq.s32.totalorder %s13, 1
    %p171 = por %p169, %p170
    %p172 = scmp.ne.s32.totalorder %s164, %s167
    %p173 = scmp.eq.s32.totalorder %s13, 0
    %p174 = por %p172, %p173
    %p175 = scmp.ne.s32.totalorder %s164, %s167
    %p176 = scmp.eq.s32.totalorder %s18, 1
    %p177 = por %p175, %p176
    %p178 = scmp.ne.s32.totalorder %s167, %s168
    %p179 = scmp.eq.s32.totalorder %s18, 0
    %p180 = por %p178, %p179
    %p181 = scmp.ne.s32.totalorder %s167, %s168
    %p182 = scmp.eq.s32.totalorder %s19, 1
    %p183 = por %p181, %p182
    %p185 = scmp.ne.s32.totalorder %s168, %s184
    %p186 = scmp.eq.s32.totalorder %s19, 0
    %p187 = por %p185, %p186
    %p188 = scmp.le.s32.totalorder 1, %s13
    %p189 = scmp.lt.s32.totalorder %s13, 3
    %p190 = pnand %p188, %p189
    %p191 = pneg %p190
    // Predicated region
    $region9: #{bottleneck_pallas.5} parent=5 // pred_check
      _
    $region10: #{bottleneck_pallas.5} parent=5 // pred_check_branch
      %193 = sbr.rel (%p190) target = $region12
    $region11: #{bottleneck_pallas.5} parent=5 // pred_region
      %s194 = ssub.s32 %s13, 1
      // Predicated region
      $region13: #{bottleneck_pallas.5} parent=11 // pred_check
        %p195 = pneg %p60
      $region14: #{bottleneck_pallas.5} parent=11 // pred_check_branch
        %197 = sbr.rel (%p195) target = $region16
      $region15: #{bottleneck_pallas.5} parent=11 // pred_region
        _
      $region16: #{bottleneck_pallas.5} parent=11 // pred_fallthru
        _
      // Predicated region
      $region17: #{bottleneck_pallas.5} parent=11 // pred_check
        %p198 = pneg %p81
      $region18: #{bottleneck_pallas.5} parent=11 // pred_check_branch
        %200 = sbr.rel (%p198) target = $region20
      $region19: #{bottleneck_pallas.5} parent=11 // pred_region
        _
      $region20: #{bottleneck_pallas.5} parent=11 // pred_fallthru
        _
      // Predicated region
      $region21: #{bottleneck_pallas.5} parent=11 // pred_check
        %p201 = pneg %p102
      $region22: #{bottleneck_pallas.5} parent=11 // pred_check_branch
        %203 = sbr.rel (%p201) target = $region24
      $region23: #{bottleneck_pallas.5} parent=11 // pred_region
        _
      $region24: #{bottleneck_pallas.5} parent=11 // pred_fallthru
        _
    $region12: #{bottleneck_pallas.5} parent=5 // pred_fallthru
      _
    %p204 = scmp.lt.s32.totalorder %s13, 2
    // Predicated region
    $region25: #{bottleneck_pallas.5} parent=5 // pred_check
      %p205 = pneg %p204
    $region26: #{bottleneck_pallas.5} parent=5 // pred_check_branch
      %207 = sbr.rel (%p205) target = $region28
    $region27: #{bottleneck_pallas.5} parent=5 // pred_region
      // Predicated region
      $region29: #{bottleneck_pallas.5} parent=27 // pred_check
        %p208 = pneg %p33
      $region30: #{bottleneck_pallas.5} parent=27 // pred_check_branch
        %210 = sbr.rel (%p208) target = $region32
      $region31: #{bottleneck_pallas.5} parent=27 // pred_region
        %p211 = scmp.lt.s32.totalorder %s13, 1
        %s212 = scalar_select %p211, %s13, 1
        %s213 = smul.addr %s212, 32
        %s214 = smul.addr %s213, 4
        %s215 = scalar_lea.vmem %s0, %s214
      $region32: #{bottleneck_pallas.5} parent=27 // pred_fallthru
        _
    $region28: #{bottleneck_pallas.5} parent=5 // pred_fallthru
      _
    %p216 = scmp.le.s32.totalorder 1, %s13
    %p217 = scmp.lt.s32.totalorder %s13, 3
    %p218 = pnand %p216, %p217
    %p219 = pneg %p218
    // Predicated region
    $region33: #{bottleneck_pallas.5} parent=5 // pred_check
      _
    $region34: #{bottleneck_pallas.5} parent=5 // pred_check_branch
      %221 = sbr.rel (%p218) target = $region36
    $region35: #{bottleneck_pallas.5} parent=5 // pred_region
      %s222 = ssub.s32 %s13, 1
      %p223 = scmp.lt.s32.totalorder %s18, 1
      %s224 = scalar_select %p223, %s18, 1
      %s225 = smul.addr %s224, 32
      %s226 = smul.addr %s225, 4
      %s227 = scalar_lea.vmem %s0, %s226
      %p228 = pneg %p39
      %p229 = pneg %p36
      %p230 = pneg %p60
      %p231 = pneg %p57
      %p232 = pneg %p81
      %p233 = pneg %p78
      %p234 = pneg %p102
      %p235 = pneg %p99
      %p236 = pneg %p128
      %p237 = pneg %p125
      %p238 = scmp.lt.s32.totalorder %s18, 1
      %s239 = scalar_select %p238, %s18, 1
      %s240 = smul.addr %s239, 32
      %s241 = smul.addr %s240, 4
      %s242 = scalar_lea.vmem %s4, %s241
      %p243 = pneg %p154
      %p244 = pneg %p151
      %p245 = scmp.lt.s32.totalorder %s18, 1
      %s246 = scalar_select %p245, %s18, 1
      %s247 = scalar_lea.vmem %s5, %s246
      %p248 = pneg %p180
      %p249 = pneg %p177
      %p250 = scmp.lt.s32.totalorder %s18, 1
      %s251 = scalar_select %p250, %s18, 1
      %s252 = scalar_lea.vmem %s6, %s251
      %p253 = scmp.lt.s32.totalorder %s18, 1
      %s254 = scalar_select %p253, %s18, 1
      %s255 = smul.addr %s254, 32
      %s256 = smul.addr %s255, 4
      %s257 = scalar_lea.vmem %s0, %s256
      %p258 = scmp.lt.s32.totalorder %s18, 1
      %s259 = scalar_select %p258, %s18, 1
      %s260 = smul.addr %s259, 32
      %s261 = smul.addr %s260, 4
      %s262 = scalar_lea.vmem %s4, %s261
      %p263 = scmp.lt.s32.totalorder %s18, 1
      %s264 = scalar_select %p263, %s18, 1
      %s265 = scalar_lea.vmem %s5, %s264
      %p266 = scmp.lt.s32.totalorder %s18, 1
      %s267 = scalar_select %p266, %s18, 1
      %s268 = scalar_lea.vmem %s6, %s267
      %v270 = vld [vmem:[%s257] sm:$0xf]
      %v271 = vld [vmem:[%s257 + $0x4] sm:$0xf]
      %v272 = vld [vmem:[%s257 + $0x8] sm:$0xf]
      %v273 = vld [vmem:[%s257 + $0xc] sm:$0xf]
      %v274 = vld [vmem:[%s257 + $0x10] sm:$0xf]
      %v275 = vld [vmem:[%s257 + $0x14] sm:$0xf]
      %v276 = vld [vmem:[%s257 + $0x18] sm:$0xf]
      %v277 = vld [vmem:[%s257 + $0x1c] sm:$0xf]
      %v278 = vld [vmem:[%s257 + $0x20] sm:$0xf]
      %v279 = vld [vmem:[%s257 + $0x24] sm:$0xf]
      %v280 = vld [vmem:[%s257 + $0x28] sm:$0xf]
      %v281 = vld [vmem:[%s257 + $0x2c] sm:$0xf]
      %v282 = vld [vmem:[%s257 + $0x30] sm:$0xf]
      %v283 = vld [vmem:[%s257 + $0x34] sm:$0xf]
      %v284 = vld [vmem:[%s257 + $0x38] sm:$0xf]
      %v285 = vld [vmem:[%s257 + $0x3c] sm:$0xf]
      %v286 = vld [vmem:[%s257 + $0x40] sm:$0xf]
      %v287 = vld [vmem:[%s257 + $0x44] sm:$0xf]
      %v288 = vld [vmem:[%s257 + $0x48] sm:$0xf]
      %v289 = vld [vmem:[%s257 + $0x4c] sm:$0xf]
      %v290 = vld [vmem:[%s257 + $0x50] sm:$0xf]
      %v291 = vld [vmem:[%s257 + $0x54] sm:$0xf]
      %v292 = vld [vmem:[%s257 + $0x58] sm:$0xf]
      %v293 = vld [vmem:[%s257 + $0x5c] sm:$0xf]
      %v294 = vld [vmem:[%s257 + $0x60] sm:$0xf]
      %v295 = vld [vmem:[%s257 + $0x64] sm:$0xf]
      %v296 = vld [vmem:[%s257 + $0x68] sm:$0xf]
      %v297 = vld [vmem:[%s257 + $0x6c] sm:$0xf]
      %v298 = vld [vmem:[%s257 + $0x70] sm:$0xf]
      %v299 = vld [vmem:[%s257 + $0x74] sm:$0xf]
      %v300 = vld [vmem:[%s257 + $0x78] sm:$0xf]
      %v301 = vld [vmem:[%s257 + $0x7c] sm:$0xf]
      %v302 = vunpack.c.l.bf16 %v270
      %v303 = vunpack.c.l.bf16 %v271
      %v304 = vunpack.c.l.bf16 %v272
      %v305 = vunpack.c.l.bf16 %v273
      %v306 = vunpack.c.l.bf16 %v274
      %v307 = vunpack.c.l.bf16 %v275
      %v308 = vunpack.c.l.bf16 %v276
      %v309 = vunpack.c.l.bf16 %v277
      %v310 = vunpack.c.l.bf16 %v278
      %v311 = vunpack.c.l.bf16 %v279
      %v312 = vunpack.c.l.bf16 %v280
      %v313 = vunpack.c.l.bf16 %v281
      %v314 = vunpack.c.l.bf16 %v282
      %v315 = vunpack.c.l.bf16 %v283
      %v316 = vunpack.c.l.bf16 %v284
      %v317 = vunpack.c.l.bf16 %v285
      %v318 = vunpack.c.l.bf16 %v286
      %v319 = vunpack.c.l.bf16 %v287
      %v320 = vunpack.c.l.bf16 %v288
      %v321 = vunpack.c.l.bf16 %v289
      %v322 = vunpack.c.l.bf16 %v290
      %v323 = vunpack.c.l.bf16 %v291
      %v324 = vunpack.c.l.bf16 %v292
      %v325 = vunpack.c.l.bf16 %v293
      %v326 = vunpack.c.l.bf16 %v294
      %v327 = vunpack.c.l.bf16 %v295
      %v328 = vunpack.c.l.bf16 %v296
      %v329 = vunpack.c.l.bf16 %v297
      %v330 = vunpack.c.l.bf16 %v298
      %v331 = vunpack.c.l.bf16 %v299
      %v332 = vunpack.c.l.bf16 %v300
      %v333 = vunpack.c.l.bf16 %v301
      %v334 = vld [vmem:[%s1] sm:$0x1]
      %v336 = vlaneseq
      %v337 = vshrl.u32 %v336, 7
      %v338 = vsub.s32 0, %v337
      %v339 = vrot.slane %v334, %v338
      %v341 = vmul.f32 %v302, %v339
      %v342 = vmul.f32 %v303, %v339
      %v343 = vmul.f32 %v304, %v339
      %v344 = vmul.f32 %v305, %v339
      %v345 = vmul.f32 %v306, %v339
      %v346 = vmul.f32 %v307, %v339
      %v347 = vmul.f32 %v308, %v339
      %v348 = vmul.f32 %v309, %v339
      %v349 = vmul.f32 %v310, %v339
      %v350 = vmul.f32 %v311, %v339
      %v351 = vmul.f32 %v312, %v339
      %v352 = vmul.f32 %v313, %v339
      %v353 = vmul.f32 %v314, %v339
      %v354 = vmul.f32 %v315, %v339
      %v355 = vmul.f32 %v316, %v339
      %v356 = vmul.f32 %v317, %v339
      %v357 = vmul.f32 %v318, %v339
      %v358 = vmul.f32 %v319, %v339
      %v359 = vmul.f32 %v320, %v339
      %v360 = vmul.f32 %v321, %v339
      %v361 = vmul.f32 %v322, %v339
      %v362 = vmul.f32 %v323, %v339
      %v363 = vmul.f32 %v324, %v339
      %v364 = vmul.f32 %v325, %v339
      %v365 = vmul.f32 %v326, %v339
      %v366 = vmul.f32 %v327, %v339
      %v367 = vmul.f32 %v328, %v339
      %v368 = vmul.f32 %v329, %v339
      %v369 = vmul.f32 %v330, %v339
      %v370 = vmul.f32 %v331, %v339
      %v371 = vmul.f32 %v332, %v339
      %v372 = vmul.f32 %v333, %v339
      %v373 = vld [vmem:[%s2] sm:$0x1]
      %v375 = vlaneseq
      %v376 = vshrl.u32 %v375, 7
      %v377 = vsub.s32 0, %v376
      %v378 = vrot.slane %v373, %v377
      %v380 = vadd.f32 %v341, %v378
      %v381 = vadd.f32 %v342, %v378
      %v382 = vadd.f32 %v343, %v378
      %v383 = vadd.f32 %v344, %v378
      %v384 = vadd.f32 %v345, %v378
      %v385 = vadd.f32 %v346, %v378
      %v386 = vadd.f32 %v347, %v378
      %v387 = vadd.f32 %v348, %v378
      %v388 = vadd.f32 %v349, %v378
      %v389 = vadd.f32 %v350, %v378
      %v390 = vadd.f32 %v351, %v378
      %v391 = vadd.f32 %v352, %v378
      %v392 = vadd.f32 %v353, %v378
      %v393 = vadd.f32 %v354, %v378
      %v394 = vadd.f32 %v355, %v378
      %v395 = vadd.f32 %v356, %v378
      %v396 = vadd.f32 %v357, %v378
      %v397 = vadd.f32 %v358, %v378
      %v398 = vadd.f32 %v359, %v378
      %v399 = vadd.f32 %v360, %v378
      %v400 = vadd.f32 %v361, %v378
      %v401 = vadd.f32 %v362, %v378
      %v402 = vadd.f32 %v363, %v378
      %v403 = vadd.f32 %v364, %v378
      %v404 = vadd.f32 %v365, %v378
      %v405 = vadd.f32 %v366, %v378
      %v406 = vadd.f32 %v367, %v378
      %v407 = vadd.f32 %v368, %v378
      %v408 = vadd.f32 %v369, %v378
      %v409 = vadd.f32 %v370, %v378
      %v410 = vadd.f32 %v371, %v378
      %v411 = vadd.f32 %v372, %v378
      %v412 = vmax.f32 %v380, 0.0
      %v413 = vmax.f32 %v381, 0.0
      %v414 = vmax.f32 %v382, 0.0
      %v415 = vmax.f32 %v383, 0.0
      %v416 = vmax.f32 %v384, 0.0
      %v417 = vmax.f32 %v385, 0.0
      %v418 = vmax.f32 %v386, 0.0
      %v419 = vmax.f32 %v387, 0.0
      %v420 = vmax.f32 %v388, 0.0
      %v421 = vmax.f32 %v389, 0.0
      %v422 = vmax.f32 %v390, 0.0
      %v423 = vmax.f32 %v391, 0.0
      %v424 = vmax.f32 %v392, 0.0
      %v425 = vmax.f32 %v393, 0.0
      %v426 = vmax.f32 %v394, 0.0
      %v427 = vmax.f32 %v395, 0.0
      %v428 = vmax.f32 %v396, 0.0
      %v429 = vmax.f32 %v397, 0.0
      %v430 = vmax.f32 %v398, 0.0
      %v431 = vmax.f32 %v399, 0.0
      %v432 = vmax.f32 %v400, 0.0
      %v433 = vmax.f32 %v401, 0.0
      %v434 = vmax.f32 %v402, 0.0
      %v435 = vmax.f32 %v403, 0.0
      %v436 = vmax.f32 %v404, 0.0
      %v437 = vmax.f32 %v405, 0.0
      %v438 = vmax.f32 %v406, 0.0
      %v439 = vmax.f32 %v407, 0.0
      %v440 = vmax.f32 %v408, 0.0
      %v441 = vmax.f32 %v409, 0.0
      %v442 = vmax.f32 %v410, 0.0
      %v443 = vmax.f32 %v411, 0.0
      %vm444 = vcmask 60416
      %445 = vst.msk [vmem:[#allocation2] sm:$0xf] %vm444, 0
      %446 = vst.msk [vmem:[#allocation2 + $0x4] sm:$0xf] %vm444, 0
      %vm447 = vcmask 57344
      %448 = vst.msk [vmem:[#allocation2 + $0x8] sm:$0x1] %vm447, 0
      %s449 = scalar_lea.vmem [#allocation2], 204
      %450 = vst.msk [vmem:[%s449] sm:$0xf] %vm444, 0
      %451 = vst.msk [vmem:[%s449 + $0x4] sm:$0xf] %vm444, 0
      %452 = vst.msk [vmem:[%s449 + $0x8] sm:$0x1] %vm447, 0
      %vm453 = vcmask 57344
      %vm454 = vsmask.f32 256
      %vm455 = vmand %vm453, %vm454
      %v456 = vld [vmem:[#allocation2] sm:$0x1]
      %v457 = vsel %vm455, 0, %v456
      %458 = vst [vmem:[#allocation2] sm:$0x1] %v457
      %v459 = vld [vmem:[#allocation2 + $0xc] sm:$0x1]
      %v460 = vsel %vm455, 0, %v459
      %461 = vst [vmem:[#allocation2 + $0xc] sm:$0x1] %v460
      %v462 = vld [vmem:[#allocation2 + $0x18] sm:$0x1]
      %v463 = vsel %vm455, 0, %v462
      %464 = vst [vmem:[#allocation2 + $0x18] sm:$0x1] %v463
      %v465 = vld [vmem:[#allocation2 + $0x24] sm:$0x1]
      %v466 = vsel %vm455, 0, %v465
      %467 = vst [vmem:[#allocation2 + $0x24] sm:$0x1] %v466
      %v468 = vld [vmem:[#allocation2 + $0x30] sm:$0x1]
      %v469 = vsel %vm455, 0, %v468
      %470 = vst [vmem:[#allocation2 + $0x30] sm:$0x1] %v469
      %v471 = vld [vmem:[#allocation2 + $0x3c] sm:$0x1]
      %v472 = vsel %vm455, 0, %v471
      %473 = vst [vmem:[#allocation2 + $0x3c] sm:$0x1] %v472
      %v474 = vld [vmem:[#allocation2 + $0x48] sm:$0x1]
      %v475 = vsel %vm455, 0, %v474
      %476 = vst [vmem:[#allocation2 + $0x48] sm:$0x1] %v475
      %v477 = vld [vmem:[#allocation2 + $0x54] sm:$0x1]
      %v478 = vsel %vm455, 0, %v477
      %479 = vst [vmem:[#allocation2 + $0x54] sm:$0x1] %v478
      %v480 = vld [vmem:[#allocation2 + $0x60] sm:$0x1]
      %v481 = vsel %vm455, 0, %v480
      %482 = vst [vmem:[#allocation2 + $0x60] sm:$0x1] %v481
      %v483 = vld [vmem:[#allocation2 + $0x6c] sm:$0x1]
      %v484 = vsel %vm455, 0, %v483
      %485 = vst [vmem:[#allocation2 + $0x6c] sm:$0x1] %v484
      %v486 = vld [vmem:[#allocation2 + $0x78] sm:$0x1]
      %v487 = vsel %vm455, 0, %v486
      %488 = vst [vmem:[#allocation2 + $0x78] sm:$0x1] %v487
      %v489 = vld [vmem:[#allocation2 + $0x84] sm:$0x1]
      %v490 = vsel %vm455, 0, %v489
      %491 = vst [vmem:[#allocation2 + $0x84] sm:$0x1] %v490
      %v492 = vld [vmem:[#allocation2 + $0x90] sm:$0x1]
      %v493 = vsel %vm455, 0, %v492
      %494 = vst [vmem:[#allocation2 + $0x90] sm:$0x1] %v493
      %v495 = vld [vmem:[#allocation2 + $0x9c] sm:$0x1]
      %v496 = vsel %vm455, 0, %v495
      %497 = vst [vmem:[#allocation2 + $0x9c] sm:$0x1] %v496
      %v498 = vld [vmem:[#allocation2 + $0xa8] sm:$0x1]
      %v499 = vsel %vm455, 0, %v498
      %500 = vst [vmem:[#allocation2 + $0xa8] sm:$0x1] %v499
      %v501 = vld [vmem:[#allocation2 + $0xb4] sm:$0x1]
      %v502 = vsel %vm455, 0, %v501
      %503 = vst [vmem:[#allocation2 + $0xb4] sm:$0x1] %v502
      %v504 = vld [vmem:[#allocation2 + $0xc0] sm:$0x1]
      %v505 = vsel %vm455, 0, %v504
      %506 = vst [vmem:[#allocation2 + $0xc0] sm:$0x1] %v505
      %v507 = vld [vmem:[#allocation2 + $0xcc] sm:$0x1]
      %v508 = vsel %vm455, 0, %v507
      %509 = vst [vmem:[#allocation2 + $0xcc] sm:$0x1] %v508
      %vm510 = vsmask.f32 7938
      %vm511 = vmand %vm453, %vm510
      %v512 = vld [vmem:[#allocation2 + $0x8] sm:$0x1]
      %v513 = vsel %vm511, 0, %v512
      %514 = vst [vmem:[#allocation2 + $0x8] sm:$0x1] %v513
      %v515 = vld [vmem:[#allocation2 + $0x14] sm:$0x1]
      %v516 = vsel %vm511, 0, %v515
      %517 = vst [vmem:[#allocation2 + $0x14] sm:$0x1] %v516
      %v518 = vld [vmem:[#allocation2 + $0x20] sm:$0x1]
      %v519 = vsel %vm511, 0, %v518
      %520 = vst [vmem:[#allocation2 + $0x20] sm:$0x1] %v519
      %v521 = vld [vmem:[#allocation2 + $0x2c] sm:$0x1]
      %v522 = vsel %vm511, 0, %v521
      %523 = vst [vmem:[#allocation2 + $0x2c] sm:$0x1] %v522
      %v524 = vld [vmem:[#allocation2 + $0x38] sm:$0x1]
      %v525 = vsel %vm511, 0, %v524
      %526 = vst [vmem:[#allocation2 + $0x38] sm:$0x1] %v525
      %v527 = vld [vmem:[#allocation2 + $0x44] sm:$0x1]
      %v528 = vsel %vm511, 0, %v527
      %529 = vst [vmem:[#allocation2 + $0x44] sm:$0x1] %v528
      %v530 = vld [vmem:[#allocation2 + $0x50] sm:$0x1]
      %v531 = vsel %vm511, 0, %v530
      %532 = vst [vmem:[#allocation2 + $0x50] sm:$0x1] %v531
      %v533 = vld [vmem:[#allocation2 + $0x5c] sm:$0x1]
      %v534 = vsel %vm511, 0, %v533
      %535 = vst [vmem:[#allocation2 + $0x5c] sm:$0x1] %v534
      %v536 = vld [vmem:[#allocation2 + $0x68] sm:$0x1]
      %v537 = vsel %vm511, 0, %v536
      %538 = vst [vmem:[#allocation2 + $0x68] sm:$0x1] %v537
      %v539 = vld [vmem:[#allocation2 + $0x74] sm:$0x1]
      %v540 = vsel %vm511, 0, %v539
      %541 = vst [vmem:[#allocation2 + $0x74] sm:$0x1] %v540
      %v542 = vld [vmem:[#allocation2 + $0x80] sm:$0x1]
      %v543 = vsel %vm511, 0, %v542
      %544 = vst [vmem:[#allocation2 + $0x80] sm:$0x1] %v543
      %v545 = vld [vmem:[#allocation2 + $0x8c] sm:$0x1]
      %v546 = vsel %vm511, 0, %v545
      %547 = vst [vmem:[#allocation2 + $0x8c] sm:$0x1] %v546
      %v548 = vld [vmem:[#allocation2 + $0x98] sm:$0x1]
      %v549 = vsel %vm511, 0, %v548
      %550 = vst [vmem:[#allocation2 + $0x98] sm:$0x1] %v549
      %v551 = vld [vmem:[#allocation2 + $0xa4] sm:$0x1]
      %v552 = vsel %vm511, 0, %v551
      %553 = vst [vmem:[#allocation2 + $0xa4] sm:$0x1] %v552
      %v554 = vld [vmem:[#allocation2 + $0xb0] sm:$0x1]
      %v555 = vsel %vm511, 0, %v554
      %556 = vst [vmem:[#allocation2 + $0xb0] sm:$0x1] %v555
      %v557 = vld [vmem:[#allocation2 + $0xbc] sm:$0x1]
      %v558 = vsel %vm511, 0, %v557
      %559 = vst [vmem:[#allocation2 + $0xbc] sm:$0x1] %v558
      %v560 = vld [vmem:[#allocation2 + $0xc8] sm:$0x1]
      %v561 = vsel %vm511, 0, %v560
      %562 = vst [vmem:[#allocation2 + $0xc8] sm:$0x1] %v561
      %v563 = vld [vmem:[#allocation2 + $0xd4] sm:$0x1]
      %v564 = vsel %vm511, 0, %v563
      %565 = vst [vmem:[#allocation2 + $0xd4] sm:$0x1] %v564
      %v566 = vpack.c.bf16 %v413, %v412
      %v567 = vpack.c.bf16 %v415, %v414
      %v568 = vpack.c.bf16 %v417, %v416
      %v569 = vpack.c.bf16 %v419, %v418
      %v570 = vpack.c.bf16 %v421, %v420
      %v571 = vpack.c.bf16 %v423, %v422
      %v572 = vpack.c.bf16 %v425, %v424
      %v573 = vpack.c.bf16 %v427, %v426
      %v574 = vpack.c.bf16 %v429, %v428
      %v575 = vpack.c.bf16 %v431, %v430
      %v576 = vpack.c.bf16 %v433, %v432
      %v577 = vpack.c.bf16 %v435, %v434
      %v578 = vpack.c.bf16 %v437, %v436
      %v579 = vpack.c.bf16 %v439, %v438
      %v580 = vpack.c.bf16 %v441, %v440
      %v581 = vpack.c.bf16 %v443, %v442
      %v598 = vunpack.c.l.b16 %v566
      %v599 = vunpack.c.h.b16 %v566
      %v600 = vunpack.c.l.b16 %v567
      %v601 = vunpack.c.h.b16 %v567
      %v602 = vunpack.c.l.b16 %v568
      %v603 = vunpack.c.h.b16 %v568
      %v604 = vunpack.c.l.b16 %v569
      %v605 = vunpack.c.h.b16 %v569
      %v606 = vunpack.c.l.b16 %v570
      %v607 = vunpack.c.h.b16 %v570
      %v608 = vunpack.c.l.b16 %v571
      %v609 = vunpack.c.h.b16 %v571
      %v610 = vunpack.c.l.b16 %v572
      %v611 = vunpack.c.h.b16 %v572
      %v612 = vunpack.c.l.b16 %v573
      %v613 = vunpack.c.h.b16 %v573
      %v614 = vunpack.c.l.b16 %v574
      %v615 = vunpack.c.h.b16 %v574
      %v616 = vunpack.c.l.b16 %v575
      %v617 = vunpack.c.h.b16 %v575
      %v618 = vunpack.c.l.b16 %v576
      %v619 = vunpack.c.h.b16 %v576
      %v620 = vunpack.c.l.b16 %v577
      %v621 = vunpack.c.h.b16 %v577
      %v622 = vunpack.c.l.b16 %v578
      %v623 = vunpack.c.h.b16 %v578
      %v624 = vunpack.c.l.b16 %v579
      %v625 = vunpack.c.h.b16 %v579
      %v626 = vunpack.c.l.b16 %v580
      %v627 = vunpack.c.h.b16 %v580
      %v628 = vunpack.c.l.b16 %v581
      %v629 = vunpack.c.h.b16 %v581
      %v630 = vpack.c.b16 %v598, %v598
      %v631 = vpack.c.b16 %v599, %v599
      %v632 = vpack.c.b16 %v600, %v600
      %v633 = vpack.c.b16 %v601, %v601
      %v634 = vpack.c.b16 %v602, %v602
      %v635 = vpack.c.b16 %v603, %v603
      %v636 = vpack.c.b16 %v604, %v604
      %v637 = vpack.c.b16 %v605, %v605
      %v638 = vpack.c.b16 %v606, %v606
      %v639 = vpack.c.b16 %v607, %v607
      %v640 = vpack.c.b16 %v608, %v608
      %v641 = vpack.c.b16 %v609, %v609
      %v642 = vpack.c.b16 %v610, %v610
      %v643 = vpack.c.b16 %v611, %v611
      %v644 = vpack.c.b16 %v612, %v612
      %v645 = vpack.c.b16 %v613, %v613
      %v646 = vpack.c.b16 %v614, %v614
      %v647 = vpack.c.b16 %v615, %v615
      %v648 = vpack.c.b16 %v616, %v616
      %v649 = vpack.c.b16 %v617, %v617
      %v650 = vpack.c.b16 %v618, %v618
      %v651 = vpack.c.b16 %v619, %v619
      %v652 = vpack.c.b16 %v620, %v620
      %v653 = vpack.c.b16 %v621, %v621
      %v654 = vpack.c.b16 %v622, %v622
      %v655 = vpack.c.b16 %v623, %v623
      %v656 = vpack.c.b16 %v624, %v624
      %v657 = vpack.c.b16 %v625, %v625
      %v658 = vpack.c.b16 %v626, %v626
      %v659 = vpack.c.b16 %v627, %v627
      %v660 = vpack.c.b16 %v628, %v628
      %v661 = vpack.c.b16 %v629, %v629
      %vm662 = vsmask.f32 4368
      %vm663 = vmor %vm454, %vm662
      %v665 = vshrl.u32 %v630, 16
      %v667 = vrot.slane %v665, 7
      %v668 = vshll.u32 %v630, 16
      %v670 = vor.u32 %v667, %v668
      %v671 = vrot.slane %v667, 4
      %v673 = vshrl.u32 %v631, 16
      %v675 = vrot.slane %v673, 7
      %v676 = vshll.u32 %v631, 16
      %v678 = vor.u32 %v675, %v676
      %v679 = vsel %vm663, %v671, %v678
      %v680 = vrot.slane %v675, 4
      %v682 = vshrl.u32 %v632, 16
      %v684 = vrot.slane %v682, 7
      %v685 = vshll.u32 %v632, 16
      %v687 = vor.u32 %v684, %v685
      %v688 = vrot.slane %v684, 4
      %v690 = vshrl.u32 %v633, 16
      %v692 = vrot.slane %v690, 7
      %v693 = vshll.u32 %v633, 16
      %v695 = vor.u32 %v692, %v693
      %v696 = vsel %vm663, %v688, %v695
      %v697 = vrot.slane %v692, 4
      %v699 = vshrl.u32 %v634, 16
      %v701 = vrot.slane %v699, 7
      %v702 = vshll.u32 %v634, 16
      %v704 = vor.u32 %v701, %v702
      %v705 = vrot.slane %v701, 4
      %v707 = vshrl.u32 %v635, 16
      %v709 = vrot.slane %v707, 7
      %v710 = vshll.u32 %v635, 16
      %v712 = vor.u32 %v709, %v710
      %v713 = vsel %vm663, %v705, %v712
      %v714 = vrot.slane %v709, 4
      %v716 = vshrl.u32 %v636, 16
      %v718 = vrot.slane %v716, 7
      %v719 = vshll.u32 %v636, 16
      %v721 = vor.u32 %v718, %v719
      %v722 = vrot.slane %v718, 4
      %v724 = vshrl.u32 %v637, 16
      %v726 = vrot.slane %v724, 7
      %v727 = vshll.u32 %v637, 16
      %v729 = vor.u32 %v726, %v727
      %v730 = vsel %vm663, %v722, %v729
      %v731 = vrot.slane %v726, 4
      %v733 = vshrl.u32 %v638, 16
      %v735 = vrot.slane %v733, 7
      %v736 = vshll.u32 %v638, 16
      %v738 = vor.u32 %v735, %v736
      %v739 = vrot.slane %v735, 4
      %v741 = vshrl.u32 %v639, 16
      %v743 = vrot.slane %v741, 7
      %v744 = vshll.u32 %v639, 16
      %v746 = vor.u32 %v743, %v744
      %v747 = vsel %vm663, %v739, %v746
      %v748 = vrot.slane %v743, 4
      %v750 = vshrl.u32 %v640, 16
      %v752 = vrot.slane %v750, 7
      %v753 = vshll.u32 %v640, 16
      %v755 = vor.u32 %v752, %v753
      %v756 = vrot.slane %v752, 4
      %v758 = vshrl.u32 %v641, 16
      %v760 = vrot.slane %v758, 7
      %v761 = vshll.u32 %v641, 16
      %v763 = vor.u32 %v760, %v761
      %v764 = vsel %vm663, %v756, %v763
      %v765 = vrot.slane %v760, 4
      %v767 = vshrl.u32 %v642, 16
      %v769 = vrot.slane %v767, 7
      %v770 = vshll.u32 %v642, 16
      %v772 = vor.u32 %v769, %v770
      %v773 = vrot.slane %v769, 4
      %v775 = vshrl.u32 %v643, 16
      %v777 = vrot.slane %v775, 7
      %v778 = vshll.u32 %v643, 16
      %v780 = vor.u32 %v777, %v778
      %v781 = vsel %vm663, %v773, %v780
      %v782 = vrot.slane %v777, 4
      %v784 = vshrl.u32 %v644, 16
      %v786 = vrot.slane %v784, 7
      %v787 = vshll.u32 %v644, 16
      %v789 = vor.u32 %v786, %v787
      %v790 = vrot.slane %v786, 4
      %v792 = vshrl.u32 %v645, 16
      %v794 = vrot.slane %v792, 7
      %v795 = vshll.u32 %v645, 16
      %v797 = vor.u32 %v794, %v795
      %v798 = vsel %vm663, %v790, %v797
      %v799 = vrot.slane %v794, 4
      %v801 = vshrl.u32 %v646, 16
      %v803 = vrot.slane %v801, 7
      %v804 = vshll.u32 %v646, 16
      %v806 = vor.u32 %v803, %v804
      %v807 = vrot.slane %v803, 4
      %v809 = vshrl.u32 %v647, 16
      %v811 = vrot.slane %v809, 7
      %v812 = vshll.u32 %v647, 16
      %v814 = vor.u32 %v811, %v812
      %v815 = vsel %vm663, %v807, %v814
      %v816 = vrot.slane %v811, 4
      %v818 = vshrl.u32 %v648, 16
      %v820 = vrot.slane %v818, 7
      %v821 = vshll.u32 %v648, 16
      %v823 = vor.u32 %v820, %v821
      %v824 = vrot.slane %v820, 4
      %v826 = vshrl.u32 %v649, 16
      %v828 = vrot.slane %v826, 7
      %v829 = vshll.u32 %v649, 16
      %v831 = vor.u32 %v828, %v829
      %v832 = vsel %vm663, %v824, %v831
      %v833 = vrot.slane %v828, 4
      %v835 = vshrl.u32 %v650, 16
      %v837 = vrot.slane %v835, 7
      %v838 = vshll.u32 %v650, 16
      %v840 = vor.u32 %v837, %v838
      %v841 = vrot.slane %v837, 4
      %v843 = vshrl.u32 %v651, 16
      %v845 = vrot.slane %v843, 7
      %v846 = vshll.u32 %v651, 16
      %v848 = vor.u32 %v845, %v846
      %v849 = vsel %vm663, %v841, %v848
      %v850 = vrot.slane %v845, 4
      %v852 = vshrl.u32 %v652, 16
      %v854 = vrot.slane %v852, 7
      %v855 = vshll.u32 %v652, 16
      %v857 = vor.u32 %v854, %v855
      %v858 = vrot.slane %v854, 4
      %v860 = vshrl.u32 %v653, 16
      %v862 = vrot.slane %v860, 7
      %v863 = vshll.u32 %v653, 16
      %v865 = vor.u32 %v862, %v863
      %v866 = vsel %vm663, %v858, %v865
      %v867 = vrot.slane %v862, 4
      %v869 = vshrl.u32 %v654, 16
      %v871 = vrot.slane %v869, 7
      %v872 = vshll.u32 %v654, 16
      %v874 = vor.u32 %v871, %v872
      %v875 = vrot.slane %v871, 4
      %v877 = vshrl.u32 %v655, 16
      %v879 = vrot.slane %v877, 7
      %v880 = vshll.u32 %v655, 16
      %v882 = vor.u32 %v879, %v880
      %v883 = vsel %vm663, %v875, %v882
      %v884 = vrot.slane %v879, 4
      %v886 = vshrl.u32 %v656, 16
      %v888 = vrot.slane %v886, 7
      %v889 = vshll.u32 %v656, 16
      %v891 = vor.u32 %v888, %v889
      %v892 = vrot.slane %v888, 4
      %v894 = vshrl.u32 %v657, 16
      %v896 = vrot.slane %v894, 7
      %v897 = vshll.u32 %v657, 16
      %v899 = vor.u32 %v896, %v897
      %v900 = vsel %vm663, %v892, %v899
      %v901 = vrot.slane %v896, 4
      %v903 = vshrl.u32 %v658, 16
      %v905 = vrot.slane %v903, 7
      %v906 = vshll.u32 %v658, 16
      %v908 = vor.u32 %v905, %v906
      %v909 = vrot.slane %v905, 4
      %v911 = vshrl.u32 %v659, 16
      %v913 = vrot.slane %v911, 7
      %v914 = vshll.u32 %v659, 16
      %v916 = vor.u32 %v913, %v914
      %v917 = vsel %vm663, %v909, %v916
      %v918 = vrot.slane %v913, 4
      %v920 = vshrl.u32 %v660, 16
      %v922 = vrot.slane %v920, 7
      %v923 = vshll.u32 %v660, 16
      %v925 = vor.u32 %v922, %v923
      %v926 = vrot.slane %v922, 4
      %v928 = vshrl.u32 %v661, 16
      %v930 = vrot.slane %v928, 7
      %v931 = vshll.u32 %v661, 16
      %v933 = vor.u32 %v930, %v931
      %v934 = vsel %vm663, %v926, %v933
      %v935 = vrot.slane %v930, 4
      %s984 = scalar_lea.vmem [#allocation2], 12
      %vm985 = vcmask 60416
      %vm986 = vmand %vm985, %vm510
      %v987 = vld [vmem:[%s984] sm:$0xf]
      %v988 = vsel %vm986, %v670, %v987
      %989 = vst [vmem:[%s984] sm:$0xf] %v988
      %990 = vst.msk [vmem:[%s984 + $0x4] sm:$0xf] %vm444, %v679
      %v991 = vld [vmem:[%s984 + $0x8] sm:$0x1]
      %v992 = vsel %vm455, %v680, %v991
      %993 = vst [vmem:[%s984 + $0x8] sm:$0x1] %v992
      %v994 = vld [vmem:[%s984 + $0xc] sm:$0xf]
      %v995 = vsel %vm986, %v687, %v994
      %996 = vst [vmem:[%s984 + $0xc] sm:$0xf] %v995
      %997 = vst.msk [vmem:[%s984 + $0x10] sm:$0xf] %vm444, %v696
      %v998 = vld [vmem:[%s984 + $0x14] sm:$0x1]
      %v999 = vsel %vm455, %v697, %v998
      %1000 = vst [vmem:[%s984 + $0x14] sm:$0x1] %v999
      %v1001 = vld [vmem:[%s984 + $0x18] sm:$0xf]
      %v1002 = vsel %vm986, %v704, %v1001
      %1003 = vst [vmem:[%s984 + $0x18] sm:$0xf] %v1002
      %1004 = vst.msk [vmem:[%s984 + $0x1c] sm:$0xf] %vm444, %v713
      %v1005 = vld [vmem:[%s984 + $0x20] sm:$0x1]
      %v1006 = vsel %vm455, %v714, %v1005
      %1007 = vst [vmem:[%s984 + $0x20] sm:$0x1] %v1006
      %v1008 = vld [vmem:[%s984 + $0x24] sm:$0xf]
      %v1009 = vsel %vm986, %v721, %v1008
      %1010 = vst [vmem:[%s984 + $0x24] sm:$0xf] %v1009
      %1011 = vst.msk [vmem:[%s984 + $0x28] sm:$0xf] %vm444, %v730
      %v1012 = vld [vmem:[%s984 + $0x2c] sm:$0x1]
      %v1013 = vsel %vm455, %v731, %v1012
      %1014 = vst [vmem:[%s984 + $0x2c] sm:$0x1] %v1013
      %v1015 = vld [vmem:[%s984 + $0x30] sm:$0xf]
      %v1016 = vsel %vm986, %v738, %v1015
      %1017 = vst [vmem:[%s984 + $0x30] sm:$0xf] %v1016
      %1018 = vst.msk [vmem:[%s984 + $0x34] sm:$0xf] %vm444, %v747
      %v1019 = vld [vmem:[%s984 + $0x38] sm:$0x1]
      %v1020 = vsel %vm455, %v748, %v1019
      %1021 = vst [vmem:[%s984 + $0x38] sm:$0x1] %v1020
      %v1022 = vld [vmem:[%s984 + $0x3c] sm:$0xf]
      %v1023 = vsel %vm986, %v755, %v1022
      %1024 = vst [vmem:[%s984 + $0x3c] sm:$0xf] %v1023
      %1025 = vst.msk [vmem:[%s984 + $0x40] sm:$0xf] %vm444, %v764
      %v1026 = vld [vmem:[%s984 + $0x44] sm:$0x1]
      %v1027 = vsel %vm455, %v765, %v1026
      %1028 = vst [vmem:[%s984 + $0x44] sm:$0x1] %v1027
      %v1029 = vld [vmem:[%s984 + $0x48] sm:$0xf]
      %v1030 = vsel %vm986, %v772, %v1029
      %1031 = vst [vmem:[%s984 + $0x48] sm:$0xf] %v1030
      %1032 = vst.msk [vmem:[%s984 + $0x4c] sm:$0xf] %vm444, %v781
      %v1033 = vld [vmem:[%s984 + $0x50] sm:$0x1]
      %v1034 = vsel %vm455, %v782, %v1033
      %1035 = vst [vmem:[%s984 + $0x50] sm:$0x1] %v1034
      %v1036 = vld [vmem:[%s984 + $0x54] sm:$0xf]
      %v1037 = vsel %vm986, %v789, %v1036
      %1038 = vst [vmem:[%s984 + $0x54] sm:$0xf] %v1037
      %1039 = vst.msk [vmem:[%s984 + $0x58] sm:$0xf] %vm444, %v798
      %v1040 = vld [vmem:[%s984 + $0x5c] sm:$0x1]
      %v1041 = vsel %vm455, %v799, %v1040
      %1042 = vst [vmem:[%s984 + $0x5c] sm:$0x1] %v1041
      %v1043 = vld [vmem:[%s984 + $0x60] sm:$0xf]
      %v1044 = vsel %vm986, %v806, %v1043
      %1045 = vst [vmem:[%s984 + $0x60] sm:$0xf] %v1044
      %1046 = vst.msk [vmem:[%s984 + $0x64] sm:$0xf] %vm444, %v815
      %v1047 = vld [vmem:[%s984 + $0x68] sm:$0x1]
      %v1048 = vsel %vm455, %v816, %v1047
      %1049 = vst [vmem:[%s984 + $0x68] sm:$0x1] %v1048
      %v1050 = vld [vmem:[%s984 + $0x6c] sm:$0xf]
      %v1051 = vsel %vm986, %v823, %v1050
      %1052 = vst [vmem:[%s984 + $0x6c] sm:$0xf] %v1051
      %1053 = vst.msk [vmem:[%s984 + $0x70] sm:$0xf] %vm444, %v832
      %v1054 = vld [vmem:[%s984 + $0x74] sm:$0x1]
      %v1055 = vsel %vm455, %v833, %v1054
      %1056 = vst [vmem:[%s984 + $0x74] sm:$0x1] %v1055
      %v1057 = vld [vmem:[%s984 + $0x78] sm:$0xf]
      %v1058 = vsel %vm986, %v840, %v1057
      %1059 = vst [vmem:[%s984 + $0x78] sm:$0xf] %v1058
      %1060 = vst.msk [vmem:[%s984 + $0x7c] sm:$0xf] %vm444, %v849
      %v1061 = vld [vmem:[%s984 + $0x80] sm:$0x1]
      %v1062 = vsel %vm455, %v850, %v1061
      %1063 = vst [vmem:[%s984 + $0x80] sm:$0x1] %v1062
      %v1064 = vld [vmem:[%s984 + $0x84] sm:$0xf]
      %v1065 = vsel %vm986, %v857, %v1064
      %1066 = vst [vmem:[%s984 + $0x84] sm:$0xf] %v1065
      %1067 = vst.msk [vmem:[%s984 + $0x88] sm:$0xf] %vm444, %v866
      %v1068 = vld [vmem:[%s984 + $0x8c] sm:$0x1]
      %v1069 = vsel %vm455, %v867, %v1068
      %1070 = vst [vmem:[%s984 + $0x8c] sm:$0x1] %v1069
      %v1071 = vld [vmem:[%s984 + $0x90] sm:$0xf]
      %v1072 = vsel %vm986, %v874, %v1071
      %1073 = vst [vmem:[%s984 + $0x90] sm:$0xf] %v1072
      %1074 = vst.msk [vmem:[%s984 + $0x94] sm:$0xf] %vm444, %v883
      %v1075 = vld [vmem:[%s984 + $0x98] sm:$0x1]
      %v1076 = vsel %vm455, %v884, %v1075
      %1077 = vst [vmem:[%s984 + $0x98] sm:$0x1] %v1076
      %v1078 = vld [vmem:[%s984 + $0x9c] sm:$0xf]
      %v1079 = vsel %vm986, %v891, %v1078
      %1080 = vst [vmem:[%s984 + $0x9c] sm:$0xf] %v1079
      %1081 = vst.msk [vmem:[%s984 + $0xa0] sm:$0xf] %vm444, %v900
      %v1082 = vld [vmem:[%s984 + $0xa4] sm:$0x1]
      %v1083 = vsel %vm455, %v901, %v1082
      %1084 = vst [vmem:[%s984 + $0xa4] sm:$0x1] %v1083
      %v1085 = vld [vmem:[%s984 + $0xa8] sm:$0xf]
      %v1086 = vsel %vm986, %v908, %v1085
      %1087 = vst [vmem:[%s984 + $0xa8] sm:$0xf] %v1086
      %1088 = vst.msk [vmem:[%s984 + $0xac] sm:$0xf] %vm444, %v917
      %v1089 = vld [vmem:[%s984 + $0xb0] sm:$0x1]
      %v1090 = vsel %vm455, %v918, %v1089
      %1091 = vst [vmem:[%s984 + $0xb0] sm:$0x1] %v1090
      %v1092 = vld [vmem:[%s984 + $0xb4] sm:$0xf]
      %v1093 = vsel %vm986, %v925, %v1092
      %1094 = vst [vmem:[%s984 + $0xb4] sm:$0xf] %v1093
      %1095 = vst.msk [vmem:[%s984 + $0xb8] sm:$0xf] %vm444, %v934
      %v1096 = vld [vmem:[%s984 + $0xbc] sm:$0x1]
      %v1097 = vsel %vm455, %v935, %v1096
      %1098 = vst [vmem:[%s984 + $0xbc] sm:$0x1] %v1097
      %s1099 = smul.u32 0, 3
      %s1100 = smul.addr %s1099, 4
      %s1101 = scalar_lea.vmem [#allocation2], %s1100
      %v1102 = vld [vmem:[%s1101] sm:$0xf]
      %v1103 = vld [vmem:[%s1101 + $0x4] sm:$0xf]
      %v1104 = vld [vmem:[%s1101 + $0xc] sm:$0xf]
      %v1105 = vld [vmem:[%s1101 + $0x10] sm:$0xf]
      %v1106 = vld [vmem:[%s1101 + $0x18] sm:$0xf]
      %v1107 = vld [vmem:[%s1101 + $0x1c] sm:$0xf]
      %v1108 = vld [vmem:[%s1101 + $0x24] sm:$0xf]
      %v1109 = vld [vmem:[%s1101 + $0x28] sm:$0xf]
      %v1110 = vld [vmem:[%s1101 + $0x30] sm:$0xf]
      %v1111 = vld [vmem:[%s1101 + $0x34] sm:$0xf]
      %v1112 = vld [vmem:[%s1101 + $0x3c] sm:$0xf]
      %v1113 = vld [vmem:[%s1101 + $0x40] sm:$0xf]
      %v1114 = vld [vmem:[%s1101 + $0x48] sm:$0xf]
      %v1115 = vld [vmem:[%s1101 + $0x4c] sm:$0xf]
      %v1116 = vld [vmem:[%s1101 + $0x54] sm:$0xf]
      %v1117 = vld [vmem:[%s1101 + $0x58] sm:$0xf]
      %v1118 = vld [vmem:[%s1101 + $0x60] sm:$0xf]
      %v1119 = vld [vmem:[%s1101 + $0x64] sm:$0xf]
      %v1120 = vld [vmem:[%s1101 + $0x6c] sm:$0xf]
      %v1121 = vld [vmem:[%s1101 + $0x70] sm:$0xf]
      %v1122 = vld [vmem:[%s1101 + $0x78] sm:$0xf]
      %v1123 = vld [vmem:[%s1101 + $0x7c] sm:$0xf]
      %v1124 = vld [vmem:[%s1101 + $0x84] sm:$0xf]
      %v1125 = vld [vmem:[%s1101 + $0x88] sm:$0xf]
      %v1126 = vld [vmem:[%s1101 + $0x90] sm:$0xf]
      %v1127 = vld [vmem:[%s1101 + $0x94] sm:$0xf]
      %v1128 = vld [vmem:[%s1101 + $0x9c] sm:$0xf]
      %v1129 = vld [vmem:[%s1101 + $0xa0] sm:$0xf]
      %v1130 = vld [vmem:[%s1101 + $0xa8] sm:$0xf]
      %v1131 = vld [vmem:[%s1101 + $0xac] sm:$0xf]
      %v1132 = vld [vmem:[%s1101 + $0xb4] sm:$0xf]
      %v1133 = vld [vmem:[%s1101 + $0xb8] sm:$0xf]
      %v1134 = vld [vmem:[%s3] sm:$0xf]
      %v1135 = vld [vmem:[%s1101 + $0x8] sm:$0x1]
      %v1136 = vld [vmem:[%s1101 + $0x14] sm:$0x1]
      %v1137 = vld [vmem:[%s1101 + $0x20] sm:$0x1]
      %v1138 = vld [vmem:[%s1101 + $0x2c] sm:$0x1]
      %v1139 = vld [vmem:[%s1101 + $0x38] sm:$0x1]
      %v1140 = vld [vmem:[%s1101 + $0x44] sm:$0x1]
      %v1141 = vld [vmem:[%s1101 + $0x50] sm:$0x1]
      %v1142 = vld [vmem:[%s1101 + $0x5c] sm:$0x1]
      %v1143 = vld [vmem:[%s1101 + $0x68] sm:$0x1]
      %v1144 = vld [vmem:[%s1101 + $0x74] sm:$0x1]
      %v1145 = vld [vmem:[%s1101 + $0x80] sm:$0x1]
      %v1146 = vld [vmem:[%s1101 + $0x8c] sm:$0x1]
      %v1147 = vld [vmem:[%s1101 + $0x98] sm:$0x1]
      %v1148 = vld [vmem:[%s1101 + $0xa4] sm:$0x1]
      %v1149 = vld [vmem:[%s1101 + $0xb0] sm:$0x1]
      %v1150 = vld [vmem:[%s1101 + $0xbc] sm:$0x1]
      %vm1151 = vsmask.f32 3328
      %vm1152 = vsmask.f32 7440
      %vm1153 = vmor %vm1151, %vm1152
      %v1155 = vshrl.u32 %v1102, 16
      %v1157 = vrot.slane %v1155, 4
      %v1158 = vshll.u32 %v1102, 16
      %v1160 = vrot.slane %v1158, 5
      %v1161 = vor.u32 %v1157, %v1160
      %v1162 = vrot.slane %v1161, 4
      %v1164 = vshll.u32 %v1103, 16
      %v1166 = vrot.slane %v1164, 5
      %v1167 = vsel %vm1153, %v1162, %v1166
      %v1168 = vshrl.u32 %v1103, 16
      %v1170 = vrot.slane %v1168, 4
      %v1171 = vor.u32 %v1170, %v1166
      %v1172 = vrot.slane %v1171, 4
      %v1174 = vshll.u32 %v1135, 16
      %v1176 = vrot.slane %v1174, 5
      %v1177 = vsel %vm1153, %v1172, %v1176
      %v1179 = vshrl.u32 %v1104, 16
      %v1181 = vrot.slane %v1179, 4
      %v1182 = vshll.u32 %v1104, 16
      %v1184 = vrot.slane %v1182, 5
      %v1185 = vor.u32 %v1181, %v1184
      %v1186 = vrot.slane %v1185, 4
      %v1188 = vshll.u32 %v1105, 16
      %v1190 = vrot.slane %v1188, 5
      %v1191 = vsel %vm1153, %v1186, %v1190
      %v1192 = vshrl.u32 %v1105, 16
      %v1194 = vrot.slane %v1192, 4
      %v1195 = vor.u32 %v1194, %v1190
      %v1196 = vrot.slane %v1195, 4
      %v1198 = vshll.u32 %v1136, 16
      %v1200 = vrot.slane %v1198, 5
      %v1201 = vsel %vm1153, %v1196, %v1200
      %v1203 = vshrl.u32 %v1106, 16
      %v1205 = vrot.slane %v1203, 4
      %v1206 = vshll.u32 %v1106, 16
      %v1208 = vrot.slane %v1206, 5
      %v1209 = vor.u32 %v1205, %v1208
      %v1210 = vrot.slane %v1209, 4
      %v1212 = vshll.u32 %v1107, 16
      %v1214 = vrot.slane %v1212, 5
      %v1215 = vsel %vm1153, %v1210, %v1214
      %v1216 = vshrl.u32 %v1107, 16
      %v1218 = vrot.slane %v1216, 4
      %v1219 = vor.u32 %v1218, %v1214
      %v1220 = vrot.slane %v1219, 4
      %v1222 = vshll.u32 %v1137, 16
      %v1224 = vrot.slane %v1222, 5
      %v1225 = vsel %vm1153, %v1220, %v1224
      %v1227 = vshrl.u32 %v1108, 16
      %v1229 = vrot.slane %v1227, 4
      %v1230 = vshll.u32 %v1108, 16
      %v1232 = vrot.slane %v1230, 5
      %v1233 = vor.u32 %v1229, %v1232
      %v1234 = vrot.slane %v1233, 4
      %v1236 = vshll.u32 %v1109, 16
      %v1238 = vrot.slane %v1236, 5
      %v1239 = vsel %vm1153, %v1234, %v1238
      %v1240 = vshrl.u32 %v1109, 16
      %v1242 = vrot.slane %v1240, 4
      %v1243 = vor.u32 %v1242, %v1238
      %v1244 = vrot.slane %v1243, 4
      %v1246 = vshll.u32 %v1138, 16
      %v1248 = vrot.slane %v1246, 5
      %v1249 = vsel %vm1153, %v1244, %v1248
      %v1251 = vshrl.u32 %v1110, 16
      %v1253 = vrot.slane %v1251, 4
      %v1254 = vshll.u32 %v1110, 16
      %v1256 = vrot.slane %v1254, 5
      %v1257 = vor.u32 %v1253, %v1256
      %v1258 = vrot.slane %v1257, 4
      %v1260 = vshll.u32 %v1111, 16
      %v1262 = vrot.slane %v1260, 5
      %v1263 = vsel %vm1153, %v1258, %v1262
      %v1264 = vshrl.u32 %v1111, 16
      %v1266 = vrot.slane %v1264, 4
      %v1267 = vor.u32 %v1266, %v1262
      %v1268 = vrot.slane %v1267, 4
      %v1270 = vshll.u32 %v1139, 16
      %v1272 = vrot.slane %v1270, 5
      %v1273 = vsel %vm1153, %v1268, %v1272
      %v1275 = vshrl.u32 %v1112, 16
      %v1277 = vrot.slane %v1275, 4
      %v1278 = vshll.u32 %v1112, 16
      %v1280 = vrot.slane %v1278, 5
      %v1281 = vor.u32 %v1277, %v1280
      %v1282 = vrot.slane %v1281, 4
      %v1284 = vshll.u32 %v1113, 16
      %v1286 = vrot.slane %v1284, 5
      %v1287 = vsel %vm1153, %v1282, %v1286
      %v1288 = vshrl.u32 %v1113, 16
      %v1290 = vrot.slane %v1288, 4
      %v1291 = vor.u32 %v1290, %v1286
      %v1292 = vrot.slane %v1291, 4
      %v1294 = vshll.u32 %v1140, 16
      %v1296 = vrot.slane %v1294, 5
      %v1297 = vsel %vm1153, %v1292, %v1296
      %v1299 = vshrl.u32 %v1114, 16
      %v1301 = vrot.slane %v1299, 4
      %v1302 = vshll.u32 %v1114, 16
      %v1304 = vrot.slane %v1302, 5
      %v1305 = vor.u32 %v1301, %v1304
      %v1306 = vrot.slane %v1305, 4
      %v1308 = vshll.u32 %v1115, 16
      %v1310 = vrot.slane %v1308, 5
      %v1311 = vsel %vm1153, %v1306, %v1310
      %v1312 = vshrl.u32 %v1115, 16
      %v1314 = vrot.slane %v1312, 4
      %v1315 = vor.u32 %v1314, %v1310
      %v1316 = vrot.slane %v1315, 4
      %v1318 = vshll.u32 %v1141, 16
      %v1320 = vrot.slane %v1318, 5
      %v1321 = vsel %vm1153, %v1316, %v1320
      %v1323 = vshrl.u32 %v1116, 16
      %v1325 = vrot.slane %v1323, 4
      %v1326 = vshll.u32 %v1116, 16
      %v1328 = vrot.slane %v1326, 5
      %v1329 = vor.u32 %v1325, %v1328
      %v1330 = vrot.slane %v1329, 4
      %v1332 = vshll.u32 %v1117, 16
      %v1334 = vrot.slane %v1332, 5
      %v1335 = vsel %vm1153, %v1330, %v1334
      %v1336 = vshrl.u32 %v1117, 16
      %v1338 = vrot.slane %v1336, 4
      %v1339 = vor.u32 %v1338, %v1334
      %v1340 = vrot.slane %v1339, 4
      %v1342 = vshll.u32 %v1142, 16
      %v1344 = vrot.slane %v1342, 5
      %v1345 = vsel %vm1153, %v1340, %v1344
      %v1347 = vshrl.u32 %v1118, 16
      %v1349 = vrot.slane %v1347, 4
      %v1350 = vshll.u32 %v1118, 16
      %v1352 = vrot.slane %v1350, 5
      %v1353 = vor.u32 %v1349, %v1352
      %v1354 = vrot.slane %v1353, 4
      %v1356 = vshll.u32 %v1119, 16
      %v1358 = vrot.slane %v1356, 5
      %v1359 = vsel %vm1153, %v1354, %v1358
      %v1360 = vshrl.u32 %v1119, 16
      %v1362 = vrot.slane %v1360, 4
      %v1363 = vor.u32 %v1362, %v1358
      %v1364 = vrot.slane %v1363, 4
      %v1366 = vshll.u32 %v1143, 16
      %v1368 = vrot.slane %v1366, 5
      %v1369 = vsel %vm1153, %v1364, %v1368
      %v1371 = vshrl.u32 %v1120, 16
      %v1373 = vrot.slane %v1371, 4
      %v1374 = vshll.u32 %v1120, 16
      %v1376 = vrot.slane %v1374, 5
      %v1377 = vor.u32 %v1373, %v1376
      %v1378 = vrot.slane %v1377, 4
      %v1380 = vshll.u32 %v1121, 16
      %v1382 = vrot.slane %v1380, 5
      %v1383 = vsel %vm1153, %v1378, %v1382
      %v1384 = vshrl.u32 %v1121, 16
      %v1386 = vrot.slane %v1384, 4
      %v1387 = vor.u32 %v1386, %v1382
      %v1388 = vrot.slane %v1387, 4
      %v1390 = vshll.u32 %v1144, 16
      %v1392 = vrot.slane %v1390, 5
      %v1393 = vsel %vm1153, %v1388, %v1392
      %v1395 = vshrl.u32 %v1122, 16
      %v1397 = vrot.slane %v1395, 4
      %v1398 = vshll.u32 %v1122, 16
      %v1400 = vrot.slane %v1398, 5
      %v1401 = vor.u32 %v1397, %v1400
      %v1402 = vrot.slane %v1401, 4
      %v1404 = vshll.u32 %v1123, 16
      %v1406 = vrot.slane %v1404, 5
      %v1407 = vsel %vm1153, %v1402, %v1406
      %v1408 = vshrl.u32 %v1123, 16
      %v1410 = vrot.slane %v1408, 4
      %v1411 = vor.u32 %v1410, %v1406
      %v1412 = vrot.slane %v1411, 4
      %v1414 = vshll.u32 %v1145, 16
      %v1416 = vrot.slane %v1414, 5
      %v1417 = vsel %vm1153, %v1412, %v1416
      %v1419 = vshrl.u32 %v1124, 16
      %v1421 = vrot.slane %v1419, 4
      %v1422 = vshll.u32 %v1124, 16
      %v1424 = vrot.slane %v1422, 5
      %v1425 = vor.u32 %v1421, %v1424
      %v1426 = vrot.slane %v1425, 4
      %v1428 = vshll.u32 %v1125, 16
      %v1430 = vrot.slane %v1428, 5
      %v1431 = vsel %vm1153, %v1426, %v1430
      %v1432 = vshrl.u32 %v1125, 16
      %v1434 = vrot.slane %v1432, 4
      %v1435 = vor.u32 %v1434, %v1430
      %v1436 = vrot.slane %v1435, 4
      %v1438 = vshll.u32 %v1146, 16
      %v1440 = vrot.slane %v1438, 5
      %v1441 = vsel %vm1153, %v1436, %v1440
      %v1443 = vshrl.u32 %v1126, 16
      %v1445 = vrot.slane %v1443, 4
      %v1446 = vshll.u32 %v1126, 16
      %v1448 = vrot.slane %v1446, 5
      %v1449 = vor.u32 %v1445, %v1448
      %v1450 = vrot.slane %v1449, 4
      %v1452 = vshll.u32 %v1127, 16
      %v1454 = vrot.slane %v1452, 5
      %v1455 = vsel %vm1153, %v1450, %v1454
      %v1456 = vshrl.u32 %v1127, 16
      %v1458 = vrot.slane %v1456, 4
      %v1459 = vor.u32 %v1458, %v1454
      %v1460 = vrot.slane %v1459, 4
      %v1462 = vshll.u32 %v1147, 16
      %v1464 = vrot.slane %v1462, 5
      %v1465 = vsel %vm1153, %v1460, %v1464
      %v1467 = vshrl.u32 %v1128, 16
      %v1469 = vrot.slane %v1467, 4
      %v1470 = vshll.u32 %v1128, 16
      %v1472 = vrot.slane %v1470, 5
      %v1473 = vor.u32 %v1469, %v1472
      %v1474 = vrot.slane %v1473, 4
      %v1476 = vshll.u32 %v1129, 16
      %v1478 = vrot.slane %v1476, 5
      %v1479 = vsel %vm1153, %v1474, %v1478
      %v1480 = vshrl.u32 %v1129, 16
      %v1482 = vrot.slane %v1480, 4
      %v1483 = vor.u32 %v1482, %v1478
      %v1484 = vrot.slane %v1483, 4
      %v1486 = vshll.u32 %v1148, 16
      %v1488 = vrot.slane %v1486, 5
      %v1489 = vsel %vm1153, %v1484, %v1488
      %v1491 = vshrl.u32 %v1130, 16
      %v1493 = vrot.slane %v1491, 4
      %v1494 = vshll.u32 %v1130, 16
      %v1496 = vrot.slane %v1494, 5
      %v1497 = vor.u32 %v1493, %v1496
      %v1498 = vrot.slane %v1497, 4
      %v1500 = vshll.u32 %v1131, 16
      %v1502 = vrot.slane %v1500, 5
      %v1503 = vsel %vm1153, %v1498, %v1502
      %v1504 = vshrl.u32 %v1131, 16
      %v1506 = vrot.slane %v1504, 4
      %v1507 = vor.u32 %v1506, %v1502
      %v1508 = vrot.slane %v1507, 4
      %v1510 = vshll.u32 %v1149, 16
      %v1512 = vrot.slane %v1510, 5
      %v1513 = vsel %vm1153, %v1508, %v1512
      %v1515 = vshrl.u32 %v1132, 16
      %v1517 = vrot.slane %v1515, 4
      %v1518 = vshll.u32 %v1132, 16
      %v1520 = vrot.slane %v1518, 5
      %v1521 = vor.u32 %v1517, %v1520
      %v1522 = vrot.slane %v1521, 4
      %v1524 = vshll.u32 %v1133, 16
      %v1526 = vrot.slane %v1524, 5
      %v1527 = vsel %vm1153, %v1522, %v1526
      %v1528 = vshrl.u32 %v1133, 16
      %v1530 = vrot.slane %v1528, 4
      %v1531 = vor.u32 %v1530, %v1526
      %v1532 = vrot.slane %v1531, 4
      %v1534 = vshll.u32 %v1150, 16
      %v1536 = vrot.slane %v1534, 5
      %v1537 = vsel %vm1153, %v1532, %v1536
      %s1538 = scalar_lea.vmem %s3, 4
      %v1539 = vld [vmem:[%s1538] sm:$0xf]
      %v1540 = vunpack.c.l.b16 %v1167
      %v1541 = vunpack.c.l.b16 %v1177
      %v1542 = vunpack.c.l.b16 %v1191
      %v1543 = vunpack.c.l.b16 %v1201
      %v1544 = vunpack.c.l.b16 %v1215
      %v1545 = vunpack.c.l.b16 %v1225
      %v1546 = vunpack.c.l.b16 %v1239
      %v1547 = vunpack.c.l.b16 %v1249
      %v1548 = vunpack.c.l.b16 %v1263
      %v1549 = vunpack.c.l.b16 %v1273
      %v1550 = vunpack.c.l.b16 %v1287
      %v1551 = vunpack.c.l.b16 %v1297
      %v1552 = vunpack.c.l.b16 %v1311
      %v1553 = vunpack.c.l.b16 %v1321
      %v1554 = vunpack.c.l.b16 %v1335
      %v1555 = vunpack.c.l.b16 %v1345
      %v1556 = vunpack.c.l.b16 %v1359
      %v1557 = vunpack.c.l.b16 %v1369
      %v1558 = vunpack.c.l.b16 %v1383
      %v1559 = vunpack.c.l.b16 %v1393
      %v1560 = vunpack.c.l.b16 %v1407
      %v1561 = vunpack.c.l.b16 %v1417
      %v1562 = vunpack.c.l.b16 %v1431
      %v1563 = vunpack.c.l.b16 %v1441
      %v1564 = vunpack.c.l.b16 %v1455
      %v1565 = vunpack.c.l.b16 %v1465
      %v1566 = vunpack.c.l.b16 %v1479
      %v1567 = vunpack.c.l.b16 %v1489
      %v1568 = vunpack.c.l.b16 %v1503
      %v1569 = vunpack.c.l.b16 %v1513
      %v1570 = vunpack.c.l.b16 %v1527
      %v1571 = vunpack.c.l.b16 %v1537
      %v1572 = vpack.c.b16 %v1541, %v1540
      %v1573 = vpack.c.b16 %v1543, %v1542
      %v1574 = vpack.c.b16 %v1545, %v1544
      %v1575 = vpack.c.b16 %v1547, %v1546
      %v1576 = vpack.c.b16 %v1549, %v1548
      %v1577 = vpack.c.b16 %v1551, %v1550
      %v1578 = vpack.c.b16 %v1553, %v1552
      %v1579 = vpack.c.b16 %v1555, %v1554
      %v1580 = vpack.c.b16 %v1557, %v1556
      %v1581 = vpack.c.b16 %v1559, %v1558
      %v1582 = vpack.c.b16 %v1561, %v1560
      %v1583 = vpack.c.b16 %v1563, %v1562
      %v1584 = vpack.c.b16 %v1565, %v1564
      %v1585 = vpack.c.b16 %v1567, %v1566
      %v1586 = vpack.c.b16 %v1569, %v1568
      %v1587 = vpack.c.b16 %v1571, %v1570
      %vm1588 = vcmask 64512
      %v1590 = vsel %vm1588, %v1572, 0
      %v1593 = vsel %vm1588, %v1573, 0
      %v1596 = vsel %vm1588, %v1574, 0
      %v1599 = vsel %vm1588, %v1575, 0
      %v1602 = vsel %vm1588, %v1576, 0
      %v1605 = vsel %vm1588, %v1577, 0
      %v1608 = vsel %vm1588, %v1578, 0
      %v1611 = vsel %vm1588, %v1579, 0
      %v1614 = vsel %vm1588, %v1580, 0
      %v1617 = vsel %vm1588, %v1581, 0
      %v1620 = vsel %vm1588, %v1582, 0
      %v1623 = vsel %vm1588, %v1583, 0
      %v1626 = vsel %vm1588, %v1584, 0
      %v1629 = vsel %vm1588, %v1585, 0
      %v1632 = vsel %vm1588, %v1586, 0
      %v1635 = vsel %vm1588, %v1587, 0
      %vm1637 = vcmask 1043456
      %v1639 = vsel %vm1637, %v1539, 0
      %1641 = vmatprep.subr.bf16.mxu0 0
      %1642 = vmatpush1.bf16.msra.mxu0 %v1639
      %1643 = vmatprep.subr.bf16.mxu0 0
      %1644 = vmatpush1.bf16.msra.mxu0 0
      %1645 = vmatprep.subr.bf16.mxu0 0
      %1646 = vmatpush1.bf16.msra.mxu0 0
      %1647 = vmatprep.subr.bf16.mxu0 0
      %1648 = vmatpush1.bf16.msra.mxu0 0
      %1649 = vmatprep.subr.bf16.mxu0 0
      %1650 = vmatpush1.bf16.msra.mxu0 0
      %1651 = vmatprep.subr.bf16.mxu0 0
      %1652 = vmatpush1.bf16.msra.mxu0 0
      %1653 = vmatprep.subr.bf16.mxu0 0
      %1654 = vmatpush1.bf16.msra.mxu0 0
      %1655 = vmatprep.subr.bf16.mxu0 0
      %1656 = vmatpush1.bf16.msra.mxu0 0
      %1657 = vmatprep.subr.bf16.mxu0 0
      %1658 = vmatpush1.bf16.msra.mxu0 0
      %1659 = vmatprep.subr.bf16.mxu0 0
      %1660 = vmatpush1.bf16.msra.mxu0 0
      %1661 = vmatprep.subr.bf16.mxu0 0
      %1662 = vmatpush1.bf16.msra.mxu0 0
      %1663 = vmatprep.subr.bf16.mxu0 0
      %1664 = vmatpush1.bf16.msra.mxu0 0
      %1665 = vmatprep.subr.bf16.mxu0 0
      %1666 = vmatpush1.bf16.msra.mxu0 0
      %1667 = vmatprep.subr.bf16.mxu0 0
      %1668 = vmatpush1.bf16.msra.mxu0 0
      %1669 = vmatprep.subr.bf16.mxu0 0
      %1670 = vmatpush1.bf16.msra.mxu0 0
      %1671 = vmatprep.subr.bf16.mxu0 0
      %1672 = vmatpush1.bf16.msra.mxu0 0
      %1673 = vmatprep.mubr.bf16.mxu0 0
      %1674 = vmatmul.mubr.bf16.gmra.mrb[0].mxu0 %v1590
      %v1675 = vpop.f32.mrb[0].mxu0
      %v1676 = vadd.f32 0.0, %v1675
      %v1677 = vpop.f32.mrb[0].mxu0
      %v1678 = vpop.f32.mrb[0].mxu0
      %v1679 = vadd.f32 0.0, %v1678
      %v1680 = vpop.f32.mrb[0].mxu0
      %1681 = vmatprep.mubr.bf16.mxu0 0
      %1682 = vmatmul.mubr.bf16.gmra.mrb[0].mxu0 %v1593
      %v1683 = vpop.f32.mrb[0].mxu0
      %v1684 = vadd.f32 0.0, %v1683
      %v1685 = vpop.f32.mrb[0].mxu0
      %v1686 = vpop.f32.mrb[0].mxu0
      %v1687 = vadd.f32 0.0, %v1686
      %v1688 = vpop.f32.mrb[0].mxu0
      %1689 = vmatprep.mubr.bf16.mxu0 0
      %1690 = vmatmul.mubr.bf16.gmra.mrb[0].mxu0 %v1596
      %v1691 = vpop.f32.mrb[0].mxu0
      %v1692 = vadd.f32 0.0, %v1691
      %v1693 = vpop.f32.mrb[0].mxu0
      %v1694 = vpop.f32.mrb[0].mxu0
      %v1695 = vadd.f32 0.0, %v1694
      %v1696 = vpop.f32.mrb[0].mxu0
      %1697 = vmatprep.mubr.bf16.mxu0 0
      %1698 = vmatmul.mubr.bf16.gmra.mrb[0].mxu0 %v1599
      %v1699 = vpop.f32.mrb[0].mxu0
      %v1700 = vadd.f32 0.0, %v1699
      %v1701 = vpop.f32.mrb[0].mxu0
      %v1702 = vpop.f32.mrb[0].mxu0
      %v1703 = vadd.f32 0.0, %v1702
      %v1704 = vpop.f32.mrb[0].mxu0
      %1705 = vmatprep.mubr.bf16.mxu0 0
      %1706 = vmatmul.mubr.bf16.gmra.mrb[0].mxu0 %v1602
      %v1707 = vpop.f32.mrb[0].mxu0
      %v1708 = vadd.f32 0.0, %v1707
      %v1709 = vpop.f32.mrb[0].mxu0
      %v1710 = vpop.f32.mrb[0].mxu0
      %v1711 = vadd.f32 0.0, %v1710
      %v1712 = vpop.f32.mrb[0].mxu0
      %1713 = vmatprep.mubr.bf16.mxu0 0
      %1714 = vmatmul.mubr.bf16.gmra.mrb[0].mxu0 %v1605
      %v1715 = vpop.f32.mrb[0].mxu0
      %v1716 = vadd.f32 0.0, %v1715
      %v1717 = vpop.f32.mrb[0].mxu0
      %v1718 = vpop.f32.mrb[0].mxu0
      %v1719 = vadd.f32 0.0, %v1718
      %v1720 = vpop.f32.mrb[0].mxu0
      %1721 = vmatprep.mubr.bf16.mxu0 0
      %1722 = vmatmul.mubr.bf16.gmra.mrb[0].mxu0 %v1608
      %v1723 = vpop.f32.mrb[0].mxu0
      %v1724 = vadd.f32 0.0, %v1723
      %v1725 = vpop.f32.mrb[0].mxu0
      %v1726 = vpop.f32.mrb[0].mxu0
      %v1727 = vadd.f32 0.0, %v1726
      %v1728 = vpop.f32.mrb[0].mxu0
      %1729 = vmatprep.mubr.bf16.mxu0 0
      %1730 = vmatmul.mubr.bf16.gmra.mrb[0].mxu0 %v1611
      %v1731 = vpop.f32.mrb[0].mxu0
      %v1732 = vadd.f32 0.0, %v1731
      %v1733 = vpop.f32.mrb[0].mxu0
      %v1734 = vpop.f32.mrb[0].mxu0
      %v1735 = vadd.f32 0.0, %v1734
      %v1736 = vpop.f32.mrb[0].mxu0
      %1737 = vmatprep.mubr.bf16.mxu0 0
      %1738 = vmatmul.mubr.bf16.gmra.mrb[0].mxu0 %v1614
      %v1739 = vpop.f32.mrb[0].mxu0
      %v1740 = vadd.f32 0.0, %v1739
      %v1741 = vpop.f32.mrb[0].mxu0
      %v1742 = vpop.f32.mrb[0].mxu0
      %v1743 = vadd.f32 0.0, %v1742
      %v1744 = vpop.f32.mrb[0].mxu0
      %1745 = vmatprep.mubr.bf16.mxu0 0
      %1746 = vmatmul.mubr.bf16.gmra.mrb[0].mxu0 %v1617
      %v1747 = vpop.f32.mrb[0].mxu0
      %v1748 = vadd.f32 0.0, %v1747
      %v1749 = vpop.f32.mrb[0].mxu0
      %v1750 = vpop.f32.mrb[0].mxu0
      %v1751 = vadd.f32 0.0, %v1750
      %v1752 = vpop.f32.mrb[0].mxu0
      %1753 = vmatprep.mubr.bf16.mxu0 0
      %1754 = vmatmul.mubr.bf16.gmra.mrb[0].mxu0 %v1620
      %v1755 = vpop.f32.mrb[0].mxu0
      %v1756 = vadd.f32 0.0, %v1755
      %v1757 = vpop.f32.mrb[0].mxu0
      %v1758 = vpop.f32.mrb[0].mxu0
      %v1759 = vadd.f32 0.0, %v1758
      %v1760 = vpop.f32.mrb[0].mxu0
      %1761 = vmatprep.mubr.bf16.mxu0 0
      %1762 = vmatmul.mubr.bf16.gmra.mrb[0].mxu0 %v1623
      %v1763 = vpop.f32.mrb[0].mxu0
      %v1764 = vadd.f32 0.0, %v1763
      %v1765 = vpop.f32.mrb[0].mxu0
      %v1766 = vpop.f32.mrb[0].mxu0
      %v1767 = vadd.f32 0.0, %v1766
      %v1768 = vpop.f32.mrb[0].mxu0
      %1769 = vmatprep.mubr.bf16.mxu0 0
      %1770 = vmatmul.mubr.bf16.gmra.mrb[0].mxu0 %v1626
      %v1771 = vpop.f32.mrb[0].mxu0
      %v1772 = vadd.f32 0.0, %v1771
      %v1773 = vpop.f32.mrb[0].mxu0
      %v1774 = vpop.f32.mrb[0].mxu0
      %v1775 = vadd.f32 0.0, %v1774
      %v1776 = vpop.f32.mrb[0].mxu0
      %1777 = vmatprep.mubr.bf16.mxu0 0
      %1778 = vmatmul.mubr.bf16.gmra.mrb[0].mxu0 %v1629
      %v1779 = vpop.f32.mrb[0].mxu0
      %v1780 = vadd.f32 0.0, %v1779
      %v1781 = vpop.f32.mrb[0].mxu0
      %v1782 = vpop.f32.mrb[0].mxu0
      %v1783 = vadd.f32 0.0, %v1782
      %v1784 = vpop.f32.mrb[0].mxu0
      %1785 = vmatprep.mubr.bf16.mxu0 0
      %1786 = vmatmul.mubr.bf16.gmra.mrb[0].mxu0 %v1632
      %v1787 = vpop.f32.mrb[0].mxu0
      %v1788 = vadd.f32 0.0, %v1787
      %v1789 = vpop.f32.mrb[0].mxu0
      %v1790 = vpop.f32.mrb[0].mxu0
      %v1791 = vadd.f32 0.0, %v1790
      %v1792 = vpop.f32.mrb[0].mxu0
      %1793 = vmatprep.mubr.bf16.mxu0 0
      %1794 = vmatmul.mubr.bf16.gmra.mrb[0].mxu0 %v1635
      %v1795 = vpop.f32.mrb[0].mxu0
      %v1796 = vadd.f32 0.0, %v1795
      %v1797 = vpop.f32.mrb[0].mxu0
      %v1798 = vpop.f32.mrb[0].mxu0
      %v1799 = vadd.f32 0.0, %v1798
      %v1800 = vpop.f32.mrb[0].mxu0
      %1801 = vdwg.mxu0
      %v1834 = vunpack.c.l.b16 %v1102
      %v1835 = vunpack.c.l.b16 %v1103
      %v1836 = vunpack.c.l.b16 %v1104
      %v1837 = vunpack.c.l.b16 %v1105
      %v1838 = vunpack.c.l.b16 %v1106
      %v1839 = vunpack.c.l.b16 %v1107
      %v1840 = vunpack.c.l.b16 %v1108
      %v1841 = vunpack.c.l.b16 %v1109
      %v1842 = vunpack.c.l.b16 %v1110
      %v1843 = vunpack.c.l.b16 %v1111
      %v1844 = vunpack.c.l.b16 %v1112
      %v1845 = vunpack.c.l.b16 %v1113
      %v1846 = vunpack.c.l.b16 %v1114
      %v1847 = vunpack.c.l.b16 %v1115
      %v1848 = vunpack.c.l.b16 %v1116
      %v1849 = vunpack.c.l.b16 %v1117
      %v1850 = vunpack.c.l.b16 %v1118
      %v1851 = vunpack.c.l.b16 %v1119
      %v1852 = vunpack.c.l.b16 %v1120
      %v1853 = vunpack.c.l.b16 %v1121
      %v1854 = vunpack.c.l.b16 %v1122
      %v1855 = vunpack.c.l.b16 %v1123
      %v1856 = vunpack.c.l.b16 %v1124
      %v1857 = vunpack.c.l.b16 %v1125
      %v1858 = vunpack.c.l.b16 %v1126
      %v1859 = vunpack.c.l.b16 %v1127
      %v1860 = vunpack.c.l.b16 %v1128
      %v1861 = vunpack.c.l.b16 %v1129
      %v1862 = vunpack.c.l.b16 %v1130
      %v1863 = vunpack.c.l.b16 %v1131
      %v1864 = vunpack.c.l.b16 %v1132
      %v1865 = vunpack.c.l.b16 %v1133
      %v1866 = vpack.c.b16 %v1835, %v1834
      %v1867 = vpack.c.b16 %v1837, %v1836
      %v1868 = vpack.c.b16 %v1839, %v1838
      %v1869 = vpack.c.b16 %v1841, %v1840
      %v1870 = vpack.c.b16 %v1843, %v1842
      %v1871 = vpack.c.b16 %v1845, %v1844
      %v1872 = vpack.c.b16 %v1847, %v1846
      %v1873 = vpack.c.b16 %v1849, %v1848
      %v1874 = vpack.c.b16 %v1851, %v1850
      %v1875 = vpack.c.b16 %v1853, %v1852
      %v1876 = vpack.c.b16 %v1855, %v1854
      %v1877 = vpack.c.b16 %v1857, %v1856
      %v1878 = vpack.c.b16 %v1859, %v1858
      %v1879 = vpack.c.b16 %v1861, %v1860
      %v1880 = vpack.c.b16 %v1863, %v1862
      %v1881 = vpack.c.b16 %v1865, %v1864
      %v1883 = vsel %vm1588, %v1866, 0
      %v1886 = vsel %vm1588, %v1867, 0
      %v1889 = vsel %vm1588, %v1868, 0
      %v1892 = vsel %vm1588, %v1869, 0
      %v1895 = vsel %vm1588, %v1870, 0
      %v1898 = vsel %vm1588, %v1871, 0
      %v1901 = vsel %vm1588, %v1872, 0
      %v1904 = vsel %vm1588, %v1873, 0
      %v1907 = vsel %vm1588, %v1874, 0
      %v1910 = vsel %vm1588, %v1875, 0
      %v1913 = vsel %vm1588, %v1876, 0
      %v1916 = vsel %vm1588, %v1877, 0
      %v1919 = vsel %vm1588, %v1878, 0
      %v1922 = vsel %vm1588, %v1879, 0
      %v1925 = vsel %vm1588, %v1880, 0
      %v1928 = vsel %vm1588, %v1881, 0
      %v1931 = vsel %vm1637, %v1134, 0
      %1933 = vmatprep.subr.bf16.mxu0 0
      %1934 = vmatpush1.bf16.msra.mxu0 %v1931
      %1935 = vmatprep.subr.bf16.mxu0 0
      %1936 = vmatpush1.bf16.msra.mxu0 0
      %1937 = vmatprep.subr.bf16.mxu0 0
      %1938 = vmatpush1.bf16.msra.mxu0 0
      %1939 = vmatprep.subr.bf16.mxu0 0
      %1940 = vmatpush1.bf16.msra.mxu0 0
      %1941 = vmatprep.subr.bf16.mxu0 0
      %1942 = vmatpush1.bf16.msra.mxu0 0
      %1943 = vmatprep.subr.bf16.mxu0 0
      %1944 = vmatpush1.bf16.msra.mxu0 0
      %1945 = vmatprep.subr.bf16.mxu0 0
      %1946 = vmatpush1.bf16.msra.mxu0 0
      %1947 = vmatprep.subr.bf16.mxu0 0
      %1948 = vmatpush1.bf16.msra.mxu0 0
      %1949 = vmatprep.subr.bf16.mxu0 0
      %1950 = vmatpush1.bf16.msra.mxu0 0
      %1951 = vmatprep.subr.bf16.mxu0 0
      %1952 = vmatpush1.bf16.msra.mxu0 0
      %1953 = vmatprep.subr.bf16.mxu0 0
      %1954 = vmatpush1.bf16.msra.mxu0 0
      %1955 = vmatprep.subr.bf16.mxu0 0
      %1956 = vmatpush1.bf16.msra.mxu0 0
      %1957 = vmatprep.subr.bf16.mxu0 0
      %1958 = vmatpush1.bf16.msra.mxu0 0
      %1959 = vmatprep.subr.bf16.mxu0 0
      %1960 = vmatpush1.bf16.msra.mxu0 0
      %1961 = vmatprep.subr.bf16.mxu0 0
      %1962 = vmatpush1.bf16.msra.mxu0 0
      %1963 = vmatprep.subr.bf16.mxu0 0
      %1964 = vmatpush1.bf16.msra.mxu0 0
      %1965 = vmatprep.mubr.bf16.mxu0 0
      %1966 = vmatmul.mubr.bf16.gmra.mrb[0].mxu0 %v1883
      %v1967 = vpop.f32.mrb[0].mxu0
      %v1968 = vadd.f32 %v1676, %v1967
      %v1969 = vpop.f32.mrb[0].mxu0
      %v1970 = vpop.f32.mrb[0].mxu0
      %v1971 = vadd.f32 %v1679, %v1970
      %v1972 = vpop.f32.mrb[0].mxu0
      %1973 = vmatprep.mubr.bf16.mxu0 0
      %1974 = vmatmul.mubr.bf16.gmra.mrb[0].mxu0 %v1886
      %v1975 = vpop.f32.mrb[0].mxu0
      %v1976 = vadd.f32 %v1684, %v1975
      %v1977 = vpop.f32.mrb[0].mxu0
      %v1978 = vpop.f32.mrb[0].mxu0
      %v1979 = vadd.f32 %v1687, %v1978
      %v1980 = vpop.f32.mrb[0].mxu0
      %1981 = vmatprep.mubr.bf16.mxu0 0
      %1982 = vmatmul.mubr.bf16.gmra.mrb[0].mxu0 %v1889
      %v1983 = vpop.f32.mrb[0].mxu0
      %v1984 = vadd.f32 %v1692, %v1983
      %v1985 = vpop.f32.mrb[0].mxu0
      %v1986 = vpop.f32.mrb[0].mxu0
      %v1987 = vadd.f32 %v1695, %v1986
      %v1988 = vpop.f32.mrb[0].mxu0
      %1989 = vmatprep.mubr.bf16.mxu0 0
      %1990 = vmatmul.mubr.bf16.gmra.mrb[0].mxu0 %v1892
      %v1991 = vpop.f32.mrb[0].mxu0
      %v1992 = vadd.f32 %v1700, %v1991
      %v1993 = vpop.f32.mrb[0].mxu0
      %v1994 = vpop.f32.mrb[0].mxu0
      %v1995 = vadd.f32 %v1703, %v1994
      %v1996 = vpop.f32.mrb[0].mxu0
      %1997 = vmatprep.mubr.bf16.mxu0 0
      %1998 = vmatmul.mubr.bf16.gmra.mrb[0].mxu0 %v1895
      %v1999 = vpop.f32.mrb[0].mxu0
      %v2000 = vadd.f32 %v1708, %v1999
      %v2001 = vpop.f32.mrb[0].mxu0
      %v2002 = vpop.f32.mrb[0].mxu0
      %v2003 = vadd.f32 %v1711, %v2002
      %v2004 = vpop.f32.mrb[0].mxu0
      %2005 = vmatprep.mubr.bf16.mxu0 0
      %2006 = vmatmul.mubr.bf16.gmra.mrb[0].mxu0 %v1898
      %v2007 = vpop.f32.mrb[0].mxu0
      %v2008 = vadd.f32 %v1716, %v2007
      %v2009 = vpop.f32.mrb[0].mxu0
      %v2010 = vpop.f32.mrb[0].mxu0
      %v2011 = vadd.f32 %v1719, %v2010
      %v2012 = vpop.f32.mrb[0].mxu0
      %2013 = vmatprep.mubr.bf16.mxu0 0
      %2014 = vmatmul.mubr.bf16.gmra.mrb[0].mxu0 %v1901
      %v2015 = vpop.f32.mrb[0].mxu0
      %v2016 = vadd.f32 %v1724, %v2015
      %v2017 = vpop.f32.mrb[0].mxu0
      %v2018 = vpop.f32.mrb[0].mxu0
      %v2019 = vadd.f32 %v1727, %v2018
      %v2020 = vpop.f32.mrb[0].mxu0
      %2021 = vmatprep.mubr.bf16.mxu0 0
      %2022 = vmatmul.mubr.bf16.gmra.mrb[0].mxu0 %v1904
      %v2023 = vpop.f32.mrb[0].mxu0
      %v2024 = vadd.f32 %v1732, %v2023
      %v2025 = vpop.f32.mrb[0].mxu0
      %v2026 = vpop.f32.mrb[0].mxu0
      %v2027 = vadd.f32 %v1735, %v2026
      %v2028 = vpop.f32.mrb[0].mxu0
      %2029 = vmatprep.mubr.bf16.mxu0 0
      %2030 = vmatmul.mubr.bf16.gmra.mrb[0].mxu0 %v1907
      %v2031 = vpop.f32.mrb[0].mxu0
      %v2032 = vadd.f32 %v1740, %v2031
      %v2033 = vpop.f32.mrb[0].mxu0
      %v2034 = vpop.f32.mrb[0].mxu0
      %v2035 = vadd.f32 %v1743, %v2034
      %v2036 = vpop.f32.mrb[0].mxu0
      %2037 = vmatprep.mubr.bf16.mxu0 0
      %2038 = vmatmul.mubr.bf16.gmra.mrb[0].mxu0 %v1910
      %v2039 = vpop.f32.mrb[0].mxu0
      %v2040 = vadd.f32 %v1748, %v2039
      %v2041 = vpop.f32.mrb[0].mxu0
      %v2042 = vpop.f32.mrb[0].mxu0
      %v2043 = vadd.f32 %v1751, %v2042
      %v2044 = vpop.f32.mrb[0].mxu0
      %2045 = vmatprep.mubr.bf16.mxu0 0
      %2046 = vmatmul.mubr.bf16.gmra.mrb[0].mxu0 %v1913
      %v2047 = vpop.f32.mrb[0].mxu0
      %v2048 = vadd.f32 %v1756, %v2047
      %v2049 = vpop.f32.mrb[0].mxu0
      %v2050 = vpop.f32.mrb[0].mxu0
      %v2051 = vadd.f32 %v1759, %v2050
      %v2052 = vpop.f32.mrb[0].mxu0
      %2053 = vmatprep.mubr.bf16.mxu0 0
      %2054 = vmatmul.mubr.bf16.gmra.mrb[0].mxu0 %v1916
      %v2055 = vpop.f32.mrb[0].mxu0
      %v2056 = vadd.f32 %v1764, %v2055
      %v2057 = vpop.f32.mrb[0].mxu0
      %v2058 = vpop.f32.mrb[0].mxu0
      %v2059 = vadd.f32 %v1767, %v2058
      %v2060 = vpop.f32.mrb[0].mxu0
      %2061 = vmatprep.mubr.bf16.mxu0 0
      %2062 = vmatmul.mubr.bf16.gmra.mrb[0].mxu0 %v1919
      %v2063 = vpop.f32.mrb[0].mxu0
      %v2064 = vadd.f32 %v1772, %v2063
      %v2065 = vpop.f32.mrb[0].mxu0
      %v2066 = vpop.f32.mrb[0].mxu0
      %v2067 = vadd.f32 %v1775, %v2066
      %v2068 = vpop.f32.mrb[0].mxu0
      %2069 = vmatprep.mubr.bf16.mxu0 0
      %2070 = vmatmul.mubr.bf16.gmra.mrb[0].mxu0 %v1922
      %v2071 = vpop.f32.mrb[0].mxu0
      %v2072 = vadd.f32 %v1780, %v2071
      %v2073 = vpop.f32.mrb[0].mxu0
      %v2074 = vpop.f32.mrb[0].mxu0
      %v2075 = vadd.f32 %v1783, %v2074
      %v2076 = vpop.f32.mrb[0].mxu0
      %2077 = vmatprep.mubr.bf16.mxu0 0
      %2078 = vmatmul.mubr.bf16.gmra.mrb[0].mxu0 %v1925
      %v2079 = vpop.f32.mrb[0].mxu0
      %v2080 = vadd.f32 %v1788, %v2079
      %v2081 = vpop.f32.mrb[0].mxu0
      %v2082 = vpop.f32.mrb[0].mxu0
      %v2083 = vadd.f32 %v1791, %v2082
      %v2084 = vpop.f32.mrb[0].mxu0
      %2085 = vmatprep.mubr.bf16.mxu0 0
      %2086 = vmatmul.mubr.bf16.gmra.mrb[0].mxu0 %v1928
      %v2087 = vpop.f32.mrb[0].mxu0
      %v2088 = vadd.f32 %v1796, %v2087
      %v2089 = vpop.f32.mrb[0].mxu0
      %v2090 = vpop.f32.mrb[0].mxu0
      %v2091 = vadd.f32 %v1799, %v2090
      %v2092 = vpop.f32.mrb[0].mxu0
      %2093 = vdwg.mxu0
      %v2094 = vld [vmem:[%s1101] sm:$0xe]
      %v2095 = vld [vmem:[%s1101 + $0xc] sm:$0xe]
      %v2096 = vld [vmem:[%s1101 + $0x18] sm:$0xe]
      %v2097 = vld [vmem:[%s1101 + $0x24] sm:$0xe]
      %v2098 = vld [vmem:[%s1101 + $0x30] sm:$0xe]
      %v2099 = vld [vmem:[%s1101 + $0x3c] sm:$0xe]
      %v2100 = vld [vmem:[%s1101 + $0x48] sm:$0xe]
      %v2101 = vld [vmem:[%s1101 + $0x54] sm:$0xe]
      %v2102 = vld [vmem:[%s1101 + $0x60] sm:$0xe]
      %v2103 = vld [vmem:[%s1101 + $0x6c] sm:$0xe]
      %v2104 = vld [vmem:[%s1101 + $0x78] sm:$0xe]
      %v2105 = vld [vmem:[%s1101 + $0x84] sm:$0xe]
      %v2106 = vld [vmem:[%s1101 + $0x90] sm:$0xe]
      %v2107 = vld [vmem:[%s1101 + $0x9c] sm:$0xe]
      %v2108 = vld [vmem:[%s1101 + $0xa8] sm:$0xe]
      %v2109 = vld [vmem:[%s1101 + $0xb4] sm:$0xe]
      %vm2142 = vcmask 1042432
      %vm2143 = vcmask 1046532
      %vm2144 = vmor %vm2142, %vm2143
      %v2145 = vrot.slane %v2094, 5
      %v2146 = vrot.slane %v2145, 4
      %v2147 = vrot.slane %v1103, 5
      %v2148 = vsel %vm2144, %v2146, %v2147
      %v2149 = vrot.slane %v2147, 4
      %v2150 = vrot.slane %v1135, 5
      %v2151 = vsel %vm2144, %v2149, %v2150
      %v2152 = vrot.slane %v2095, 5
      %v2153 = vrot.slane %v2152, 4
      %v2154 = vrot.slane %v1105, 5
      %v2155 = vsel %vm2144, %v2153, %v2154
      %v2156 = vrot.slane %v2154, 4
      %v2157 = vrot.slane %v1136, 5
      %v2158 = vsel %vm2144, %v2156, %v2157
      %v2159 = vrot.slane %v2096, 5
      %v2160 = vrot.slane %v2159, 4
      %v2161 = vrot.slane %v1107, 5
      %v2162 = vsel %vm2144, %v2160, %v2161
      %v2163 = vrot.slane %v2161, 4
      %v2164 = vrot.slane %v1137, 5
      %v2165 = vsel %vm2144, %v2163, %v2164
      %v2166 = vrot.slane %v2097, 5
      %v2167 = vrot.slane %v2166, 4
      %v2168 = vrot.slane %v1109, 5
      %v2169 = vsel %vm2144, %v2167, %v2168
      %v2170 = vrot.slane %v2168, 4
      %v2171 = vrot.slane %v1138, 5
      %v2172 = vsel %vm2144, %v2170, %v2171
      %v2173 = vrot.slane %v2098, 5
      %v2174 = vrot.slane %v2173, 4
      %v2175 = vrot.slane %v1111, 5
      %v2176 = vsel %vm2144, %v2174, %v2175
      %v2177 = vrot.slane %v2175, 4
      %v2178 = vrot.slane %v1139, 5
      %v2179 = vsel %vm2144, %v2177, %v2178
      %v2180 = vrot.slane %v2099, 5
      %v2181 = vrot.slane %v2180, 4
      %v2182 = vrot.slane %v1113, 5
      %v2183 = vsel %vm2144, %v2181, %v2182
      %v2184 = vrot.slane %v2182, 4
      %v2185 = vrot.slane %v1140, 5
      %v2186 = vsel %vm2144, %v2184, %v2185
      %v2187 = vrot.slane %v2100, 5
      %v2188 = vrot.slane %v2187, 4
      %v2189 = vrot.slane %v1115, 5
      %v2190 = vsel %vm2144, %v2188, %v2189
      %v2191 = vrot.slane %v2189, 4
      %v2192 = vrot.slane %v1141, 5
      %v2193 = vsel %vm2144, %v2191, %v2192
      %v2194 = vrot.slane %v2101, 5
      %v2195 = vrot.slane %v2194, 4
      %v2196 = vrot.slane %v1117, 5
      %v2197 = vsel %vm2144, %v2195, %v2196
      %v2198 = vrot.slane %v2196, 4
      %v2199 = vrot.slane %v1142, 5
      %v2200 = vsel %vm2144, %v2198, %v2199
      %v2201 = vrot.slane %v2102, 5
      %v2202 = vrot.slane %v2201, 4
      %v2203 = vrot.slane %v1119, 5
      %v2204 = vsel %vm2144, %v2202, %v2203
      %v2205 = vrot.slane %v2203, 4
      %v2206 = vrot.slane %v1143, 5
      %v2207 = vsel %vm2144, %v2205, %v2206
      %v2208 = vrot.slane %v2103, 5
      %v2209 = vrot.slane %v2208, 4
      %v2210 = vrot.slane %v1121, 5
      %v2211 = vsel %vm2144, %v2209, %v2210
      %v2212 = vrot.slane %v2210, 4
      %v2213 = vrot.slane %v1144, 5
      %v2214 = vsel %vm2144, %v2212, %v2213
      %v2215 = vrot.slane %v2104, 5
      %v2216 = vrot.slane %v2215, 4
      %v2217 = vrot.slane %v1123, 5
      %v2218 = vsel %vm2144, %v2216, %v2217
      %v2219 = vrot.slane %v2217, 4
      %v2220 = vrot.slane %v1145, 5
      %v2221 = vsel %vm2144, %v2219, %v2220
      %v2222 = vrot.slane %v2105, 5
      %v2223 = vrot.slane %v2222, 4
      %v2224 = vrot.slane %v1125, 5
      %v2225 = vsel %vm2144, %v2223, %v2224
      %v2226 = vrot.slane %v2224, 4
      %v2227 = vrot.slane %v1146, 5
      %v2228 = vsel %vm2144, %v2226, %v2227
      %v2229 = vrot.slane %v2106, 5
      %v2230 = vrot.slane %v2229, 4
      %v2231 = vrot.slane %v1127, 5
      %v2232 = vsel %vm2144, %v2230, %v2231
      %v2233 = vrot.slane %v2231, 4
      %v2234 = vrot.slane %v1147, 5
      %v2235 = vsel %vm2144, %v2233, %v2234
      %v2236 = vrot.slane %v2107, 5
      %v2237 = vrot.slane %v2236, 4
      %v2238 = vrot.slane %v1129, 5
      %v2239 = vsel %vm2144, %v2237, %v2238
      %v2240 = vrot.slane %v2238, 4
      %v2241 = vrot.slane %v1148, 5
      %v2242 = vsel %vm2144, %v2240, %v2241
      %v2243 = vrot.slane %v2108, 5
      %v2244 = vrot.slane %v2243, 4
      %v2245 = vrot.slane %v1131, 5
      %v2246 = vsel %vm2144, %v2244, %v2245
      %v2247 = vrot.slane %v2245, 4
      %v2248 = vrot.slane %v1149, 5
      %v2249 = vsel %vm2144, %v2247, %v2248
      %v2250 = vrot.slane %v2109, 5
      %v2251 = vrot.slane %v2250, 4
      %v2252 = vrot.slane %v1133, 5
      %v2253 = vsel %vm2144, %v2251, %v2252
      %v2254 = vrot.slane %v2252, 4
      %v2255 = vrot.slane %v1150, 5
      %v2256 = vsel %vm2144, %v2254, %v2255
      %s2257 = scalar_lea.vmem %s3, 8
      %v2258 = vld [vmem:[%s2257] sm:$0xf]
      %v2259 = vunpack.c.l.b16 %v2148
      %v2260 = vunpack.c.l.b16 %v2151
      %v2261 = vunpack.c.l.b16 %v2155
      %v2262 = vunpack.c.l.b16 %v2158
      %v2263 = vunpack.c.l.b16 %v2162
      %v2264 = vunpack.c.l.b16 %v2165
      %v2265 = vunpack.c.l.b16 %v2169
      %v2266 = vunpack.c.l.b16 %v2172
      %v2267 = vunpack.c.l.b16 %v2176
      %v2268 = vunpack.c.l.b16 %v2179
      %v2269 = vunpack.c.l.b16 %v2183
      %v2270 = vunpack.c.l.b16 %v2186
      %v2271 = vunpack.c.l.b16 %v2190
      %v2272 = vunpack.c.l.b16 %v2193
      %v2273 = vunpack.c.l.b16 %v2197
      %v2274 = vunpack.c.l.b16 %v2200
      %v2275 = vunpack.c.l.b16 %v2204
      %v2276 = vunpack.c.l.b16 %v2207
      %v2277 = vunpack.c.l.b16 %v2211
      %v2278 = vunpack.c.l.b16 %v2214
      %v2279 = vunpack.c.l.b16 %v2218
      %v2280 = vunpack.c.l.b16 %v2221
      %v2281 = vunpack.c.l.b16 %v2225
      %v2282 = vunpack.c.l.b16 %v2228
      %v2283 = vunpack.c.l.b16 %v2232
      %v2284 = vunpack.c.l.b16 %v2235
      %v2285 = vunpack.c.l.b16 %v2239
      %v2286 = vunpack.c.l.b16 %v2242
      %v2287 = vunpack.c.l.b16 %v2246
      %v2288 = vunpack.c.l.b16 %v2249
      %v2289 = vunpack.c.l.b16 %v2253
      %v2290 = vunpack.c.l.b16 %v2256
      %v2291 = vpack.c.b16 %v2260, %v2259
      %v2292 = vpack.c.b16 %v2262, %v2261
      %v2293 = vpack.c.b16 %v2264, %v2263
      %v2294 = vpack.c.b16 %v2266, %v2265
      %v2295 = vpack.c.b16 %v2268, %v2267
      %v2296 = vpack.c.b16 %v2270, %v2269
      %v2297 = vpack.c.b16 %v2272, %v2271
      %v2298 = vpack.c.b16 %v2274, %v2273
      %v2299 = vpack.c.b16 %v2276, %v2275
      %v2300 = vpack.c.b16 %v2278, %v2277
      %v2301 = vpack.c.b16 %v2280, %v2279
      %v2302 = vpack.c.b16 %v2282, %v2281
      %v2303 = vpack.c.b16 %v2284, %v2283
      %v2304 = vpack.c.b16 %v2286, %v2285
      %v2305 = vpack.c.b16 %v2288, %v2287
      %v2306 = vpack.c.b16 %v2290, %v2289
      %v2308 = vsel %vm1588, %v2291, 0
      %v2311 = vsel %vm1588, %v2292, 0
      %v2314 = vsel %vm1588, %v2293, 0
      %v2317 = vsel %vm1588, %v2294, 0
      %v2320 = vsel %vm1588, %v2295, 0
      %v2323 = vsel %vm1588, %v2296, 0
      %v2326 = vsel %vm1588, %v2297, 0
      %v2329 = vsel %vm1588, %v2298, 0
      %v2332 = vsel %vm1588, %v2299, 0
      %v2335 = vsel %vm1588, %v2300, 0
      %v2338 = vsel %vm1588, %v2301, 0
      %v2341 = vsel %vm1588, %v2302, 0
      %v2344 = vsel %vm1588, %v2303, 0
      %v2347 = vsel %vm1588, %v2304, 0
      %v2350 = vsel %vm1588, %v2305, 0
      %v2353 = vsel %vm1588, %v2306, 0
      %v2356 = vsel %vm1637, %v2258, 0
      %2358 = vmatprep.subr.bf16.mxu0 0
      %2359 = vmatpush1.bf16.msra.mxu0 %v2356
      %2360 = vmatprep.subr.bf16.mxu0 0
      %2361 = vmatpush1.bf16.msra.mxu0 0
      %2362 = vmatprep.subr.bf16.mxu0 0
      %2363 = vmatpush1.bf16.msra.mxu0 0
      %2364 = vmatprep.subr.bf16.mxu0 0
      %2365 = vmatpush1.bf16.msra.mxu0 0
      %2366 = vmatprep.subr.bf16.mxu0 0
      %2367 = vmatpush1.bf16.msra.mxu0 0
      %2368 = vmatprep.subr.bf16.mxu0 0
      %2369 = vmatpush1.bf16.msra.mxu0 0
      %2370 = vmatprep.subr.bf16.mxu0 0
      %2371 = vmatpush1.bf16.msra.mxu0 0
      %2372 = vmatprep.subr.bf16.mxu0 0
      %2373 = vmatpush1.bf16.msra.mxu0 0
      %2374 = vmatprep.subr.bf16.mxu0 0
      %2375 = vmatpush1.bf16.msra.mxu0 0
      %2376 = vmatprep.subr.bf16.mxu0 0
      %2377 = vmatpush1.bf16.msra.mxu0 0
      %2378 = vmatprep.subr.bf16.mxu0 0
      %2379 = vmatpush1.bf16.msra.mxu0 0
      %2380 = vmatprep.subr.bf16.mxu0 0
      %2381 = vmatpush1.bf16.msra.mxu0 0
      %2382 = vmatprep.subr.bf16.mxu0 0
      %2383 = vmatpush1.bf16.msra.mxu0 0
      %2384 = vmatprep.subr.bf16.mxu0 0
      %2385 = vmatpush1.bf16.msra.mxu0 0
      %2386 = vmatprep.subr.bf16.mxu0 0
      %2387 = vmatpush1.bf16.msra.mxu0 0
      %2388 = vmatprep.subr.bf16.mxu0 0
      %2389 = vmatpush1.bf16.msra.mxu0 0
      %2390 = vmatprep.mubr.bf16.mxu0 0
      %2391 = vmatmul.mubr.bf16.gmra.mrb[0].mxu0 %v2308
      %v2392 = vpop.f32.mrb[0].mxu0
      %v2393 = vadd.f32 0.0, %v2392
      %v2394 = vpop.f32.mrb[0].mxu0
      %v2395 = vpop.f32.mrb[0].mxu0
      %v2396 = vadd.f32 0.0, %v2395
      %v2397 = vpop.f32.mrb[0].mxu0
      %2398 = vmatprep.mubr.bf16.mxu0 0
      %2399 = vmatmul.mubr.bf16.gmra.mrb[0].mxu0 %v2311
      %v2400 = vpop.f32.mrb[0].mxu0
      %v2401 = vadd.f32 0.0, %v2400
      %v2402 = vpop.f32.mrb[0].mxu0
      %v2403 = vpop.f32.mrb[0].mxu0
      %v2404 = vadd.f32 0.0, %v2403
      %v2405 = vpop.f32.mrb[0].mxu0
      %2406 = vmatprep.mubr.bf16.mxu0 0
      %2407 = vmatmul.mubr.bf16.gmra.mrb[0].mxu0 %v2314
      %v2408 = vpop.f32.mrb[0].mxu0
      %v2409 = vadd.f32 0.0, %v2408
      %v2410 = vpop.f32.mrb[0].mxu0
      %v2411 = vpop.f32.mrb[0].mxu0
      %v2412 = vadd.f32 0.0, %v2411
      %v2413 = vpop.f32.mrb[0].mxu0
      %2414 = vmatprep.mubr.bf16.mxu0 0
      %2415 = vmatmul.mubr.bf16.gmra.mrb[0].mxu0 %v2317
      %v2416 = vpop.f32.mrb[0].mxu0
      %v2417 = vadd.f32 0.0, %v2416
      %v2418 = vpop.f32.mrb[0].mxu0
      %v2419 = vpop.f32.mrb[0].mxu0
      %v2420 = vadd.f32 0.0, %v2419
      %v2421 = vpop.f32.mrb[0].mxu0
      %2422 = vmatprep.mubr.bf16.mxu0 0
      %2423 = vmatmul.mubr.bf16.gmra.mrb[0].mxu0 %v2320
      %v2424 = vpop.f32.mrb[0].mxu0
      %v2425 = vadd.f32 0.0, %v2424
      %v2426 = vpop.f32.mrb[0].mxu0
      %v2427 = vpop.f32.mrb[0].mxu0
      %v2428 = vadd.f32 0.0, %v2427
      %v2429 = vpop.f32.mrb[0].mxu0
      %2430 = vmatprep.mubr.bf16.mxu0 0
      %2431 = vmatmul.mubr.bf16.gmra.mrb[0].mxu0 %v2323
      %v2432 = vpop.f32.mrb[0].mxu0
      %v2433 = vadd.f32 0.0, %v2432
      %v2434 = vpop.f32.mrb[0].mxu0
      %v2435 = vpop.f32.mrb[0].mxu0
      %v2436 = vadd.f32 0.0, %v2435
      %v2437 = vpop.f32.mrb[0].mxu0
      %2438 = vmatprep.mubr.bf16.mxu0 0
      %2439 = vmatmul.mubr.bf16.gmra.mrb[0].mxu0 %v2326
      %v2440 = vpop.f32.mrb[0].mxu0
      %v2441 = vadd.f32 0.0, %v2440
      %v2442 = vpop.f32.mrb[0].mxu0
      %v2443 = vpop.f32.mrb[0].mxu0
      %v2444 = vadd.f32 0.0, %v2443
      %v2445 = vpop.f32.mrb[0].mxu0
      %2446 = vmatprep.mubr.bf16.mxu0 0
      %2447 = vmatmul.mubr.bf16.gmra.mrb[0].mxu0 %v2329
      %v2448 = vpop.f32.mrb[0].mxu0
      %v2449 = vadd.f32 0.0, %v2448
      %v2450 = vpop.f32.mrb[0].mxu0
      %v2451 = vpop.f32.mrb[0].mxu0
      %v2452 = vadd.f32 0.0, %v2451
      %v2453 = vpop.f32.mrb[0].mxu0
      %2454 = vmatprep.mubr.bf16.mxu0 0
      %2455 = vmatmul.mubr.bf16.gmra.mrb[0].mxu0 %v2332
      %v2456 = vpop.f32.mrb[0].mxu0
      %v2457 = vadd.f32 0.0, %v2456
      %v2458 = vpop.f32.mrb[0].mxu0
      %v2459 = vpop.f32.mrb[0].mxu0
      %v2460 = vadd.f32 0.0, %v2459
      %v2461 = vpop.f32.mrb[0].mxu0
      %2462 = vmatprep.mubr.bf16.mxu0 0
      %2463 = vmatmul.mubr.bf16.gmra.mrb[0].mxu0 %v2335
      %v2464 = vpop.f32.mrb[0].mxu0
      %v2465 = vadd.f32 0.0, %v2464
      %v2466 = vpop.f32.mrb[0].mxu0
      %v2467 = vpop.f32.mrb[0].mxu0
      %v2468 = vadd.f32 0.0, %v2467
      %v2469 = vpop.f32.mrb[0].mxu0
      %2470 = vmatprep.mubr.bf16.mxu0 0
      %2471 = vmatmul.mubr.bf16.gmra.mrb[0].mxu0 %v2338
      %v2472 = vpop.f32.mrb[0].mxu0
      %v2473 = vadd.f32 0.0, %v2472
      %v2474 = vpop.f32.mrb[0].mxu0
      %v2475 = vpop.f32.mrb[0].mxu0
      %v2476 = vadd.f32 0.0, %v2475
      %v2477 = vpop.f32.mrb[0].mxu0
      %2478 = vmatprep.mubr.bf16.mxu0 0
      %2479 = vmatmul.mubr.bf16.gmra.mrb[0].mxu0 %v2341
      %v2480 = vpop.f32.mrb[0].mxu0
      %v2481 = vadd.f32 0.0, %v2480
      %v2482 = vpop.f32.mrb[0].mxu0
      %v2483 = vpop.f32.mrb[0].mxu0
      %v2484 = vadd.f32 0.0, %v2483
      %v2485 = vpop.f32.mrb[0].mxu0
      %2486 = vmatprep.mubr.bf16.mxu0 0
      %2487 = vmatmul.mubr.bf16.gmra.mrb[0].mxu0 %v2344
      %v2488 = vpop.f32.mrb[0].mxu0
      %v2489 = vadd.f32 0.0, %v2488
      %v2490 = vpop.f32.mrb[0].mxu0
      %v2491 = vpop.f32.mrb[0].mxu0
      %v2492 = vadd.f32 0.0, %v2491
      %v2493 = vpop.f32.mrb[0].mxu0
      %2494 = vmatprep.mubr.bf16.mxu0 0
      %2495 = vmatmul.mubr.bf16.gmra.mrb[0].mxu0 %v2347
      %v2496 = vpop.f32.mrb[0].mxu0
      %v2497 = vadd.f32 0.0, %v2496
      %v2498 = vpop.f32.mrb[0].mxu0
      %v2499 = vpop.f32.mrb[0].mxu0
      %v2500 = vadd.f32 0.0, %v2499
      %v2501 = vpop.f32.mrb[0].mxu0
      %2502 = vmatprep.mubr.bf16.mxu0 0
      %2503 = vmatmul.mubr.bf16.gmra.mrb[0].mxu0 %v2350
      %v2504 = vpop.f32.mrb[0].mxu0
      %v2505 = vadd.f32 0.0, %v2504
      %v2506 = vpop.f32.mrb[0].mxu0
      %v2507 = vpop.f32.mrb[0].mxu0
      %v2508 = vadd.f32 0.0, %v2507
      %v2509 = vpop.f32.mrb[0].mxu0
      %2510 = vmatprep.mubr.bf16.mxu0 0
      %2511 = vmatmul.mubr.bf16.gmra.mrb[0].mxu0 %v2353
      %v2512 = vpop.f32.mrb[0].mxu0
      %v2513 = vadd.f32 0.0, %v2512
      %v2514 = vpop.f32.mrb[0].mxu0
      %v2515 = vpop.f32.mrb[0].mxu0
      %v2516 = vadd.f32 0.0, %v2515
      %v2517 = vpop.f32.mrb[0].mxu0
      %2518 = vdwg.mxu0
      %v2519 = vadd.f32 %v1968, %v2393
      %v2520 = vadd.f32 %v1971, %v2396
      %v2521 = vadd.f32 %v1976, %v2401
      %v2522 = vadd.f32 %v1979, %v2404
      %v2523 = vadd.f32 %v1984, %v2409
      %v2524 = vadd.f32 %v1987, %v2412
      %v2525 = vadd.f32 %v1992, %v2417
      %v2526 = vadd.f32 %v1995, %v2420
      %v2527 = vadd.f32 %v2000, %v2425
      %v2528 = vadd.f32 %v2003, %v2428
      %v2529 = vadd.f32 %v2008, %v2433
      %v2530 = vadd.f32 %v2011, %v2436
      %v2531 = vadd.f32 %v2016, %v2441
      %v2532 = vadd.f32 %v2019, %v2444
      %v2533 = vadd.f32 %v2024, %v2449
      %v2534 = vadd.f32 %v2027, %v2452
      %v2535 = vadd.f32 %v2032, %v2457
      %v2536 = vadd.f32 %v2035, %v2460
      %v2537 = vadd.f32 %v2040, %v2465
      %v2538 = vadd.f32 %v2043, %v2468
      %v2539 = vadd.f32 %v2048, %v2473
      %v2540 = vadd.f32 %v2051, %v2476
      %v2541 = vadd.f32 %v2056, %v2481
      %v2542 = vadd.f32 %v2059, %v2484
      %v2543 = vadd.f32 %v2064, %v2489
      %v2544 = vadd.f32 %v2067, %v2492
      %v2545 = vadd.f32 %v2072, %v2497
      %v2546 = vadd.f32 %v2075, %v2500
      %v2547 = vadd.f32 %v2080, %v2505
      %v2548 = vadd.f32 %v2083, %v2508
      %v2549 = vadd.f32 %v2088, %v2513
      %v2550 = vadd.f32 %v2091, %v2516
      %s2551 = sadd.s32 0, 1
      %s2552 = smul.u32 %s2551, 3
      %s2553 = smul.addr %s2552, 4
      %s2554 = scalar_lea.vmem [#allocation2], %s2553
      %v2555 = vld [vmem:[%s2554] sm:$0xf]
      %v2556 = vld [vmem:[%s2554 + $0x4] sm:$0xf]
      %v2557 = vld [vmem:[%s2554 + $0xc] sm:$0xf]
      %v2558 = vld [vmem:[%s2554 + $0x10] sm:$0xf]
      %v2559 = vld [vmem:[%s2554 + $0x18] sm:$0xf]
      %v2560 = vld [vmem:[%s2554 + $0x1c] sm:$0xf]
      %v2561 = vld [vmem:[%s2554 + $0x24] sm:$0xf]
      %v2562 = vld [vmem:[%s2554 + $0x28] sm:$0xf]
      %v2563 = vld [vmem:[%s2554 + $0x30] sm:$0xf]
      %v2564 = vld [vmem:[%s2554 + $0x34] sm:$0xf]
      %v2565 = vld [vmem:[%s2554 + $0x3c] sm:$0xf]
      %v2566 = vld [vmem:[%s2554 + $0x40] sm:$0xf]
      %v2567 = vld [vmem:[%s2554 + $0x48] sm:$0xf]
      %v2568 = vld [vmem:[%s2554 + $0x4c] sm:$0xf]
      %v2569 = vld [vmem:[%s2554 + $0x54] sm:$0xf]
      %v2570 = vld [vmem:[%s2554 + $0x58] sm:$0xf]
      %v2571 = vld [vmem:[%s2554 + $0x60] sm:$0xf]
      %v2572 = vld [vmem:[%s2554 + $0x64] sm:$0xf]
      %v2573 = vld [vmem:[%s2554 + $0x6c] sm:$0xf]
      %v2574 = vld [vmem:[%s2554 + $0x70] sm:$0xf]
      %v2575 = vld [vmem:[%s2554 + $0x78] sm:$0xf]
      %v2576 = vld [vmem:[%s2554 + $0x7c] sm:$0xf]
      %v2577 = vld [vmem:[%s2554 + $0x84] sm:$0xf]
      %v2578 = vld [vmem:[%s2554 + $0x88] sm:$0xf]
      %v2579 = vld [vmem:[%s2554 + $0x90] sm:$0xf]
      %v2580 = vld [vmem:[%s2554 + $0x94] sm:$0xf]
      %v2581 = vld [vmem:[%s2554 + $0x9c] sm:$0xf]
      %v2582 = vld [vmem:[%s2554 + $0xa0] sm:$0xf]
      %v2583 = vld [vmem:[%s2554 + $0xa8] sm:$0xf]
      %v2584 = vld [vmem:[%s2554 + $0xac] sm:$0xf]
      %v2585 = vld [vmem:[%s2554 + $0xb4] sm:$0xf]
      %v2586 = vld [vmem:[%s2554 + $0xb8] sm:$0xf]
      %s2587 = scalar_lea.vmem %s3, 12
      %v2588 = vld [vmem:[%s2587] sm:$0xf]
      %v2621 = vunpack.c.l.b16 %v2555
      %v2622 = vunpack.c.l.b16 %v2556
      %v2623 = vunpack.c.l.b16 %v2557
      %v2624 = vunpack.c.l.b16 %v2558
      %v2625 = vunpack.c.l.b16 %v2559
      %v2626 = vunpack.c.l.b16 %v2560
      %v2627 = vunpack.c.l.b16 %v2561
      %v2628 = vunpack.c.l.b16 %v2562
      %v2629 = vunpack.c.l.b16 %v2563
      %v2630 = vunpack.c.l.b16 %v2564
      %v2631 = vunpack.c.l.b16 %v2565
      %v2632 = vunpack.c.l.b16 %v2566
      %v2633 = vunpack.c.l.b16 %v2567
      %v2634 = vunpack.c.l.b16 %v2568
      %v2635 = vunpack.c.l.b16 %v2569
      %v2636 = vunpack.c.l.b16 %v2570
      %v2637 = vunpack.c.l.b16 %v2571
      %v2638 = vunpack.c.l.b16 %v2572
      %v2639 = vunpack.c.l.b16 %v2573
      %v2640 = vunpack.c.l.b16 %v2574
      %v2641 = vunpack.c.l.b16 %v2575
      %v2642 = vunpack.c.l.b16 %v2576
      %v2643 = vunpack.c.l.b16 %v2577
      %v2644 = vunpack.c.l.b16 %v2578
      %v2645 = vunpack.c.l.b16 %v2579
      %v2646 = vunpack.c.l.b16 %v2580
      %v2647 = vunpack.c.l.b16 %v2581
      %v2648 = vunpack.c.l.b16 %v2582
      %v2649 = vunpack.c.l.b16 %v2583
      %v2650 = vunpack.c.l.b16 %v2584
      %v2651 = vunpack.c.l.b16 %v2585
      %v2652 = vunpack.c.l.b16 %v2586
      %v2653 = vpack.c.b16 %v2622, %v2621
      %v2654 = vpack.c.b16 %v2624, %v2623
      %v2655 = vpack.c.b16 %v2626, %v2625
      %v2656 = vpack.c.b16 %v2628, %v2627
      %v2657 = vpack.c.b16 %v2630, %v2629
      %v2658 = vpack.c.b16 %v2632, %v2631
      %v2659 = vpack.c.b16 %v2634, %v2633
      %v2660 = vpack.c.b16 %v2636, %v2635
      %v2661 = vpack.c.b16 %v2638, %v2637
      %v2662 = vpack.c.b16 %v2640, %v2639
      %v2663 = vpack.c.b16 %v2642, %v2641
      %v2664 = vpack.c.b16 %v2644, %v2643
      %v2665 = vpack.c.b16 %v2646, %v2645
      %v2666 = vpack.c.b16 %v2648, %v2647
      %v2667 = vpack.c.b16 %v2650, %v2649
      %v2668 = vpack.c.b16 %v2652, %v2651
      %v2670 = vsel %vm1588, %v2653, 0
      %v2673 = vsel %vm1588, %v2654, 0
      %v2676 = vsel %vm1588, %v2655, 0
      %v2679 = vsel %vm1588, %v2656, 0
      %v2682 = vsel %vm1588, %v2657, 0
      %v2685 = vsel %vm1588, %v2658, 0
      %v2688 = vsel %vm1588, %v2659, 0
      %v2691 = vsel %vm1588, %v2660, 0
      %v2694 = vsel %vm1588, %v2661, 0
      %v2697 = vsel %vm1588, %v2662, 0
      %v2700 = vsel %vm1588, %v2663, 0
      %v2703 = vsel %vm1588, %v2664, 0
      %v2706 = vsel %vm1588, %v2665, 0
      %v2709 = vsel %vm1588, %v2666, 0
      %v2712 = vsel %vm1588, %v2667, 0
      %v2715 = vsel %vm1588, %v2668, 0
      %v2718 = vsel %vm1637, %v2588, 0
      %2720 = vmatprep.subr.bf16.mxu0 0
      %2721 = vmatpush1.bf16.msra.mxu0 %v2718
      %2722 = vmatprep.subr.bf16.mxu0 0
      %2723 = vmatpush1.bf16.msra.mxu0 0
      %2724 = vmatprep.subr.bf16.mxu0 0
      %2725 = vmatpush1.bf16.msra.mxu0 0
      %2726 = vmatprep.subr.bf16.mxu0 0
      %2727 = vmatpush1.bf16.msra.mxu0 0
      %2728 = vmatprep.subr.bf16.mxu0 0
      %2729 = vmatpush1.bf16.msra.mxu0 0
      %2730 = vmatprep.subr.bf16.mxu0 0
      %2731 = vmatpush1.bf16.msra.mxu0 0
      %2732 = vmatprep.subr.bf16.mxu0 0
      %2733 = vmatpush1.bf16.msra.mxu0 0
      %2734 = vmatprep.subr.bf16.mxu0 0
      %2735 = vmatpush1.bf16.msra.mxu0 0
      %2736 = vmatprep.subr.bf16.mxu0 0
      %2737 = vmatpush1.bf16.msra.mxu0 0
      %2738 = vmatprep.subr.bf16.mxu0 0
      %2739 = vmatpush1.bf16.msra.mxu0 0
      %2740 = vmatprep.subr.bf16.mxu0 0
      %2741 = vmatpush1.bf16.msra.mxu0 0
      %2742 = vmatprep.subr.bf16.mxu0 0
      %2743 = vmatpush1.bf16.msra.mxu0 0
      %2744 = vmatprep.subr.bf16.mxu0 0
      %2745 = vmatpush1.bf16.msra.mxu0 0
      %2746 = vmatprep.subr.bf16.mxu0 0
      %2747 = vmatpush1.bf16.msra.mxu0 0
      %2748 = vmatprep.subr.bf16.mxu0 0
      %2749 = vmatpush1.bf16.msra.mxu0 0
      %2750 = vmatprep.subr.bf16.mxu0 0
      %2751 = vmatpush1.bf16.msra.mxu0 0
      %2752 = vmatprep.mubr.bf16.mxu0 0
      %2753 = vmatmul.mubr.bf16.gmra.mrb[0].mxu0 %v2670
      %v2754 = vpop.f32.mrb[0].mxu0
      %v2755 = vadd.f32 0.0, %v2754
      %v2756 = vpop.f32.mrb[0].mxu0
      %v2757 = vpop.f32.mrb[0].mxu0
      %v2758 = vadd.f32 0.0, %v2757
      %v2759 = vpop.f32.mrb[0].mxu0
      %2760 = vmatprep.mubr.bf16.mxu0 0
      %2761 = vmatmul.mubr.bf16.gmra.mrb[0].mxu0 %v2673
      %v2762 = vpop.f32.mrb[0].mxu0
      %v2763 = vadd.f32 0.0, %v2762
      %v2764 = vpop.f32.mrb[0].mxu0
      %v2765 = vpop.f32.mrb[0].mxu0
      %v2766 = vadd.f32 0.0, %v2765
      %v2767 = vpop.f32.mrb[0].mxu0
      %2768 = vmatprep.mubr.bf16.mxu0 0
      %2769 = vmatmul.mubr.bf16.gmra.mrb[0].mxu0 %v2676
      %v2770 = vpop.f32.mrb[0].mxu0
      %v2771 = vadd.f32 0.0, %v2770
      %v2772 = vpop.f32.mrb[0].mxu0
      %v2773 = vpop.f32.mrb[0].mxu0
      %v2774 = vadd.f32 0.0, %v2773
      %v2775 = vpop.f32.mrb[0].mxu0
      %2776 = vmatprep.mubr.bf16.mxu0 0
      %2777 = vmatmul.mubr.bf16.gmra.mrb[0].mxu0 %v2679
      %v2778 = vpop.f32.mrb[0].mxu0
      %v2779 = vadd.f32 0.0, %v2778
      %v2780 = vpop.f32.mrb[0].mxu0
      %v2781 = vpop.f32.mrb[0].mxu0
      %v2782 = vadd.f32 0.0, %v2781
      %v2783 = vpop.f32.mrb[0].mxu0
      %2784 = vmatprep.mubr.bf16.mxu0 0
      %2785 = vmatmul.mubr.bf16.gmra.mrb[0].mxu0 %v2682
      %v2786 = vpop.f32.mrb[0].mxu0
      %v2787 = vadd.f32 0.0, %v2786
      %v2788 = vpop.f32.mrb[0].mxu0
      %v2789 = vpop.f32.mrb[0].mxu0
      %v2790 = vadd.f32 0.0, %v2789
      %v2791 = vpop.f32.mrb[0].mxu0
      %2792 = vmatprep.mubr.bf16.mxu0 0
      %2793 = vmatmul.mubr.bf16.gmra.mrb[0].mxu0 %v2685
      %v2794 = vpop.f32.mrb[0].mxu0
      %v2795 = vadd.f32 0.0, %v2794
      %v2796 = vpop.f32.mrb[0].mxu0
      %v2797 = vpop.f32.mrb[0].mxu0
      %v2798 = vadd.f32 0.0, %v2797
      %v2799 = vpop.f32.mrb[0].mxu0
      %2800 = vmatprep.mubr.bf16.mxu0 0
      %2801 = vmatmul.mubr.bf16.gmra.mrb[0].mxu0 %v2688
      %v2802 = vpop.f32.mrb[0].mxu0
      %v2803 = vadd.f32 0.0, %v2802
      %v2804 = vpop.f32.mrb[0].mxu0
      %v2805 = vpop.f32.mrb[0].mxu0
      %v2806 = vadd.f32 0.0, %v2805
      %v2807 = vpop.f32.mrb[0].mxu0
      %2808 = vmatprep.mubr.bf16.mxu0 0
      %2809 = vmatmul.mubr.bf16.gmra.mrb[0].mxu0 %v2691
      %v2810 = vpop.f32.mrb[0].mxu0
      %v2811 = vadd.f32 0.0, %v2810
      %v2812 = vpop.f32.mrb[0].mxu0
      %v2813 = vpop.f32.mrb[0].mxu0
      %v2814 = vadd.f32 0.0, %v2813
      %v2815 = vpop.f32.mrb[0].mxu0
      %2816 = vmatprep.mubr.bf16.mxu0 0
      %2817 = vmatmul.mubr.bf16.gmra.mrb[0].mxu0 %v2694
      %v2818 = vpop.f32.mrb[0].mxu0
      %v2819 = vadd.f32 0.0, %v2818
      %v2820 = vpop.f32.mrb[0].mxu0
      %v2821 = vpop.f32.mrb[0].mxu0
      %v2822 = vadd.f32 0.0, %v2821
      %v2823 = vpop.f32.mrb[0].mxu0
      %2824 = vmatprep.mubr.bf16.mxu0 0
      %2825 = vmatmul.mubr.bf16.gmra.mrb[0].mxu0 %v2697
      %v2826 = vpop.f32.mrb[0].mxu0
      %v2827 = vadd.f32 0.0, %v2826
      %v2828 = vpop.f32.mrb[0].mxu0
      %v2829 = vpop.f32.mrb[0].mxu0
      %v2830 = vadd.f32 0.0, %v2829
      %v2831 = vpop.f32.mrb[0].mxu0
      %2832 = vmatprep.mubr.bf16.mxu0 0
      %2833 = vmatmul.mubr.bf16.gmra.mrb[0].mxu0 %v2700
      %v2834 = vpop.f32.mrb[0].mxu0
      %v2835 = vadd.f32 0.0, %v2834
      %v2836 = vpop.f32.mrb[0].mxu0
      %v2837 = vpop.f32.mrb[0].mxu0
      %v2838 = vadd.f32 0.0, %v2837
      %v2839 = vpop.f32.mrb[0].mxu0
      %2840 = vmatprep.mubr.bf16.mxu0 0
      %2841 = vmatmul.mubr.bf16.gmra.mrb[0].mxu0 %v2703
      %v2842 = vpop.f32.mrb[0].mxu0
      %v2843 = vadd.f32 0.0, %v2842
      %v2844 = vpop.f32.mrb[0].mxu0
      %v2845 = vpop.f32.mrb[0].mxu0
      %v2846 = vadd.f32 0.0, %v2845
      %v2847 = vpop.f32.mrb[0].mxu0
      %2848 = vmatprep.mubr.bf16.mxu0 0
      %2849 = vmatmul.mubr.bf16.gmra.mrb[0].mxu0 %v2706
      %v2850 = vpop.f32.mrb[0].mxu0
      %v2851 = vadd.f32 0.0, %v2850
      %v2852 = vpop.f32.mrb[0].mxu0
      %v2853 = vpop.f32.mrb[0].mxu0
      %v2854 = vadd.f32 0.0, %v2853
      %v2855 = vpop.f32.mrb[0].mxu0
      %2856 = vmatprep.mubr.bf16.mxu0 0
      %2857 = vmatmul.mubr.bf16.gmra.mrb[0].mxu0 %v2709
      %v2858 = vpop.f32.mrb[0].mxu0
      %v2859 = vadd.f32 0.0, %v2858
      %v2860 = vpop.f32.mrb[0].mxu0
      %v2861 = vpop.f32.mrb[0].mxu0
      %v2862 = vadd.f32 0.0, %v2861
      %v2863 = vpop.f32.mrb[0].mxu0
      %2864 = vmatprep.mubr.bf16.mxu0 0
      %2865 = vmatmul.mubr.bf16.gmra.mrb[0].mxu0 %v2712
      %v2866 = vpop.f32.mrb[0].mxu0
      %v2867 = vadd.f32 0.0, %v2866
      %v2868 = vpop.f32.mrb[0].mxu0
      %v2869 = vpop.f32.mrb[0].mxu0
      %v2870 = vadd.f32 0.0, %v2869
      %v2871 = vpop.f32.mrb[0].mxu0
      %2872 = vmatprep.mubr.bf16.mxu0 0
      %2873 = vmatmul.mubr.bf16.gmra.mrb[0].mxu0 %v2715
      %v2874 = vpop.f32.mrb[0].mxu0
      %v2875 = vadd.f32 0.0, %v2874
      %v2876 = vpop.f32.mrb[0].mxu0
      %v2877 = vpop.f32.mrb[0].mxu0
      %v2878 = vadd.f32 0.0, %v2877
      %v2879 = vpop.f32.mrb[0].mxu0
      %2880 = vdwg.mxu0
      %v2881 = vadd.f32 %v2519, %v2755
      %v2882 = vadd.f32 %v2520, %v2758
      %v2883 = vadd.f32 %v2521, %v2763
      %v2884 = vadd.f32 %v2522, %v2766
      %v2885 = vadd.f32 %v2523, %v2771
      %v2886 = vadd.f32 %v2524, %v2774
      %v2887 = vadd.f32 %v2525, %v2779
      %v2888 = vadd.f32 %v2526, %v2782
      %v2889 = vadd.f32 %v2527, %v2787
      %v2890 = vadd.f32 %v2528, %v2790
      %v2891 = vadd.f32 %v2529, %v2795
      %v2892 = vadd.f32 %v2530, %v2798
      %v2893 = vadd.f32 %v2531, %v2803
      %v2894 = vadd.f32 %v2532, %v2806
      %v2895 = vadd.f32 %v2533, %v2811
      %v2896 = vadd.f32 %v2534, %v2814
      %v2897 = vadd.f32 %v2535, %v2819
      %v2898 = vadd.f32 %v2536, %v2822
      %v2899 = vadd.f32 %v2537, %v2827
      %v2900 = vadd.f32 %v2538, %v2830
      %v2901 = vadd.f32 %v2539, %v2835
      %v2902 = vadd.f32 %v2540, %v2838
      %v2903 = vadd.f32 %v2541, %v2843
      %v2904 = vadd.f32 %v2542, %v2846
      %v2905 = vadd.f32 %v2543, %v2851
      %v2906 = vadd.f32 %v2544, %v2854
      %v2907 = vadd.f32 %v2545, %v2859
      %v2908 = vadd.f32 %v2546, %v2862
      %v2909 = vadd.f32 %v2547, %v2867
      %v2910 = vadd.f32 %v2548, %v2870
      %v2911 = vadd.f32 %v2549, %v2875
      %v2912 = vadd.f32 %v2550, %v2878
      %v2913 = vld [vmem:[%s2554] sm:$0xf]
      %v2914 = vld [vmem:[%s2554 + $0x4] sm:$0xf]
      %v2915 = vld [vmem:[%s2554 + $0x8] sm:$0x1]
      %v2916 = vld [vmem:[%s2554 + $0xc] sm:$0xf]
      %v2917 = vld [vmem:[%s2554 + $0x10] sm:$0xf]
      %v2918 = vld [vmem:[%s2554 + $0x14] sm:$0x1]
      %v2919 = vld [vmem:[%s2554 + $0x18] sm:$0xf]
      %v2920 = vld [vmem:[%s2554 + $0x1c] sm:$0xf]
      %v2921 = vld [vmem:[%s2554 + $0x20] sm:$0x1]
      %v2922 = vld [vmem:[%s2554 + $0x24] sm:$0xf]
      %v2923 = vld [vmem:[%s2554 + $0x28] sm:$0xf]
      %v2924 = vld [vmem:[%s2554 + $0x2c] sm:$0x1]
      %v2925 = vld [vmem:[%s2554 + $0x30] sm:$0xf]
      %v2926 = vld [vmem:[%s2554 + $0x34] sm:$0xf]
      %v2927 = vld [vmem:[%s2554 + $0x38] sm:$0x1]
      %v2928 = vld [vmem:[%s2554 + $0x3c] sm:$0xf]
      %v2929 = vld [vmem:[%s2554 + $0x40] sm:$0xf]
      %v2930 = vld [vmem:[%s2554 + $0x44] sm:$0x1]
      %v2931 = vld [vmem:[%s2554 + $0x48] sm:$0xf]
      %v2932 = vld [vmem:[%s2554 + $0x4c] sm:$0xf]
      %v2933 = vld [vmem:[%s2554 + $0x50] sm:$0x1]
      %v2934 = vld [vmem:[%s2554 + $0x54] sm:$0xf]
      %v2935 = vld [vmem:[%s2554 + $0x58] sm:$0xf]
      %v2936 = vld [vmem:[%s2554 + $0x5c] sm:$0x1]
      %v2937 = vld [vmem:[%s2554 + $0x60] sm:$0xf]
      %v2938 = vld [vmem:[%s2554 + $0x64] sm:$0xf]
      %v2939 = vld [vmem:[%s2554 + $0x68] sm:$0x1]
      %v2940 = vld [vmem:[%s2554 + $0x6c] sm:$0xf]
      %v2941 = vld [vmem:[%s2554 + $0x70] sm:$0xf]
      %v2942 = vld [vmem:[%s2554 + $0x74] sm:$0x1]
      %v2943 = vld [vmem:[%s2554 + $0x78] sm:$0xf]
      %v2944 = vld [vmem:[%s2554 + $0x7c] sm:$0xf]
      %v2945 = vld [vmem:[%s2554 + $0x80] sm:$0x1]
      %v2946 = vld [vmem:[%s2554 + $0x84] sm:$0xf]
      %v2947 = vld [vmem:[%s2554 + $0x88] sm:$0xf]
      %v2948 = vld [vmem:[%s2554 + $0x8c] sm:$0x1]
      %v2949 = vld [vmem:[%s2554 + $0x90] sm:$0xf]
      %v2950 = vld [vmem:[%s2554 + $0x94] sm:$0xf]
      %v2951 = vld [vmem:[%s2554 + $0x98] sm:$0x1]
      %v2952 = vld [vmem:[%s2554 + $0x9c] sm:$0xf]
      %v2953 = vld [vmem:[%s2554 + $0xa0] sm:$0xf]
      %v2954 = vld [vmem:[%s2554 + $0xa4] sm:$0x1]
      %v2955 = vld [vmem:[%s2554 + $0xa8] sm:$0xf]
      %v2956 = vld [vmem:[%s2554 + $0xac] sm:$0xf]
      %v2957 = vld [vmem:[%s2554 + $0xb0] sm:$0x1]
      %v2958 = vld [vmem:[%s2554 + $0xb4] sm:$0xf]
      %v2959 = vld [vmem:[%s2554 + $0xb8] sm:$0xf]
      %v2960 = vld [vmem:[%s2554 + $0xbc] sm:$0x1]
      %v2962 = vshrl.u32 %v2913, 16
      %v2964 = vrot.slane %v2962, 4
      %v2965 = vshll.u32 %v2913, 16
      %v2967 = vrot.slane %v2965, 5
      %v2968 = vor.u32 %v2964, %v2967
      %v2969 = vrot.slane %v2968, 4
      %v2971 = vshll.u32 %v2914, 16
      %v2973 = vrot.slane %v2971, 5
      %v2974 = vsel %vm1153, %v2969, %v2973
      %v2975 = vshrl.u32 %v2914, 16
      %v2977 = vrot.slane %v2975, 4
      %v2978 = vor.u32 %v2977, %v2973
      %v2979 = vrot.slane %v2978, 4
      %v2981 = vshll.u32 %v2915, 16
      %v2983 = vrot.slane %v2981, 5
      %v2984 = vsel %vm1153, %v2979, %v2983
      %v2986 = vshrl.u32 %v2916, 16
      %v2988 = vrot.slane %v2986, 4
      %v2989 = vshll.u32 %v2916, 16
      %v2991 = vrot.slane %v2989, 5
      %v2992 = vor.u32 %v2988, %v2991
      %v2993 = vrot.slane %v2992, 4
      %v2995 = vshll.u32 %v2917, 16
      %v2997 = vrot.slane %v2995, 5
      %v2998 = vsel %vm1153, %v2993, %v2997
      %v2999 = vshrl.u32 %v2917, 16
      %v3001 = vrot.slane %v2999, 4
      %v3002 = vor.u32 %v3001, %v2997
      %v3003 = vrot.slane %v3002, 4
      %v3005 = vshll.u32 %v2918, 16
      %v3007 = vrot.slane %v3005, 5
      %v3008 = vsel %vm1153, %v3003, %v3007
      %v3010 = vshrl.u32 %v2919, 16
      %v3012 = vrot.slane %v3010, 4
      %v3013 = vshll.u32 %v2919, 16
      %v3015 = vrot.slane %v3013, 5
      %v3016 = vor.u32 %v3012, %v3015
      %v3017 = vrot.slane %v3016, 4
      %v3019 = vshll.u32 %v2920, 16
      %v3021 = vrot.slane %v3019, 5
      %v3022 = vsel %vm1153, %v3017, %v3021
      %v3023 = vshrl.u32 %v2920, 16
      %v3025 = vrot.slane %v3023, 4
      %v3026 = vor.u32 %v3025, %v3021
      %v3027 = vrot.slane %v3026, 4
      %v3029 = vshll.u32 %v2921, 16
      %v3031 = vrot.slane %v3029, 5
      %v3032 = vsel %vm1153, %v3027, %v3031
      %v3034 = vshrl.u32 %v2922, 16
      %v3036 = vrot.slane %v3034, 4
      %v3037 = vshll.u32 %v2922, 16
      %v3039 = vrot.slane %v3037, 5
      %v3040 = vor.u32 %v3036, %v3039
      %v3041 = vrot.slane %v3040, 4
      %v3043 = vshll.u32 %v2923, 16
      %v3045 = vrot.slane %v3043, 5
      %v3046 = vsel %vm1153, %v3041, %v3045
      %v3047 = vshrl.u32 %v2923, 16
      %v3049 = vrot.slane %v3047, 4
      %v3050 = vor.u32 %v3049, %v3045
      %v3051 = vrot.slane %v3050, 4
      %v3053 = vshll.u32 %v2924, 16
      %v3055 = vrot.slane %v3053, 5
      %v3056 = vsel %vm1153, %v3051, %v3055
      %v3058 = vshrl.u32 %v2925, 16
      %v3060 = vrot.slane %v3058, 4
      %v3061 = vshll.u32 %v2925, 16
      %v3063 = vrot.slane %v3061, 5
      %v3064 = vor.u32 %v3060, %v3063
      %v3065 = vrot.slane %v3064, 4
      %v3067 = vshll.u32 %v2926, 16
      %v3069 = vrot.slane %v3067, 5
      %v3070 = vsel %vm1153, %v3065, %v3069
      %v3071 = vshrl.u32 %v2926, 16
      %v3073 = vrot.slane %v3071, 4
      %v3074 = vor.u32 %v3073, %v3069
      %v3075 = vrot.slane %v3074, 4
      %v3077 = vshll.u32 %v2927, 16
      %v3079 = vrot.slane %v3077, 5
      %v3080 = vsel %vm1153, %v3075, %v3079
      %v3082 = vshrl.u32 %v2928, 16
      %v3084 = vrot.slane %v3082, 4
      %v3085 = vshll.u32 %v2928, 16
      %v3087 = vrot.slane %v3085, 5
      %v3088 = vor.u32 %v3084, %v3087
      %v3089 = vrot.slane %v3088, 4
      %v3091 = vshll.u32 %v2929, 16
      %v3093 = vrot.slane %v3091, 5
      %v3094 = vsel %vm1153, %v3089, %v3093
      %v3095 = vshrl.u32 %v2929, 16
      %v3097 = vrot.slane %v3095, 4
      %v3098 = vor.u32 %v3097, %v3093
      %v3099 = vrot.slane %v3098, 4
      %v3101 = vshll.u32 %v2930, 16
      %v3103 = vrot.slane %v3101, 5
      %v3104 = vsel %vm1153, %v3099, %v3103
      %v3106 = vshrl.u32 %v2931, 16
      %v3108 = vrot.slane %v3106, 4
      %v3109 = vshll.u32 %v2931, 16
      %v3111 = vrot.slane %v3109, 5
      %v3112 = vor.u32 %v3108, %v3111
      %v3113 = vrot.slane %v3112, 4
      %v3115 = vshll.u32 %v2932, 16
      %v3117 = vrot.slane %v3115, 5
      %v3118 = vsel %vm1153, %v3113, %v3117
      %v3119 = vshrl.u32 %v2932, 16
      %v3121 = vrot.slane %v3119, 4
      %v3122 = vor.u32 %v3121, %v3117
      %v3123 = vrot.slane %v3122, 4
      %v3125 = vshll.u32 %v2933, 16
      %v3127 = vrot.slane %v3125, 5
      %v3128 = vsel %vm1153, %v3123, %v3127
      %v3130 = vshrl.u32 %v2934, 16
      %v3132 = vrot.slane %v3130, 4
      %v3133 = vshll.u32 %v2934, 16
      %v3135 = vrot.slane %v3133, 5
      %v3136 = vor.u32 %v3132, %v3135
      %v3137 = vrot.slane %v3136, 4
      %v3139 = vshll.u32 %v2935, 16
      %v3141 = vrot.slane %v3139, 5
      %v3142 = vsel %vm1153, %v3137, %v3141
      %v3143 = vshrl.u32 %v2935, 16
      %v3145 = vrot.slane %v3143, 4
      %v3146 = vor.u32 %v3145, %v3141
      %v3147 = vrot.slane %v3146, 4
      %v3149 = vshll.u32 %v2936, 16
      %v3151 = vrot.slane %v3149, 5
      %v3152 = vsel %vm1153, %v3147, %v3151
      %v3154 = vshrl.u32 %v2937, 16
      %v3156 = vrot.slane %v3154, 4
      %v3157 = vshll.u32 %v2937, 16
      %v3159 = vrot.slane %v3157, 5
      %v3160 = vor.u32 %v3156, %v3159
      %v3161 = vrot.slane %v3160, 4
      %v3163 = vshll.u32 %v2938, 16
      %v3165 = vrot.slane %v3163, 5
      %v3166 = vsel %vm1153, %v3161, %v3165
      %v3167 = vshrl.u32 %v2938, 16
      %v3169 = vrot.slane %v3167, 4
      %v3170 = vor.u32 %v3169, %v3165
      %v3171 = vrot.slane %v3170, 4
      %v3173 = vshll.u32 %v2939, 16
      %v3175 = vrot.slane %v3173, 5
      %v3176 = vsel %vm1153, %v3171, %v3175
      %v3178 = vshrl.u32 %v2940, 16
      %v3180 = vrot.slane %v3178, 4
      %v3181 = vshll.u32 %v2940, 16
      %v3183 = vrot.slane %v3181, 5
      %v3184 = vor.u32 %v3180, %v3183
      %v3185 = vrot.slane %v3184, 4
      %v3187 = vshll.u32 %v2941, 16
      %v3189 = vrot.slane %v3187, 5
      %v3190 = vsel %vm1153, %v3185, %v3189
      %v3191 = vshrl.u32 %v2941, 16
      %v3193 = vrot.slane %v3191, 4
      %v3194 = vor.u32 %v3193, %v3189
      %v3195 = vrot.slane %v3194, 4
      %v3197 = vshll.u32 %v2942, 16
      %v3199 = vrot.slane %v3197, 5
      %v3200 = vsel %vm1153, %v3195, %v3199
      %v3202 = vshrl.u32 %v2943, 16
      %v3204 = vrot.slane %v3202, 4
      %v3205 = vshll.u32 %v2943, 16
      %v3207 = vrot.slane %v3205, 5
      %v3208 = vor.u32 %v3204, %v3207
      %v3209 = vrot.slane %v3208, 4
      %v3211 = vshll.u32 %v2944, 16
      %v3213 = vrot.slane %v3211, 5
      %v3214 = vsel %vm1153, %v3209, %v3213
      %v3215 = vshrl.u32 %v2944, 16
      %v3217 = vrot.slane %v3215, 4
      %v3218 = vor.u32 %v3217, %v3213
      %v3219 = vrot.slane %v3218, 4
      %v3221 = vshll.u32 %v2945, 16
      %v3223 = vrot.slane %v3221, 5
      %v3224 = vsel %vm1153, %v3219, %v3223
      %v3226 = vshrl.u32 %v2946, 16
      %v3228 = vrot.slane %v3226, 4
      %v3229 = vshll.u32 %v2946, 16
      %v3231 = vrot.slane %v3229, 5
      %v3232 = vor.u32 %v3228, %v3231
      %v3233 = vrot.slane %v3232, 4
      %v3235 = vshll.u32 %v2947, 16
      %v3237 = vrot.slane %v3235, 5
      %v3238 = vsel %vm1153, %v3233, %v3237
      %v3239 = vshrl.u32 %v2947, 16
      %v3241 = vrot.slane %v3239, 4
      %v3242 = vor.u32 %v3241, %v3237
      %v3243 = vrot.slane %v3242, 4
      %v3245 = vshll.u32 %v2948, 16
      %v3247 = vrot.slane %v3245, 5
      %v3248 = vsel %vm1153, %v3243, %v3247
      %v3250 = vshrl.u32 %v2949, 16
      %v3252 = vrot.slane %v3250, 4
      %v3253 = vshll.u32 %v2949, 16
      %v3255 = vrot.slane %v3253, 5
      %v3256 = vor.u32 %v3252, %v3255
      %v3257 = vrot.slane %v3256, 4
      %v3259 = vshll.u32 %v2950, 16
      %v3261 = vrot.slane %v3259, 5
      %v3262 = vsel %vm1153, %v3257, %v3261
      %v3263 = vshrl.u32 %v2950, 16
      %v3265 = vrot.slane %v3263, 4
      %v3266 = vor.u32 %v3265, %v3261
      %v3267 = vrot.slane %v3266, 4
      %v3269 = vshll.u32 %v2951, 16
      %v3271 = vrot.slane %v3269, 5
      %v3272 = vsel %vm1153, %v3267, %v3271
      %v3274 = vshrl.u32 %v2952, 16
      %v3276 = vrot.slane %v3274, 4
      %v3277 = vshll.u32 %v2952, 16
      %v3279 = vrot.slane %v3277, 5
      %v3280 = vor.u32 %v3276, %v3279
      %v3281 = vrot.slane %v3280, 4
      %v3283 = vshll.u32 %v2953, 16
      %v3285 = vrot.slane %v3283, 5
      %v3286 = vsel %vm1153, %v3281, %v3285
      %v3287 = vshrl.u32 %v2953, 16
      %v3289 = vrot.slane %v3287, 4
      %v3290 = vor.u32 %v3289, %v3285
      %v3291 = vrot.slane %v3290, 4
      %v3293 = vshll.u32 %v2954, 16
      %v3295 = vrot.slane %v3293, 5
      %v3296 = vsel %vm1153, %v3291, %v3295
      %v3298 = vshrl.u32 %v2955, 16
      %v3300 = vrot.slane %v3298, 4
      %v3301 = vshll.u32 %v2955, 16
      %v3303 = vrot.slane %v3301, 5
      %v3304 = vor.u32 %v3300, %v3303
      %v3305 = vrot.slane %v3304, 4
      %v3307 = vshll.u32 %v2956, 16
      %v3309 = vrot.slane %v3307, 5
      %v3310 = vsel %vm1153, %v3305, %v3309
      %v3311 = vshrl.u32 %v2956, 16
      %v3313 = vrot.slane %v3311, 4
      %v3314 = vor.u32 %v3313, %v3309
      %v3315 = vrot.slane %v3314, 4
      %v3317 = vshll.u32 %v2957, 16
      %v3319 = vrot.slane %v3317, 5
      %v3320 = vsel %vm1153, %v3315, %v3319
      %v3322 = vshrl.u32 %v2958, 16
      %v3324 = vrot.slane %v3322, 4
      %v3325 = vshll.u32 %v2958, 16
      %v3327 = vrot.slane %v3325, 5
      %v3328 = vor.u32 %v3324, %v3327
      %v3329 = vrot.slane %v3328, 4
      %v3331 = vshll.u32 %v2959, 16
      %v3333 = vrot.slane %v3331, 5
      %v3334 = vsel %vm1153, %v3329, %v3333
      %v3335 = vshrl.u32 %v2959, 16
      %v3337 = vrot.slane %v3335, 4
      %v3338 = vor.u32 %v3337, %v3333
      %v3339 = vrot.slane %v3338, 4
      %v3341 = vshll.u32 %v2960, 16
      %v3343 = vrot.slane %v3341, 5
      %v3344 = vsel %vm1153, %v3339, %v3343
      %s3345 = scalar_lea.vmem %s3, 16
      %v3346 = vld [vmem:[%s3345] sm:$0xf]
      %v3347 = vunpack.c.l.b16 %v2974
      %v3348 = vunpack.c.l.b16 %v2984
      %v3349 = vunpack.c.l.b16 %v2998
      %v3350 = vunpack.c.l.b16 %v3008
      %v3351 = vunpack.c.l.b16 %v3022
      %v3352 = vunpack.c.l.b16 %v3032
      %v3353 = vunpack.c.l.b16 %v3046
      %v3354 = vunpack.c.l.b16 %v3056
      %v3355 = vunpack.c.l.b16 %v3070
      %v3356 = vunpack.c.l.b16 %v3080
      %v3357 = vunpack.c.l.b16 %v3094
      %v3358 = vunpack.c.l.b16 %v3104
      %v3359 = vunpack.c.l.b16 %v3118
      %v3360 = vunpack.c.l.b16 %v3128
      %v3361 = vunpack.c.l.b16 %v3142
      %v3362 = vunpack.c.l.b16 %v3152
      %v3363 = vunpack.c.l.b16 %v3166
      %v3364 = vunpack.c.l.b16 %v3176
      %v3365 = vunpack.c.l.b16 %v3190
      %v3366 = vunpack.c.l.b16 %v3200
      %v3367 = vunpack.c.l.b16 %v3214
      %v3368 = vunpack.c.l.b16 %v3224
      %v3369 = vunpack.c.l.b16 %v3238
      %v3370 = vunpack.c.l.b16 %v3248
      %v3371 = vunpack.c.l.b16 %v3262
      %v3372 = vunpack.c.l.b16 %v3272
      %v3373 = vunpack.c.l.b16 %v3286
      %v3374 = vunpack.c.l.b16 %v3296
      %v3375 = vunpack.c.l.b16 %v3310
      %v3376 = vunpack.c.l.b16 %v3320
      %v3377 = vunpack.c.l.b16 %v3334
      %v3378 = vunpack.c.l.b16 %v3344
      %v3379 = vpack.c.b16 %v3348, %v3347
      %v3380 = vpack.c.b16 %v3350, %v3349
      %v3381 = vpack.c.b16 %v3352, %v3351
      %v3382 = vpack.c.b16 %v3354, %v3353
      %v3383 = vpack.c.b16 %v3356, %v3355
      %v3384 = vpack.c.b16 %v3358, %v3357
      %v3385 = vpack.c.b16 %v3360, %v3359
      %v3386 = vpack.c.b16 %v3362, %v3361
      %v3387 = vpack.c.b16 %v3364, %v3363
      %v3388 = vpack.c.b16 %v3366, %v3365
      %v3389 = vpack.c.b16 %v3368, %v3367
      %v3390 = vpack.c.b16 %v3370, %v3369
      %v3391 = vpack.c.b16 %v3372, %v3371
      %v3392 = vpack.c.b16 %v3374, %v3373
      %v3393 = vpack.c.b16 %v3376, %v3375
      %v3394 = vpack.c.b16 %v3378, %v3377
      %v3396 = vsel %vm1588, %v3379, 0
      %v3399 = vsel %vm1588, %v3380, 0
      %v3402 = vsel %vm1588, %v3381, 0
      %v3405 = vsel %vm1588, %v3382, 0
      %v3408 = vsel %vm1588, %v3383, 0
      %v3411 = vsel %vm1588, %v3384, 0
      %v3414 = vsel %vm1588, %v3385, 0
      %v3417 = vsel %vm1588, %v3386, 0
      %v3420 = vsel %vm1588, %v3387, 0
      %v3423 = vsel %vm1588, %v3388, 0
      %v3426 = vsel %vm1588, %v3389, 0
      %v3429 = vsel %vm1588, %v3390, 0
      %v3432 = vsel %vm1588, %v3391, 0
      %v3435 = vsel %vm1588, %v3392, 0
      %v3438 = vsel %vm1588, %v3393, 0
      %v3441 = vsel %vm1588, %v3394, 0
      %v3444 = vsel %vm1637, %v3346, 0
      %3446 = vmatprep.subr.bf16.mxu0 0
      %3447 = vmatpush1.bf16.msra.mxu0 %v3444
      %3448 = vmatprep.subr.bf16.mxu0 0
      %3449 = vmatpush1.bf16.msra.mxu0 0
      %3450 = vmatprep.subr.bf16.mxu0 0
      %3451 = vmatpush1.bf16.msra.mxu0 0
      %3452 = vmatprep.subr.bf16.mxu0 0
      %3453 = vmatpush1.bf16.msra.mxu0 0
      %3454 = vmatprep.subr.bf16.mxu0 0
      %3455 = vmatpush1.bf16.msra.mxu0 0
      %3456 = vmatprep.subr.bf16.mxu0 0
      %3457 = vmatpush1.bf16.msra.mxu0 0
      %3458 = vmatprep.subr.bf16.mxu0 0
      %3459 = vmatpush1.bf16.msra.mxu0 0
      %3460 = vmatprep.subr.bf16.mxu0 0
      %3461 = vmatpush1.bf16.msra.mxu0 0
      %3462 = vmatprep.subr.bf16.mxu0 0
      %3463 = vmatpush1.bf16.msra.mxu0 0
      %3464 = vmatprep.subr.bf16.mxu0 0
      %3465 = vmatpush1.bf16.msra.mxu0 0
      %3466 = vmatprep.subr.bf16.mxu0 0
      %3467 = vmatpush1.bf16.msra.mxu0 0
      %3468 = vmatprep.subr.bf16.mxu0 0
      %3469 = vmatpush1.bf16.msra.mxu0 0
      %3470 = vmatprep.subr.bf16.mxu0 0
      %3471 = vmatpush1.bf16.msra.mxu0 0
      %3472 = vmatprep.subr.bf16.mxu0 0
      %3473 = vmatpush1.bf16.msra.mxu0 0
      %3474 = vmatprep.subr.bf16.mxu0 0
      %3475 = vmatpush1.bf16.msra.mxu0 0
      %3476 = vmatprep.subr.bf16.mxu0 0
      %3477 = vmatpush1.bf16.msra.mxu0 0
      %3478 = vmatprep.mubr.bf16.mxu0 0
      %3479 = vmatmul.mubr.bf16.gmra.mrb[0].mxu0 %v3396
      %v3480 = vpop.f32.mrb[0].mxu0
      %v3481 = vadd.f32 0.0, %v3480
      %v3482 = vpop.f32.mrb[0].mxu0
      %v3483 = vpop.f32.mrb[0].mxu0
      %v3484 = vadd.f32 0.0, %v3483
      %v3485 = vpop.f32.mrb[0].mxu0
      %3486 = vmatprep.mubr.bf16.mxu0 0
      %3487 = vmatmul.mubr.bf16.gmra.mrb[0].mxu0 %v3399
      %v3488 = vpop.f32.mrb[0].mxu0
      %v3489 = vadd.f32 0.0, %v3488
      %v3490 = vpop.f32.mrb[0].mxu0
      %v3491 = vpop.f32.mrb[0].mxu0
      %v3492 = vadd.f32 0.0, %v3491
      %v3493 = vpop.f32.mrb[0].mxu0
      %3494 = vmatprep.mubr.bf16.mxu0 0
      %3495 = vmatmul.mubr.bf16.gmra.mrb[0].mxu0 %v3402
      %v3496 = vpop.f32.mrb[0].mxu0
      %v3497 = vadd.f32 0.0, %v3496
      %v3498 = vpop.f32.mrb[0].mxu0
      %v3499 = vpop.f32.mrb[0].mxu0
      %v3500 = vadd.f32 0.0, %v3499
      %v3501 = vpop.f32.mrb[0].mxu0
      %3502 = vmatprep.mubr.bf16.mxu0 0
      %3503 = vmatmul.mubr.bf16.gmra.mrb[0].mxu0 %v3405
      %v3504 = vpop.f32.mrb[0].mxu0
      %v3505 = vadd.f32 0.0, %v3504
      %v3506 = vpop.f32.mrb[0].mxu0
      %v3507 = vpop.f32.mrb[0].mxu0
      %v3508 = vadd.f32 0.0, %v3507
      %v3509 = vpop.f32.mrb[0].mxu0
      %3510 = vmatprep.mubr.bf16.mxu0 0
      %3511 = vmatmul.mubr.bf16.gmra.mrb[0].mxu0 %v3408
      %v3512 = vpop.f32.mrb[0].mxu0
      %v3513 = vadd.f32 0.0, %v3512
      %v3514 = vpop.f32.mrb[0].mxu0
      %v3515 = vpop.f32.mrb[0].mxu0
      %v3516 = vadd.f32 0.0, %v3515
      %v3517 = vpop.f32.mrb[0].mxu0
      %3518 = vmatprep.mubr.bf16.mxu0 0
      %3519 = vmatmul.mubr.bf16.gmra.mrb[0].mxu0 %v3411
      %v3520 = vpop.f32.mrb[0].mxu0
      %v3521 = vadd.f32 0.0, %v3520
      %v3522 = vpop.f32.mrb[0].mxu0
      %v3523 = vpop.f32.mrb[0].mxu0
      %v3524 = vadd.f32 0.0, %v3523
      %v3525 = vpop.f32.mrb[0].mxu0
      %3526 = vmatprep.mubr.bf16.mxu0 0
      %3527 = vmatmul.mubr.bf16.gmra.mrb[0].mxu0 %v3414
      %v3528 = vpop.f32.mrb[0].mxu0
      %v3529 = vadd.f32 0.0, %v3528
      %v3530 = vpop.f32.mrb[0].mxu0
      %v3531 = vpop.f32.mrb[0].mxu0
      %v3532 = vadd.f32 0.0, %v3531
      %v3533 = vpop.f32.mrb[0].mxu0
      %3534 = vmatprep.mubr.bf16.mxu0 0
      %3535 = vmatmul.mubr.bf16.gmra.mrb[0].mxu0 %v3417
      %v3536 = vpop.f32.mrb[0].mxu0
      %v3537 = vadd.f32 0.0, %v3536
      %v3538 = vpop.f32.mrb[0].mxu0
      %v3539 = vpop.f32.mrb[0].mxu0
      %v3540 = vadd.f32 0.0, %v3539
      %v3541 = vpop.f32.mrb[0].mxu0
      %3542 = vmatprep.mubr.bf16.mxu0 0
      %3543 = vmatmul.mubr.bf16.gmra.mrb[0].mxu0 %v3420
      %v3544 = vpop.f32.mrb[0].mxu0
      %v3545 = vadd.f32 0.0, %v3544
      %v3546 = vpop.f32.mrb[0].mxu0
      %v3547 = vpop.f32.mrb[0].mxu0
      %v3548 = vadd.f32 0.0, %v3547
      %v3549 = vpop.f32.mrb[0].mxu0
      %3550 = vmatprep.mubr.bf16.mxu0 0
      %3551 = vmatmul.mubr.bf16.gmra.mrb[0].mxu0 %v3423
      %v3552 = vpop.f32.mrb[0].mxu0
      %v3553 = vadd.f32 0.0, %v3552
      %v3554 = vpop.f32.mrb[0].mxu0
      %v3555 = vpop.f32.mrb[0].mxu0
      %v3556 = vadd.f32 0.0, %v3555
      %v3557 = vpop.f32.mrb[0].mxu0
      %3558 = vmatprep.mubr.bf16.mxu0 0
      %3559 = vmatmul.mubr.bf16.gmra.mrb[0].mxu0 %v3426
      %v3560 = vpop.f32.mrb[0].mxu0
      %v3561 = vadd.f32 0.0, %v3560
      %v3562 = vpop.f32.mrb[0].mxu0
      %v3563 = vpop.f32.mrb[0].mxu0
      %v3564 = vadd.f32 0.0, %v3563
      %v3565 = vpop.f32.mrb[0].mxu0
      %3566 = vmatprep.mubr.bf16.mxu0 0
      %3567 = vmatmul.mubr.bf16.gmra.mrb[0].mxu0 %v3429
      %v3568 = vpop.f32.mrb[0].mxu0
      %v3569 = vadd.f32 0.0, %v3568
      %v3570 = vpop.f32.mrb[0].mxu0
      %v3571 = vpop.f32.mrb[0].mxu0
      %v3572 = vadd.f32 0.0, %v3571
      %v3573 = vpop.f32.mrb[0].mxu0
      %3574 = vmatprep.mubr.bf16.mxu0 0
      %3575 = vmatmul.mubr.bf16.gmra.mrb[0].mxu0 %v3432
      %v3576 = vpop.f32.mrb[0].mxu0
      %v3577 = vadd.f32 0.0, %v3576
      %v3578 = vpop.f32.mrb[0].mxu0
      %v3579 = vpop.f32.mrb[0].mxu0
      %v3580 = vadd.f32 0.0, %v3579
      %v3581 = vpop.f32.mrb[0].mxu0
      %3582 = vmatprep.mubr.bf16.mxu0 0
      %3583 = vmatmul.mubr.bf16.gmra.mrb[0].mxu0 %v3435
      %v3584 = vpop.f32.mrb[0].mxu0
      %v3585 = vadd.f32 0.0, %v3584
      %v3586 = vpop.f32.mrb[0].mxu0
      %v3587 = vpop.f32.mrb[0].mxu0
      %v3588 = vadd.f32 0.0, %v3587
      %v3589 = vpop.f32.mrb[0].mxu0
      %3590 = vmatprep.mubr.bf16.mxu0 0
      %3591 = vmatmul.mubr.bf16.gmra.mrb[0].mxu0 %v3438
      %v3592 = vpop.f32.mrb[0].mxu0
      %v3593 = vadd.f32 0.0, %v3592
      %v3594 = vpop.f32.mrb[0].mxu0
      %v3595 = vpop.f32.mrb[0].mxu0
      %v3596 = vadd.f32 0.0, %v3595
      %v3597 = vpop.f32.mrb[0].mxu0
      %3598 = vmatprep.mubr.bf16.mxu0 0
      %3599 = vmatmul.mubr.bf16.gmra.mrb[0].mxu0 %v3441
      %v3600 = vpop.f32.mrb[0].mxu0
      %v3601 = vadd.f32 0.0, %v3600
      %v3602 = vpop.f32.mrb[0].mxu0
      %v3603 = vpop.f32.mrb[0].mxu0
      %v3604 = vadd.f32 0.0, %v3603
      %v3605 = vpop.f32.mrb[0].mxu0
      %3606 = vdwg.mxu0
      %v3607 = vadd.f32 %v2881, %v3481
      %v3608 = vadd.f32 %v2882, %v3484
      %v3609 = vadd.f32 %v2883, %v3489
      %v3610 = vadd.f32 %v2884, %v3492
      %v3611 = vadd.f32 %v2885, %v3497
      %v3612 = vadd.f32 %v2886, %v3500
      %v3613 = vadd.f32 %v2887, %v3505
      %v3614 = vadd.f32 %v2888, %v3508
      %v3615 = vadd.f32 %v2889, %v3513
      %v3616 = vadd.f32 %v2890, %v3516
      %v3617 = vadd.f32 %v2891, %v3521
      %v3618 = vadd.f32 %v2892, %v3524
      %v3619 = vadd.f32 %v2893, %v3529
      %v3620 = vadd.f32 %v2894, %v3532
      %v3621 = vadd.f32 %v2895, %v3537
      %v3622 = vadd.f32 %v2896, %v3540
      %v3623 = vadd.f32 %v2897, %v3545
      %v3624 = vadd.f32 %v2898, %v3548
      %v3625 = vadd.f32 %v2899, %v3553
      %v3626 = vadd.f32 %v2900, %v3556
      %v3627 = vadd.f32 %v2901, %v3561
      %v3628 = vadd.f32 %v2902, %v3564
      %v3629 = vadd.f32 %v2903, %v3569
      %v3630 = vadd.f32 %v2904, %v3572
      %v3631 = vadd.f32 %v2905, %v3577
      %v3632 = vadd.f32 %v2906, %v3580
      %v3633 = vadd.f32 %v2907, %v3585
      %v3634 = vadd.f32 %v2908, %v3588
      %v3635 = vadd.f32 %v2909, %v3593
      %v3636 = vadd.f32 %v2910, %v3596
      %v3637 = vadd.f32 %v2911, %v3601
      %v3638 = vadd.f32 %v2912, %v3604
      %v3639 = vld [vmem:[%s2554] sm:$0xe]
      %v3640 = vld [vmem:[%s2554 + $0xc] sm:$0xe]
      %v3641 = vld [vmem:[%s2554 + $0x18] sm:$0xe]
      %v3642 = vld [vmem:[%s2554 + $0x24] sm:$0xe]
      %v3643 = vld [vmem:[%s2554 + $0x30] sm:$0xe]
      %v3644 = vld [vmem:[%s2554 + $0x3c] sm:$0xe]
      %v3645 = vld [vmem:[%s2554 + $0x48] sm:$0xe]
      %v3646 = vld [vmem:[%s2554 + $0x54] sm:$0xe]
      %v3647 = vld [vmem:[%s2554 + $0x60] sm:$0xe]
      %v3648 = vld [vmem:[%s2554 + $0x6c] sm:$0xe]
      %v3649 = vld [vmem:[%s2554 + $0x78] sm:$0xe]
      %v3650 = vld [vmem:[%s2554 + $0x84] sm:$0xe]
      %v3651 = vld [vmem:[%s2554 + $0x90] sm:$0xe]
      %v3652 = vld [vmem:[%s2554 + $0x9c] sm:$0xe]
      %v3653 = vld [vmem:[%s2554 + $0xa8] sm:$0xe]
      %v3654 = vld [vmem:[%s2554 + $0xb4] sm:$0xe]
      %v3703 = vrot.slane %v3639, 5
      %v3704 = vrot.slane %v3703, 4
      %v3705 = vrot.slane %v2914, 5
      %v3706 = vsel %vm2144, %v3704, %v3705
      %v3707 = vrot.slane %v3705, 4
      %v3708 = vrot.slane %v2915, 5
      %v3709 = vsel %vm2144, %v3707, %v3708
      %v3710 = vrot.slane %v3640, 5
      %v3711 = vrot.slane %v3710, 4
      %v3712 = vrot.slane %v2917, 5
      %v3713 = vsel %vm2144, %v3711, %v3712
      %v3714 = vrot.slane %v3712, 4
      %v3715 = vrot.slane %v2918, 5
      %v3716 = vsel %vm2144, %v3714, %v3715
      %v3717 = vrot.slane %v3641, 5
      %v3718 = vrot.slane %v3717, 4
      %v3719 = vrot.slane %v2920, 5
      %v3720 = vsel %vm2144, %v3718, %v3719
      %v3721 = vrot.slane %v3719, 4
      %v3722 = vrot.slane %v2921, 5
      %v3723 = vsel %vm2144, %v3721, %v3722
      %v3724 = vrot.slane %v3642, 5
      %v3725 = vrot.slane %v3724, 4
      %v3726 = vrot.slane %v2923, 5
      %v3727 = vsel %vm2144, %v3725, %v3726
      %v3728 = vrot.slane %v3726, 4
      %v3729 = vrot.slane %v2924, 5
      %v3730 = vsel %vm2144, %v3728, %v3729
      %v3731 = vrot.slane %v3643, 5
      %v3732 = vrot.slane %v3731, 4
      %v3733 = vrot.slane %v2926, 5
      %v3734 = vsel %vm2144, %v3732, %v3733
      %v3735 = vrot.slane %v3733, 4
      %v3736 = vrot.slane %v2927, 5
      %v3737 = vsel %vm2144, %v3735, %v3736
      %v3738 = vrot.slane %v3644, 5
      %v3739 = vrot.slane %v3738, 4
      %v3740 = vrot.slane %v2929, 5
      %v3741 = vsel %vm2144, %v3739, %v3740
      %v3742 = vrot.slane %v3740, 4
      %v3743 = vrot.slane %v2930, 5
      %v3744 = vsel %vm2144, %v3742, %v3743
      %v3745 = vrot.slane %v3645, 5
      %v3746 = vrot.slane %v3745, 4
      %v3747 = vrot.slane %v2932, 5
      %v3748 = vsel %vm2144, %v3746, %v3747
      %v3749 = vrot.slane %v3747, 4
      %v3750 = vrot.slane %v2933, 5
      %v3751 = vsel %vm2144, %v3749, %v3750
      %v3752 = vrot.slane %v3646, 5
      %v3753 = vrot.slane %v3752, 4
      %v3754 = vrot.slane %v2935, 5
      %v3755 = vsel %vm2144, %v3753, %v3754
      %v3756 = vrot.slane %v3754, 4
      %v3757 = vrot.slane %v2936, 5
      %v3758 = vsel %vm2144, %v3756, %v3757
      %v3759 = vrot.slane %v3647, 5
      %v3760 = vrot.slane %v3759, 4
      %v3761 = vrot.slane %v2938, 5
      %v3762 = vsel %vm2144, %v3760, %v3761
      %v3763 = vrot.slane %v3761, 4
      %v3764 = vrot.slane %v2939, 5
      %v3765 = vsel %vm2144, %v3763, %v3764
      %v3766 = vrot.slane %v3648, 5
      %v3767 = vrot.slane %v3766, 4
      %v3768 = vrot.slane %v2941, 5
      %v3769 = vsel %vm2144, %v3767, %v3768
      %v3770 = vrot.slane %v3768, 4
      %v3771 = vrot.slane %v2942, 5
      %v3772 = vsel %vm2144, %v3770, %v3771
      %v3773 = vrot.slane %v3649, 5
      %v3774 = vrot.slane %v3773, 4
      %v3775 = vrot.slane %v2944, 5
      %v3776 = vsel %vm2144, %v3774, %v3775
      %v3777 = vrot.slane %v3775, 4
      %v3778 = vrot.slane %v2945, 5
      %v3779 = vsel %vm2144, %v3777, %v3778
      %v3780 = vrot.slane %v3650, 5
      %v3781 = vrot.slane %v3780, 4
      %v3782 = vrot.slane %v2947, 5
      %v3783 = vsel %vm2144, %v3781, %v3782
      %v3784 = vrot.slane %v3782, 4
      %v3785 = vrot.slane %v2948, 5
      %v3786 = vsel %vm2144, %v3784, %v3785
      %v3787 = vrot.slane %v3651, 5
      %v3788 = vrot.slane %v3787, 4
      %v3789 = vrot.slane %v2950, 5
      %v3790 = vsel %vm2144, %v3788, %v3789
      %v3791 = vrot.slane %v3789, 4
      %v3792 = vrot.slane %v2951, 5
      %v3793 = vsel %vm2144, %v3791, %v3792
      %v3794 = vrot.slane %v3652, 5
      %v3795 = vrot.slane %v3794, 4
      %v3796 = vrot.slane %v2953, 5
      %v3797 = vsel %vm2144, %v3795, %v3796
      %v3798 = vrot.slane %v3796, 4
      %v3799 = vrot.slane %v2954, 5
      %v3800 = vsel %vm2144, %v3798, %v3799
      %v3801 = vrot.slane %v3653, 5
      %v3802 = vrot.slane %v3801, 4
      %v3803 = vrot.slane %v2956, 5
      %v3804 = vsel %vm2144, %v3802, %v3803
      %v3805 = vrot.slane %v3803, 4
      %v3806 = vrot.slane %v2957, 5
      %v3807 = vsel %vm2144, %v3805, %v3806
      %v3808 = vrot.slane %v3654, 5
      %v3809 = vrot.slane %v3808, 4
      %v3810 = vrot.slane %v2959, 5
      %v3811 = vsel %vm2144, %v3809, %v3810
      %v3812 = vrot.slane %v3810, 4
      %v3813 = vrot.slane %v2960, 5
      %v3814 = vsel %vm2144, %v3812, %v3813
      %s3815 = scalar_lea.vmem %s3, 20
      %v3816 = vld [vmem:[%s3815] sm:$0xf]
      %v3817 = vunpack.c.l.b16 %v3706
      %v3818 = vunpack.c.l.b16 %v3709
      %v3819 = vunpack.c.l.b16 %v3713
      %v3820 = vunpack.c.l.b16 %v3716
      %v3821 = vunpack.c.l.b16 %v3720
      %v3822 = vunpack.c.l.b16 %v3723
      %v3823 = vunpack.c.l.b16 %v3727
      %v3824 = vunpack.c.l.b16 %v3730
      %v3825 = vunpack.c.l.b16 %v3734
      %v3826 = vunpack.c.l.b16 %v3737
      %v3827 = vunpack.c.l.b16 %v3741
      %v3828 = vunpack.c.l.b16 %v3744
      %v3829 = vunpack.c.l.b16 %v3748
      %v3830 = vunpack.c.l.b16 %v3751
      %v3831 = vunpack.c.l.b16 %v3755
      %v3832 = vunpack.c.l.b16 %v3758
      %v3833 = vunpack.c.l.b16 %v3762
      %v3834 = vunpack.c.l.b16 %v3765
      %v3835 = vunpack.c.l.b16 %v3769
      %v3836 = vunpack.c.l.b16 %v3772
      %v3837 = vunpack.c.l.b16 %v3776
      %v3838 = vunpack.c.l.b16 %v3779
      %v3839 = vunpack.c.l.b16 %v3783
      %v3840 = vunpack.c.l.b16 %v3786
      %v3841 = vunpack.c.l.b16 %v3790
      %v3842 = vunpack.c.l.b16 %v3793
      %v3843 = vunpack.c.l.b16 %v3797
      %v3844 = vunpack.c.l.b16 %v3800
      %v3845 = vunpack.c.l.b16 %v3804
      %v3846 = vunpack.c.l.b16 %v3807
      %v3847 = vunpack.c.l.b16 %v3811
      %v3848 = vunpack.c.l.b16 %v3814
      %v3849 = vpack.c.b16 %v3818, %v3817
      %v3850 = vpack.c.b16 %v3820, %v3819
      %v3851 = vpack.c.b16 %v3822, %v3821
      %v3852 = vpack.c.b16 %v3824, %v3823
      %v3853 = vpack.c.b16 %v3826, %v3825
      %v3854 = vpack.c.b16 %v3828, %v3827
      %v3855 = vpack.c.b16 %v3830, %v3829
      %v3856 = vpack.c.b16 %v3832, %v3831
      %v3857 = vpack.c.b16 %v3834, %v3833
      %v3858 = vpack.c.b16 %v3836, %v3835
      %v3859 = vpack.c.b16 %v3838, %v3837
      %v3860 = vpack.c.b16 %v3840, %v3839
      %v3861 = vpack.c.b16 %v3842, %v3841
      %v3862 = vpack.c.b16 %v3844, %v3843
      %v3863 = vpack.c.b16 %v3846, %v3845
      %v3864 = vpack.c.b16 %v3848, %v3847
      %v3866 = vsel %vm1588, %v3849, 0
      %v3869 = vsel %vm1588, %v3850, 0
      %v3872 = vsel %vm1588, %v3851, 0
      %v3875 = vsel %vm1588, %v3852, 0
      %v3878 = vsel %vm1588, %v3853, 0
      %v3881 = vsel %vm1588, %v3854, 0
      %v3884 = vsel %vm1588, %v3855, 0
      %v3887 = vsel %vm1588, %v3856, 0
      %v3890 = vsel %vm1588, %v3857, 0
      %v3893 = vsel %vm1588, %v3858, 0
      %v3896 = vsel %vm1588, %v3859, 0
      %v3899 = vsel %vm1588, %v3860, 0
      %v3902 = vsel %vm1588, %v3861, 0
      %v3905 = vsel %vm1588, %v3862, 0
      %v3908 = vsel %vm1588, %v3863, 0
      %v3911 = vsel %vm1588, %v3864, 0
      %v3914 = vsel %vm1637, %v3816, 0
      %3916 = vmatprep.subr.bf16.mxu0 0
      %3917 = vmatpush1.bf16.msra.mxu0 %v3914
      %3918 = vmatprep.subr.bf16.mxu0 0
      %3919 = vmatpush1.bf16.msra.mxu0 0
      %3920 = vmatprep.subr.bf16.mxu0 0
      %3921 = vmatpush1.bf16.msra.mxu0 0
      %3922 = vmatprep.subr.bf16.mxu0 0
      %3923 = vmatpush1.bf16.msra.mxu0 0
      %3924 = vmatprep.subr.bf16.mxu0 0
      %3925 = vmatpush1.bf16.msra.mxu0 0
      %3926 = vmatprep.subr.bf16.mxu0 0
      %3927 = vmatpush1.bf16.msra.mxu0 0
      %3928 = vmatprep.subr.bf16.mxu0 0
      %3929 = vmatpush1.bf16.msra.mxu0 0
      %3930 = vmatprep.subr.bf16.mxu0 0
      %3931 = vmatpush1.bf16.msra.mxu0 0
      %3932 = vmatprep.subr.bf16.mxu0 0
      %3933 = vmatpush1.bf16.msra.mxu0 0
      %3934 = vmatprep.subr.bf16.mxu0 0
      %3935 = vmatpush1.bf16.msra.mxu0 0
      %3936 = vmatprep.subr.bf16.mxu0 0
      %3937 = vmatpush1.bf16.msra.mxu0 0
      %3938 = vmatprep.subr.bf16.mxu0 0
      %3939 = vmatpush1.bf16.msra.mxu0 0
      %3940 = vmatprep.subr.bf16.mxu0 0
      %3941 = vmatpush1.bf16.msra.mxu0 0
      %3942 = vmatprep.subr.bf16.mxu0 0
      %3943 = vmatpush1.bf16.msra.mxu0 0
      %3944 = vmatprep.subr.bf16.mxu0 0
      %3945 = vmatpush1.bf16.msra.mxu0 0
      %3946 = vmatprep.subr.bf16.mxu0 0
      %3947 = vmatpush1.bf16.msra.mxu0 0
      %3948 = vmatprep.mubr.bf16.mxu0 0
      %3949 = vmatmul.mubr.bf16.gmra.mrb[0].mxu0 %v3866
      %v3950 = vpop.f32.mrb[0].mxu0
      %v3951 = vadd.f32 0.0, %v3950
      %v3952 = vpop.f32.mrb[0].mxu0
      %v3953 = vpop.f32.mrb[0].mxu0
      %v3954 = vadd.f32 0.0, %v3953
      %v3955 = vpop.f32.mrb[0].mxu0
      %3956 = vmatprep.mubr.bf16.mxu0 0
      %3957 = vmatmul.mubr.bf16.gmra.mrb[0].mxu0 %v3869
      %v3958 = vpop.f32.mrb[0].mxu0
      %v3959 = vadd.f32 0.0, %v3958
      %v3960 = vpop.f32.mrb[0].mxu0
      %v3961 = vpop.f32.mrb[0].mxu0
      %v3962 = vadd.f32 0.0, %v3961
      %v3963 = vpop.f32.mrb[0].mxu0
      %3964 = vmatprep.mubr.bf16.mxu0 0
      %3965 = vmatmul.mubr.bf16.gmra.mrb[0].mxu0 %v3872
      %v3966 = vpop.f32.mrb[0].mxu0
      %v3967 = vadd.f32 0.0, %v3966
      %v3968 = vpop.f32.mrb[0].mxu0
      %v3969 = vpop.f32.mrb[0].mxu0
      %v3970 = vadd.f32 0.0, %v3969
      %v3971 = vpop.f32.mrb[0].mxu0
      %3972 = vmatprep.mubr.bf16.mxu0 0
      %3973 = vmatmul.mubr.bf16.gmra.mrb[0].mxu0 %v3875
      %v3974 = vpop.f32.mrb[0].mxu0
      %v3975 = vadd.f32 0.0, %v3974
      %v3976 = vpop.f32.mrb[0].mxu0
      %v3977 = vpop.f32.mrb[0].mxu0
      %v3978 = vadd.f32 0.0, %v3977
      %v3979 = vpop.f32.mrb[0].mxu0
      %3980 = vmatprep.mubr.bf16.mxu0 0
      %3981 = vmatmul.mubr.bf16.gmra.mrb[0].mxu0 %v3878
      %v3982 = vpop.f32.mrb[0].mxu0
      %v3983 = vadd.f32 0.0, %v3982
      %v3984 = vpop.f32.mrb[0].mxu0
      %v3985 = vpop.f32.mrb[0].mxu0
      %v3986 = vadd.f32 0.0, %v3985
      %v3987 = vpop.f32.mrb[0].mxu0
      %3988 = vmatprep.mubr.bf16.mxu0 0
      %3989 = vmatmul.mubr.bf16.gmra.mrb[0].mxu0 %v3881
      %v3990 = vpop.f32.mrb[0].mxu0
      %v3991 = vadd.f32 0.0, %v3990
      %v3992 = vpop.f32.mrb[0].mxu0
      %v3993 = vpop.f32.mrb[0].mxu0
      %v3994 = vadd.f32 0.0, %v3993
      %v3995 = vpop.f32.mrb[0].mxu0
      %3996 = vmatprep.mubr.bf16.mxu0 0
      %3997 = vmatmul.mubr.bf16.gmra.mrb[0].mxu0 %v3884
      %v3998 = vpop.f32.mrb[0].mxu0
      %v3999 = vadd.f32 0.0, %v3998
      %v4000 = vpop.f32.mrb[0].mxu0
      %v4001 = vpop.f32.mrb[0].mxu0
      %v4002 = vadd.f32 0.0, %v4001
      %v4003 = vpop.f32.mrb[0].mxu0
      %4004 = vmatprep.mubr.bf16.mxu0 0
      %4005 = vmatmul.mubr.bf16.gmra.mrb[0].mxu0 %v3887
      %v4006 = vpop.f32.mrb[0].mxu0
      %v4007 = vadd.f32 0.0, %v4006
      %v4008 = vpop.f32.mrb[0].mxu0
      %v4009 = vpop.f32.mrb[0].mxu0
      %v4010 = vadd.f32 0.0, %v4009
      %v4011 = vpop.f32.mrb[0].mxu0
      %4012 = vmatprep.mubr.bf16.mxu0 0
      %4013 = vmatmul.mubr.bf16.gmra.mrb[0].mxu0 %v3890
      %v4014 = vpop.f32.mrb[0].mxu0
      %v4015 = vadd.f32 0.0, %v4014
      %v4016 = vpop.f32.mrb[0].mxu0
      %v4017 = vpop.f32.mrb[0].mxu0
      %v4018 = vadd.f32 0.0, %v4017
      %v4019 = vpop.f32.mrb[0].mxu0
      %4020 = vmatprep.mubr.bf16.mxu0 0
      %4021 = vmatmul.mubr.bf16.gmra.mrb[0].mxu0 %v3893
      %v4022 = vpop.f32.mrb[0].mxu0
      %v4023 = vadd.f32 0.0, %v4022
      %v4024 = vpop.f32.mrb[0].mxu0
      %v4025 = vpop.f32.mrb[0].mxu0
      %v4026 = vadd.f32 0.0, %v4025
      %v4027 = vpop.f32.mrb[0].mxu0
      %4028 = vmatprep.mubr.bf16.mxu0 0
      %4029 = vmatmul.mubr.bf16.gmra.mrb[0].mxu0 %v3896
      %v4030 = vpop.f32.mrb[0].mxu0
      %v4031 = vadd.f32 0.0, %v4030
      %v4032 = vpop.f32.mrb[0].mxu0
      %v4033 = vpop.f32.mrb[0].mxu0
      %v4034 = vadd.f32 0.0, %v4033
      %v4035 = vpop.f32.mrb[0].mxu0
      %4036 = vmatprep.mubr.bf16.mxu0 0
      %4037 = vmatmul.mubr.bf16.gmra.mrb[0].mxu0 %v3899
      %v4038 = vpop.f32.mrb[0].mxu0
      %v4039 = vadd.f32 0.0, %v4038
      %v4040 = vpop.f32.mrb[0].mxu0
      %v4041 = vpop.f32.mrb[0].mxu0
      %v4042 = vadd.f32 0.0, %v4041
      %v4043 = vpop.f32.mrb[0].mxu0
      %4044 = vmatprep.mubr.bf16.mxu0 0
      %4045 = vmatmul.mubr.bf16.gmra.mrb[0].mxu0 %v3902
      %v4046 = vpop.f32.mrb[0].mxu0
      %v4047 = vadd.f32 0.0, %v4046
      %v4048 = vpop.f32.mrb[0].mxu0
      %v4049 = vpop.f32.mrb[0].mxu0
      %v4050 = vadd.f32 0.0, %v4049
      %v4051 = vpop.f32.mrb[0].mxu0
      %4052 = vmatprep.mubr.bf16.mxu0 0
      %4053 = vmatmul.mubr.bf16.gmra.mrb[0].mxu0 %v3905
      %v4054 = vpop.f32.mrb[0].mxu0
      %v4055 = vadd.f32 0.0, %v4054
      %v4056 = vpop.f32.mrb[0].mxu0
      %v4057 = vpop.f32.mrb[0].mxu0
      %v4058 = vadd.f32 0.0, %v4057
      %v4059 = vpop.f32.mrb[0].mxu0
      %4060 = vmatprep.mubr.bf16.mxu0 0
      %4061 = vmatmul.mubr.bf16.gmra.mrb[0].mxu0 %v3908
      %v4062 = vpop.f32.mrb[0].mxu0
      %v4063 = vadd.f32 0.0, %v4062
      %v4064 = vpop.f32.mrb[0].mxu0
      %v4065 = vpop.f32.mrb[0].mxu0
      %v4066 = vadd.f32 0.0, %v4065
      %v4067 = vpop.f32.mrb[0].mxu0
      %4068 = vmatprep.mubr.bf16.mxu0 0
      %4069 = vmatmul.mubr.bf16.gmra.mrb[0].mxu0 %v3911
      %v4070 = vpop.f32.mrb[0].mxu0
      %v4071 = vadd.f32 0.0, %v4070
      %v4072 = vpop.f32.mrb[0].mxu0
      %v4073 = vpop.f32.mrb[0].mxu0
      %v4074 = vadd.f32 0.0, %v4073
      %v4075 = vpop.f32.mrb[0].mxu0
      %4076 = vdwg.mxu0
      %v4077 = vadd.f32 %v3607, %v3951
      %v4078 = vadd.f32 %v3608, %v3954
      %v4079 = vadd.f32 %v3609, %v3959
      %v4080 = vadd.f32 %v3610, %v3962
      %v4081 = vadd.f32 %v3611, %v3967
      %v4082 = vadd.f32 %v3612, %v3970
      %v4083 = vadd.f32 %v3613, %v3975
      %v4084 = vadd.f32 %v3614, %v3978
      %v4085 = vadd.f32 %v3615, %v3983
      %v4086 = vadd.f32 %v3616, %v3986
      %v4087 = vadd.f32 %v3617, %v3991
      %v4088 = vadd.f32 %v3618, %v3994
      %v4089 = vadd.f32 %v3619, %v3999
      %v4090 = vadd.f32 %v3620, %v4002
      %v4091 = vadd.f32 %v3621, %v4007
      %v4092 = vadd.f32 %v3622, %v4010
      %v4093 = vadd.f32 %v3623, %v4015
      %v4094 = vadd.f32 %v3624, %v4018
      %v4095 = vadd.f32 %v3625, %v4023
      %v4096 = vadd.f32 %v3626, %v4026
      %v4097 = vadd.f32 %v3627, %v4031
      %v4098 = vadd.f32 %v3628, %v4034
      %v4099 = vadd.f32 %v3629, %v4039
      %v4100 = vadd.f32 %v3630, %v4042
      %v4101 = vadd.f32 %v3631, %v4047
      %v4102 = vadd.f32 %v3632, %v4050
      %v4103 = vadd.f32 %v3633, %v4055
      %v4104 = vadd.f32 %v3634, %v4058
      %v4105 = vadd.f32 %v3635, %v4063
      %v4106 = vadd.f32 %v3636, %v4066
      %v4107 = vadd.f32 %v3637, %v4071
      %v4108 = vadd.f32 %v3638, %v4074
      %s4109 = sadd.s32 0, 2
      %s4110 = smul.u32 %s4109, 3
      %s4111 = smul.addr %s4110, 4
      %s4112 = scalar_lea.vmem [#allocation2], %s4111
      %v4113 = vld [vmem:[%s4112] sm:$0xf]
      %v4114 = vld [vmem:[%s4112 + $0x4] sm:$0xf]
      %v4115 = vld [vmem:[%s4112 + $0xc] sm:$0xf]
      %v4116 = vld [vmem:[%s4112 + $0x10] sm:$0xf]
      %v4117 = vld [vmem:[%s4112 + $0x18] sm:$0xf]
      %v4118 = vld [vmem:[%s4112 + $0x1c] sm:$0xf]
      %v4119 = vld [vmem:[%s4112 + $0x24] sm:$0xf]
      %v4120 = vld [vmem:[%s4112 + $0x28] sm:$0xf]
      %v4121 = vld [vmem:[%s4112 + $0x30] sm:$0xf]
      %v4122 = vld [vmem:[%s4112 + $0x34] sm:$0xf]
      %v4123 = vld [vmem:[%s4112 + $0x3c] sm:$0xf]
      %v4124 = vld [vmem:[%s4112 + $0x40] sm:$0xf]
      %v4125 = vld [vmem:[%s4112 + $0x48] sm:$0xf]
      %v4126 = vld [vmem:[%s4112 + $0x4c] sm:$0xf]
      %v4127 = vld [vmem:[%s4112 + $0x54] sm:$0xf]
      %v4128 = vld [vmem:[%s4112 + $0x58] sm:$0xf]
      %v4129 = vld [vmem:[%s4112 + $0x60] sm:$0xf]
      %v4130 = vld [vmem:[%s4112 + $0x64] sm:$0xf]
      %v4131 = vld [vmem:[%s4112 + $0x6c] sm:$0xf]
      %v4132 = vld [vmem:[%s4112 + $0x70] sm:$0xf]
      %v4133 = vld [vmem:[%s4112 + $0x78] sm:$0xf]
      %v4134 = vld [vmem:[%s4112 + $0x7c] sm:$0xf]
      %v4135 = vld [vmem:[%s4112 + $0x84] sm:$0xf]
      %v4136 = vld [vmem:[%s4112 + $0x88] sm:$0xf]
      %v4137 = vld [vmem:[%s4112 + $0x90] sm:$0xf]
      %v4138 = vld [vmem:[%s4112 + $0x94] sm:$0xf]
      %v4139 = vld [vmem:[%s4112 + $0x9c] sm:$0xf]
      %v4140 = vld [vmem:[%s4112 + $0xa0] sm:$0xf]
      %v4141 = vld [vmem:[%s4112 + $0xa8] sm:$0xf]
      %v4142 = vld [vmem:[%s4112 + $0xac] sm:$0xf]
      %v4143 = vld [vmem:[%s4112 + $0xb4] sm:$0xf]
      %v4144 = vld [vmem:[%s4112 + $0xb8] sm:$0xf]
      %s4145 = scalar_lea.vmem %s3, 24
      %v4146 = vld [vmem:[%s4145] sm:$0xf]
      %v4179 = vunpack.c.l.b16 %v4113
      %v4180 = vunpack.c.l.b16 %v4114
      %v4181 = vunpack.c.l.b16 %v4115
      %v4182 = vunpack.c.l.b16 %v4116
      %v4183 = vunpack.c.l.b16 %v4117
      %v4184 = vunpack.c.l.b16 %v4118
      %v4185 = vunpack.c.l.b16 %v4119
      %v4186 = vunpack.c.l.b16 %v4120
      %v4187 = vunpack.c.l.b16 %v4121
      %v4188 = vunpack.c.l.b16 %v4122
      %v4189 = vunpack.c.l.b16 %v4123
      %v4190 = vunpack.c.l.b16 %v4124
      %v4191 = vunpack.c.l.b16 %v4125
      %v4192 = vunpack.c.l.b16 %v4126
      %v4193 = vunpack.c.l.b16 %v4127
      %v4194 = vunpack.c.l.b16 %v4128
      %v4195 = vunpack.c.l.b16 %v4129
      %v4196 = vunpack.c.l.b16 %v4130
      %v4197 = vunpack.c.l.b16 %v4131
      %v4198 = vunpack.c.l.b16 %v4132
      %v4199 = vunpack.c.l.b16 %v4133
      %v4200 = vunpack.c.l.b16 %v4134
      %v4201 = vunpack.c.l.b16 %v4135
      %v4202 = vunpack.c.l.b16 %v4136
      %v4203 = vunpack.c.l.b16 %v4137
      %v4204 = vunpack.c.l.b16 %v4138
      %v4205 = vunpack.c.l.b16 %v4139
      %v4206 = vunpack.c.l.b16 %v4140
      %v4207 = vunpack.c.l.b16 %v4141
      %v4208 = vunpack.c.l.b16 %v4142
      %v4209 = vunpack.c.l.b16 %v4143
      %v4210 = vunpack.c.l.b16 %v4144
      %v4211 = vpack.c.b16 %v4180, %v4179
      %v4212 = vpack.c.b16 %v4182, %v4181
      %v4213 = vpack.c.b16 %v4184, %v4183
      %v4214 = vpack.c.b16 %v4186, %v4185
      %v4215 = vpack.c.b16 %v4188, %v4187
      %v4216 = vpack.c.b16 %v4190, %v4189
      %v4217 = vpack.c.b16 %v4192, %v4191
      %v4218 = vpack.c.b16 %v4194, %v4193
      %v4219 = vpack.c.b16 %v4196, %v4195
      %v4220 = vpack.c.b16 %v4198, %v4197
      %v4221 = vpack.c.b16 %v4200, %v4199
      %v4222 = vpack.c.b16 %v4202, %v4201
      %v4223 = vpack.c.b16 %v4204, %v4203
      %v4224 = vpack.c.b16 %v4206, %v4205
      %v4225 = vpack.c.b16 %v4208, %v4207
      %v4226 = vpack.c.b16 %v4210, %v4209
      %v4228 = vsel %vm1588, %v4211, 0
      %v4231 = vsel %vm1588, %v4212, 0
      %v4234 = vsel %vm1588, %v4213, 0
      %v4237 = vsel %vm1588, %v4214, 0
      %v4240 = vsel %vm1588, %v4215, 0
      %v4243 = vsel %vm1588, %v4216, 0
      %v4246 = vsel %vm1588, %v4217, 0
      %v4249 = vsel %vm1588, %v4218, 0
      %v4252 = vsel %vm1588, %v4219, 0
      %v4255 = vsel %vm1588, %v4220, 0
      %v4258 = vsel %vm1588, %v4221, 0
      %v4261 = vsel %vm1588, %v4222, 0
      %v4264 = vsel %vm1588, %v4223, 0
      %v4267 = vsel %vm1588, %v4224, 0
      %v4270 = vsel %vm1588, %v4225, 0
      %v4273 = vsel %vm1588, %v4226, 0
      %v4276 = vsel %vm1637, %v4146, 0
      %4278 = vmatprep.subr.bf16.mxu0 0
      %4279 = vmatpush1.bf16.msra.mxu0 %v4276
      %4280 = vmatprep.subr.bf16.mxu0 0
      %4281 = vmatpush1.bf16.msra.mxu0 0
      %4282 = vmatprep.subr.bf16.mxu0 0
      %4283 = vmatpush1.bf16.msra.mxu0 0
      %4284 = vmatprep.subr.bf16.mxu0 0
      %4285 = vmatpush1.bf16.msra.mxu0 0
      %4286 = vmatprep.subr.bf16.mxu0 0
      %4287 = vmatpush1.bf16.msra.mxu0 0
      %4288 = vmatprep.subr.bf16.mxu0 0
      %4289 = vmatpush1.bf16.msra.mxu0 0
      %4290 = vmatprep.subr.bf16.mxu0 0
      %4291 = vmatpush1.bf16.msra.mxu0 0
      %4292 = vmatprep.subr.bf16.mxu0 0
      %4293 = vmatpush1.bf16.msra.mxu0 0
      %4294 = vmatprep.subr.bf16.mxu0 0
      %4295 = vmatpush1.bf16.msra.mxu0 0
      %4296 = vmatprep.subr.bf16.mxu0 0
      %4297 = vmatpush1.bf16.msra.mxu0 0
      %4298 = vmatprep.subr.bf16.mxu0 0
      %4299 = vmatpush1.bf16.msra.mxu0 0
      %4300 = vmatprep.subr.bf16.mxu0 0
      %4301 = vmatpush1.bf16.msra.mxu0 0
      %4302 = vmatprep.subr.bf16.mxu0 0
      %4303 = vmatpush1.bf16.msra.mxu0 0
      %4304 = vmatprep.subr.bf16.mxu0 0
      %4305 = vmatpush1.bf16.msra.mxu0 0
      %4306 = vmatprep.subr.bf16.mxu0 0
      %4307 = vmatpush1.bf16.msra.mxu0 0
      %4308 = vmatprep.subr.bf16.mxu0 0
      %4309 = vmatpush1.bf16.msra.mxu0 0
      %4310 = vmatprep.mubr.bf16.mxu0 0
      %4311 = vmatmul.mubr.bf16.gmra.mrb[0].mxu0 %v4228
      %v4312 = vpop.f32.mrb[0].mxu0
      %v4313 = vadd.f32 0.0, %v4312
      %v4314 = vpop.f32.mrb[0].mxu0
      %v4315 = vpop.f32.mrb[0].mxu0
      %v4316 = vadd.f32 0.0, %v4315
      %v4317 = vpop.f32.mrb[0].mxu0
      %4318 = vmatprep.mubr.bf16.mxu0 0
      %4319 = vmatmul.mubr.bf16.gmra.mrb[0].mxu0 %v4231
      %v4320 = vpop.f32.mrb[0].mxu0
      %v4321 = vadd.f32 0.0, %v4320
      %v4322 = vpop.f32.mrb[0].mxu0
      %v4323 = vpop.f32.mrb[0].mxu0
      %v4324 = vadd.f32 0.0, %v4323
      %v4325 = vpop.f32.mrb[0].mxu0
      %4326 = vmatprep.mubr.bf16.mxu0 0
      %4327 = vmatmul.mubr.bf16.gmra.mrb[0].mxu0 %v4234
      %v4328 = vpop.f32.mrb[0].mxu0
      %v4329 = vadd.f32 0.0, %v4328
      %v4330 = vpop.f32.mrb[0].mxu0
      %v4331 = vpop.f32.mrb[0].mxu0
      %v4332 = vadd.f32 0.0, %v4331
      %v4333 = vpop.f32.mrb[0].mxu0
      %4334 = vmatprep.mubr.bf16.mxu0 0
      %4335 = vmatmul.mubr.bf16.gmra.mrb[0].mxu0 %v4237
      %v4336 = vpop.f32.mrb[0].mxu0
      %v4337 = vadd.f32 0.0, %v4336
      %v4338 = vpop.f32.mrb[0].mxu0
      %v4339 = vpop.f32.mrb[0].mxu0
      %v4340 = vadd.f32 0.0, %v4339
      %v4341 = vpop.f32.mrb[0].mxu0
      %4342 = vmatprep.mubr.bf16.mxu0 0
      %4343 = vmatmul.mubr.bf16.gmra.mrb[0].mxu0 %v4240
      %v4344 = vpop.f32.mrb[0].mxu0
      %v4345 = vadd.f32 0.0, %v4344
      %v4346 = vpop.f32.mrb[0].mxu0
      %v4347 = vpop.f32.mrb[0].mxu0
      %v4348 = vadd.f32 0.0, %v4347
      %v4349 = vpop.f32.mrb[0].mxu0
      %4350 = vmatprep.mubr.bf16.mxu0 0
      %4351 = vmatmul.mubr.bf16.gmra.mrb[0].mxu0 %v4243
      %v4352 = vpop.f32.mrb[0].mxu0
      %v4353 = vadd.f32 0.0, %v4352
      %v4354 = vpop.f32.mrb[0].mxu0
      %v4355 = vpop.f32.mrb[0].mxu0
      %v4356 = vadd.f32 0.0, %v4355
      %v4357 = vpop.f32.mrb[0].mxu0
      %4358 = vmatprep.mubr.bf16.mxu0 0
      %4359 = vmatmul.mubr.bf16.gmra.mrb[0].mxu0 %v4246
      %v4360 = vpop.f32.mrb[0].mxu0
      %v4361 = vadd.f32 0.0, %v4360
      %v4362 = vpop.f32.mrb[0].mxu0
      %v4363 = vpop.f32.mrb[0].mxu0
      %v4364 = vadd.f32 0.0, %v4363
      %v4365 = vpop.f32.mrb[0].mxu0
      %4366 = vmatprep.mubr.bf16.mxu0 0
      %4367 = vmatmul.mubr.bf16.gmra.mrb[0].mxu0 %v4249
      %v4368 = vpop.f32.mrb[0].mxu0
      %v4369 = vadd.f32 0.0, %v4368
      %v4370 = vpop.f32.mrb[0].mxu0
      %v4371 = vpop.f32.mrb[0].mxu0
      %v4372 = vadd.f32 0.0, %v4371
      %v4373 = vpop.f32.mrb[0].mxu0
      %4374 = vmatprep.mubr.bf16.mxu0 0
      %4375 = vmatmul.mubr.bf16.gmra.mrb[0].mxu0 %v4252
      %v4376 = vpop.f32.mrb[0].mxu0
      %v4377 = vadd.f32 0.0, %v4376
      %v4378 = vpop.f32.mrb[0].mxu0
      %v4379 = vpop.f32.mrb[0].mxu0
      %v4380 = vadd.f32 0.0, %v4379
      %v4381 = vpop.f32.mrb[0].mxu0
      %4382 = vmatprep.mubr.bf16.mxu0 0
      %4383 = vmatmul.mubr.bf16.gmra.mrb[0].mxu0 %v4255
      %v4384 = vpop.f32.mrb[0].mxu0
      %v4385 = vadd.f32 0.0, %v4384
      %v4386 = vpop.f32.mrb[0].mxu0
      %v4387 = vpop.f32.mrb[0].mxu0
      %v4388 = vadd.f32 0.0, %v4387
      %v4389 = vpop.f32.mrb[0].mxu0
      %4390 = vmatprep.mubr.bf16.mxu0 0
      %4391 = vmatmul.mubr.bf16.gmra.mrb[0].mxu0 %v4258
      %v4392 = vpop.f32.mrb[0].mxu0
      %v4393 = vadd.f32 0.0, %v4392
      %v4394 = vpop.f32.mrb[0].mxu0
      %v4395 = vpop.f32.mrb[0].mxu0
      %v4396 = vadd.f32 0.0, %v4395
      %v4397 = vpop.f32.mrb[0].mxu0
      %4398 = vmatprep.mubr.bf16.mxu0 0
      %4399 = vmatmul.mubr.bf16.gmra.mrb[0].mxu0 %v4261
      %v4400 = vpop.f32.mrb[0].mxu0
      %v4401 = vadd.f32 0.0, %v4400
      %v4402 = vpop.f32.mrb[0].mxu0
      %v4403 = vpop.f32.mrb[0].mxu0
      %v4404 = vadd.f32 0.0, %v4403
      %v4405 = vpop.f32.mrb[0].mxu0
      %4406 = vmatprep.mubr.bf16.mxu0 0
      %4407 = vmatmul.mubr.bf16.gmra.mrb[0].mxu0 %v4264
      %v4408 = vpop.f32.mrb[0].mxu0
      %v4409 = vadd.f32 0.0, %v4408
      %v4410 = vpop.f32.mrb[0].mxu0
      %v4411 = vpop.f32.mrb[0].mxu0
      %v4412 = vadd.f32 0.0, %v4411
      %v4413 = vpop.f32.mrb[0].mxu0
      %4414 = vmatprep.mubr.bf16.mxu0 0
      %4415 = vmatmul.mubr.bf16.gmra.mrb[0].mxu0 %v4267
      %v4416 = vpop.f32.mrb[0].mxu0
      %v4417 = vadd.f32 0.0, %v4416
      %v4418 = vpop.f32.mrb[0].mxu0
      %v4419 = vpop.f32.mrb[0].mxu0
      %v4420 = vadd.f32 0.0, %v4419
      %v4421 = vpop.f32.mrb[0].mxu0
      %4422 = vmatprep.mubr.bf16.mxu0 0
      %4423 = vmatmul.mubr.bf16.gmra.mrb[0].mxu0 %v4270
      %v4424 = vpop.f32.mrb[0].mxu0
      %v4425 = vadd.f32 0.0, %v4424
      %v4426 = vpop.f32.mrb[0].mxu0
      %v4427 = vpop.f32.mrb[0].mxu0
      %v4428 = vadd.f32 0.0, %v4427
      %v4429 = vpop.f32.mrb[0].mxu0
      %4430 = vmatprep.mubr.bf16.mxu0 0
      %4431 = vmatmul.mubr.bf16.gmra.mrb[0].mxu0 %v4273
      %v4432 = vpop.f32.mrb[0].mxu0
      %v4433 = vadd.f32 0.0, %v4432
      %v4434 = vpop.f32.mrb[0].mxu0
      %v4435 = vpop.f32.mrb[0].mxu0
      %v4436 = vadd.f32 0.0, %v4435
      %v4437 = vpop.f32.mrb[0].mxu0
      %4438 = vdwg.mxu0
      %v4439 = vadd.f32 %v4077, %v4313
      %v4440 = vadd.f32 %v4078, %v4316
      %v4441 = vadd.f32 %v4079, %v4321
      %v4442 = vadd.f32 %v4080, %v4324
      %v4443 = vadd.f32 %v4081, %v4329
      %v4444 = vadd.f32 %v4082, %v4332
      %v4445 = vadd.f32 %v4083, %v4337
      %v4446 = vadd.f32 %v4084, %v4340
      %v4447 = vadd.f32 %v4085, %v4345
      %v4448 = vadd.f32 %v4086, %v4348
      %v4449 = vadd.f32 %v4087, %v4353
      %v4450 = vadd.f32 %v4088, %v4356
      %v4451 = vadd.f32 %v4089, %v4361
      %v4452 = vadd.f32 %v4090, %v4364
      %v4453 = vadd.f32 %v4091, %v4369
      %v4454 = vadd.f32 %v4092, %v4372
      %v4455 = vadd.f32 %v4093, %v4377
      %v4456 = vadd.f32 %v4094, %v4380
      %v4457 = vadd.f32 %v4095, %v4385
      %v4458 = vadd.f32 %v4096, %v4388
      %v4459 = vadd.f32 %v4097, %v4393
      %v4460 = vadd.f32 %v4098, %v4396
      %v4461 = vadd.f32 %v4099, %v4401
      %v4462 = vadd.f32 %v4100, %v4404
      %v4463 = vadd.f32 %v4101, %v4409
      %v4464 = vadd.f32 %v4102, %v4412
      %v4465 = vadd.f32 %v4103, %v4417
      %v4466 = vadd.f32 %v4104, %v4420
      %v4467 = vadd.f32 %v4105, %v4425
      %v4468 = vadd.f32 %v4106, %v4428
      %v4469 = vadd.f32 %v4107, %v4433
      %v4470 = vadd.f32 %v4108, %v4436
      %v4471 = vld [vmem:[%s4112] sm:$0xf]
      %v4472 = vld [vmem:[%s4112 + $0x4] sm:$0xf]
      %v4473 = vld [vmem:[%s4112 + $0x8] sm:$0x1]
      %v4474 = vld [vmem:[%s4112 + $0xc] sm:$0xf]
      %v4475 = vld [vmem:[%s4112 + $0x10] sm:$0xf]
      %v4476 = vld [vmem:[%s4112 + $0x14] sm:$0x1]
      %v4477 = vld [vmem:[%s4112 + $0x18] sm:$0xf]
      %v4478 = vld [vmem:[%s4112 + $0x1c] sm:$0xf]
      %v4479 = vld [vmem:[%s4112 + $0x20] sm:$0x1]
      %v4480 = vld [vmem:[%s4112 + $0x24] sm:$0xf]
      %v4481 = vld [vmem:[%s4112 + $0x28] sm:$0xf]
      %v4482 = vld [vmem:[%s4112 + $0x2c] sm:$0x1]
      %v4483 = vld [vmem:[%s4112 + $0x30] sm:$0xf]
      %v4484 = vld [vmem:[%s4112 + $0x34] sm:$0xf]
      %v4485 = vld [vmem:[%s4112 + $0x38] sm:$0x1]
      %v4486 = vld [vmem:[%s4112 + $0x3c] sm:$0xf]
      %v4487 = vld [vmem:[%s4112 + $0x40] sm:$0xf]
      %v4488 = vld [vmem:[%s4112 + $0x44] sm:$0x1]
      %v4489 = vld [vmem:[%s4112 + $0x48] sm:$0xf]
      %v4490 = vld [vmem:[%s4112 + $0x4c] sm:$0xf]
      %v4491 = vld [vmem:[%s4112 + $0x50] sm:$0x1]
      %v4492 = vld [vmem:[%s4112 + $0x54] sm:$0xf]
      %v4493 = vld [vmem:[%s4112 + $0x58] sm:$0xf]
      %v4494 = vld [vmem:[%s4112 + $0x5c] sm:$0x1]
      %v4495 = vld [vmem:[%s4112 + $0x60] sm:$0xf]
      %v4496 = vld [vmem:[%s4112 + $0x64] sm:$0xf]
      %v4497 = vld [vmem:[%s4112 + $0x68] sm:$0x1]
      %v4498 = vld [vmem:[%s4112 + $0x6c] sm:$0xf]
      %v4499 = vld [vmem:[%s4112 + $0x70] sm:$0xf]
      %v4500 = vld [vmem:[%s4112 + $0x74] sm:$0x1]
      %v4501 = vld [vmem:[%s4112 + $0x78] sm:$0xf]
      %v4502 = vld [vmem:[%s4112 + $0x7c] sm:$0xf]
      %v4503 = vld [vmem:[%s4112 + $0x80] sm:$0x1]
      %v4504 = vld [vmem:[%s4112 + $0x84] sm:$0xf]
      %v4505 = vld [vmem:[%s4112 + $0x88] sm:$0xf]
      %v4506 = vld [vmem:[%s4112 + $0x8c] sm:$0x1]
      %v4507 = vld [vmem:[%s4112 + $0x90] sm:$0xf]
      %v4508 = vld [vmem:[%s4112 + $0x94] sm:$0xf]
      %v4509 = vld [vmem:[%s4112 + $0x98] sm:$0x1]
      %v4510 = vld [vmem:[%s4112 + $0x9c] sm:$0xf]
      %v4511 = vld [vmem:[%s4112 + $0xa0] sm:$0xf]
      %v4512 = vld [vmem:[%s4112 + $0xa4] sm:$0x1]
      %v4513 = vld [vmem:[%s4112 + $0xa8] sm:$0xf]
      %v4514 = vld [vmem:[%s4112 + $0xac] sm:$0xf]
      %v4515 = vld [vmem:[%s4112 + $0xb0] sm:$0x1]
      %v4516 = vld [vmem:[%s4112 + $0xb4] sm:$0xf]
      %v4517 = vld [vmem:[%s4112 + $0xb8] sm:$0xf]
      %v4518 = vld [vmem:[%s4112 + $0xbc] sm:$0x1]
      %v4520 = vshrl.u32 %v4471, 16
      %v4522 = vrot.slane %v4520, 4
      %v4523 = vshll.u32 %v4471, 16
      %v4525 = vrot.slane %v4523, 5
      %v4526 = vor.u32 %v4522, %v4525
      %v4527 = vrot.slane %v4526, 4
      %v4529 = vshll.u32 %v4472, 16
      %v4531 = vrot.slane %v4529, 5
      %v4532 = vsel %vm1153, %v4527, %v4531
      %v4533 = vshrl.u32 %v4472, 16
      %v4535 = vrot.slane %v4533, 4
      %v4536 = vor.u32 %v4535, %v4531
      %v4537 = vrot.slane %v4536, 4
      %v4539 = vshll.u32 %v4473, 16
      %v4541 = vrot.slane %v4539, 5
      %v4542 = vsel %vm1153, %v4537, %v4541
      %v4544 = vshrl.u32 %v4474, 16
      %v4546 = vrot.slane %v4544, 4
      %v4547 = vshll.u32 %v4474, 16
      %v4549 = vrot.slane %v4547, 5
      %v4550 = vor.u32 %v4546, %v4549
      %v4551 = vrot.slane %v4550, 4
      %v4553 = vshll.u32 %v4475, 16
      %v4555 = vrot.slane %v4553, 5
      %v4556 = vsel %vm1153, %v4551, %v4555
      %v4557 = vshrl.u32 %v4475, 16
      %v4559 = vrot.slane %v4557, 4
      %v4560 = vor.u32 %v4559, %v4555
      %v4561 = vrot.slane %v4560, 4
      %v4563 = vshll.u32 %v4476, 16
      %v4565 = vrot.slane %v4563, 5
      %v4566 = vsel %vm1153, %v4561, %v4565
      %v4568 = vshrl.u32 %v4477, 16
      %v4570 = vrot.slane %v4568, 4
      %v4571 = vshll.u32 %v4477, 16
      %v4573 = vrot.slane %v4571, 5
      %v4574 = vor.u32 %v4570, %v4573
      %v4575 = vrot.slane %v4574, 4
      %v4577 = vshll.u32 %v4478, 16
      %v4579 = vrot.slane %v4577, 5
      %v4580 = vsel %vm1153, %v4575, %v4579
      %v4581 = vshrl.u32 %v4478, 16
      %v4583 = vrot.slane %v4581, 4
      %v4584 = vor.u32 %v4583, %v4579
      %v4585 = vrot.slane %v4584, 4
      %v4587 = vshll.u32 %v4479, 16
      %v4589 = vrot.slane %v4587, 5
      %v4590 = vsel %vm1153, %v4585, %v4589
      %v4592 = vshrl.u32 %v4480, 16
      %v4594 = vrot.slane %v4592, 4
      %v4595 = vshll.u32 %v4480, 16
      %v4597 = vrot.slane %v4595, 5
      %v4598 = vor.u32 %v4594, %v4597
      %v4599 = vrot.slane %v4598, 4
      %v4601 = vshll.u32 %v4481, 16
      %v4603 = vrot.slane %v4601, 5
      %v4604 = vsel %vm1153, %v4599, %v4603
      %v4605 = vshrl.u32 %v4481, 16
      %v4607 = vrot.slane %v4605, 4
      %v4608 = vor.u32 %v4607, %v4603
      %v4609 = vrot.slane %v4608, 4
      %v4611 = vshll.u32 %v4482, 16
      %v4613 = vrot.slane %v4611, 5
      %v4614 = vsel %vm1153, %v4609, %v4613
      %v4616 = vshrl.u32 %v4483, 16
      %v4618 = vrot.slane %v4616, 4
      %v4619 = vshll.u32 %v4483, 16
      %v4621 = vrot.slane %v4619, 5
      %v4622 = vor.u32 %v4618, %v4621
      %v4623 = vrot.slane %v4622, 4
      %v4625 = vshll.u32 %v4484, 16
      %v4627 = vrot.slane %v4625, 5
      %v4628 = vsel %vm1153, %v4623, %v4627
      %v4629 = vshrl.u32 %v4484, 16
      %v4631 = vrot.slane %v4629, 4
      %v4632 = vor.u32 %v4631, %v4627
      %v4633 = vrot.slane %v4632, 4
      %v4635 = vshll.u32 %v4485, 16
      %v4637 = vrot.slane %v4635, 5
      %v4638 = vsel %vm1153, %v4633, %v4637
      %v4640 = vshrl.u32 %v4486, 16
      %v4642 = vrot.slane %v4640, 4
      %v4643 = vshll.u32 %v4486, 16
      %v4645 = vrot.slane %v4643, 5
      %v4646 = vor.u32 %v4642, %v4645
      %v4647 = vrot.slane %v4646, 4
      %v4649 = vshll.u32 %v4487, 16
      %v4651 = vrot.slane %v4649, 5
      %v4652 = vsel %vm1153, %v4647, %v4651
      %v4653 = vshrl.u32 %v4487, 16
      %v4655 = vrot.slane %v4653, 4
      %v4656 = vor.u32 %v4655, %v4651
      %v4657 = vrot.slane %v4656, 4
      %v4659 = vshll.u32 %v4488, 16
      %v4661 = vrot.slane %v4659, 5
      %v4662 = vsel %vm1153, %v4657, %v4661
      %v4664 = vshrl.u32 %v4489, 16
      %v4666 = vrot.slane %v4664, 4
      %v4667 = vshll.u32 %v4489, 16
      %v4669 = vrot.slane %v4667, 5
      %v4670 = vor.u32 %v4666, %v4669
      %v4671 = vrot.slane %v4670, 4
      %v4673 = vshll.u32 %v4490, 16
      %v4675 = vrot.slane %v4673, 5
      %v4676 = vsel %vm1153, %v4671, %v4675
      %v4677 = vshrl.u32 %v4490, 16
      %v4679 = vrot.slane %v4677, 4
      %v4680 = vor.u32 %v4679, %v4675
      %v4681 = vrot.slane %v4680, 4
      %v4683 = vshll.u32 %v4491, 16
      %v4685 = vrot.slane %v4683, 5
      %v4686 = vsel %vm1153, %v4681, %v4685
      %v4688 = vshrl.u32 %v4492, 16
      %v4690 = vrot.slane %v4688, 4
      %v4691 = vshll.u32 %v4492, 16
      %v4693 = vrot.slane %v4691, 5
      %v4694 = vor.u32 %v4690, %v4693
      %v4695 = vrot.slane %v4694, 4
      %v4697 = vshll.u32 %v4493, 16
      %v4699 = vrot.slane %v4697, 5
      %v4700 = vsel %vm1153, %v4695, %v4699
      %v4701 = vshrl.u32 %v4493, 16
      %v4703 = vrot.slane %v4701, 4
      %v4704 = vor.u32 %v4703, %v4699
      %v4705 = vrot.slane %v4704, 4
      %v4707 = vshll.u32 %v4494, 16
      %v4709 = vrot.slane %v4707, 5
      %v4710 = vsel %vm1153, %v4705, %v4709
      %v4712 = vshrl.u32 %v4495, 16
      %v4714 = vrot.slane %v4712, 4
      %v4715 = vshll.u32 %v4495, 16
      %v4717 = vrot.slane %v4715, 5
      %v4718 = vor.u32 %v4714, %v4717
      %v4719 = vrot.slane %v4718, 4
      %v4721 = vshll.u32 %v4496, 16
      %v4723 = vrot.slane %v4721, 5
      %v4724 = vsel %vm1153, %v4719, %v4723
      %v4725 = vshrl.u32 %v4496, 16
      %v4727 = vrot.slane %v4725, 4
      %v4728 = vor.u32 %v4727, %v4723
      %v4729 = vrot.slane %v4728, 4
      %v4731 = vshll.u32 %v4497, 16
      %v4733 = vrot.slane %v4731, 5
      %v4734 = vsel %vm1153, %v4729, %v4733
      %v4736 = vshrl.u32 %v4498, 16
      %v4738 = vrot.slane %v4736, 4
      %v4739 = vshll.u32 %v4498, 16
      %v4741 = vrot.slane %v4739, 5
      %v4742 = vor.u32 %v4738, %v4741
      %v4743 = vrot.slane %v4742, 4
      %v4745 = vshll.u32 %v4499, 16
      %v4747 = vrot.slane %v4745, 5
      %v4748 = vsel %vm1153, %v4743, %v4747
      %v4749 = vshrl.u32 %v4499, 16
      %v4751 = vrot.slane %v4749, 4
      %v4752 = vor.u32 %v4751, %v4747
      %v4753 = vrot.slane %v4752, 4
      %v4755 = vshll.u32 %v4500, 16
      %v4757 = vrot.slane %v4755, 5
      %v4758 = vsel %vm1153, %v4753, %v4757
      %v4760 = vshrl.u32 %v4501, 16
      %v4762 = vrot.slane %v4760, 4
      %v4763 = vshll.u32 %v4501, 16
      %v4765 = vrot.slane %v4763, 5
      %v4766 = vor.u32 %v4762, %v4765
      %v4767 = vrot.slane %v4766, 4
      %v4769 = vshll.u32 %v4502, 16
      %v4771 = vrot.slane %v4769, 5
      %v4772 = vsel %vm1153, %v4767, %v4771
      %v4773 = vshrl.u32 %v4502, 16
      %v4775 = vrot.slane %v4773, 4
      %v4776 = vor.u32 %v4775, %v4771
      %v4777 = vrot.slane %v4776, 4
      %v4779 = vshll.u32 %v4503, 16
      %v4781 = vrot.slane %v4779, 5
      %v4782 = vsel %vm1153, %v4777, %v4781
      %v4784 = vshrl.u32 %v4504, 16
      %v4786 = vrot.slane %v4784, 4
      %v4787 = vshll.u32 %v4504, 16
      %v4789 = vrot.slane %v4787, 5
      %v4790 = vor.u32 %v4786, %v4789
      %v4791 = vrot.slane %v4790, 4
      %v4793 = vshll.u32 %v4505, 16
      %v4795 = vrot.slane %v4793, 5
      %v4796 = vsel %vm1153, %v4791, %v4795
      %v4797 = vshrl.u32 %v4505, 16
      %v4799 = vrot.slane %v4797, 4
      %v4800 = vor.u32 %v4799, %v4795
      %v4801 = vrot.slane %v4800, 4
      %v4803 = vshll.u32 %v4506, 16
      %v4805 = vrot.slane %v4803, 5
      %v4806 = vsel %vm1153, %v4801, %v4805
      %v4808 = vshrl.u32 %v4507, 16
      %v4810 = vrot.slane %v4808, 4
      %v4811 = vshll.u32 %v4507, 16
      %v4813 = vrot.slane %v4811, 5
      %v4814 = vor.u32 %v4810, %v4813
      %v4815 = vrot.slane %v4814, 4
      %v4817 = vshll.u32 %v4508, 16
      %v4819 = vrot.slane %v4817, 5
      %v4820 = vsel %vm1153, %v4815, %v4819
      %v4821 = vshrl.u32 %v4508, 16
      %v4823 = vrot.slane %v4821, 4
      %v4824 = vor.u32 %v4823, %v4819
      %v4825 = vrot.slane %v4824, 4
      %v4827 = vshll.u32 %v4509, 16
      %v4829 = vrot.slane %v4827, 5
      %v4830 = vsel %vm1153, %v4825, %v4829
      %v4832 = vshrl.u32 %v4510, 16
      %v4834 = vrot.slane %v4832, 4
      %v4835 = vshll.u32 %v4510, 16
      %v4837 = vrot.slane %v4835, 5
      %v4838 = vor.u32 %v4834, %v4837
      %v4839 = vrot.slane %v4838, 4
      %v4841 = vshll.u32 %v4511, 16
      %v4843 = vrot.slane %v4841, 5
      %v4844 = vsel %vm1153, %v4839, %v4843
      %v4845 = vshrl.u32 %v4511, 16
      %v4847 = vrot.slane %v4845, 4
      %v4848 = vor.u32 %v4847, %v4843
      %v4849 = vrot.slane %v4848, 4
      %v4851 = vshll.u32 %v4512, 16
      %v4853 = vrot.slane %v4851, 5
      %v4854 = vsel %vm1153, %v4849, %v4853
      %v4856 = vshrl.u32 %v4513, 16
      %v4858 = vrot.slane %v4856, 4
      %v4859 = vshll.u32 %v4513, 16
      %v4861 = vrot.slane %v4859, 5
      %v4862 = vor.u32 %v4858, %v4861
      %v4863 = vrot.slane %v4862, 4
      %v4865 = vshll.u32 %v4514, 16
      %v4867 = vrot.slane %v4865, 5
      %v4868 = vsel %vm1153, %v4863, %v4867
      %v4869 = vshrl.u32 %v4514, 16
      %v4871 = vrot.slane %v4869, 4
      %v4872 = vor.u32 %v4871, %v4867
      %v4873 = vrot.slane %v4872, 4
      %v4875 = vshll.u32 %v4515, 16
      %v4877 = vrot.slane %v4875, 5
      %v4878 = vsel %vm1153, %v4873, %v4877
      %v4880 = vshrl.u32 %v4516, 16
      %v4882 = vrot.slane %v4880, 4
      %v4883 = vshll.u32 %v4516, 16
      %v4885 = vrot.slane %v4883, 5
      %v4886 = vor.u32 %v4882, %v4885
      %v4887 = vrot.slane %v4886, 4
      %v4889 = vshll.u32 %v4517, 16
      %v4891 = vrot.slane %v4889, 5
      %v4892 = vsel %vm1153, %v4887, %v4891
      %v4893 = vshrl.u32 %v4517, 16
      %v4895 = vrot.slane %v4893, 4
      %v4896 = vor.u32 %v4895, %v4891
      %v4897 = vrot.slane %v4896, 4
      %v4899 = vshll.u32 %v4518, 16
      %v4901 = vrot.slane %v4899, 5
      %v4902 = vsel %vm1153, %v4897, %v4901
      %s4903 = scalar_lea.vmem %s3, 28
      %v4904 = vld [vmem:[%s4903] sm:$0xf]
      %v4905 = vunpack.c.l.b16 %v4532
      %v4906 = vunpack.c.l.b16 %v4542
      %v4907 = vunpack.c.l.b16 %v4556
      %v4908 = vunpack.c.l.b16 %v4566
      %v4909 = vunpack.c.l.b16 %v4580
      %v4910 = vunpack.c.l.b16 %v4590
      %v4911 = vunpack.c.l.b16 %v4604
      %v4912 = vunpack.c.l.b16 %v4614
      %v4913 = vunpack.c.l.b16 %v4628
      %v4914 = vunpack.c.l.b16 %v4638
      %v4915 = vunpack.c.l.b16 %v4652
      %v4916 = vunpack.c.l.b16 %v4662
      %v4917 = vunpack.c.l.b16 %v4676
      %v4918 = vunpack.c.l.b16 %v4686
      %v4919 = vunpack.c.l.b16 %v4700
      %v4920 = vunpack.c.l.b16 %v4710
      %v4921 = vunpack.c.l.b16 %v4724
      %v4922 = vunpack.c.l.b16 %v4734
      %v4923 = vunpack.c.l.b16 %v4748
      %v4924 = vunpack.c.l.b16 %v4758
      %v4925 = vunpack.c.l.b16 %v4772
      %v4926 = vunpack.c.l.b16 %v4782
      %v4927 = vunpack.c.l.b16 %v4796
      %v4928 = vunpack.c.l.b16 %v4806
      %v4929 = vunpack.c.l.b16 %v4820
      %v4930 = vunpack.c.l.b16 %v4830
      %v4931 = vunpack.c.l.b16 %v4844
      %v4932 = vunpack.c.l.b16 %v4854
      %v4933 = vunpack.c.l.b16 %v4868
      %v4934 = vunpack.c.l.b16 %v4878
      %v4935 = vunpack.c.l.b16 %v4892
      %v4936 = vunpack.c.l.b16 %v4902
      %v4937 = vpack.c.b16 %v4906, %v4905
      %v4938 = vpack.c.b16 %v4908, %v4907
      %v4939 = vpack.c.b16 %v4910, %v4909
      %v4940 = vpack.c.b16 %v4912, %v4911
      %v4941 = vpack.c.b16 %v4914, %v4913
      %v4942 = vpack.c.b16 %v4916, %v4915
      %v4943 = vpack.c.b16 %v4918, %v4917
      %v4944 = vpack.c.b16 %v4920, %v4919
      %v4945 = vpack.c.b16 %v4922, %v4921
      %v4946 = vpack.c.b16 %v4924, %v4923
      %v4947 = vpack.c.b16 %v4926, %v4925
      %v4948 = vpack.c.b16 %v4928, %v4927
      %v4949 = vpack.c.b16 %v4930, %v4929
      %v4950 = vpack.c.b16 %v4932, %v4931
      %v4951 = vpack.c.b16 %v4934, %v4933
      %v4952 = vpack.c.b16 %v4936, %v4935
      %v4954 = vsel %vm1588, %v4937, 0
      %v4957 = vsel %vm1588, %v4938, 0
      %v4960 = vsel %vm1588, %v4939, 0
      %v4963 = vsel %vm1588, %v4940, 0
      %v4966 = vsel %vm1588, %v4941, 0
      %v4969 = vsel %vm1588, %v4942, 0
      %v4972 = vsel %vm1588, %v4943, 0
      %v4975 = vsel %vm1588, %v4944, 0
      %v4978 = vsel %vm1588, %v4945, 0
      %v4981 = vsel %vm1588, %v4946, 0
      %v4984 = vsel %vm1588, %v4947, 0
      %v4987 = vsel %vm1588, %v4948, 0
      %v4990 = vsel %vm1588, %v4949, 0
      %v4993 = vsel %vm1588, %v4950, 0
      %v4996 = vsel %vm1588, %v4951, 0
      %v4999 = vsel %vm1588, %v4952, 0
      %v5002 = vsel %vm1637, %v4904, 0
      %5004 = vmatprep.subr.bf16.mxu0 0
      %5005 = vmatpush1.bf16.msra.mxu0 %v5002
      %5006 = vmatprep.subr.bf16.mxu0 0
      %5007 = vmatpush1.bf16.msra.mxu0 0
      %5008 = vmatprep.subr.bf16.mxu0 0
      %5009 = vmatpush1.bf16.msra.mxu0 0
      %5010 = vmatprep.subr.bf16.mxu0 0
      %5011 = vmatpush1.bf16.msra.mxu0 0
      %5012 = vmatprep.subr.bf16.mxu0 0
      %5013 = vmatpush1.bf16.msra.mxu0 0
      %5014 = vmatprep.subr.bf16.mxu0 0
      %5015 = vmatpush1.bf16.msra.mxu0 0
      %5016 = vmatprep.subr.bf16.mxu0 0
      %5017 = vmatpush1.bf16.msra.mxu0 0
      %5018 = vmatprep.subr.bf16.mxu0 0
      %5019 = vmatpush1.bf16.msra.mxu0 0
      %5020 = vmatprep.subr.bf16.mxu0 0
      %5021 = vmatpush1.bf16.msra.mxu0 0
      %5022 = vmatprep.subr.bf16.mxu0 0
      %5023 = vmatpush1.bf16.msra.mxu0 0
      %5024 = vmatprep.subr.bf16.mxu0 0
      %5025 = vmatpush1.bf16.msra.mxu0 0
      %5026 = vmatprep.subr.bf16.mxu0 0
      %5027 = vmatpush1.bf16.msra.mxu0 0
      %5028 = vmatprep.subr.bf16.mxu0 0
      %5029 = vmatpush1.bf16.msra.mxu0 0
      %5030 = vmatprep.subr.bf16.mxu0 0
      %5031 = vmatpush1.bf16.msra.mxu0 0
      %5032 = vmatprep.subr.bf16.mxu0 0
      %5033 = vmatpush1.bf16.msra.mxu0 0
      %5034 = vmatprep.subr.bf16.mxu0 0
      %5035 = vmatpush1.bf16.msra.mxu0 0
      %5036 = vmatprep.mubr.bf16.mxu0 0
      %5037 = vmatmul.mubr.bf16.gmra.mrb[0].mxu0 %v4954
      %v5038 = vpop.f32.mrb[0].mxu0
      %v5039 = vadd.f32 0.0, %v5038
      %v5040 = vpop.f32.mrb[0].mxu0
      %v5041 = vpop.f32.mrb[0].mxu0
      %v5042 = vadd.f32 0.0, %v5041
      %v5043 = vpop.f32.mrb[0].mxu0
      %5044 = vmatprep.mubr.bf16.mxu0 0
      %5045 = vmatmul.mubr.bf16.gmra.mrb[0].mxu0 %v4957
      %v5046 = vpop.f32.mrb[0].mxu0
      %v5047 = vadd.f32 0.0, %v5046
      %v5048 = vpop.f32.mrb[0].mxu0
      %v5049 = vpop.f32.mrb[0].mxu0
      %v5050 = vadd.f32 0.0, %v5049
      %v5051 = vpop.f32.mrb[0].mxu0
      %5052 = vmatprep.mubr.bf16.mxu0 0
      %5053 = vmatmul.mubr.bf16.gmra.mrb[0].mxu0 %v4960
      %v5054 = vpop.f32.mrb[0].mxu0
      %v5055 = vadd.f32 0.0, %v5054
      %v5056 = vpop.f32.mrb[0].mxu0
      %v5057 = vpop.f32.mrb[0].mxu0
      %v5058 = vadd.f32 0.0, %v5057
      %v5059 = vpop.f32.mrb[0].mxu0
      %5060 = vmatprep.mubr.bf16.mxu0 0
      %5061 = vmatmul.mubr.bf16.gmra.mrb[0].mxu0 %v4963
      %v5062 = vpop.f32.mrb[0].mxu0
      %v5063 = vadd.f32 0.0, %v5062
      %v5064 = vpop.f32.mrb[0].mxu0
      %v5065 = vpop.f32.mrb[0].mxu0
      %v5066 = vadd.f32 0.0, %v5065
      %v5067 = vpop.f32.mrb[0].mxu0
      %5068 = vmatprep.mubr.bf16.mxu0 0
      %5069 = vmatmul.mubr.bf16.gmra.mrb[0].mxu0 %v4966
      %v5070 = vpop.f32.mrb[0].mxu0
      %v5071 = vadd.f32 0.0, %v5070
      %v5072 = vpop.f32.mrb[0].mxu0
      %v5073 = vpop.f32.mrb[0].mxu0
      %v5074 = vadd.f32 0.0, %v5073
      %v5075 = vpop.f32.mrb[0].mxu0
      %5076 = vmatprep.mubr.bf16.mxu0 0
      %5077 = vmatmul.mubr.bf16.gmra.mrb[0].mxu0 %v4969
      %v5078 = vpop.f32.mrb[0].mxu0
      %v5079 = vadd.f32 0.0, %v5078
      %v5080 = vpop.f32.mrb[0].mxu0
      %v5081 = vpop.f32.mrb[0].mxu0
      %v5082 = vadd.f32 0.0, %v5081
      %v5083 = vpop.f32.mrb[0].mxu0
      %5084 = vmatprep.mubr.bf16.mxu0 0
      %5085 = vmatmul.mubr.bf16.gmra.mrb[0].mxu0 %v4972
      %v5086 = vpop.f32.mrb[0].mxu0
      %v5087 = vadd.f32 0.0, %v5086
      %v5088 = vpop.f32.mrb[0].mxu0
      %v5089 = vpop.f32.mrb[0].mxu0
      %v5090 = vadd.f32 0.0, %v5089
      %v5091 = vpop.f32.mrb[0].mxu0
      %5092 = vmatprep.mubr.bf16.mxu0 0
      %5093 = vmatmul.mubr.bf16.gmra.mrb[0].mxu0 %v4975
      %v5094 = vpop.f32.mrb[0].mxu0
      %v5095 = vadd.f32 0.0, %v5094
      %v5096 = vpop.f32.mrb[0].mxu0
      %v5097 = vpop.f32.mrb[0].mxu0
      %v5098 = vadd.f32 0.0, %v5097
      %v5099 = vpop.f32.mrb[0].mxu0
      %5100 = vmatprep.mubr.bf16.mxu0 0
      %5101 = vmatmul.mubr.bf16.gmra.mrb[0].mxu0 %v4978
      %v5102 = vpop.f32.mrb[0].mxu0
      %v5103 = vadd.f32 0.0, %v5102
      %v5104 = vpop.f32.mrb[0].mxu0
      %v5105 = vpop.f32.mrb[0].mxu0
      %v5106 = vadd.f32 0.0, %v5105
      %v5107 = vpop.f32.mrb[0].mxu0
      %5108 = vmatprep.mubr.bf16.mxu0 0
      %5109 = vmatmul.mubr.bf16.gmra.mrb[0].mxu0 %v4981
      %v5110 = vpop.f32.mrb[0].mxu0
      %v5111 = vadd.f32 0.0, %v5110
      %v5112 = vpop.f32.mrb[0].mxu0
      %v5113 = vpop.f32.mrb[0].mxu0
      %v5114 = vadd.f32 0.0, %v5113
      %v5115 = vpop.f32.mrb[0].mxu0
      %5116 = vmatprep.mubr.bf16.mxu0 0
      %5117 = vmatmul.mubr.bf16.gmra.mrb[0].mxu0 %v4984
      %v5118 = vpop.f32.mrb[0].mxu0
      %v5119 = vadd.f32 0.0, %v5118
      %v5120 = vpop.f32.mrb[0].mxu0
      %v5121 = vpop.f32.mrb[0].mxu0
      %v5122 = vadd.f32 0.0, %v5121
      %v5123 = vpop.f32.mrb[0].mxu0
      %5124 = vmatprep.mubr.bf16.mxu0 0
      %5125 = vmatmul.mubr.bf16.gmra.mrb[0].mxu0 %v4987
      %v5126 = vpop.f32.mrb[0].mxu0
      %v5127 = vadd.f32 0.0, %v5126
      %v5128 = vpop.f32.mrb[0].mxu0
      %v5129 = vpop.f32.mrb[0].mxu0
      %v5130 = vadd.f32 0.0, %v5129
      %v5131 = vpop.f32.mrb[0].mxu0
      %5132 = vmatprep.mubr.bf16.mxu0 0
      %5133 = vmatmul.mubr.bf16.gmra.mrb[0].mxu0 %v4990
      %v5134 = vpop.f32.mrb[0].mxu0
      %v5135 = vadd.f32 0.0, %v5134
      %v5136 = vpop.f32.mrb[0].mxu0
      %v5137 = vpop.f32.mrb[0].mxu0
      %v5138 = vadd.f32 0.0, %v5137
      %v5139 = vpop.f32.mrb[0].mxu0
      %5140 = vmatprep.mubr.bf16.mxu0 0
      %5141 = vmatmul.mubr.bf16.gmra.mrb[0].mxu0 %v4993
      %v5142 = vpop.f32.mrb[0].mxu0
      %v5143 = vadd.f32 0.0, %v5142
      %v5144 = vpop.f32.mrb[0].mxu0
      %v5145 = vpop.f32.mrb[0].mxu0
      %v5146 = vadd.f32 0.0, %v5145
      %v5147 = vpop.f32.mrb[0].mxu0
      %5148 = vmatprep.mubr.bf16.mxu0 0
      %5149 = vmatmul.mubr.bf16.gmra.mrb[0].mxu0 %v4996
      %v5150 = vpop.f32.mrb[0].mxu0
      %v5151 = vadd.f32 0.0, %v5150
      %v5152 = vpop.f32.mrb[0].mxu0
      %v5153 = vpop.f32.mrb[0].mxu0
      %v5154 = vadd.f32 0.0, %v5153
      %v5155 = vpop.f32.mrb[0].mxu0
      %5156 = vmatprep.mubr.bf16.mxu0 0
      %5157 = vmatmul.mubr.bf16.gmra.mrb[0].mxu0 %v4999
      %v5158 = vpop.f32.mrb[0].mxu0
      %v5159 = vadd.f32 0.0, %v5158
      %v5160 = vpop.f32.mrb[0].mxu0
      %v5161 = vpop.f32.mrb[0].mxu0
      %v5162 = vadd.f32 0.0, %v5161
      %v5163 = vpop.f32.mrb[0].mxu0
      %5164 = vdwg.mxu0
      %v5165 = vadd.f32 %v4439, %v5039
      %v5166 = vadd.f32 %v4440, %v5042
      %v5167 = vadd.f32 %v4441, %v5047
      %v5168 = vadd.f32 %v4442, %v5050
      %v5169 = vadd.f32 %v4443, %v5055
      %v5170 = vadd.f32 %v4444, %v5058
      %v5171 = vadd.f32 %v4445, %v5063
      %v5172 = vadd.f32 %v4446, %v5066
      %v5173 = vadd.f32 %v4447, %v5071
      %v5174 = vadd.f32 %v4448, %v5074
      %v5175 = vadd.f32 %v4449, %v5079
      %v5176 = vadd.f32 %v4450, %v5082
      %v5177 = vadd.f32 %v4451, %v5087
      %v5178 = vadd.f32 %v4452, %v5090
      %v5179 = vadd.f32 %v4453, %v5095
      %v5180 = vadd.f32 %v4454, %v5098
      %v5181 = vadd.f32 %v4455, %v5103
      %v5182 = vadd.f32 %v4456, %v5106
      %v5183 = vadd.f32 %v4457, %v5111
      %v5184 = vadd.f32 %v4458, %v5114
      %v5185 = vadd.f32 %v4459, %v5119
      %v5186 = vadd.f32 %v4460, %v5122
      %v5187 = vadd.f32 %v4461, %v5127
      %v5188 = vadd.f32 %v4462, %v5130
      %v5189 = vadd.f32 %v4463, %v5135
      %v5190 = vadd.f32 %v4464, %v5138
      %v5191 = vadd.f32 %v4465, %v5143
      %v5192 = vadd.f32 %v4466, %v5146
      %v5193 = vadd.f32 %v4467, %v5151
      %v5194 = vadd.f32 %v4468, %v5154
      %v5195 = vadd.f32 %v4469, %v5159
      %v5196 = vadd.f32 %v4470, %v5162
      %v5197 = vld [vmem:[%s4112] sm:$0xe]
      %v5198 = vld [vmem:[%s4112 + $0xc] sm:$0xe]
      %v5199 = vld [vmem:[%s4112 + $0x18] sm:$0xe]
      %v5200 = vld [vmem:[%s4112 + $0x24] sm:$0xe]
      %v5201 = vld [vmem:[%s4112 + $0x30] sm:$0xe]
      %v5202 = vld [vmem:[%s4112 + $0x3c] sm:$0xe]
      %v5203 = vld [vmem:[%s4112 + $0x48] sm:$0xe]
      %v5204 = vld [vmem:[%s4112 + $0x54] sm:$0xe]
      %v5205 = vld [vmem:[%s4112 + $0x60] sm:$0xe]
      %v5206 = vld [vmem:[%s4112 + $0x6c] sm:$0xe]
      %v5207 = vld [vmem:[%s4112 + $0x78] sm:$0xe]
      %v5208 = vld [vmem:[%s4112 + $0x84] sm:$0xe]
      %v5209 = vld [vmem:[%s4112 + $0x90] sm:$0xe]
      %v5210 = vld [vmem:[%s4112 + $0x9c] sm:$0xe]
      %v5211 = vld [vmem:[%s4112 + $0xa8] sm:$0xe]
      %v5212 = vld [vmem:[%s4112 + $0xb4] sm:$0xe]
      %v5261 = vrot.slane %v5197, 5
      %v5262 = vrot.slane %v5261, 4
      %v5263 = vrot.slane %v4472, 5
      %v5264 = vsel %vm2144, %v5262, %v5263
      %v5265 = vrot.slane %v5263, 4
      %v5266 = vrot.slane %v4473, 5
      %v5267 = vsel %vm2144, %v5265, %v5266
      %v5268 = vrot.slane %v5198, 5
      %v5269 = vrot.slane %v5268, 4
      %v5270 = vrot.slane %v4475, 5
      %v5271 = vsel %vm2144, %v5269, %v5270
      %v5272 = vrot.slane %v5270, 4
      %v5273 = vrot.slane %v4476, 5
      %v5274 = vsel %vm2144, %v5272, %v5273
      %v5275 = vrot.slane %v5199, 5
      %v5276 = vrot.slane %v5275, 4
      %v5277 = vrot.slane %v4478, 5
      %v5278 = vsel %vm2144, %v5276, %v5277
      %v5279 = vrot.slane %v5277, 4
      %v5280 = vrot.slane %v4479, 5
      %v5281 = vsel %vm2144, %v5279, %v5280
      %v5282 = vrot.slane %v5200, 5
      %v5283 = vrot.slane %v5282, 4
      %v5284 = vrot.slane %v4481, 5
      %v5285 = vsel %vm2144, %v5283, %v5284
      %v5286 = vrot.slane %v5284, 4
      %v5287 = vrot.slane %v4482, 5
      %v5288 = vsel %vm2144, %v5286, %v5287
      %v5289 = vrot.slane %v5201, 5
      %v5290 = vrot.slane %v5289, 4
      %v5291 = vrot.slane %v4484, 5
      %v5292 = vsel %vm2144, %v5290, %v5291
      %v5293 = vrot.slane %v5291, 4
      %v5294 = vrot.slane %v4485, 5
      %v5295 = vsel %vm2144, %v5293, %v5294
      %v5296 = vrot.slane %v5202, 5
      %v5297 = vrot.slane %v5296, 4
      %v5298 = vrot.slane %v4487, 5
      %v5299 = vsel %vm2144, %v5297, %v5298
      %v5300 = vrot.slane %v5298, 4
      %v5301 = vrot.slane %v4488, 5
      %v5302 = vsel %vm2144, %v5300, %v5301
      %v5303 = vrot.slane %v5203, 5
      %v5304 = vrot.slane %v5303, 4
      %v5305 = vrot.slane %v4490, 5
      %v5306 = vsel %vm2144, %v5304, %v5305
      %v5307 = vrot.slane %v5305, 4
      %v5308 = vrot.slane %v4491, 5
      %v5309 = vsel %vm2144, %v5307, %v5308
      %v5310 = vrot.slane %v5204, 5
      %v5311 = vrot.slane %v5310, 4
      %v5312 = vrot.slane %v4493, 5
      %v5313 = vsel %vm2144, %v5311, %v5312
      %v5314 = vrot.slane %v5312, 4
      %v5315 = vrot.slane %v4494, 5
      %v5316 = vsel %vm2144, %v5314, %v5315
      %v5317 = vrot.slane %v5205, 5
      %v5318 = vrot.slane %v5317, 4
      %v5319 = vrot.slane %v4496, 5
      %v5320 = vsel %vm2144, %v5318, %v5319
      %v5321 = vrot.slane %v5319, 4
      %v5322 = vrot.slane %v4497, 5
      %v5323 = vsel %vm2144, %v5321, %v5322
      %v5324 = vrot.slane %v5206, 5
      %v5325 = vrot.slane %v5324, 4
      %v5326 = vrot.slane %v4499, 5
      %v5327 = vsel %vm2144, %v5325, %v5326
      %v5328 = vrot.slane %v5326, 4
      %v5329 = vrot.slane %v4500, 5
      %v5330 = vsel %vm2144, %v5328, %v5329
      %v5331 = vrot.slane %v5207, 5
      %v5332 = vrot.slane %v5331, 4
      %v5333 = vrot.slane %v4502, 5
      %v5334 = vsel %vm2144, %v5332, %v5333
      %v5335 = vrot.slane %v5333, 4
      %v5336 = vrot.slane %v4503, 5
      %v5337 = vsel %vm2144, %v5335, %v5336
      %v5338 = vrot.slane %v5208, 5
      %v5339 = vrot.slane %v5338, 4
      %v5340 = vrot.slane %v4505, 5
      %v5341 = vsel %vm2144, %v5339, %v5340
      %v5342 = vrot.slane %v5340, 4
      %v5343 = vrot.slane %v4506, 5
      %v5344 = vsel %vm2144, %v5342, %v5343
      %v5345 = vrot.slane %v5209, 5
      %v5346 = vrot.slane %v5345, 4
      %v5347 = vrot.slane %v4508, 5
      %v5348 = vsel %vm2144, %v5346, %v5347
      %v5349 = vrot.slane %v5347, 4
      %v5350 = vrot.slane %v4509, 5
      %v5351 = vsel %vm2144, %v5349, %v5350
      %v5352 = vrot.slane %v5210, 5
      %v5353 = vrot.slane %v5352, 4
      %v5354 = vrot.slane %v4511, 5
      %v5355 = vsel %vm2144, %v5353, %v5354
      %v5356 = vrot.slane %v5354, 4
      %v5357 = vrot.slane %v4512, 5
      %v5358 = vsel %vm2144, %v5356, %v5357
      %v5359 = vrot.slane %v5211, 5
      %v5360 = vrot.slane %v5359, 4
      %v5361 = vrot.slane %v4514, 5
      %v5362 = vsel %vm2144, %v5360, %v5361
      %v5363 = vrot.slane %v5361, 4
      %v5364 = vrot.slane %v4515, 5
      %v5365 = vsel %vm2144, %v5363, %v5364
      %v5366 = vrot.slane %v5212, 5
      %v5367 = vrot.slane %v5366, 4
      %v5368 = vrot.slane %v4517, 5
      %v5369 = vsel %vm2144, %v5367, %v5368
      %v5370 = vrot.slane %v5368, 4
      %v5371 = vrot.slane %v4518, 5
      %v5372 = vsel %vm2144, %v5370, %v5371
      %s5373 = scalar_lea.vmem %s3, 32
      %v5374 = vld [vmem:[%s5373] sm:$0xf]
      %v5375 = vunpack.c.l.b16 %v5264
      %v5376 = vunpack.c.l.b16 %v5267
      %v5377 = vunpack.c.l.b16 %v5271
      %v5378 = vunpack.c.l.b16 %v5274
      %v5379 = vunpack.c.l.b16 %v5278
      %v5380 = vunpack.c.l.b16 %v5281
      %v5381 = vunpack.c.l.b16 %v5285
      %v5382 = vunpack.c.l.b16 %v5288
      %v5383 = vunpack.c.l.b16 %v5292
      %v5384 = vunpack.c.l.b16 %v5295
      %v5385 = vunpack.c.l.b16 %v5299
      %v5386 = vunpack.c.l.b16 %v5302
      %v5387 = vunpack.c.l.b16 %v5306
      %v5388 = vunpack.c.l.b16 %v5309
      %v5389 = vunpack.c.l.b16 %v5313
      %v5390 = vunpack.c.l.b16 %v5316
      %v5391 = vunpack.c.l.b16 %v5320
      %v5392 = vunpack.c.l.b16 %v5323
      %v5393 = vunpack.c.l.b16 %v5327
      %v5394 = vunpack.c.l.b16 %v5330
      %v5395 = vunpack.c.l.b16 %v5334
      %v5396 = vunpack.c.l.b16 %v5337
      %v5397 = vunpack.c.l.b16 %v5341
      %v5398 = vunpack.c.l.b16 %v5344
      %v5399 = vunpack.c.l.b16 %v5348
      %v5400 = vunpack.c.l.b16 %v5351
      %v5401 = vunpack.c.l.b16 %v5355
      %v5402 = vunpack.c.l.b16 %v5358
      %v5403 = vunpack.c.l.b16 %v5362
      %v5404 = vunpack.c.l.b16 %v5365
      %v5405 = vunpack.c.l.b16 %v5369
      %v5406 = vunpack.c.l.b16 %v5372
      %v5407 = vpack.c.b16 %v5376, %v5375
      %v5408 = vpack.c.b16 %v5378, %v5377
      %v5409 = vpack.c.b16 %v5380, %v5379
      %v5410 = vpack.c.b16 %v5382, %v5381
      %v5411 = vpack.c.b16 %v5384, %v5383
      %v5412 = vpack.c.b16 %v5386, %v5385
      %v5413 = vpack.c.b16 %v5388, %v5387
      %v5414 = vpack.c.b16 %v5390, %v5389
      %v5415 = vpack.c.b16 %v5392, %v5391
      %v5416 = vpack.c.b16 %v5394, %v5393
      %v5417 = vpack.c.b16 %v5396, %v5395
      %v5418 = vpack.c.b16 %v5398, %v5397
      %v5419 = vpack.c.b16 %v5400, %v5399
      %v5420 = vpack.c.b16 %v5402, %v5401
      %v5421 = vpack.c.b16 %v5404, %v5403
      %v5422 = vpack.c.b16 %v5406, %v5405
      %v5424 = vsel %vm1588, %v5407, 0
      %v5427 = vsel %vm1588, %v5408, 0
      %v5430 = vsel %vm1588, %v5409, 0
      %v5433 = vsel %vm1588, %v5410, 0
      %v5436 = vsel %vm1588, %v5411, 0
      %v5439 = vsel %vm1588, %v5412, 0
      %v5442 = vsel %vm1588, %v5413, 0
      %v5445 = vsel %vm1588, %v5414, 0
      %v5448 = vsel %vm1588, %v5415, 0
      %v5451 = vsel %vm1588, %v5416, 0
      %v5454 = vsel %vm1588, %v5417, 0
      %v5457 = vsel %vm1588, %v5418, 0
      %v5460 = vsel %vm1588, %v5419, 0
      %v5463 = vsel %vm1588, %v5420, 0
      %v5466 = vsel %vm1588, %v5421, 0
      %v5469 = vsel %vm1588, %v5422, 0
      %v5472 = vsel %vm1637, %v5374, 0
      %5474 = vmatprep.subr.bf16.mxu0 0
      %5475 = vmatpush1.bf16.msra.mxu0 %v5472
      %5476 = vmatprep.subr.bf16.mxu0 0
      %5477 = vmatpush1.bf16.msra.mxu0 0
      %5478 = vmatprep.subr.bf16.mxu0 0
      %5479 = vmatpush1.bf16.msra.mxu0 0
      %5480 = vmatprep.subr.bf16.mxu0 0
      %5481 = vmatpush1.bf16.msra.mxu0 0
      %5482 = vmatprep.subr.bf16.mxu0 0
      %5483 = vmatpush1.bf16.msra.mxu0 0
      %5484 = vmatprep.subr.bf16.mxu0 0
      %5485 = vmatpush1.bf16.msra.mxu0 0
      %5486 = vmatprep.subr.bf16.mxu0 0
      %5487 = vmatpush1.bf16.msra.mxu0 0
      %5488 = vmatprep.subr.bf16.mxu0 0
      %5489 = vmatpush1.bf16.msra.mxu0 0
      %5490 = vmatprep.subr.bf16.mxu0 0
      %5491 = vmatpush1.bf16.msra.mxu0 0
      %5492 = vmatprep.subr.bf16.mxu0 0
      %5493 = vmatpush1.bf16.msra.mxu0 0
      %5494 = vmatprep.subr.bf16.mxu0 0
      %5495 = vmatpush1.bf16.msra.mxu0 0
      %5496 = vmatprep.subr.bf16.mxu0 0
      %5497 = vmatpush1.bf16.msra.mxu0 0
      %5498 = vmatprep.subr.bf16.mxu0 0
      %5499 = vmatpush1.bf16.msra.mxu0 0
      %5500 = vmatprep.subr.bf16.mxu0 0
      %5501 = vmatpush1.bf16.msra.mxu0 0
      %5502 = vmatprep.subr.bf16.mxu0 0
      %5503 = vmatpush1.bf16.msra.mxu0 0
      %5504 = vmatprep.subr.bf16.mxu0 0
      %5505 = vmatpush1.bf16.msra.mxu0 0
      %5506 = vmatprep.mubr.bf16.mxu0 0
      %5507 = vmatmul.mubr.bf16.gmra.mrb[0].mxu0 %v5424
      %v5508 = vpop.f32.mrb[0].mxu0
      %v5509 = vadd.f32 0.0, %v5508
      %v5510 = vpop.f32.mrb[0].mxu0
      %v5511 = vpop.f32.mrb[0].mxu0
      %v5512 = vadd.f32 0.0, %v5511
      %v5513 = vpop.f32.mrb[0].mxu0
      %5514 = vmatprep.mubr.bf16.mxu0 0
      %5515 = vmatmul.mubr.bf16.gmra.mrb[0].mxu0 %v5427
      %v5516 = vpop.f32.mrb[0].mxu0
      %v5517 = vadd.f32 0.0, %v5516
      %v5518 = vpop.f32.mrb[0].mxu0
      %v5519 = vpop.f32.mrb[0].mxu0
      %v5520 = vadd.f32 0.0, %v5519
      %v5521 = vpop.f32.mrb[0].mxu0
      %5522 = vmatprep.mubr.bf16.mxu0 0
      %5523 = vmatmul.mubr.bf16.gmra.mrb[0].mxu0 %v5430
      %v5524 = vpop.f32.mrb[0].mxu0
      %v5525 = vadd.f32 0.0, %v5524
      %v5526 = vpop.f32.mrb[0].mxu0
      %v5527 = vpop.f32.mrb[0].mxu0
      %v5528 = vadd.f32 0.0, %v5527
      %v5529 = vpop.f32.mrb[0].mxu0
      %5530 = vmatprep.mubr.bf16.mxu0 0
      %5531 = vmatmul.mubr.bf16.gmra.mrb[0].mxu0 %v5433
      %v5532 = vpop.f32.mrb[0].mxu0
      %v5533 = vadd.f32 0.0, %v5532
      %v5534 = vpop.f32.mrb[0].mxu0
      %v5535 = vpop.f32.mrb[0].mxu0
      %v5536 = vadd.f32 0.0, %v5535
      %v5537 = vpop.f32.mrb[0].mxu0
      %5538 = vmatprep.mubr.bf16.mxu0 0
      %5539 = vmatmul.mubr.bf16.gmra.mrb[0].mxu0 %v5436
      %v5540 = vpop.f32.mrb[0].mxu0
      %v5541 = vadd.f32 0.0, %v5540
      %v5542 = vpop.f32.mrb[0].mxu0
      %v5543 = vpop.f32.mrb[0].mxu0
      %v5544 = vadd.f32 0.0, %v5543
      %v5545 = vpop.f32.mrb[0].mxu0
      %5546 = vmatprep.mubr.bf16.mxu0 0
      %5547 = vmatmul.mubr.bf16.gmra.mrb[0].mxu0 %v5439
      %v5548 = vpop.f32.mrb[0].mxu0
      %v5549 = vadd.f32 0.0, %v5548
      %v5550 = vpop.f32.mrb[0].mxu0
      %v5551 = vpop.f32.mrb[0].mxu0
      %v5552 = vadd.f32 0.0, %v5551
      %v5553 = vpop.f32.mrb[0].mxu0
      %5554 = vmatprep.mubr.bf16.mxu0 0
      %5555 = vmatmul.mubr.bf16.gmra.mrb[0].mxu0 %v5442
      %v5556 = vpop.f32.mrb[0].mxu0
      %v5557 = vadd.f32 0.0, %v5556
      %v5558 = vpop.f32.mrb[0].mxu0
      %v5559 = vpop.f32.mrb[0].mxu0
      %v5560 = vadd.f32 0.0, %v5559
      %v5561 = vpop.f32.mrb[0].mxu0
      %5562 = vmatprep.mubr.bf16.mxu0 0
      %5563 = vmatmul.mubr.bf16.gmra.mrb[0].mxu0 %v5445
      %v5564 = vpop.f32.mrb[0].mxu0
      %v5565 = vadd.f32 0.0, %v5564
      %v5566 = vpop.f32.mrb[0].mxu0
      %v5567 = vpop.f32.mrb[0].mxu0
      %v5568 = vadd.f32 0.0, %v5567
      %v5569 = vpop.f32.mrb[0].mxu0
      %5570 = vmatprep.mubr.bf16.mxu0 0
      %5571 = vmatmul.mubr.bf16.gmra.mrb[0].mxu0 %v5448
      %v5572 = vpop.f32.mrb[0].mxu0
      %v5573 = vadd.f32 0.0, %v5572
      %v5574 = vpop.f32.mrb[0].mxu0
      %v5575 = vpop.f32.mrb[0].mxu0
      %v5576 = vadd.f32 0.0, %v5575
      %v5577 = vpop.f32.mrb[0].mxu0
      %5578 = vmatprep.mubr.bf16.mxu0 0
      %5579 = vmatmul.mubr.bf16.gmra.mrb[0].mxu0 %v5451
      %v5580 = vpop.f32.mrb[0].mxu0
      %v5581 = vadd.f32 0.0, %v5580
      %v5582 = vpop.f32.mrb[0].mxu0
      %v5583 = vpop.f32.mrb[0].mxu0
      %v5584 = vadd.f32 0.0, %v5583
      %v5585 = vpop.f32.mrb[0].mxu0
      %5586 = vmatprep.mubr.bf16.mxu0 0
      %5587 = vmatmul.mubr.bf16.gmra.mrb[0].mxu0 %v5454
      %v5588 = vpop.f32.mrb[0].mxu0
      %v5589 = vadd.f32 0.0, %v5588
      %v5590 = vpop.f32.mrb[0].mxu0
      %v5591 = vpop.f32.mrb[0].mxu0
      %v5592 = vadd.f32 0.0, %v5591
      %v5593 = vpop.f32.mrb[0].mxu0
      %5594 = vmatprep.mubr.bf16.mxu0 0
      %5595 = vmatmul.mubr.bf16.gmra.mrb[0].mxu0 %v5457
      %v5596 = vpop.f32.mrb[0].mxu0
      %v5597 = vadd.f32 0.0, %v5596
      %v5598 = vpop.f32.mrb[0].mxu0
      %v5599 = vpop.f32.mrb[0].mxu0
      %v5600 = vadd.f32 0.0, %v5599
      %v5601 = vpop.f32.mrb[0].mxu0
      %5602 = vmatprep.mubr.bf16.mxu0 0
      %5603 = vmatmul.mubr.bf16.gmra.mrb[0].mxu0 %v5460
      %v5604 = vpop.f32.mrb[0].mxu0
      %v5605 = vadd.f32 0.0, %v5604
      %v5606 = vpop.f32.mrb[0].mxu0
      %v5607 = vpop.f32.mrb[0].mxu0
      %v5608 = vadd.f32 0.0, %v5607
      %v5609 = vpop.f32.mrb[0].mxu0
      %5610 = vmatprep.mubr.bf16.mxu0 0
      %5611 = vmatmul.mubr.bf16.gmra.mrb[0].mxu0 %v5463
      %v5612 = vpop.f32.mrb[0].mxu0
      %v5613 = vadd.f32 0.0, %v5612
      %v5614 = vpop.f32.mrb[0].mxu0
      %v5615 = vpop.f32.mrb[0].mxu0
      %v5616 = vadd.f32 0.0, %v5615
      %v5617 = vpop.f32.mrb[0].mxu0
      %5618 = vmatprep.mubr.bf16.mxu0 0
      %5619 = vmatmul.mubr.bf16.gmra.mrb[0].mxu0 %v5466
      %v5620 = vpop.f32.mrb[0].mxu0
      %v5621 = vadd.f32 0.0, %v5620
      %v5622 = vpop.f32.mrb[0].mxu0
      %v5623 = vpop.f32.mrb[0].mxu0
      %v5624 = vadd.f32 0.0, %v5623
      %v5625 = vpop.f32.mrb[0].mxu0
      %5626 = vmatprep.mubr.bf16.mxu0 0
      %5627 = vmatmul.mubr.bf16.gmra.mrb[0].mxu0 %v5469
      %v5628 = vpop.f32.mrb[0].mxu0
      %v5629 = vadd.f32 0.0, %v5628
      %v5630 = vpop.f32.mrb[0].mxu0
      %v5631 = vpop.f32.mrb[0].mxu0
      %v5632 = vadd.f32 0.0, %v5631
      %v5633 = vpop.f32.mrb[0].mxu0
      %5634 = vdwg.mxu0
      %v5635 = vadd.f32 %v5165, %v5509
      %v5636 = vadd.f32 %v5166, %v5512
      %v5637 = vadd.f32 %v5167, %v5517
      %v5638 = vadd.f32 %v5168, %v5520
      %v5639 = vadd.f32 %v5169, %v5525
      %v5640 = vadd.f32 %v5170, %v5528
      %v5641 = vadd.f32 %v5171, %v5533
      %v5642 = vadd.f32 %v5172, %v5536
      %v5643 = vadd.f32 %v5173, %v5541
      %v5644 = vadd.f32 %v5174, %v5544
      %v5645 = vadd.f32 %v5175, %v5549
      %v5646 = vadd.f32 %v5176, %v5552
      %v5647 = vadd.f32 %v5177, %v5557
      %v5648 = vadd.f32 %v5178, %v5560
      %v5649 = vadd.f32 %v5179, %v5565
      %v5650 = vadd.f32 %v5180, %v5568
      %v5651 = vadd.f32 %v5181, %v5573
      %v5652 = vadd.f32 %v5182, %v5576
      %v5653 = vadd.f32 %v5183, %v5581
      %v5654 = vadd.f32 %v5184, %v5584
      %v5655 = vadd.f32 %v5185, %v5589
      %v5656 = vadd.f32 %v5186, %v5592
      %v5657 = vadd.f32 %v5187, %v5597
      %v5658 = vadd.f32 %v5188, %v5600
      %v5659 = vadd.f32 %v5189, %v5605
      %v5660 = vadd.f32 %v5190, %v5608
      %v5661 = vadd.f32 %v5191, %v5613
      %v5662 = vadd.f32 %v5192, %v5616
      %v5663 = vadd.f32 %v5193, %v5621
      %v5664 = vadd.f32 %v5194, %v5624
      %v5665 = vadd.f32 %v5195, %v5629
      %v5666 = vadd.f32 %v5196, %v5632
      %v5667 = vpack.c.bf16 %v5636, %v5635
      %v5668 = vpack.c.bf16 %v5638, %v5637
      %v5669 = vpack.c.bf16 %v5640, %v5639
      %v5670 = vpack.c.bf16 %v5642, %v5641
      %v5671 = vpack.c.bf16 %v5644, %v5643
      %v5672 = vpack.c.bf16 %v5646, %v5645
      %v5673 = vpack.c.bf16 %v5648, %v5647
      %v5674 = vpack.c.bf16 %v5650, %v5649
      %v5675 = vpack.c.bf16 %v5652, %v5651
      %v5676 = vpack.c.bf16 %v5654, %v5653
      %v5677 = vpack.c.bf16 %v5656, %v5655
      %v5678 = vpack.c.bf16 %v5658, %v5657
      %v5679 = vpack.c.bf16 %v5660, %v5659
      %v5680 = vpack.c.bf16 %v5662, %v5661
      %v5681 = vpack.c.bf16 %v5664, %v5663
      %v5682 = vpack.c.bf16 %v5666, %v5665
      %v5699 = vunpack.c.l.b16 %v5667
      %v5700 = vunpack.c.h.b16 %v5667
      %v5701 = vunpack.c.l.b16 %v5668
      %v5702 = vunpack.c.h.b16 %v5668
      %v5703 = vunpack.c.l.b16 %v5669
      %v5704 = vunpack.c.h.b16 %v5669
      %v5705 = vunpack.c.l.b16 %v5670
      %v5706 = vunpack.c.h.b16 %v5670
      %v5707 = vunpack.c.l.b16 %v5671
      %v5708 = vunpack.c.h.b16 %v5671
      %v5709 = vunpack.c.l.b16 %v5672
      %v5710 = vunpack.c.h.b16 %v5672
      %v5711 = vunpack.c.l.b16 %v5673
      %v5712 = vunpack.c.h.b16 %v5673
      %v5713 = vunpack.c.l.b16 %v5674
      %v5714 = vunpack.c.h.b16 %v5674
      %v5715 = vunpack.c.l.b16 %v5675
      %v5716 = vunpack.c.h.b16 %v5675
      %v5717 = vunpack.c.l.b16 %v5676
      %v5718 = vunpack.c.h.b16 %v5676
      %v5719 = vunpack.c.l.b16 %v5677
      %v5720 = vunpack.c.h.b16 %v5677
      %v5721 = vunpack.c.l.b16 %v5678
      %v5722 = vunpack.c.h.b16 %v5678
      %v5723 = vunpack.c.l.b16 %v5679
      %v5724 = vunpack.c.h.b16 %v5679
      %v5725 = vunpack.c.l.b16 %v5680
      %v5726 = vunpack.c.h.b16 %v5680
      %v5727 = vunpack.c.l.b16 %v5681
      %v5728 = vunpack.c.h.b16 %v5681
      %v5729 = vunpack.c.l.b16 %v5682
      %v5730 = vunpack.c.h.b16 %v5682
      %v5731 = vpack.c.b16 %v5699, %v5699
      %v5732 = vpack.c.b16 %v5700, %v5700
      %v5733 = vpack.c.b16 %v5701, %v5701
      %v5734 = vpack.c.b16 %v5702, %v5702
      %v5735 = vpack.c.b16 %v5703, %v5703
      %v5736 = vpack.c.b16 %v5704, %v5704
      %v5737 = vpack.c.b16 %v5705, %v5705
      %v5738 = vpack.c.b16 %v5706, %v5706
      %v5739 = vpack.c.b16 %v5707, %v5707
      %v5740 = vpack.c.b16 %v5708, %v5708
      %v5741 = vpack.c.b16 %v5709, %v5709
      %v5742 = vpack.c.b16 %v5710, %v5710
      %v5743 = vpack.c.b16 %v5711, %v5711
      %v5744 = vpack.c.b16 %v5712, %v5712
      %v5745 = vpack.c.b16 %v5713, %v5713
      %v5746 = vpack.c.b16 %v5714, %v5714
      %v5747 = vpack.c.b16 %v5715, %v5715
      %v5748 = vpack.c.b16 %v5716, %v5716
      %v5749 = vpack.c.b16 %v5717, %v5717
      %v5750 = vpack.c.b16 %v5718, %v5718
      %v5751 = vpack.c.b16 %v5719, %v5719
      %v5752 = vpack.c.b16 %v5720, %v5720
      %v5753 = vpack.c.b16 %v5721, %v5721
      %v5754 = vpack.c.b16 %v5722, %v5722
      %v5755 = vpack.c.b16 %v5723, %v5723
      %v5756 = vpack.c.b16 %v5724, %v5724
      %v5757 = vpack.c.b16 %v5725, %v5725
      %v5758 = vpack.c.b16 %v5726, %v5726
      %v5759 = vpack.c.b16 %v5727, %v5727
      %v5760 = vpack.c.b16 %v5728, %v5728
      %v5761 = vpack.c.b16 %v5729, %v5729
      %v5762 = vpack.c.b16 %v5730, %v5730
      %s5795 = smul.u32 0, 2
      %s5796 = smul.addr %s5795, 4
      %s5797 = scalar_lea.vmem %s262, %s5796
      %5798 = vst.msk [vmem:[%s5797] sm:$0xf] %vm444, %v5731
      %5799 = vst.msk [vmem:[%s5797 + $0x4] sm:$0xf] %vm444, %v5732
      %5800 = vst.msk [vmem:[%s5797 + $0x8] sm:$0xf] %vm444, %v5733
      %5801 = vst.msk [vmem:[%s5797 + $0xc] sm:$0xf] %vm444, %v5734
      %5802 = vst.msk [vmem:[%s5797 + $0x10] sm:$0xf] %vm444, %v5735
      %5803 = vst.msk [vmem:[%s5797 + $0x14] sm:$0xf] %vm444, %v5736
      %5804 = vst.msk [vmem:[%s5797 + $0x18] sm:$0xf] %vm444, %v5737
      %5805 = vst.msk [vmem:[%s5797 + $0x1c] sm:$0xf] %vm444, %v5738
      %5806 = vst.msk [vmem:[%s5797 + $0x20] sm:$0xf] %vm444, %v5739
      %5807 = vst.msk [vmem:[%s5797 + $0x24] sm:$0xf] %vm444, %v5740
      %5808 = vst.msk [vmem:[%s5797 + $0x28] sm:$0xf] %vm444, %v5741
      %5809 = vst.msk [vmem:[%s5797 + $0x2c] sm:$0xf] %vm444, %v5742
      %5810 = vst.msk [vmem:[%s5797 + $0x30] sm:$0xf] %vm444, %v5743
      %5811 = vst.msk [vmem:[%s5797 + $0x34] sm:$0xf] %vm444, %v5744
      %5812 = vst.msk [vmem:[%s5797 + $0x38] sm:$0xf] %vm444, %v5745
      %5813 = vst.msk [vmem:[%s5797 + $0x3c] sm:$0xf] %vm444, %v5746
      %5814 = vst.msk [vmem:[%s5797 + $0x40] sm:$0xf] %vm444, %v5747
      %5815 = vst.msk [vmem:[%s5797 + $0x44] sm:$0xf] %vm444, %v5748
      %5816 = vst.msk [vmem:[%s5797 + $0x48] sm:$0xf] %vm444, %v5749
      %5817 = vst.msk [vmem:[%s5797 + $0x4c] sm:$0xf] %vm444, %v5750
      %5818 = vst.msk [vmem:[%s5797 + $0x50] sm:$0xf] %vm444, %v5751
      %5819 = vst.msk [vmem:[%s5797 + $0x54] sm:$0xf] %vm444, %v5752
      %5820 = vst.msk [vmem:[%s5797 + $0x58] sm:$0xf] %vm444, %v5753
      %5821 = vst.msk [vmem:[%s5797 + $0x5c] sm:$0xf] %vm444, %v5754
      %5822 = vst.msk [vmem:[%s5797 + $0x60] sm:$0xf] %vm444, %v5755
      %5823 = vst.msk [vmem:[%s5797 + $0x64] sm:$0xf] %vm444, %v5756
      %5824 = vst.msk [vmem:[%s5797 + $0x68] sm:$0xf] %vm444, %v5757
      %5825 = vst.msk [vmem:[%s5797 + $0x6c] sm:$0xf] %vm444, %v5758
      %5826 = vst.msk [vmem:[%s5797 + $0x70] sm:$0xf] %vm444, %v5759
      %5827 = vst.msk [vmem:[%s5797 + $0x74] sm:$0xf] %vm444, %v5760
      %5828 = vst.msk [vmem:[%s5797 + $0x78] sm:$0xf] %vm444, %v5761
      %5829 = vst.msk [vmem:[%s5797 + $0x7c] sm:$0xf] %vm444, %v5762
      %v5830 = vsel %vm1588, %v5635, 0.0
      %v5831 = vsel %vm1588, %v5636, 0.0
      %v5832 = vadd.f32 %v5830, %v5831
      %v5833 = vsel %vm1588, %v5637, 0.0
      %v5834 = vadd.f32 %v5832, %v5833
      %v5835 = vsel %vm1588, %v5638, 0.0
      %v5836 = vadd.f32 %v5834, %v5835
      %v5837 = vsel %vm1588, %v5639, 0.0
      %v5838 = vadd.f32 %v5836, %v5837
      %v5839 = vsel %vm1588, %v5640, 0.0
      %v5840 = vadd.f32 %v5838, %v5839
      %v5841 = vsel %vm1588, %v5641, 0.0
      %v5842 = vadd.f32 %v5840, %v5841
      %v5843 = vsel %vm1588, %v5642, 0.0
      %v5844 = vadd.f32 %v5842, %v5843
      %v5845 = vsel %vm1588, %v5643, 0.0
      %v5846 = vadd.f32 %v5844, %v5845
      %v5847 = vsel %vm1588, %v5644, 0.0
      %v5848 = vadd.f32 %v5846, %v5847
      %v5849 = vsel %vm1588, %v5645, 0.0
      %v5850 = vadd.f32 %v5848, %v5849
      %v5851 = vsel %vm1588, %v5646, 0.0
      %v5852 = vadd.f32 %v5850, %v5851
      %v5853 = vsel %vm1588, %v5647, 0.0
      %v5854 = vadd.f32 %v5852, %v5853
      %v5855 = vsel %vm1588, %v5648, 0.0
      %v5856 = vadd.f32 %v5854, %v5855
      %v5857 = vsel %vm1588, %v5649, 0.0
      %v5858 = vadd.f32 %v5856, %v5857
      %v5859 = vsel %vm1588, %v5650, 0.0
      %v5860 = vadd.f32 %v5858, %v5859
      %v5861 = vsel %vm1588, %v5651, 0.0
      %v5862 = vadd.f32 %v5860, %v5861
      %v5863 = vsel %vm1588, %v5652, 0.0
      %v5864 = vadd.f32 %v5862, %v5863
      %v5865 = vsel %vm1588, %v5653, 0.0
      %v5866 = vadd.f32 %v5864, %v5865
      %v5867 = vsel %vm1588, %v5654, 0.0
      %v5868 = vadd.f32 %v5866, %v5867
      %v5869 = vsel %vm1588, %v5655, 0.0
      %v5870 = vadd.f32 %v5868, %v5869
      %v5871 = vsel %vm1588, %v5656, 0.0
      %v5872 = vadd.f32 %v5870, %v5871
      %v5873 = vsel %vm1588, %v5657, 0.0
      %v5874 = vadd.f32 %v5872, %v5873
      %v5875 = vsel %vm1588, %v5658, 0.0
      %v5876 = vadd.f32 %v5874, %v5875
      %v5877 = vsel %vm1588, %v5659, 0.0
      %v5878 = vadd.f32 %v5876, %v5877
      %v5879 = vsel %vm1588, %v5660, 0.0
      %v5880 = vadd.f32 %v5878, %v5879
      %v5881 = vsel %vm1588, %v5661, 0.0
      %v5882 = vadd.f32 %v5880, %v5881
      %v5883 = vsel %vm1588, %v5662, 0.0
      %v5884 = vadd.f32 %v5882, %v5883
      %v5885 = vsel %vm1588, %v5663, 0.0
      %v5886 = vadd.f32 %v5884, %v5885
      %v5887 = vsel %vm1588, %v5664, 0.0
      %v5888 = vadd.f32 %v5886, %v5887
      %v5889 = vsel %vm1588, %v5665, 0.0
      %v5890 = vadd.f32 %v5888, %v5889
      %v5891 = vsel %vm1588, %v5666, 0.0
      %v5892 = vadd.f32 %v5890, %v5891
      %v5893 = vrot.slane %v5892, 4
      %v5894 = vadd.f32 %v5892, %v5893
      %v5895 = vrot.slane %v5894, 2
      %v5896 = vadd.f32 %v5894, %v5895
      %v5897 = vrot.slane %v5896, 1
      %v5898 = vadd.f32 %v5896, %v5897
      %v5899 = vadd.f32 %v5898, 0.0
      %v5900 = vmul.f32 %v5635, %v5635
      %v5901 = vmul.f32 %v5636, %v5636
      %v5902 = vmul.f32 %v5637, %v5637
      %v5903 = vmul.f32 %v5638, %v5638
      %v5904 = vmul.f32 %v5639, %v5639
      %v5905 = vmul.f32 %v5640, %v5640
      %v5906 = vmul.f32 %v5641, %v5641
      %v5907 = vmul.f32 %v5642, %v5642
      %v5908 = vmul.f32 %v5643, %v5643
      %v5909 = vmul.f32 %v5644, %v5644
      %v5910 = vmul.f32 %v5645, %v5645
      %v5911 = vmul.f32 %v5646, %v5646
      %v5912 = vmul.f32 %v5647, %v5647
      %v5913 = vmul.f32 %v5648, %v5648
      %v5914 = vmul.f32 %v5649, %v5649
      %v5915 = vmul.f32 %v5650, %v5650
      %v5916 = vmul.f32 %v5651, %v5651
      %v5917 = vmul.f32 %v5652, %v5652
      %v5918 = vmul.f32 %v5653, %v5653
      %v5919 = vmul.f32 %v5654, %v5654
      %v5920 = vmul.f32 %v5655, %v5655
      %v5921 = vmul.f32 %v5656, %v5656
      %v5922 = vmul.f32 %v5657, %v5657
      %v5923 = vmul.f32 %v5658, %v5658
      %v5924 = vmul.f32 %v5659, %v5659
      %v5925 = vmul.f32 %v5660, %v5660
      %v5926 = vmul.f32 %v5661, %v5661
      %v5927 = vmul.f32 %v5662, %v5662
      %v5928 = vmul.f32 %v5663, %v5663
      %v5929 = vmul.f32 %v5664, %v5664
      %v5930 = vmul.f32 %v5665, %v5665
      %v5931 = vmul.f32 %v5666, %v5666
      %v5932 = vsel %vm1588, %v5900, 0.0
      %v5933 = vsel %vm1588, %v5901, 0.0
      %v5934 = vadd.f32 %v5932, %v5933
      %v5935 = vsel %vm1588, %v5902, 0.0
      %v5936 = vadd.f32 %v5934, %v5935
      %v5937 = vsel %vm1588, %v5903, 0.0
      %v5938 = vadd.f32 %v5936, %v5937
      %v5939 = vsel %vm1588, %v5904, 0.0
      %v5940 = vadd.f32 %v5938, %v5939
      %v5941 = vsel %vm1588, %v5905, 0.0
      %v5942 = vadd.f32 %v5940, %v5941
      %v5943 = vsel %vm1588, %v5906, 0.0
      %v5944 = vadd.f32 %v5942, %v5943
      %v5945 = vsel %vm1588, %v5907, 0.0
      %v5946 = vadd.f32 %v5944, %v5945
      %v5947 = vsel %vm1588, %v5908, 0.0
      %v5948 = vadd.f32 %v5946, %v5947
      %v5949 = vsel %vm1588, %v5909, 0.0
      %v5950 = vadd.f32 %v5948, %v5949
      %v5951 = vsel %vm1588, %v5910, 0.0
      %v5952 = vadd.f32 %v5950, %v5951
      %v5953 = vsel %vm1588, %v5911, 0.0
      %v5954 = vadd.f32 %v5952, %v5953
      %v5955 = vsel %vm1588, %v5912, 0.0
      %v5956 = vadd.f32 %v5954, %v5955
      %v5957 = vsel %vm1588, %v5913, 0.0
      %v5958 = vadd.f32 %v5956, %v5957
      %v5959 = vsel %vm1588, %v5914, 0.0
      %v5960 = vadd.f32 %v5958, %v5959
      %v5961 = vsel %vm1588, %v5915, 0.0
      %v5962 = vadd.f32 %v5960, %v5961
      %v5963 = vsel %vm1588, %v5916, 0.0
      %v5964 = vadd.f32 %v5962, %v5963
      %v5965 = vsel %vm1588, %v5917, 0.0
      %v5966 = vadd.f32 %v5964, %v5965
      %v5967 = vsel %vm1588, %v5918, 0.0
      %v5968 = vadd.f32 %v5966, %v5967
      %v5969 = vsel %vm1588, %v5919, 0.0
      %v5970 = vadd.f32 %v5968, %v5969
      %v5971 = vsel %vm1588, %v5920, 0.0
      %v5972 = vadd.f32 %v5970, %v5971
      %v5973 = vsel %vm1588, %v5921, 0.0
      %v5974 = vadd.f32 %v5972, %v5973
      %v5975 = vsel %vm1588, %v5922, 0.0
      %v5976 = vadd.f32 %v5974, %v5975
      %v5977 = vsel %vm1588, %v5923, 0.0
      %v5978 = vadd.f32 %v5976, %v5977
      %v5979 = vsel %vm1588, %v5924, 0.0
      %v5980 = vadd.f32 %v5978, %v5979
      %v5981 = vsel %vm1588, %v5925, 0.0
      %v5982 = vadd.f32 %v5980, %v5981
      %v5983 = vsel %vm1588, %v5926, 0.0
      %v5984 = vadd.f32 %v5982, %v5983
      %v5985 = vsel %vm1588, %v5927, 0.0
      %v5986 = vadd.f32 %v5984, %v5985
      %v5987 = vsel %vm1588, %v5928, 0.0
      %v5988 = vadd.f32 %v5986, %v5987
      %v5989 = vsel %vm1588, %v5929, 0.0
      %v5990 = vadd.f32 %v5988, %v5989
      %v5991 = vsel %vm1588, %v5930, 0.0
      %v5992 = vadd.f32 %v5990, %v5991
      %v5993 = vsel %vm1588, %v5931, 0.0
      %v5994 = vadd.f32 %v5992, %v5993
      %v5995 = vrot.slane %v5994, 4
      %v5996 = vadd.f32 %v5994, %v5995
      %v5997 = vrot.slane %v5996, 2
      %v5998 = vadd.f32 %v5996, %v5997
      %v5999 = vrot.slane %v5998, 1
      %v6000 = vadd.f32 %v5998, %v5999
      %v6001 = vadd.f32 %v6000, 0.0
      %6002 = vst.msk [vmem:[%s265] sm:$0x1] %vm447, %v5899
      %6003 = vst.msk [vmem:[%s268] sm:$0x1] %vm447, %v6001
      %p6004 = scmp.lt.s32.totalorder %s18, 1
      %s6005 = scalar_select %p6004, %s18, 1
      %s6006 = smul.addr %s6005, 32
      %s6007 = smul.addr %s6006, 4
      %s6008 = scalar_lea.vmem %s4, %s6007
      %p6009 = scmp.lt.s32.totalorder %s18, 1
      %s6010 = scalar_select %p6009, %s18, 1
      %s6011 = scalar_lea.vmem %s5, %s6010
      %p6012 = scmp.lt.s32.totalorder %s18, 1
      %s6013 = scalar_select %p6012, %s18, 1
      %s6014 = scalar_lea.vmem %s6, %s6013
      // Predicated region
      $region37: #{bottleneck_pallas.5} parent=35 // pred_check
        %p6015 = pneg %p125
      $region38: #{bottleneck_pallas.5} parent=35 // pred_check_branch
        %6017 = sbr.rel (%p6015) target = $region40
      $region39: #{bottleneck_pallas.5} parent=35 // pred_region
        _
      $region40: #{bottleneck_pallas.5} parent=35 // pred_fallthru
        _
      // Predicated region
      $region41: #{bottleneck_pallas.5} parent=35 // pred_check
        %p6018 = pneg %p151
      $region42: #{bottleneck_pallas.5} parent=35 // pred_check_branch
        %6020 = sbr.rel (%p6018) target = $region44
      $region43: #{bottleneck_pallas.5} parent=35 // pred_region
        _
      $region44: #{bottleneck_pallas.5} parent=35 // pred_fallthru
        _
      // Predicated region
      $region45: #{bottleneck_pallas.5} parent=35 // pred_check
        %p6021 = pneg %p177
      $region46: #{bottleneck_pallas.5} parent=35 // pred_check_branch
        %6023 = sbr.rel (%p6021) target = $region48
      $region47: #{bottleneck_pallas.5} parent=35 // pred_region
        _
      $region48: #{bottleneck_pallas.5} parent=35 // pred_fallthru
        _
    $region36: #{bottleneck_pallas.5} parent=5 // pred_fallthru
      _
    %p6024 = scmp.le.s32.totalorder 2, %s13
    // Predicated region
    $region49: #{bottleneck_pallas.5} parent=5 // pred_check
      %p6025 = pneg %p6024
    $region50: #{bottleneck_pallas.5} parent=5 // pred_check_branch
      %6027 = sbr.rel (%p6025) target = $region52
    $region51: #{bottleneck_pallas.5} parent=5 // pred_region
      %s6028 = ssub.s32 %s13, 2
      // Predicated region
      $region53: #{bottleneck_pallas.5} parent=51 // pred_check
        %p6029 = pneg %p131
      $region54: #{bottleneck_pallas.5} parent=51 // pred_check_branch
        %6031 = sbr.rel (%p6029) target = $region56
      $region55: #{bottleneck_pallas.5} parent=51 // pred_region
        %p6032 = scmp.lt.s32.totalorder %s19, 1
        %s6033 = scalar_select %p6032, %s19, 1
        %s6034 = smul.addr %s6033, 32
        %s6035 = smul.addr %s6034, 4
        %s6036 = scalar_lea.vmem %s4, %s6035
      $region56: #{bottleneck_pallas.5} parent=51 // pred_fallthru
        _
      // Predicated region
      $region57: #{bottleneck_pallas.5} parent=51 // pred_check
        %p6037 = pneg %p157
      $region58: #{bottleneck_pallas.5} parent=51 // pred_check_branch
        %6039 = sbr.rel (%p6037) target = $region60
      $region59: #{bottleneck_pallas.5} parent=51 // pred_region
        %p6040 = scmp.lt.s32.totalorder %s19, 1
        %s6041 = scalar_select %p6040, %s19, 1
        %s6042 = scalar_lea.vmem %s5, %s6041
      $region60: #{bottleneck_pallas.5} parent=51 // pred_fallthru
        _
      // Predicated region
      $region61: #{bottleneck_pallas.5} parent=51 // pred_check
        %p6043 = pneg %p183
      $region62: #{bottleneck_pallas.5} parent=51 // pred_check_branch
        %6045 = sbr.rel (%p6043) target = $region64
      $region63: #{bottleneck_pallas.5} parent=51 // pred_region
        %p6046 = scmp.lt.s32.totalorder %s19, 1
        %s6047 = scalar_select %p6046, %s19, 1
        %s6048 = scalar_lea.vmem %s6, %s6047
      $region64: #{bottleneck_pallas.5} parent=51 // pred_fallthru
        _
    $region52: #{bottleneck_pallas.5} parent=5 // pred_fallthru
      _
  $region6: #{bottleneck_pallas.5} parent=0 // loop_footer
    %s17 = sadd.s32 1, %s13
  $region7: #{bottleneck_pallas.5} parent=0 // loop_footer_branch
    %12 = sbr.rel target = $region3
  $region8: #{bottleneck_pallas.5} parent=0 // loop_exit
    _

</llo_original>
